<compile_context>
chip_gen: v7x
topology: tpu7x:2x2x1
jax: 0.10.0
libtpu: 0.0.40
codegen_flags: <defaults>
</compile_context>

<pallas_src>
import numpy as np
import jax
import jax.numpy as jnp
from jax import lax
from jax.experimental import pallas as pl
from jax.experimental.pallas import tpu as pltpu


def _round_up(v, m):
    return (v + m - 1) // m * m


def _cdiv(a, b):
    return -(-a // b)


def _vmem_capacity_bytes():
    try:
        return int(pltpu.get_tpu_info().vmem_capacity_bytes)
    except Exception:
        return 64 << 20          # conservative default (v7x per-core VMEM)


def _choose_bn_tile(rows):
    """Row tile for the batch*node dim: multiple of 8, <=512, prefers >=2 tiles
    (feeds both v7x TensorCores via the 'parallel' axis) with <=12.5% padding."""
    rows8 = _round_up(rows, 8)
    if rows8 < 256:
        return rows8             # too few rows to split into >=128-row tiles
    best_key, best = None, rows8
    for cand in range(min(512, rows8), 127, -8):
        padded = _round_up(rows8, cand)
        waste = padded - rows8
        key = (1 if waste * 8 > rows8 else 0,     # cap row padding at ~12.5%
               0 if padded // cand >= 2 else 1,   # prefer >=2 parallel tiles
               waste, -cand)
        if best_key is None or key < best_key:
            best_key, best = key, cand
    return best


def make_lstm_kernel(n_layers, hidden_p, t_blk, seq_len, mask_time, unroll):
    L = n_layers
    Hp = hidden_p
    G = 4 * Hp

    def sigmoid(v):
        # One EUP op (tanh) + two cheap VALU ops; avoids exp + divide.
        return 0.5 * jnp.tanh(0.5 * v) + 0.5

    def kernel(*refs):
        x_ref = refs[0]
        w_ih0_ref, w_hh0_ref, b0_ref = refs[1:4]
        deep_refs = refs[4:4 + 2 * (L - 1)]            # (w_cat, b) per deep layer
        w_out_ref = refs[4 + 2 * (L - 1)]
        b_out_ref = refs[5 + 2 * (L - 1)]
        out_ref = refs[6 + 2 * (L - 1)]
        scratch = refs[7 + 2 * (L - 1):]
        h_refs, c_refs, gx_scr = scratch[:L], scratch[L:2 * L], scratch[2 * L]

        t = pl.program_id(1)                           # time-block (carry) axis
        bn = h_refs[0].shape[0]

        @pl.when(t == 0)
        def _():
            for l in range(L):
                h_refs[l][...] = jnp.zeros_like(h_refs[l])
                c_refs[l][...] = jnp.zeros_like(c_refs[l])

        # Hoist all weight loads / bias broadcasts out of the timestep loop.
        w_hh0 = w_hh0_ref[...]
        w_cat = [deep_refs[2 * i][...] for i in range(L - 1)]
        bias = [jnp.broadcast_to(deep_refs[2 * i + 1][...], (bn, G))
                for i in range(L - 1)]

        # Layer-0 input projection for the whole time block as ONE matmul
        # (no time dependence -> off the serial critical path).
        x_blk = x_ref[...]                             # [t_blk, bn, F]
        feat = x_blk.shape[-1]
        gx2d = jnp.dot(x_blk.reshape(t_blk * bn, feat), w_ih0_ref[...],
                       preferred_element_type=jnp.float32) + b0_ref[...]
        gx_scr[...] = gx2d.reshape(t_blk, bn, G)

        def cell(gates, c_prev):
            # PyTorch LSTM gate order i, f, g, o; Hp is a multiple of 128 so
            # every slice is a whole 128-lane tile.
            i_g = sigmoid(gates[:, 0 * Hp:1 * Hp])
            f_g = sigmoid(gates[:, 1 * Hp:2 * Hp])
            g_g = jnp.tanh(gates[:, 2 * Hp:3 * Hp])
            o_g = sigmoid(gates[:, 3 * Hp:4 * Hp])
            c_new = f_g * c_prev + i_g * g_g
            return o_g * jnp.tanh(c_new), c_new

        def step(tau, carry):
            h, c = list(carry[:L]), list(carry[L:])    # flat carry, no stacking
            valid = (t * t_blk + tau) < seq_len if mask_time else None
            # Layer 0: only h @ W_hh stays on the recurrence critical path.
            gates = gx_scr[tau] + jnp.dot(h[0], w_hh0,
                                          preferred_element_type=jnp.float32)
            h_new, c_new = cell(gates, c[0])
            if mask_time:                              # freeze state on padded steps
                h_new = jnp.where(valid, h_new, h[0])
                c_new = jnp.where(valid, c_new, c[0])
            h[0], c[0] = h_new, c_new
            inp = h_new
            for l in range(1, L):                      # static unroll over layers
                # Fused input+recurrent matmul: one K=2*Hp MXU push per layer.
                gates = jnp.dot(jnp.concatenate([inp, h[l]], axis=-1),
                                w_cat[l - 1],
                                preferred_element_type=jnp.float32) + bias[l - 1]
                h_new, c_new = cell(gates, c[l])
                if mask_time:
                    h_new = jnp.where(valid, h_new, h[l])
                    c_new = jnp.where(valid, c_new, c[l])
                h[l], c[l] = h_new, c_new
                inp = h_new
            return tuple(h) + tuple(c)

        carry0 = (tuple(h_refs[l][...] for l in range(L))
                  + tuple(c_refs[l][...] for l in range(L)))
        carry = lax.fori_loop(0, t_blk, step, carry0, unroll=unroll)

        for l in range(L):
            h_refs[l][...] = carry[l]
            c_refs[l][...] = carry[L + l]

        @pl.when(t == pl.num_programs(1) - 1)
        def _():
            # Readout fused into the last time block; Op is a multiple of 128
            # lanes -> unmasked, lane-dense store.
            out_ref[...] = (jnp.dot(carry[L - 1], w_out_ref[...],
                                    preferred_element_type=jnp.float32)
                            + b_out_ref[...]).astype(out_ref.dtype)

    return kernel


def _weight_spec(shape, single_buffer):
    """Whole-array spec; block index never changes so one buffer is enough."""
    index_map = lambda n, t: (0,) * len(shape)
    if single_buffer:
        try:
            return pl.BlockSpec(shape, index_map, pipeline_mode=pl.Buffered(1))
        except Exception:
            pass
    return pl.BlockSpec(shape, index_map)


def _lstm_last_state(x_sbf, wp, *, n_layers, Hp, Op, bn_tile, t_blk,
                     seq_len, vmem_limit, single_buffer_weights):
    """x_sbf: [S_pad, BN_pad, F] -> last-timestep readout [BN_pad, Op]."""
    S_pad, BN_pad, F = x_sbf.shape
    G = 4 * Hp
    mask_time = (S_pad != seq_len)

    flat_w = [wp["w_ih0"], wp["w_hh0"], wp["b0"]]
    for (w_cat, b) in wp["deep"]:
        flat_w += [w_cat, b]
    flat_w += [wp["w_out"], wp["b_out"]]

    in_specs = [pl.BlockSpec((t_blk, bn_tile, F), lambda n, t: (t, n, 0))]
    in_specs += [_weight_spec(w.shape, single_buffer_weights) for w in flat_w]

    kernel = make_lstm_kernel(n_layers, Hp, t_blk, seq_len, mask_time,
                              unroll=min(t_blk, 8))
    scratch = ([pltpu.VMEM((bn_tile, Hp), jnp.float32)] * (2 * n_layers)
               + [pltpu.VMEM((t_blk, bn_tile, G), jnp.float32)])

    return pl.pallas_call(
        kernel,
        out_shape=jax.ShapeDtypeStruct((BN_pad, Op), jnp.float32),
        grid_spec=pltpu.PrefetchScalarGridSpec(
            num_scalar_prefetch=0,
            # Leading axis: independent row tiles ("parallel", feeds both v7x
            # TensorCores). Inner axis: time blocks ("arbitrary" carry).
            grid=(BN_pad // bn_tile, S_pad // t_blk),
            in_specs=in_specs,
            out_specs=pl.BlockSpec((bn_tile, Op), lambda n, t: (n, 0)),
            scratch_shapes=scratch),
        compiler_params=pltpu.CompilerParams(
            dimension_semantics=("parallel", "arbitrary"),
            vmem_limit_bytes=int(vmem_limit)),
    )(x_sbf, *flat_w)


def _pad_params(params, H, O, Hp, Op):
    """Zero-pad hidden/output widths per gate block (padded hidden units stay
    exactly 0) and fuse W_ih/W_hh of layers l>0 into one [2Hp, 4Hp] matrix."""
    def pad_gate_cols(w, rows_p):
        rows = w.shape[0]
        out = jnp.zeros((rows_p, 4 * Hp), w.dtype)
        for g in range(4):
            out = out.at[:rows, g * Hp:g * Hp + H].set(w[:, g * H:(g + 1) * H])
        return out

    layers = params["layers"]
    w_ih0, w_hh0, b0 = layers[0]
    deep = []
    for (w_ih, w_hh, b) in layers[1:]:
        w_cat = jnp.concatenate(
            [pad_gate_cols(w_ih, Hp), pad_gate_cols(w_hh, Hp)], axis=0)
        deep.append((w_cat, pad_gate_cols(b, 1)))
    # TODO(synk): optional bf16 weight cast (2x MXU, half the weight VMEM/HBM)
    # once tolerance vs. the f32 reference is re-validated.
    return {
        "w_ih0": pad_gate_cols(w_ih0, w_ih0.shape[0]),
        "w_hh0": pad_gate_cols(w_hh0, Hp),
        "b0": pad_gate_cols(b0, 1),
        "deep": deep,
        "w_out": jnp.zeros((Hp, Op), params["w_out"].dtype)
                    .at[:H, :O].set(params["w_out"]),
        "b_out": jnp.zeros((1, Op), params["b_out"].dtype)
                    .at[:, :O].set(params["b_out"]),
    }


def time_then_space_forward(x, edge_index, edge_weight, params,
                            hidden_size, output_size):
    # edge_index / edge_weight are unused by the reference forward pass.
    del edge_index, edge_weight
    B, S, N, F = x.shape
    BN = B * N
    H, O = hidden_size, output_size
    L = len(params["layers"])

    # Lane-align hidden/output widths (exact: zero-padded weights keep padded
    # hidden units at exactly 0) and sublane/tile-align the row dim.
    Hp = _round_up(H, 128)
    Op = _round_up(O, 128)
    bn_tile = _choose_bn_tile(BN)
    BN_pad = _round_up(BN, bn_tile)

    # Generation-aware VMEM budget (64 MiB v7x, 128 MiB v5e/v6e). Weights are
    # budgeted double-buffered so the fallback path fits too.
    capacity = _vmem_capacity_bytes()
    budget = int(capacity * 0.7)                       # leave compiler headroom
    weight_bytes = 4 * (F * 4 * Hp + Hp * 4 * Hp + 4 * Hp
                        + (L - 1) * (2 * Hp * 4 * Hp + 4 * Hp)
                        + Hp * Op + Op)
    state_bytes = 2 * L * bn_tile * Hp * 4             # h/c scratch
    out_bytes = 2 * bn_tile * Op * 4                   # double-buffered output
    act_bytes = (L + 2) * bn_tile * 4 * Hp * 4         # live gates / bias bcasts
    lane_f = _round_up(F, 128)                         # F sits in the lane dim
    per_t = bn_tile * 4 * Hp * 4 + 2 * bn_tile * lane_f * 4   # gx + x (2 bufs)
    avail = budget - 2 * weight_bytes - state_bytes - out_bytes - act_bytes
    t_max = max(1, min(512, avail // per_t))
    n_tblk = _cdiv(S, t_max)
    t_blk = _cdiv(S, n_tblk)                           # balanced time blocks
    S_pad = n_tblk * t_blk

    needed = (2 * weight_bytes + state_bytes + out_bytes + act_bytes
              + per_t * t_blk)
    vmem_limit = int(min(capacity - (2 << 20), max(needed + (16 << 20), 32 << 20)))

    def run(single_buffer_weights):
        @jax.jit
        def fwd(x_in, params_in):
            wp = _pad_params(params_in, H, O, Hp, Op)
            # TODO(synk): read x directly from [B,S,N,F] via the index_map once
            # the in-kernel [B,N,F]->[B*N,F] merge is relayout-free; for now the
            # transpose/pad stays inside this jit so XLA can fuse it.
            x_sbf = jnp.transpose(x_in, (1, 0, 2, 3)).reshape(S, BN, F)
            x_sbf = jnp.pad(x_sbf, ((0, S_pad - S), (0, BN_pad - BN), (0, 0)))
            last = _lstm_last_state(
                x_sbf, wp, n_layers=L, Hp=Hp, Op=Op, bn_tile=bn_tile,
                t_blk=t_blk, seq_len=S, vmem_limit=vmem_limit,
                single_buffer_weights=single_buffer_weights)
            last = last[:BN, :O]                       # strip padding
            enc = last.reshape(B, N, O)
            # torch .view(B,N,O,-1).view(B,O,N,-1) on contiguous memory is a
            # raw memory reinterpretation (two reshapes), NOT a transpose.
            return enc.reshape(B, N, O, 1).reshape(B, O, N, 1)
        return jax.block_until_ready(fwd(x, params))

    try:
        return run(True)       # single-buffered resident weights (halved VMEM)
    except Exception:
        return run(False)      # fall back to default double-buffered weights


def init_params(key, input_size, hidden_size, n_layers, output_size):
    keys = jax.random.split(key, 3 * n_layers + 2)
    scale = 1.0 / np.sqrt(hidden_size)
    layers = []
    for l in range(n_layers):
        in_sz = input_size if l == 0 else hidden_size
        w_ih = jax.random.uniform(keys[3 * l], (in_sz, 4 * hidden_size),
                                  jnp.float32, -scale, scale)
        w_hh = jax.random.uniform(keys[3 * l + 1], (hidden_size, 4 * hidden_size),
                                  jnp.float32, -scale, scale)
        # combined bias b_ih + b_hh of the PyTorch LSTM
        b = jax.random.uniform(keys[3 * l + 2], (1, 4 * hidden_size),
                               jnp.float32, -scale, scale)
        layers.append((w_ih, w_hh, b))
    w_out = jax.random.uniform(keys[-2], (hidden_size, output_size),
                               jnp.float32, -scale, scale)
    b_out = jax.random.uniform(keys[-1], (1, output_size),
                               jnp.float32, -scale, scale)
    return {"layers": layers, "w_out": w_out, "b_out": b_out}


def reference_forward(x, params, hidden_size, output_size):
    """Pure-JAX reference of the same forward pass (unpadded)."""
    B, S, N, F = x.shape
    H = hidden_size
    xs = jnp.transpose(x, (1, 0, 2, 3)).reshape(S, B * N, F)
    BN = B * N
    h = [jnp.zeros((BN, H), jnp.float32) for _ in params["layers"]]
    c = [jnp.zeros((BN, H), jnp.float32) for _ in params["layers"]]
    inp = xs[0]
    for t in range(S):
        inp = xs[t]
        for l, (w_ih, w_hh, b) in enumerate(params["layers"]):
            gates = inp @ w_ih + h[l] @ w_hh + b
            i = jax.nn.sigmoid(gates[:, :H])
            f = jax.nn.sigmoid(gates[:, H:2 * H])
            g = jnp.tanh(gates[:, 2 * H:3 * H])
            o = jax.nn.sigmoid(gates[:, 3 * H:])
            c[l] = f * c[l] + i * g
            h[l] = o * jnp.tanh(c[l])
            inp = h[l]
    last = inp @ params["w_out"] + params["b_out"]
    enc = last.reshape(B, N, output_size)
    return enc.reshape(B, N, output_size, 1).reshape(B, output_size, N, 1)


if __name__ == "__main__":
    B, S, N = 2, 8, 4
    input_size, hidden_size, rnn_layers, output_size = 4, 32, 2, 8

    key = jax.random.PRNGKey(0)
    kx, kp = jax.random.split(key)
    x = jax.random.normal(kx, (B, S, N, input_size), jnp.float32)
    edge_index = jnp.zeros((2, 1), jnp.int32)    # unused by the forward pass
    edge_weight = jnp.ones((1,), jnp.float32)    # unused by the forward pass

    params = init_params(kp, input_size, hidden_size, rnn_layers, output_size)

    out = time_then_space_forward(x, edge_index, edge_weight, params,
                                  hidden_size, output_size)
    out = jax.block_until_ready(out)
    assert out.shape == (B, output_size, N, 1), out.shape

    ref = reference_forward(x, params, hidden_size, output_size)
    np.testing.assert_allclose(np.asarray(out), np.asarray(ref),
                               rtol=1e-5, atol=1e-5)
    print("KERNEL_OK")
</pallas_src>

<mosaic_0001>
module attributes {stable_mosaic.version = 11 : i64} {
  func.func @kernel(%arg0: i32, %arg1: i32, %arg2: memref<8x8x4xf32, #tpu.memory_space<vmem>>, %arg3: memref<4x512xf32, #tpu.memory_space<vmem>>, %arg4: memref<128x512xf32, #tpu.memory_space<vmem>>, %arg5: memref<1x512xf32, #tpu.memory_space<vmem>>, %arg6: memref<256x512xf32, #tpu.memory_space<vmem>>, %arg7: memref<1x512xf32, #tpu.memory_space<vmem>>, %arg8: memref<128x128xf32, #tpu.memory_space<vmem>>, %arg9: memref<1x128xf32, #tpu.memory_space<vmem>>, %arg10: memref<8x128xf32, #tpu.memory_space<vmem>>, %arg11: memref<8x128xf32, #tpu.memory_space<vmem>>, %arg12: memref<8x128xf32, #tpu.memory_space<vmem>>, %arg13: memref<8x128xf32, #tpu.memory_space<vmem>>, %arg14: memref<8x128xf32, #tpu.memory_space<vmem>>, %arg15: memref<8x8x512xf32, #tpu.memory_space<vmem>>) attributes {dimension_semantics = [#tpu.dimension_semantics<parallel>, #tpu.dimension_semantics<arbitrary>], iteration_bounds = array<i64: 1, 1>, scalar_prefetch = 0 : i64, scratch_operands = 5 : i64, tpu.core_type = #tpu.core_type<tc>, window_params = [{transform_indices = @transform_0, window_bounds = array<i64: 8, 8, 4>}, {pipeline_mode = #tpu.pipeline_mode<synchronous>, transform_indices = @transform_1, window_bounds = array<i64: 4, 512>}, {pipeline_mode = #tpu.pipeline_mode<synchronous>, transform_indices = @transform_2, window_bounds = array<i64: 128, 512>}, {pipeline_mode = #tpu.pipeline_mode<synchronous>, transform_indices = @transform_3, window_bounds = array<i64: 1, 512>}, {pipeline_mode = #tpu.pipeline_mode<synchronous>, transform_indices = @transform_4, window_bounds = array<i64: 256, 512>}, {pipeline_mode = #tpu.pipeline_mode<synchronous>, transform_indices = @transform_5, window_bounds = array<i64: 1, 512>}, {pipeline_mode = #tpu.pipeline_mode<synchronous>, transform_indices = @transform_6, window_bounds = array<i64: 128, 128>}, {pipeline_mode = #tpu.pipeline_mode<synchronous>, transform_indices = @transform_7, window_bounds = array<i64: 1, 128>}, {transform_indices = @transform_8, window_bounds = array<i64: 8, 128>}]} {
    %c0_i32 = arith.constant 0 : i32
    %0 = arith.cmpi eq, %arg1, %c0_i32 : i32
    %1 = arith.extui %0 : i1 to i32
    %c0_i32_0 = arith.constant 0 : i32
    %2 = arith.cmpi ne, %1, %c0_i32_0 : i32
    scf.if %2 {
      %cst_211 = arith.constant 0.000000e+00 : f32
      %588 = vector.broadcast %cst_211 : f32 to vector<8x128xf32>
      %c0_212 = arith.constant 0 : index
      %c0_213 = arith.constant 0 : index
      %589 = vector.load %arg11[%c0_212, %c0_213] : memref<8x128xf32, #tpu.memory_space<vmem>>, vector<8x128xf32>
      tpu.vector_store %arg11[%c0_212, %c0_213], %588 {strides = array<i32>} : memref<8x128xf32, #tpu.memory_space<vmem>>, vector<8x128xf32>,
      %cst_214 = arith.constant 0.000000e+00 : f32
      %590 = vector.broadcast %cst_214 : f32 to vector<8x128xf32>
      %c0_215 = arith.constant 0 : index
      %c0_216 = arith.constant 0 : index
      %591 = vector.load %arg13[%c0_215, %c0_216] : memref<8x128xf32, #tpu.memory_space<vmem>>, vector<8x128xf32>
      tpu.vector_store %arg13[%c0_215, %c0_216], %590 {strides = array<i32>} : memref<8x128xf32, #tpu.memory_space<vmem>>, vector<8x128xf32>,
      %cst_217 = arith.constant 0.000000e+00 : f32
      %592 = vector.broadcast %cst_217 : f32 to vector<8x128xf32>
      %c0_218 = arith.constant 0 : index
      %c0_219 = arith.constant 0 : index
      %593 = vector.load %arg12[%c0_218, %c0_219] : memref<8x128xf32, #tpu.memory_space<vmem>>, vector<8x128xf32>
      tpu.vector_store %arg12[%c0_218, %c0_219], %592 {strides = array<i32>} : memref<8x128xf32, #tpu.memory_space<vmem>>, vector<8x128xf32>,
      %cst_220 = arith.constant 0.000000e+00 : f32
      %594 = vector.broadcast %cst_220 : f32 to vector<8x128xf32>
      %c0_221 = arith.constant 0 : index
      %c0_222 = arith.constant 0 : index
      %595 = vector.load %arg14[%c0_221, %c0_222] : memref<8x128xf32, #tpu.memory_space<vmem>>, vector<8x128xf32>
      tpu.vector_store %arg14[%c0_221, %c0_222], %594 {strides = array<i32>} : memref<8x128xf32, #tpu.memory_space<vmem>>, vector<8x128xf32>,
    } else {
    }
    %c0 = arith.constant 0 : index
    %c0_1 = arith.constant 0 : index
    %3 = vector.load %arg4[%c0, %c0_1] : memref<128x512xf32, #tpu.memory_space<vmem>>, vector<128x512xf32>
    %c0_2 = arith.constant 0 : index
    %c0_3 = arith.constant 0 : index
    %4 = vector.load %arg6[%c0_2, %c0_3] : memref<256x512xf32, #tpu.memory_space<vmem>>, vector<256x512xf32>
    %c0_4 = arith.constant 0 : index
    %c0_5 = arith.constant 0 : index
    %5 = vector.load %arg7[%c0_4, %c0_5] : memref<1x512xf32, #tpu.memory_space<vmem>>, vector<1x512xf32>
    %6 = vector.shape_cast %5 : vector<1x512xf32> to vector<1x512xf32>
    %7 = vector.broadcast %6 : vector<1x512xf32> to vector<8x512xf32>
    %c0_6 = arith.constant 0 : index
    %c0_7 = arith.constant 0 : index
    %c0_8 = arith.constant 0 : index
    %8 = vector.load %arg2[%c0_6, %c0_7, %c0_8] : memref<8x8x4xf32, #tpu.memory_space<vmem>>, vector<8x8x4xf32>
    %9 = vector.shape_cast %8 : vector<8x8x4xf32> to vector<64x4xf32>
    %c0_9 = arith.constant 0 : index
    %c0_10 = arith.constant 0 : index
    %10 = vector.load %arg3[%c0_9, %c0_10] : memref<4x512xf32, #tpu.memory_space<vmem>>, vector<4x512xf32>
    %cst = arith.constant dense<0.000000e+00> : vector<64x512xf32>
    %11 = tpu.matmul %9, %10, %cst {dimension_numbers = #tpu.dot_dimension_numbers<[1], [0], [0], [1], [0, 0, 1, 1], [], []>} : vector<64x4xf32>, vector<4x512xf32>, vector<64x512xf32> -> vector<64x512xf32>
    %c0_11 = arith.constant 0 : index
    %c0_12 = arith.constant 0 : index
    %12 = vector.load %arg5[%c0_11, %c0_12] : memref<1x512xf32, #tpu.memory_space<vmem>>, vector<1x512xf32>
    %13 = vector.broadcast %12 : vector<1x512xf32> to vector<64x512xf32>
    %14 = arith.addf %11, %13 : vector<64x512xf32>
    %15 = vector.shape_cast %14 : vector<64x512xf32> to vector<8x8x512xf32>
    %c0_13 = arith.constant 0 : index
    %c0_14 = arith.constant 0 : index
    %c0_15 = arith.constant 0 : index
    %16 = vector.load %arg15[%c0_13, %c0_14, %c0_15] : memref<8x8x512xf32, #tpu.memory_space<vmem>>, vector<8x8x512xf32>
    tpu.vector_store %arg15[%c0_13, %c0_14, %c0_15], %15 {strides = array<i32>} : memref<8x8x512xf32, #tpu.memory_space<vmem>>, vector<8x8x512xf32>,
    %c0_16 = arith.constant 0 : index
    %c0_17 = arith.constant 0 : index
    %17 = vector.load %arg11[%c0_16, %c0_17] : memref<8x128xf32, #tpu.memory_space<vmem>>, vector<8x128xf32>
    %c0_18 = arith.constant 0 : index
    %c0_19 = arith.constant 0 : index
    %18 = vector.load %arg12[%c0_18, %c0_19] : memref<8x128xf32, #tpu.memory_space<vmem>>, vector<8x128xf32>
    %c0_20 = arith.constant 0 : index
    %c0_21 = arith.constant 0 : index
    %19 = vector.load %arg13[%c0_20, %c0_21] : memref<8x128xf32, #tpu.memory_space<vmem>>, vector<8x128xf32>
    %c0_22 = arith.constant 0 : index
    %c0_23 = arith.constant 0 : index
    %20 = vector.load %arg14[%c0_22, %c0_23] : memref<8x128xf32, #tpu.memory_space<vmem>>, vector<8x128xf32>
    %c0_i32_24 = arith.constant 0 : i32
    %21 = arith.index_cast %c0_i32_24 : i32 to index
    %c0_25 = arith.constant 0 : index
    %c0_26 = arith.constant 0 : index
    %22 = vector.load %arg15[%21, %c0_25, %c0_26] : memref<8x8x512xf32, #tpu.memory_space<vmem>>, vector<1x8x512xf32>
    %23 = vector.shape_cast %22 : vector<1x8x512xf32> to vector<8x512xf32>
    %cst_27 = arith.constant dense<0.000000e+00> : vector<8x512xf32>
    %24 = tpu.matmul %17, %3, %cst_27 {dimension_numbers = #tpu.dot_dimension_numbers<[1], [0], [0], [1], [0, 0, 1, 1], [], []>} : vector<8x128xf32>, vector<128x512xf32>, vector<8x512xf32> -> vector<8x512xf32>
    %25 = arith.addf %23, %24 : vector<8x512xf32>
    %26 = vector.extract_strided_slice %25 {offsets = [0, 0], sizes = [8, 128], strides = [1, 1]} : vector<8x512xf32> to vector<8x128xf32>
    %cst_28 = arith.constant 5.000000e-01 : f32
    %27 = vector.broadcast %cst_28 : f32 to vector<8x128xf32>
    %28 = arith.mulf %27, %26 : vector<8x128xf32>
    %29 = math.tanh %28 : vector<8x128xf32>
    %cst_29 = arith.constant 5.000000e-01 : f32
    %30 = vector.broadcast %cst_29 : f32 to vector<8x128xf32>
    %31 = arith.mulf %30, %29 : vector<8x128xf32>
    %cst_30 = arith.constant 5.000000e-01 : f32
    %32 = vector.broadcast %cst_30 : f32 to vector<8x128xf32>
    %33 = arith.addf %31, %32 : vector<8x128xf32>
    %34 = vector.extract_strided_slice %25 {offsets = [0, 128], sizes = [8, 128], strides = [1, 1]} : vector<8x512xf32> to vector<8x128xf32>
    %cst_31 = arith.constant 5.000000e-01 : f32
    %35 = vector.broadcast %cst_31 : f32 to vector<8x128xf32>
    %36 = arith.mulf %35, %34 : vector<8x128xf32>
    %37 = math.tanh %36 : vector<8x128xf32>
    %cst_32 = arith.constant 5.000000e-01 : f32
    %38 = vector.broadcast %cst_32 : f32 to vector<8x128xf32>
    %39 = arith.mulf %38, %37 : vector<8x128xf32>
    %cst_33 = arith.constant 5.000000e-01 : f32
    %40 = vector.broadcast %cst_33 : f32 to vector<8x128xf32>
    %41 = arith.addf %39, %40 : vector<8x128xf32>
    %42 = vector.extract_strided_slice %25 {offsets = [0, 256], sizes = [8, 128], strides = [1, 1]} : vector<8x512xf32> to vector<8x128xf32>
    %43 = math.tanh %42 : vector<8x128xf32>
    %44 = vector.extract_strided_slice %25 {offsets = [0, 384], sizes = [8, 128], strides = [1, 1]} : vector<8x512xf32> to vector<8x128xf32>
    %cst_34 = arith.constant 5.000000e-01 : f32
    %45 = vector.broadcast %cst_34 : f32 to vector<8x128xf32>
    %46 = arith.mulf %45, %44 : vector<8x128xf32>
    %47 = math.tanh %46 : vector<8x128xf32>
    %cst_35 = arith.constant 5.000000e-01 : f32
    %48 = vector.broadcast %cst_35 : f32 to vector<8x128xf32>
    %49 = arith.mulf %48, %47 : vector<8x128xf32>
    %cst_36 = arith.constant 5.000000e-01 : f32
    %50 = vector.broadcast %cst_36 : f32 to vector<8x128xf32>
    %51 = arith.addf %49, %50 : vector<8x128xf32>
    %52 = arith.mulf %41, %19 : vector<8x128xf32>
    %53 = arith.mulf %33, %43 : vector<8x128xf32>
    %54 = arith.addf %52, %53 : vector<8x128xf32>
    %55 = math.tanh %54 : vector<8x128xf32>
    %56 = arith.mulf %51, %55 : vector<8x128xf32>
    %57 = tpu.concatenate %56, %18 in 1 : vector<8x128xf32>, vector<8x128xf32> -> vector<8x256xf32>
    %cst_37 = arith.constant dense<0.000000e+00> : vector<8x512xf32>
    %58 = tpu.matmul %57, %4, %cst_37 {dimension_numbers = #tpu.dot_dimension_numbers<[1], [0], [0], [1], [0, 0, 1, 1], [], []>} : vector<8x256xf32>, vector<256x512xf32>, vector<8x512xf32> -> vector<8x512xf32>
    %59 = arith.addf %58, %7 : vector<8x512xf32>
    %60 = vector.extract_strided_slice %59 {offsets = [0, 0], sizes = [8, 128], strides = [1, 1]} : vector<8x512xf32> to vector<8x128xf32>
    %cst_38 = arith.constant 5.000000e-01 : f32
    %61 = vector.broadcast %cst_38 : f32 to vector<8x128xf32>
    %62 = arith.mulf %61, %60 : vector<8x128xf32>
    %63 = math.tanh %62 : vector<8x128xf32>
    %cst_39 = arith.constant 5.000000e-01 : f32
    %64 = vector.broadcast %cst_39 : f32 to vector<8x128xf32>
    %65 = arith.mulf %64, %63 : vector<8x128xf32>
    %cst_40 = arith.constant 5.000000e-01 : f32
    %66 = vector.broadcast %cst_40 : f32 to vector<8x128xf32>
    %67 = arith.addf %65, %66 : vector<8x128xf32>
    %68 = vector.extract_strided_slice %59 {offsets = [0, 128], sizes = [8, 128], strides = [1, 1]} : vector<8x512xf32> to vector<8x128xf32>
    %cst_41 = arith.constant 5.000000e-01 : f32
    %69 = vector.broadcast %cst_41 : f32 to vector<8x128xf32>
    %70 = arith.mulf %69, %68 : vector<8x128xf32>
    %71 = math.tanh %70 : vector<8x128xf32>
    %cst_42 = arith.constant 5.000000e-01 : f32
    %72 = vector.broadcast %cst_42 : f32 to vector<8x128xf32>
    %73 = arith.mulf %72, %71 : vector<8x128xf32>
    %cst_43 = arith.constant 5.000000e-01 : f32
    %74 = vector.broadcast %cst_43 : f32 to vector<8x128xf32>
    %75 = arith.addf %73, %74 : vector<8x128xf32>
    %76 = vector.extract_strided_slice %59 {offsets = [0, 256], sizes = [8, 128], strides = [1, 1]} : vector<8x512xf32> to vector<8x128xf32>
    %77 = math.tanh %76 : vector<8x128xf32>
    %78 = vector.extract_strided_slice %59 {offsets = [0, 384], sizes = [8, 128], strides = [1, 1]} : vector<8x512xf32> to vector<8x128xf32>
    %cst_44 = arith.constant 5.000000e-01 : f32
    %79 = vector.broadcast %cst_44 : f32 to vector<8x128xf32>
    %80 = arith.mulf %79, %78 : vector<8x128xf32>
    %81 = math.tanh %80 : vector<8x128xf32>
    %cst_45 = arith.constant 5.000000e-01 : f32
    %82 = vector.broadcast %cst_45 : f32 to vector<8x128xf32>
    %83 = arith.mulf %82, %81 : vector<8x128xf32>
    %cst_46 = arith.constant 5.000000e-01 : f32
    %84 = vector.broadcast %cst_46 : f32 to vector<8x128xf32>
    %85 = arith.addf %83, %84 : vector<8x128xf32>
    %86 = arith.mulf %75, %20 : vector<8x128xf32>
    %87 = arith.mulf %67, %77 : vector<8x128xf32>
    %88 = arith.addf %86, %87 : vector<8x128xf32>
    %89 = math.tanh %88 : vector<8x128xf32>
    %90 = arith.mulf %85, %89 : vector<8x128xf32>
    %c1_i32 = arith.constant 1 : i32
    %91 = arith.index_cast %c1_i32 : i32 to index
    %c0_47 = arith.constant 0 : index
    %c0_48 = arith.constant 0 : index
    %92 = vector.load %arg15[%91, %c0_47, %c0_48] : memref<8x8x512xf32, #tpu.memory_space<vmem>>, vector<1x8x512xf32>
    %93 = vector.shape_cast %92 : vector<1x8x512xf32> to vector<8x512xf32>
    %cst_49 = arith.constant dense<0.000000e+00> : vector<8x512xf32>
    %94 = tpu.matmul %56, %3, %cst_49 {dimension_numbers = #tpu.dot_dimension_numbers<[1], [0], [0], [1], [0, 0, 1, 1], [], []>} : vector<8x128xf32>, vector<128x512xf32>, vector<8x512xf32> -> vector<8x512xf32>
    %95 = arith.addf %93, %94 : vector<8x512xf32>
    %96 = vector.extract_strided_slice %95 {offsets = [0, 0], sizes = [8, 128], strides = [1, 1]} : vector<8x512xf32> to vector<8x128xf32>
    %cst_50 = arith.constant 5.000000e-01 : f32
    %97 = vector.broadcast %cst_50 : f32 to vector<8x128xf32>
    %98 = arith.mulf %97, %96 : vector<8x128xf32>
    %99 = math.tanh %98 : vector<8x128xf32>
    %cst_51 = arith.constant 5.000000e-01 : f32
    %100 = vector.broadcast %cst_51 : f32 to vector<8x128xf32>
    %101 = arith.mulf %100, %99 : vector<8x128xf32>
    %cst_52 = arith.constant 5.000000e-01 : f32
    %102 = vector.broadcast %cst_52 : f32 to vector<8x128xf32>
    %103 = arith.addf %101, %102 : vector<8x128xf32>
    %104 = vector.extract_strided_slice %95 {offsets = [0, 128], sizes = [8, 128], strides = [1, 1]} : vector<8x512xf32> to vector<8x128xf32>
    %cst_53 = arith.constant 5.000000e-01 : f32
    %105 = vector.broadcast %cst_53 : f32 to vector<8x128xf32>
    %106 = arith.mulf %105, %104 : vector<8x128xf32>
    %107 = math.tanh %106 : vector<8x128xf32>
    %cst_54 = arith.constant 5.000000e-01 : f32
    %108 = vector.broadcast %cst_54 : f32 to vector<8x128xf32>
    %109 = arith.mulf %108, %107 : vector<8x128xf32>
    %cst_55 = arith.constant 5.000000e-01 : f32
    %110 = vector.broadcast %cst_55 : f32 to vector<8x128xf32>
    %111 = arith.addf %109, %110 : vector<8x128xf32>
    %112 = vector.extract_strided_slice %95 {offsets = [0, 256], sizes = [8, 128], strides = [1, 1]} : vector<8x512xf32> to vector<8x128xf32>
    %113 = math.tanh %112 : vector<8x128xf32>
    %114 = vector.extract_strided_slice %95 {offsets = [0, 384], sizes = [8, 128], strides = [1, 1]} : vector<8x512xf32> to vector<8x128xf32>
    %cst_56 = arith.constant 5.000000e-01 : f32
    %115 = vector.broadcast %cst_56 : f32 to vector<8x128xf32>
    %116 = arith.mulf %115, %114 : vector<8x128xf32>
    %117 = math.tanh %116 : vector<8x128xf32>
    %cst_57 = arith.constant 5.000000e-01 : f32
    %118 = vector.broadcast %cst_57 : f32 to vector<8x128xf32>
    %119 = arith.mulf %118, %117 : vector<8x128xf32>
    %cst_58 = arith.constant 5.000000e-01 : f32
    %120 = vector.broadcast %cst_58 : f32 to vector<8x128xf32>
    %121 = arith.addf %119, %120 : vector<8x128xf32>
    %122 = arith.mulf %111, %54 : vector<8x128xf32>
    %123 = arith.mulf %103, %113 : vector<8x128xf32>
    %124 = arith.addf %122, %123 : vector<8x128xf32>
    %125 = math.tanh %124 : vector<8x128xf32>
    %126 = arith.mulf %121, %125 : vector<8x128xf32>
    %127 = tpu.concatenate %126, %90 in 1 : vector<8x128xf32>, vector<8x128xf32> -> vector<8x256xf32>
    %cst_59 = arith.constant dense<0.000000e+00> : vector<8x512xf32>
    %128 = tpu.matmul %127, %4, %cst_59 {dimension_numbers = #tpu.dot_dimension_numbers<[1], [0], [0], [1], [0, 0, 1, 1], [], []>} : vector<8x256xf32>, vector<256x512xf32>, vector<8x512xf32> -> vector<8x512xf32>
    %129 = arith.addf %128, %7 : vector<8x512xf32>
    %130 = vector.extract_strided_slice %129 {offsets = [0, 0], sizes = [8, 128], strides = [1, 1]} : vector<8x512xf32> to vector<8x128xf32>
    %cst_60 = arith.constant 5.000000e-01 : f32
    %131 = vector.broadcast %cst_60 : f32 to vector<8x128xf32>
    %132 = arith.mulf %131, %130 : vector<8x128xf32>
    %133 = math.tanh %132 : vector<8x128xf32>
    %cst_61 = arith.constant 5.000000e-01 : f32
    %134 = vector.broadcast %cst_61 : f32 to vector<8x128xf32>
    %135 = arith.mulf %134, %133 : vector<8x128xf32>
    %cst_62 = arith.constant 5.000000e-01 : f32
    %136 = vector.broadcast %cst_62 : f32 to vector<8x128xf32>
    %137 = arith.addf %135, %136 : vector<8x128xf32>
    %138 = vector.extract_strided_slice %129 {offsets = [0, 128], sizes = [8, 128], strides = [1, 1]} : vector<8x512xf32> to vector<8x128xf32>
    %cst_63 = arith.constant 5.000000e-01 : f32
    %139 = vector.broadcast %cst_63 : f32 to vector<8x128xf32>
    %140 = arith.mulf %139, %138 : vector<8x128xf32>
    %141 = math.tanh %140 : vector<8x128xf32>
    %cst_64 = arith.constant 5.000000e-01 : f32
    %142 = vector.broadcast %cst_64 : f32 to vector<8x128xf32>
    %143 = arith.mulf %142, %141 : vector<8x128xf32>
    %cst_65 = arith.constant 5.000000e-01 : f32
    %144 = vector.broadcast %cst_65 : f32 to vector<8x128xf32>
    %145 = arith.addf %143, %144 : vector<8x128xf32>
    %146 = vector.extract_strided_slice %129 {offsets = [0, 256], sizes = [8, 128], strides = [1, 1]} : vector<8x512xf32> to vector<8x128xf32>
    %147 = math.tanh %146 : vector<8x128xf32>
    %148 = vector.extract_strided_slice %129 {offsets = [0, 384], sizes = [8, 128], strides = [1, 1]} : vector<8x512xf32> to vector<8x128xf32>
    %cst_66 = arith.constant 5.000000e-01 : f32
    %149 = vector.broadcast %cst_66 : f32 to vector<8x128xf32>
    %150 = arith.mulf %149, %148 : vector<8x128xf32>
    %151 = math.tanh %150 : vector<8x128xf32>
    %cst_67 = arith.constant 5.000000e-01 : f32
    %152 = vector.broadcast %cst_67 : f32 to vector<8x128xf32>
    %153 = arith.mulf %152, %151 : vector<8x128xf32>
    %cst_68 = arith.constant 5.000000e-01 : f32
    %154 = vector.broadcast %cst_68 : f32 to vector<8x128xf32>
    %155 = arith.addf %153, %154 : vector<8x128xf32>
    %156 = arith.mulf %145, %88 : vector<8x128xf32>
    %157 = arith.mulf %137, %147 : vector<8x128xf32>
    %158 = arith.addf %156, %157 : vector<8x128xf32>
    %159 = math.tanh %158 : vector<8x128xf32>
    %160 = arith.mulf %155, %159 : vector<8x128xf32>
    %c2_i32 = arith.constant 2 : i32
    %161 = arith.index_cast %c2_i32 : i32 to index
    %c0_69 = arith.constant 0 : index
    %c0_70 = arith.constant 0 : index
    %162 = vector.load %arg15[%161, %c0_69, %c0_70] : memref<8x8x512xf32, #tpu.memory_space<vmem>>, vector<1x8x512xf32>
    %163 = vector.shape_cast %162 : vector<1x8x512xf32> to vector<8x512xf32>
    %cst_71 = arith.constant dense<0.000000e+00> : vector<8x512xf32>
    %164 = tpu.matmul %126, %3, %cst_71 {dimension_numbers = #tpu.dot_dimension_numbers<[1], [0], [0], [1], [0, 0, 1, 1], [], []>} : vector<8x128xf32>, vector<128x512xf32>, vector<8x512xf32> -> vector<8x512xf32>
    %165 = arith.addf %163, %164 : vector<8x512xf32>
    %166 = vector.extract_strided_slice %165 {offsets = [0, 0], sizes = [8, 128], strides = [1, 1]} : vector<8x512xf32> to vector<8x128xf32>
    %cst_72 = arith.constant 5.000000e-01 : f32
    %167 = vector.broadcast %cst_72 : f32 to vector<8x128xf32>
    %168 = arith.mulf %167, %166 : vector<8x128xf32>
    %169 = math.tanh %168 : vector<8x128xf32>
    %cst_73 = arith.constant 5.000000e-01 : f32
    %170 = vector.broadcast %cst_73 : f32 to vector<8x128xf32>
    %171 = arith.mulf %170, %169 : vector<8x128xf32>
    %cst_74 = arith.constant 5.000000e-01 : f32
    %172 = vector.broadcast %cst_74 : f32 to vector<8x128xf32>
    %173 = arith.addf %171, %172 : vector<8x128xf32>
    %174 = vector.extract_strided_slice %165 {offsets = [0, 128], sizes = [8, 128], strides = [1, 1]} : vector<8x512xf32> to vector<8x128xf32>
    %cst_75 = arith.constant 5.000000e-01 : f32
    %175 = vector.broadcast %cst_75 : f32 to vector<8x128xf32>
    %176 = arith.mulf %175, %174 : vector<8x128xf32>
    %177 = math.tanh %176 : vector<8x128xf32>
    %cst_76 = arith.constant 5.000000e-01 : f32
    %178 = vector.broadcast %cst_76 : f32 to vector<8x128xf32>
    %179 = arith.mulf %178, %177 : vector<8x128xf32>
    %cst_77 = arith.constant 5.000000e-01 : f32
    %180 = vector.broadcast %cst_77 : f32 to vector<8x128xf32>
    %181 = arith.addf %179, %180 : vector<8x128xf32>
    %182 = vector.extract_strided_slice %165 {offsets = [0, 256], sizes = [8, 128], strides = [1, 1]} : vector<8x512xf32> to vector<8x128xf32>
    %183 = math.tanh %182 : vector<8x128xf32>
    %184 = vector.extract_strided_slice %165 {offsets = [0, 384], sizes = [8, 128], strides = [1, 1]} : vector<8x512xf32> to vector<8x128xf32>
    %cst_78 = arith.constant 5.000000e-01 : f32
    %185 = vector.broadcast %cst_78 : f32 to vector<8x128xf32>
    %186 = arith.mulf %185, %184 : vector<8x128xf32>
    %187 = math.tanh %186 : vector<8x128xf32>
    %cst_79 = arith.constant 5.000000e-01 : f32
    %188 = vector.broadcast %cst_79 : f32 to vector<8x128xf32>
    %189 = arith.mulf %188, %187 : vector<8x128xf32>
    %cst_80 = arith.constant 5.000000e-01 : f32
    %190 = vector.broadcast %cst_80 : f32 to vector<8x128xf32>
    %191 = arith.addf %189, %190 : vector<8x128xf32>
    %192 = arith.mulf %181, %124 : vector<8x128xf32>
    %193 = arith.mulf %173, %183 : vector<8x128xf32>
    %194 = arith.addf %192, %193 : vector<8x128xf32>
    %195 = math.tanh %194 : vector<8x128xf32>
    %196 = arith.mulf %191, %195 : vector<8x128xf32>
    %197 = tpu.concatenate %196, %160 in 1 : vector<8x128xf32>, vector<8x128xf32> -> vector<8x256xf32>
    %cst_81 = arith.constant dense<0.000000e+00> : vector<8x512xf32>
    %198 = tpu.matmul %197, %4, %cst_81 {dimension_numbers = #tpu.dot_dimension_numbers<[1], [0], [0], [1], [0, 0, 1, 1], [], []>} : vector<8x256xf32>, vector<256x512xf32>, vector<8x512xf32> -> vector<8x512xf32>
    %199 = arith.addf %198, %7 : vector<8x512xf32>
    %200 = vector.extract_strided_slice %199 {offsets = [0, 0], sizes = [8, 128], strides = [1, 1]} : vector<8x512xf32> to vector<8x128xf32>
    %cst_82 = arith.constant 5.000000e-01 : f32
    %201 = vector.broadcast %cst_82 : f32 to vector<8x128xf32>
    %202 = arith.mulf %201, %200 : vector<8x128xf32>
    %203 = math.tanh %202 : vector<8x128xf32>
    %cst_83 = arith.constant 5.000000e-01 : f32
    %204 = vector.broadcast %cst_83 : f32 to vector<8x128xf32>
    %205 = arith.mulf %204, %203 : vector<8x128xf32>
    %cst_84 = arith.constant 5.000000e-01 : f32
    %206 = vector.broadcast %cst_84 : f32 to vector<8x128xf32>
    %207 = arith.addf %205, %206 : vector<8x128xf32>
    %208 = vector.extract_strided_slice %199 {offsets = [0, 128], sizes = [8, 128], strides = [1, 1]} : vector<8x512xf32> to vector<8x128xf32>
    %cst_85 = arith.constant 5.000000e-01 : f32
    %209 = vector.broadcast %cst_85 : f32 to vector<8x128xf32>
    %210 = arith.mulf %209, %208 : vector<8x128xf32>
    %211 = math.tanh %210 : vector<8x128xf32>
    %cst_86 = arith.constant 5.000000e-01 : f32
    %212 = vector.broadcast %cst_86 : f32 to vector<8x128xf32>
    %213 = arith.mulf %212, %211 : vector<8x128xf32>
    %cst_87 = arith.constant 5.000000e-01 : f32
    %214 = vector.broadcast %cst_87 : f32 to vector<8x128xf32>
    %215 = arith.addf %213, %214 : vector<8x128xf32>
    %216 = vector.extract_strided_slice %199 {offsets = [0, 256], sizes = [8, 128], strides = [1, 1]} : vector<8x512xf32> to vector<8x128xf32>
    %217 = math.tanh %216 : vector<8x128xf32>
    %218 = vector.extract_strided_slice %199 {offsets = [0, 384], sizes = [8, 128], strides = [1, 1]} : vector<8x512xf32> to vector<8x128xf32>
    %cst_88 = arith.constant 5.000000e-01 : f32
    %219 = vector.broadcast %cst_88 : f32 to vector<8x128xf32>
    %220 = arith.mulf %219, %218 : vector<8x128xf32>
    %221 = math.tanh %220 : vector<8x128xf32>
    %cst_89 = arith.constant 5.000000e-01 : f32
    %222 = vector.broadcast %cst_89 : f32 to vector<8x128xf32>
    %223 = arith.mulf %222, %221 : vector<8x128xf32>
    %cst_90 = arith.constant 5.000000e-01 : f32
    %224 = vector.broadcast %cst_90 : f32 to vector<8x128xf32>
    %225 = arith.addf %223, %224 : vector<8x128xf32>
    %226 = arith.mulf %215, %158 : vector<8x128xf32>
    %227 = arith.mulf %207, %217 : vector<8x128xf32>
    %228 = arith.addf %226, %227 : vector<8x128xf32>
    %229 = math.tanh %228 : vector<8x128xf32>
    %230 = arith.mulf %225, %229 : vector<8x128xf32>
    %c3_i32 = arith.constant 3 : i32
    %231 = arith.index_cast %c3_i32 : i32 to index
    %c0_91 = arith.constant 0 : index
    %c0_92 = arith.constant 0 : index
    %232 = vector.load %arg15[%231, %c0_91, %c0_92] : memref<8x8x512xf32, #tpu.memory_space<vmem>>, vector<1x8x512xf32>
    %233 = vector.shape_cast %232 : vector<1x8x512xf32> to vector<8x512xf32>
    %cst_93 = arith.constant dense<0.000000e+00> : vector<8x512xf32>
    %234 = tpu.matmul %196, %3, %cst_93 {dimension_numbers = #tpu.dot_dimension_numbers<[1], [0], [0], [1], [0, 0, 1, 1], [], []>} : vector<8x128xf32>, vector<128x512xf32>, vector<8x512xf32> -> vector<8x512xf32>
    %235 = arith.addf %233, %234 : vector<8x512xf32>
    %236 = vector.extract_strided_slice %235 {offsets = [0, 0], sizes = [8, 128], strides = [1, 1]} : vector<8x512xf32> to vector<8x128xf32>
    %cst_94 = arith.constant 5.000000e-01 : f32
    %237 = vector.broadcast %cst_94 : f32 to vector<8x128xf32>
    %238 = arith.mulf %237, %236 : vector<8x128xf32>
    %239 = math.tanh %238 : vector<8x128xf32>
    %cst_95 = arith.constant 5.000000e-01 : f32
    %240 = vector.broadcast %cst_95 : f32 to vector<8x128xf32>
    %241 = arith.mulf %240, %239 : vector<8x128xf32>
    %cst_96 = arith.constant 5.000000e-01 : f32
    %242 = vector.broadcast %cst_96 : f32 to vector<8x128xf32>
    %243 = arith.addf %241, %242 : vector<8x128xf32>
    %244 = vector.extract_strided_slice %235 {offsets = [0, 128], sizes = [8, 128], strides = [1, 1]} : vector<8x512xf32> to vector<8x128xf32>
    %cst_97 = arith.constant 5.000000e-01 : f32
    %245 = vector.broadcast %cst_97 : f32 to vector<8x128xf32>
    %246 = arith.mulf %245, %244 : vector<8x128xf32>
    %247 = math.tanh %246 : vector<8x128xf32>
    %cst_98 = arith.constant 5.000000e-01 : f32
    %248 = vector.broadcast %cst_98 : f32 to vector<8x128xf32>
    %249 = arith.mulf %248, %247 : vector<8x128xf32>
    %cst_99 = arith.constant 5.000000e-01 : f32
    %250 = vector.broadcast %cst_99 : f32 to vector<8x128xf32>
    %251 = arith.addf %249, %250 : vector<8x128xf32>
    %252 = vector.extract_strided_slice %235 {offsets = [0, 256], sizes = [8, 128], strides = [1, 1]} : vector<8x512xf32> to vector<8x128xf32>
    %253 = math.tanh %252 : vector<8x128xf32>
    %254 = vector.extract_strided_slice %235 {offsets = [0, 384], sizes = [8, 128], strides = [1, 1]} : vector<8x512xf32> to vector<8x128xf32>
    %cst_100 = arith.constant 5.000000e-01 : f32
    %255 = vector.broadcast %cst_100 : f32 to vector<8x128xf32>
    %256 = arith.mulf %255, %254 : vector<8x128xf32>
    %257 = math.tanh %256 : vector<8x128xf32>
    %cst_101 = arith.constant 5.000000e-01 : f32
    %258 = vector.broadcast %cst_101 : f32 to vector<8x128xf32>
    %259 = arith.mulf %258, %257 : vector<8x128xf32>
    %cst_102 = arith.constant 5.000000e-01 : f32
    %260 = vector.broadcast %cst_102 : f32 to vector<8x128xf32>
    %261 = arith.addf %259, %260 : vector<8x128xf32>
    %262 = arith.mulf %251, %194 : vector<8x128xf32>
    %263 = arith.mulf %243, %253 : vector<8x128xf32>
    %264 = arith.addf %262, %263 : vector<8x128xf32>
    %265 = math.tanh %264 : vector<8x128xf32>
    %266 = arith.mulf %261, %265 : vector<8x128xf32>
    %267 = tpu.concatenate %266, %230 in 1 : vector<8x128xf32>, vector<8x128xf32> -> vector<8x256xf32>
    %cst_103 = arith.constant dense<0.000000e+00> : vector<8x512xf32>
    %268 = tpu.matmul %267, %4, %cst_103 {dimension_numbers = #tpu.dot_dimension_numbers<[1], [0], [0], [1], [0, 0, 1, 1], [], []>} : vector<8x256xf32>, vector<256x512xf32>, vector<8x512xf32> -> vector<8x512xf32>
    %269 = arith.addf %268, %7 : vector<8x512xf32>
    %270 = vector.extract_strided_slice %269 {offsets = [0, 0], sizes = [8, 128], strides = [1, 1]} : vector<8x512xf32> to vector<8x128xf32>
    %cst_104 = arith.constant 5.000000e-01 : f32
    %271 = vector.broadcast %cst_104 : f32 to vector<8x128xf32>
    %272 = arith.mulf %271, %270 : vector<8x128xf32>
    %273 = math.tanh %272 : vector<8x128xf32>
    %cst_105 = arith.constant 5.000000e-01 : f32
    %274 = vector.broadcast %cst_105 : f32 to vector<8x128xf32>
    %275 = arith.mulf %274, %273 : vector<8x128xf32>
    %cst_106 = arith.constant 5.000000e-01 : f32
    %276 = vector.broadcast %cst_106 : f32 to vector<8x128xf32>
    %277 = arith.addf %275, %276 : vector<8x128xf32>
    %278 = vector.extract_strided_slice %269 {offsets = [0, 128], sizes = [8, 128], strides = [1, 1]} : vector<8x512xf32> to vector<8x128xf32>
    %cst_107 = arith.constant 5.000000e-01 : f32
    %279 = vector.broadcast %cst_107 : f32 to vector<8x128xf32>
    %280 = arith.mulf %279, %278 : vector<8x128xf32>
    %281 = math.tanh %280 : vector<8x128xf32>
    %cst_108 = arith.constant 5.000000e-01 : f32
    %282 = vector.broadcast %cst_108 : f32 to vector<8x128xf32>
    %283 = arith.mulf %282, %281 : vector<8x128xf32>
    %cst_109 = arith.constant 5.000000e-01 : f32
    %284 = vector.broadcast %cst_109 : f32 to vector<8x128xf32>
    %285 = arith.addf %283, %284 : vector<8x128xf32>
    %286 = vector.extract_strided_slice %269 {offsets = [0, 256], sizes = [8, 128], strides = [1, 1]} : vector<8x512xf32> to vector<8x128xf32>
    %287 = math.tanh %286 : vector<8x128xf32>
    %288 = vector.extract_strided_slice %269 {offsets = [0, 384], sizes = [8, 128], strides = [1, 1]} : vector<8x512xf32> to vector<8x128xf32>
    %cst_110 = arith.constant 5.000000e-01 : f32
    %289 = vector.broadcast %cst_110 : f32 to vector<8x128xf32>
    %290 = arith.mulf %289, %288 : vector<8x128xf32>
    %291 = math.tanh %290 : vector<8x128xf32>
    %cst_111 = arith.constant 5.000000e-01 : f32
    %292 = vector.broadcast %cst_111 : f32 to vector<8x128xf32>
    %293 = arith.mulf %292, %291 : vector<8x128xf32>
    %cst_112 = arith.constant 5.000000e-01 : f32
    %294 = vector.broadcast %cst_112 : f32 to vector<8x128xf32>
    %295 = arith.addf %293, %294 : vector<8x128xf32>
    %296 = arith.mulf %285, %228 : vector<8x128xf32>
    %297 = arith.mulf %277, %287 : vector<8x128xf32>
    %298 = arith.addf %296, %297 : vector<8x128xf32>
    %299 = math.tanh %298 : vector<8x128xf32>
    %300 = arith.mulf %295, %299 : vector<8x128xf32>
    %c4_i32 = arith.constant 4 : i32
    %301 = arith.index_cast %c4_i32 : i32 to index
    %c0_113 = arith.constant 0 : index
    %c0_114 = arith.constant 0 : index
    %302 = vector.load %arg15[%301, %c0_113, %c0_114] : memref<8x8x512xf32, #tpu.memory_space<vmem>>, vector<1x8x512xf32>
    %303 = vector.shape_cast %302 : vector<1x8x512xf32> to vector<8x512xf32>
    %cst_115 = arith.constant dense<0.000000e+00> : vector<8x512xf32>
    %304 = tpu.matmul %266, %3, %cst_115 {dimension_numbers = #tpu.dot_dimension_numbers<[1], [0], [0], [1], [0, 0, 1, 1], [], []>} : vector<8x128xf32>, vector<128x512xf32>, vector<8x512xf32> -> vector<8x512xf32>
    %305 = arith.addf %303, %304 : vector<8x512xf32>
    %306 = vector.extract_strided_slice %305 {offsets = [0, 0], sizes = [8, 128], strides = [1, 1]} : vector<8x512xf32> to vector<8x128xf32>
    %cst_116 = arith.constant 5.000000e-01 : f32
    %307 = vector.broadcast %cst_116 : f32 to vector<8x128xf32>
    %308 = arith.mulf %307, %306 : vector<8x128xf32>
    %309 = math.tanh %308 : vector<8x128xf32>
    %cst_117 = arith.constant 5.000000e-01 : f32
    %310 = vector.broadcast %cst_117 : f32 to vector<8x128xf32>
    %311 = arith.mulf %310, %309 : vector<8x128xf32>
    %cst_118 = arith.constant 5.000000e-01 : f32
    %312 = vector.broadcast %cst_118 : f32 to vector<8x128xf32>
    %313 = arith.addf %311, %312 : vector<8x128xf32>
    %314 = vector.extract_strided_slice %305 {offsets = [0, 128], sizes = [8, 128], strides = [1, 1]} : vector<8x512xf32> to vector<8x128xf32>
    %cst_119 = arith.constant 5.000000e-01 : f32
    %315 = vector.broadcast %cst_119 : f32 to vector<8x128xf32>
    %316 = arith.mulf %315, %314 : vector<8x128xf32>
    %317 = math.tanh %316 : vector<8x128xf32>
    %cst_120 = arith.constant 5.000000e-01 : f32
    %318 = vector.broadcast %cst_120 : f32 to vector<8x128xf32>
    %319 = arith.mulf %318, %317 : vector<8x128xf32>
    %cst_121 = arith.constant 5.000000e-01 : f32
    %320 = vector.broadcast %cst_121 : f32 to vector<8x128xf32>
    %321 = arith.addf %319, %320 : vector<8x128xf32>
    %322 = vector.extract_strided_slice %305 {offsets = [0, 256], sizes = [8, 128], strides = [1, 1]} : vector<8x512xf32> to vector<8x128xf32>
    %323 = math.tanh %322 : vector<8x128xf32>
    %324 = vector.extract_strided_slice %305 {offsets = [0, 384], sizes = [8, 128], strides = [1, 1]} : vector<8x512xf32> to vector<8x128xf32>
    %cst_122 = arith.constant 5.000000e-01 : f32
    %325 = vector.broadcast %cst_122 : f32 to vector<8x128xf32>
    %326 = arith.mulf %325, %324 : vector<8x128xf32>
    %327 = math.tanh %326 : vector<8x128xf32>
    %cst_123 = arith.constant 5.000000e-01 : f32
    %328 = vector.broadcast %cst_123 : f32 to vector<8x128xf32>
    %329 = arith.mulf %328, %327 : vector<8x128xf32>
    %cst_124 = arith.constant 5.000000e-01 : f32
    %330 = vector.broadcast %cst_124 : f32 to vector<8x128xf32>
    %331 = arith.addf %329, %330 : vector<8x128xf32>
    %332 = arith.mulf %321, %264 : vector<8x128xf32>
    %333 = arith.mulf %313, %323 : vector<8x128xf32>
    %334 = arith.addf %332, %333 : vector<8x128xf32>
    %335 = math.tanh %334 : vector<8x128xf32>
    %336 = arith.mulf %331, %335 : vector<8x128xf32>
    %337 = tpu.concatenate %336, %300 in 1 : vector<8x128xf32>, vector<8x128xf32> -> vector<8x256xf32>
    %cst_125 = arith.constant dense<0.000000e+00> : vector<8x512xf32>
    %338 = tpu.matmul %337, %4, %cst_125 {dimension_numbers = #tpu.dot_dimension_numbers<[1], [0], [0], [1], [0, 0, 1, 1], [], []>} : vector<8x256xf32>, vector<256x512xf32>, vector<8x512xf32> -> vector<8x512xf32>
    %339 = arith.addf %338, %7 : vector<8x512xf32>
    %340 = vector.extract_strided_slice %339 {offsets = [0, 0], sizes = [8, 128], strides = [1, 1]} : vector<8x512xf32> to vector<8x128xf32>
    %cst_126 = arith.constant 5.000000e-01 : f32
    %341 = vector.broadcast %cst_126 : f32 to vector<8x128xf32>
    %342 = arith.mulf %341, %340 : vector<8x128xf32>
    %343 = math.tanh %342 : vector<8x128xf32>
    %cst_127 = arith.constant 5.000000e-01 : f32
    %344 = vector.broadcast %cst_127 : f32 to vector<8x128xf32>
    %345 = arith.mulf %344, %343 : vector<8x128xf32>
    %cst_128 = arith.constant 5.000000e-01 : f32
    %346 = vector.broadcast %cst_128 : f32 to vector<8x128xf32>
    %347 = arith.addf %345, %346 : vector<8x128xf32>
    %348 = vector.extract_strided_slice %339 {offsets = [0, 128], sizes = [8, 128], strides = [1, 1]} : vector<8x512xf32> to vector<8x128xf32>
    %cst_129 = arith.constant 5.000000e-01 : f32
    %349 = vector.broadcast %cst_129 : f32 to vector<8x128xf32>
    %350 = arith.mulf %349, %348 : vector<8x128xf32>
    %351 = math.tanh %350 : vector<8x128xf32>
    %cst_130 = arith.constant 5.000000e-01 : f32
    %352 = vector.broadcast %cst_130 : f32 to vector<8x128xf32>
    %353 = arith.mulf %352, %351 : vector<8x128xf32>
    %cst_131 = arith.constant 5.000000e-01 : f32
    %354 = vector.broadcast %cst_131 : f32 to vector<8x128xf32>
    %355 = arith.addf %353, %354 : vector<8x128xf32>
    %356 = vector.extract_strided_slice %339 {offsets = [0, 256], sizes = [8, 128], strides = [1, 1]} : vector<8x512xf32> to vector<8x128xf32>
    %357 = math.tanh %356 : vector<8x128xf32>
    %358 = vector.extract_strided_slice %339 {offsets = [0, 384], sizes = [8, 128], strides = [1, 1]} : vector<8x512xf32> to vector<8x128xf32>
    %cst_132 = arith.constant 5.000000e-01 : f32
    %359 = vector.broadcast %cst_132 : f32 to vector<8x128xf32>
    %360 = arith.mulf %359, %358 : vector<8x128xf32>
    %361 = math.tanh %360 : vector<8x128xf32>
    %cst_133 = arith.constant 5.000000e-01 : f32
    %362 = vector.broadcast %cst_133 : f32 to vector<8x128xf32>
    %363 = arith.mulf %362, %361 : vector<8x128xf32>
    %cst_134 = arith.constant 5.000000e-01 : f32
    %364 = vector.broadcast %cst_134 : f32 to vector<8x128xf32>
    %365 = arith.addf %363, %364 : vector<8x128xf32>
    %366 = arith.mulf %355, %298 : vector<8x128xf32>
    %367 = arith.mulf %347, %357 : vector<8x128xf32>
    %368 = arith.addf %366, %367 : vector<8x128xf32>
    %369 = math.tanh %368 : vector<8x128xf32>
    %370 = arith.mulf %365, %369 : vector<8x128xf32>
    %c5_i32 = arith.constant 5 : i32
    %371 = arith.index_cast %c5_i32 : i32 to index
    %c0_135 = arith.constant 0 : index
    %c0_136 = arith.constant 0 : index
    %372 = vector.load %arg15[%371, %c0_135, %c0_136] : memref<8x8x512xf32, #tpu.memory_space<vmem>>, vector<1x8x512xf32>
    %373 = vector.shape_cast %372 : vector<1x8x512xf32> to vector<8x512xf32>
    %cst_137 = arith.constant dense<0.000000e+00> : vector<8x512xf32>
    %374 = tpu.matmul %336, %3, %cst_137 {dimension_numbers = #tpu.dot_dimension_numbers<[1], [0], [0], [1], [0, 0, 1, 1], [], []>} : vector<8x128xf32>, vector<128x512xf32>, vector<8x512xf32> -> vector<8x512xf32>
    %375 = arith.addf %373, %374 : vector<8x512xf32>
    %376 = vector.extract_strided_slice %375 {offsets = [0, 0], sizes = [8, 128], strides = [1, 1]} : vector<8x512xf32> to vector<8x128xf32>
    %cst_138 = arith.constant 5.000000e-01 : f32
    %377 = vector.broadcast %cst_138 : f32 to vector<8x128xf32>
    %378 = arith.mulf %377, %376 : vector<8x128xf32>
    %379 = math.tanh %378 : vector<8x128xf32>
    %cst_139 = arith.constant 5.000000e-01 : f32
    %380 = vector.broadcast %cst_139 : f32 to vector<8x128xf32>
    %381 = arith.mulf %380, %379 : vector<8x128xf32>
    %cst_140 = arith.constant 5.000000e-01 : f32
    %382 = vector.broadcast %cst_140 : f32 to vector<8x128xf32>
    %383 = arith.addf %381, %382 : vector<8x128xf32>
    %384 = vector.extract_strided_slice %375 {offsets = [0, 128], sizes = [8, 128], strides = [1, 1]} : vector<8x512xf32> to vector<8x128xf32>
    %cst_141 = arith.constant 5.000000e-01 : f32
    %385 = vector.broadcast %cst_141 : f32 to vector<8x128xf32>
    %386 = arith.mulf %385, %384 : vector<8x128xf32>
    %387 = math.tanh %386 : vector<8x128xf32>
    %cst_142 = arith.constant 5.000000e-01 : f32
    %388 = vector.broadcast %cst_142 : f32 to vector<8x128xf32>
    %389 = arith.mulf %388, %387 : vector<8x128xf32>
    %cst_143 = arith.constant 5.000000e-01 : f32
    %390 = vector.broadcast %cst_143 : f32 to vector<8x128xf32>
    %391 = arith.addf %389, %390 : vector<8x128xf32>
    %392 = vector.extract_strided_slice %375 {offsets = [0, 256], sizes = [8, 128], strides = [1, 1]} : vector<8x512xf32> to vector<8x128xf32>
    %393 = math.tanh %392 : vector<8x128xf32>
    %394 = vector.extract_strided_slice %375 {offsets = [0, 384], sizes = [8, 128], strides = [1, 1]} : vector<8x512xf32> to vector<8x128xf32>
    %cst_144 = arith.constant 5.000000e-01 : f32
    %395 = vector.broadcast %cst_144 : f32 to vector<8x128xf32>
    %396 = arith.mulf %395, %394 : vector<8x128xf32>
    %397 = math.tanh %396 : vector<8x128xf32>
    %cst_145 = arith.constant 5.000000e-01 : f32
    %398 = vector.broadcast %cst_145 : f32 to vector<8x128xf32>
    %399 = arith.mulf %398, %397 : vector<8x128xf32>
    %cst_146 = arith.constant 5.000000e-01 : f32
    %400 = vector.broadcast %cst_146 : f32 to vector<8x128xf32>
    %401 = arith.addf %399, %400 : vector<8x128xf32>
    %402 = arith.mulf %391, %334 : vector<8x128xf32>
    %403 = arith.mulf %383, %393 : vector<8x128xf32>
    %404 = arith.addf %402, %403 : vector<8x128xf32>
    %405 = math.tanh %404 : vector<8x128xf32>
    %406 = arith.mulf %401, %405 : vector<8x128xf32>
    %407 = tpu.concatenate %406, %370 in 1 : vector<8x128xf32>, vector<8x128xf32> -> vector<8x256xf32>
    %cst_147 = arith.constant dense<0.000000e+00> : vector<8x512xf32>
    %408 = tpu.matmul %407, %4, %cst_147 {dimension_numbers = #tpu.dot_dimension_numbers<[1], [0], [0], [1], [0, 0, 1, 1], [], []>} : vector<8x256xf32>, vector<256x512xf32>, vector<8x512xf32> -> vector<8x512xf32>
    %409 = arith.addf %408, %7 : vector<8x512xf32>
    %410 = vector.extract_strided_slice %409 {offsets = [0, 0], sizes = [8, 128], strides = [1, 1]} : vector<8x512xf32> to vector<8x128xf32>
    %cst_148 = arith.constant 5.000000e-01 : f32
    %411 = vector.broadcast %cst_148 : f32 to vector<8x128xf32>
    %412 = arith.mulf %411, %410 : vector<8x128xf32>
    %413 = math.tanh %412 : vector<8x128xf32>
    %cst_149 = arith.constant 5.000000e-01 : f32
    %414 = vector.broadcast %cst_149 : f32 to vector<8x128xf32>
    %415 = arith.mulf %414, %413 : vector<8x128xf32>
    %cst_150 = arith.constant 5.000000e-01 : f32
    %416 = vector.broadcast %cst_150 : f32 to vector<8x128xf32>
    %417 = arith.addf %415, %416 : vector<8x128xf32>
    %418 = vector.extract_strided_slice %409 {offsets = [0, 128], sizes = [8, 128], strides = [1, 1]} : vector<8x512xf32> to vector<8x128xf32>
    %cst_151 = arith.constant 5.000000e-01 : f32
    %419 = vector.broadcast %cst_151 : f32 to vector<8x128xf32>
    %420 = arith.mulf %419, %418 : vector<8x128xf32>
    %421 = math.tanh %420 : vector<8x128xf32>
    %cst_152 = arith.constant 5.000000e-01 : f32
    %422 = vector.broadcast %cst_152 : f32 to vector<8x128xf32>
    %423 = arith.mulf %422, %421 : vector<8x128xf32>
    %cst_153 = arith.constant 5.000000e-01 : f32
    %424 = vector.broadcast %cst_153 : f32 to vector<8x128xf32>
    %425 = arith.addf %423, %424 : vector<8x128xf32>
    %426 = vector.extract_strided_slice %409 {offsets = [0, 256], sizes = [8, 128], strides = [1, 1]} : vector<8x512xf32> to vector<8x128xf32>
    %427 = math.tanh %426 : vector<8x128xf32>
    %428 = vector.extract_strided_slice %409 {offsets = [0, 384], sizes = [8, 128], strides = [1, 1]} : vector<8x512xf32> to vector<8x128xf32>
    %cst_154 = arith.constant 5.000000e-01 : f32
    %429 = vector.broadcast %cst_154 : f32 to vector<8x128xf32>
    %430 = arith.mulf %429, %428 : vector<8x128xf32>
    %431 = math.tanh %430 : vector<8x128xf32>
    %cst_155 = arith.constant 5.000000e-01 : f32
    %432 = vector.broadcast %cst_155 : f32 to vector<8x128xf32>
    %433 = arith.mulf %432, %431 : vector<8x128xf32>
    %cst_156 = arith.constant 5.000000e-01 : f32
    %434 = vector.broadcast %cst_156 : f32 to vector<8x128xf32>
    %435 = arith.addf %433, %434 : vector<8x128xf32>
    %436 = arith.mulf %425, %368 : vector<8x128xf32>
    %437 = arith.mulf %417, %427 : vector<8x128xf32>
    %438 = arith.addf %436, %437 : vector<8x128xf32>
    %439 = math.tanh %438 : vector<8x128xf32>
    %440 = arith.mulf %435, %439 : vector<8x128xf32>
    %c6_i32 = arith.constant 6 : i32
    %441 = arith.index_cast %c6_i32 : i32 to index
    %c0_157 = arith.constant 0 : index
    %c0_158 = arith.constant 0 : index
    %442 = vector.load %arg15[%441, %c0_157, %c0_158] : memref<8x8x512xf32, #tpu.memory_space<vmem>>, vector<1x8x512xf32>
    %443 = vector.shape_cast %442 : vector<1x8x512xf32> to vector<8x512xf32>
    %cst_159 = arith.constant dense<0.000000e+00> : vector<8x512xf32>
    %444 = tpu.matmul %406, %3, %cst_159 {dimension_numbers = #tpu.dot_dimension_numbers<[1], [0], [0], [1], [0, 0, 1, 1], [], []>} : vector<8x128xf32>, vector<128x512xf32>, vector<8x512xf32> -> vector<8x512xf32>
    %445 = arith.addf %443, %444 : vector<8x512xf32>
    %446 = vector.extract_strided_slice %445 {offsets = [0, 0], sizes = [8, 128], strides = [1, 1]} : vector<8x512xf32> to vector<8x128xf32>
    %cst_160 = arith.constant 5.000000e-01 : f32
    %447 = vector.broadcast %cst_160 : f32 to vector<8x128xf32>
    %448 = arith.mulf %447, %446 : vector<8x128xf32>
    %449 = math.tanh %448 : vector<8x128xf32>
    %cst_161 = arith.constant 5.000000e-01 : f32
    %450 = vector.broadcast %cst_161 : f32 to vector<8x128xf32>
    %451 = arith.mulf %450, %449 : vector<8x128xf32>
    %cst_162 = arith.constant 5.000000e-01 : f32
    %452 = vector.broadcast %cst_162 : f32 to vector<8x128xf32>
    %453 = arith.addf %451, %452 : vector<8x128xf32>
    %454 = vector.extract_strided_slice %445 {offsets = [0, 128], sizes = [8, 128], strides = [1, 1]} : vector<8x512xf32> to vector<8x128xf32>
    %cst_163 = arith.constant 5.000000e-01 : f32
    %455 = vector.broadcast %cst_163 : f32 to vector<8x128xf32>
    %456 = arith.mulf %455, %454 : vector<8x128xf32>
    %457 = math.tanh %456 : vector<8x128xf32>
    %cst_164 = arith.constant 5.000000e-01 : f32
    %458 = vector.broadcast %cst_164 : f32 to vector<8x128xf32>
    %459 = arith.mulf %458, %457 : vector<8x128xf32>
    %cst_165 = arith.constant 5.000000e-01 : f32
    %460 = vector.broadcast %cst_165 : f32 to vector<8x128xf32>
    %461 = arith.addf %459, %460 : vector<8x128xf32>
    %462 = vector.extract_strided_slice %445 {offsets = [0, 256], sizes = [8, 128], strides = [1, 1]} : vector<8x512xf32> to vector<8x128xf32>
    %463 = math.tanh %462 : vector<8x128xf32>
    %464 = vector.extract_strided_slice %445 {offsets = [0, 384], sizes = [8, 128], strides = [1, 1]} : vector<8x512xf32> to vector<8x128xf32>
    %cst_166 = arith.constant 5.000000e-01 : f32
    %465 = vector.broadcast %cst_166 : f32 to vector<8x128xf32>
    %466 = arith.mulf %465, %464 : vector<8x128xf32>
    %467 = math.tanh %466 : vector<8x128xf32>
    %cst_167 = arith.constant 5.000000e-01 : f32
    %468 = vector.broadcast %cst_167 : f32 to vector<8x128xf32>
    %469 = arith.mulf %468, %467 : vector<8x128xf32>
    %cst_168 = arith.constant 5.000000e-01 : f32
    %470 = vector.broadcast %cst_168 : f32 to vector<8x128xf32>
    %471 = arith.addf %469, %470 : vector<8x128xf32>
    %472 = arith.mulf %461, %404 : vector<8x128xf32>
    %473 = arith.mulf %453, %463 : vector<8x128xf32>
    %474 = arith.addf %472, %473 : vector<8x128xf32>
    %475 = math.tanh %474 : vector<8x128xf32>
    %476 = arith.mulf %471, %475 : vector<8x128xf32>
    %477 = tpu.concatenate %476, %440 in 1 : vector<8x128xf32>, vector<8x128xf32> -> vector<8x256xf32>
    %cst_169 = arith.constant dense<0.000000e+00> : vector<8x512xf32>
    %478 = tpu.matmul %477, %4, %cst_169 {dimension_numbers = #tpu.dot_dimension_numbers<[1], [0], [0], [1], [0, 0, 1, 1], [], []>} : vector<8x256xf32>, vector<256x512xf32>, vector<8x512xf32> -> vector<8x512xf32>
    %479 = arith.addf %478, %7 : vector<8x512xf32>
    %480 = vector.extract_strided_slice %479 {offsets = [0, 0], sizes = [8, 128], strides = [1, 1]} : vector<8x512xf32> to vector<8x128xf32>
    %cst_170 = arith.constant 5.000000e-01 : f32
    %481 = vector.broadcast %cst_170 : f32 to vector<8x128xf32>
    %482 = arith.mulf %481, %480 : vector<8x128xf32>
    %483 = math.tanh %482 : vector<8x128xf32>
    %cst_171 = arith.constant 5.000000e-01 : f32
    %484 = vector.broadcast %cst_171 : f32 to vector<8x128xf32>
    %485 = arith.mulf %484, %483 : vector<8x128xf32>
    %cst_172 = arith.constant 5.000000e-01 : f32
    %486 = vector.broadcast %cst_172 : f32 to vector<8x128xf32>
    %487 = arith.addf %485, %486 : vector<8x128xf32>
    %488 = vector.extract_strided_slice %479 {offsets = [0, 128], sizes = [8, 128], strides = [1, 1]} : vector<8x512xf32> to vector<8x128xf32>
    %cst_173 = arith.constant 5.000000e-01 : f32
    %489 = vector.broadcast %cst_173 : f32 to vector<8x128xf32>
    %490 = arith.mulf %489, %488 : vector<8x128xf32>
    %491 = math.tanh %490 : vector<8x128xf32>
    %cst_174 = arith.constant 5.000000e-01 : f32
    %492 = vector.broadcast %cst_174 : f32 to vector<8x128xf32>
    %493 = arith.mulf %492, %491 : vector<8x128xf32>
    %cst_175 = arith.constant 5.000000e-01 : f32
    %494 = vector.broadcast %cst_175 : f32 to vector<8x128xf32>
    %495 = arith.addf %493, %494 : vector<8x128xf32>
    %496 = vector.extract_strided_slice %479 {offsets = [0, 256], sizes = [8, 128], strides = [1, 1]} : vector<8x512xf32> to vector<8x128xf32>
    %497 = math.tanh %496 : vector<8x128xf32>
    %498 = vector.extract_strided_slice %479 {offsets = [0, 384], sizes = [8, 128], strides = [1, 1]} : vector<8x512xf32> to vector<8x128xf32>
    %cst_176 = arith.constant 5.000000e-01 : f32
    %499 = vector.broadcast %cst_176 : f32 to vector<8x128xf32>
    %500 = arith.mulf %499, %498 : vector<8x128xf32>
    %501 = math.tanh %500 : vector<8x128xf32>
    %cst_177 = arith.constant 5.000000e-01 : f32
    %502 = vector.broadcast %cst_177 : f32 to vector<8x128xf32>
    %503 = arith.mulf %502, %501 : vector<8x128xf32>
    %cst_178 = arith.constant 5.000000e-01 : f32
    %504 = vector.broadcast %cst_178 : f32 to vector<8x128xf32>
    %505 = arith.addf %503, %504 : vector<8x128xf32>
    %506 = arith.mulf %495, %438 : vector<8x128xf32>
    %507 = arith.mulf %487, %497 : vector<8x128xf32>
    %508 = arith.addf %506, %507 : vector<8x128xf32>
    %509 = math.tanh %508 : vector<8x128xf32>
    %510 = arith.mulf %505, %509 : vector<8x128xf32>
    %c7_i32 = arith.constant 7 : i32
    %511 = arith.index_cast %c7_i32 : i32 to index
    %c0_179 = arith.constant 0 : index
    %c0_180 = arith.constant 0 : index
    %512 = vector.load %arg15[%511, %c0_179, %c0_180] : memref<8x8x512xf32, #tpu.memory_space<vmem>>, vector<1x8x512xf32>
    %513 = vector.shape_cast %512 : vector<1x8x512xf32> to vector<8x512xf32>
    %cst_181 = arith.constant dense<0.000000e+00> : vector<8x512xf32>
    %514 = tpu.matmul %476, %3, %cst_181 {dimension_numbers = #tpu.dot_dimension_numbers<[1], [0], [0], [1], [0, 0, 1, 1], [], []>} : vector<8x128xf32>, vector<128x512xf32>, vector<8x512xf32> -> vector<8x512xf32>
    %515 = arith.addf %513, %514 : vector<8x512xf32>
    %516 = vector.extract_strided_slice %515 {offsets = [0, 0], sizes = [8, 128], strides = [1, 1]} : vector<8x512xf32> to vector<8x128xf32>
    %cst_182 = arith.constant 5.000000e-01 : f32
    %517 = vector.broadcast %cst_182 : f32 to vector<8x128xf32>
    %518 = arith.mulf %517, %516 : vector<8x128xf32>
    %519 = math.tanh %518 : vector<8x128xf32>
    %cst_183 = arith.constant 5.000000e-01 : f32
    %520 = vector.broadcast %cst_183 : f32 to vector<8x128xf32>
    %521 = arith.mulf %520, %519 : vector<8x128xf32>
    %cst_184 = arith.constant 5.000000e-01 : f32
    %522 = vector.broadcast %cst_184 : f32 to vector<8x128xf32>
    %523 = arith.addf %521, %522 : vector<8x128xf32>
    %524 = vector.extract_strided_slice %515 {offsets = [0, 128], sizes = [8, 128], strides = [1, 1]} : vector<8x512xf32> to vector<8x128xf32>
    %cst_185 = arith.constant 5.000000e-01 : f32
    %525 = vector.broadcast %cst_185 : f32 to vector<8x128xf32>
    %526 = arith.mulf %525, %524 : vector<8x128xf32>
    %527 = math.tanh %526 : vector<8x128xf32>
    %cst_186 = arith.constant 5.000000e-01 : f32
    %528 = vector.broadcast %cst_186 : f32 to vector<8x128xf32>
    %529 = arith.mulf %528, %527 : vector<8x128xf32>
    %cst_187 = arith.constant 5.000000e-01 : f32
    %530 = vector.broadcast %cst_187 : f32 to vector<8x128xf32>
    %531 = arith.addf %529, %530 : vector<8x128xf32>
    %532 = vector.extract_strided_slice %515 {offsets = [0, 256], sizes = [8, 128], strides = [1, 1]} : vector<8x512xf32> to vector<8x128xf32>
    %533 = math.tanh %532 : vector<8x128xf32>
    %534 = vector.extract_strided_slice %515 {offsets = [0, 384], sizes = [8, 128], strides = [1, 1]} : vector<8x512xf32> to vector<8x128xf32>
    %cst_188 = arith.constant 5.000000e-01 : f32
    %535 = vector.broadcast %cst_188 : f32 to vector<8x128xf32>
    %536 = arith.mulf %535, %534 : vector<8x128xf32>
    %537 = math.tanh %536 : vector<8x128xf32>
    %cst_189 = arith.constant 5.000000e-01 : f32
    %538 = vector.broadcast %cst_189 : f32 to vector<8x128xf32>
    %539 = arith.mulf %538, %537 : vector<8x128xf32>
    %cst_190 = arith.constant 5.000000e-01 : f32
    %540 = vector.broadcast %cst_190 : f32 to vector<8x128xf32>
    %541 = arith.addf %539, %540 : vector<8x128xf32>
    %542 = arith.mulf %531, %474 : vector<8x128xf32>
    %543 = arith.mulf %523, %533 : vector<8x128xf32>
    %544 = arith.addf %542, %543 : vector<8x128xf32>
    %545 = math.tanh %544 : vector<8x128xf32>
    %546 = arith.mulf %541, %545 : vector<8x128xf32>
    %547 = tpu.concatenate %546, %510 in 1 : vector<8x128xf32>, vector<8x128xf32> -> vector<8x256xf32>
    %cst_191 = arith.constant dense<0.000000e+00> : vector<8x512xf32>
    %548 = tpu.matmul %547, %4, %cst_191 {dimension_numbers = #tpu.dot_dimension_numbers<[1], [0], [0], [1], [0, 0, 1, 1], [], []>} : vector<8x256xf32>, vector<256x512xf32>, vector<8x512xf32> -> vector<8x512xf32>
    %549 = arith.addf %548, %7 : vector<8x512xf32>
    %550 = vector.extract_strided_slice %549 {offsets = [0, 0], sizes = [8, 128], strides = [1, 1]} : vector<8x512xf32> to vector<8x128xf32>
    %cst_192 = arith.constant 5.000000e-01 : f32
    %551 = vector.broadcast %cst_192 : f32 to vector<8x128xf32>
    %552 = arith.mulf %551, %550 : vector<8x128xf32>
    %553 = math.tanh %552 : vector<8x128xf32>
    %cst_193 = arith.constant 5.000000e-01 : f32
    %554 = vector.broadcast %cst_193 : f32 to vector<8x128xf32>
    %555 = arith.mulf %554, %553 : vector<8x128xf32>
    %cst_194 = arith.constant 5.000000e-01 : f32
    %556 = vector.broadcast %cst_194 : f32 to vector<8x128xf32>
    %557 = arith.addf %555, %556 : vector<8x128xf32>
    %558 = vector.extract_strided_slice %549 {offsets = [0, 128], sizes = [8, 128], strides = [1, 1]} : vector<8x512xf32> to vector<8x128xf32>
    %cst_195 = arith.constant 5.000000e-01 : f32
    %559 = vector.broadcast %cst_195 : f32 to vector<8x128xf32>
    %560 = arith.mulf %559, %558 : vector<8x128xf32>
    %561 = math.tanh %560 : vector<8x128xf32>
    %cst_196 = arith.constant 5.000000e-01 : f32
    %562 = vector.broadcast %cst_196 : f32 to vector<8x128xf32>
    %563 = arith.mulf %562, %561 : vector<8x128xf32>
    %cst_197 = arith.constant 5.000000e-01 : f32
    %564 = vector.broadcast %cst_197 : f32 to vector<8x128xf32>
    %565 = arith.addf %563, %564 : vector<8x128xf32>
    %566 = vector.extract_strided_slice %549 {offsets = [0, 256], sizes = [8, 128], strides = [1, 1]} : vector<8x512xf32> to vector<8x128xf32>
    %567 = math.tanh %566 : vector<8x128xf32>
    %568 = vector.extract_strided_slice %549 {offsets = [0, 384], sizes = [8, 128], strides = [1, 1]} : vector<8x512xf32> to vector<8x128xf32>
    %cst_198 = arith.constant 5.000000e-01 : f32
    %569 = vector.broadcast %cst_198 : f32 to vector<8x128xf32>
    %570 = arith.mulf %569, %568 : vector<8x128xf32>
    %571 = math.tanh %570 : vector<8x128xf32>
    %cst_199 = arith.constant 5.000000e-01 : f32
    %572 = vector.broadcast %cst_199 : f32 to vector<8x128xf32>
    %573 = arith.mulf %572, %571 : vector<8x128xf32>
    %cst_200 = arith.constant 5.000000e-01 : f32
    %574 = vector.broadcast %cst_200 : f32 to vector<8x128xf32>
    %575 = arith.addf %573, %574 : vector<8x128xf32>
    %576 = arith.mulf %565, %508 : vector<8x128xf32>
    %577 = arith.mulf %557, %567 : vector<8x128xf32>
    %578 = arith.addf %576, %577 : vector<8x128xf32>
    %579 = math.tanh %578 : vector<8x128xf32>
    %580 = arith.mulf %575, %579 : vector<8x128xf32>
    %c8_i32 = arith.constant 8 : i32
    %c0_201 = arith.constant 0 : index
    %c0_202 = arith.constant 0 : index
    %581 = vector.load %arg11[%c0_201, %c0_202] : memref<8x128xf32, #tpu.memory_space<vmem>>, vector<8x128xf32>
    tpu.vector_store %arg11[%c0_201, %c0_202], %546 {strides = array<i32>} : memref<8x128xf32, #tpu.memory_space<vmem>>, vector<8x128xf32>,
    %c0_203 = arith.constant 0 : index
    %c0_204 = arith.constant 0 : index
    %582 = vector.load %arg13[%c0_203, %c0_204] : memref<8x128xf32, #tpu.memory_space<vmem>>, vector<8x128xf32>
    tpu.vector_store %arg13[%c0_203, %c0_204], %544 {strides = array<i32>} : memref<8x128xf32, #tpu.memory_space<vmem>>, vector<8x128xf32>,
    %c0_205 = arith.constant 0 : index
    %c0_206 = arith.constant 0 : index
    %583 = vector.load %arg12[%c0_205, %c0_206] : memref<8x128xf32, #tpu.memory_space<vmem>>, vector<8x128xf32>
    tpu.vector_store %arg12[%c0_205, %c0_206], %580 {strides = array<i32>} : memref<8x128xf32, #tpu.memory_space<vmem>>, vector<8x128xf32>,
    %c0_207 = arith.constant 0 : index
    %c0_208 = arith.constant 0 : index
    %584 = vector.load %arg14[%c0_207, %c0_208] : memref<8x128xf32, #tpu.memory_space<vmem>>, vector<8x128xf32>
    tpu.vector_store %arg14[%c0_207, %c0_208], %578 {strides = array<i32>} : memref<8x128xf32, #tpu.memory_space<vmem>>, vector<8x128xf32>,
    %c0_i32_209 = arith.constant 0 : i32
    %585 = arith.cmpi eq, %arg1, %c0_i32_209 : i32
    %586 = arith.extui %585 : i1 to i32
    %c0_i32_210 = arith.constant 0 : i32
    %587 = arith.cmpi ne, %586, %c0_i32_210 : i32
    scf.if %587 {
      %c0_211 = arith.constant 0 : index
      %c0_212 = arith.constant 0 : index
      %588 = vector.load %arg8[%c0_211, %c0_212] : memref<128x128xf32, #tpu.memory_space<vmem>>, vector<128x128xf32>
      %cst_213 = arith.constant dense<0.000000e+00> : vector<8x128xf32>
      %589 = tpu.matmul %580, %588, %cst_213 {dimension_numbers = #tpu.dot_dimension_numbers<[1], [0], [0], [1], [0, 0, 1, 1], [], []>} : vector<8x128xf32>, vector<128x128xf32>, vector<8x128xf32> -> vector<8x128xf32>
      %c0_214 = arith.constant 0 : index
      %c0_215 = arith.constant 0 : index
      %590 = vector.load %arg9[%c0_214, %c0_215] : memref<1x128xf32, #tpu.memory_space<vmem>>, vector<1x128xf32>
      %591 = vector.broadcast %590 : vector<1x128xf32> to vector<8x128xf32>
      %592 = arith.addf %589, %591 : vector<8x128xf32>
      %c0_216 = arith.constant 0 : index
      %c0_217 = arith.constant 0 : index
      %593 = vector.load %arg10[%c0_216, %c0_217] : memref<8x128xf32, #tpu.memory_space<vmem>>, vector<8x128xf32>
      tpu.vector_store %arg10[%c0_216, %c0_217], %592 {strides = array<i32>} : memref<8x128xf32, #tpu.memory_space<vmem>>, vector<8x128xf32>,
    } else {
    }
    return
  }
  func.func @transform_0(%arg0: i32, %arg1: i32) -> (i32, i32, i32) {
    %c0_i32 = arith.constant 0 : i32
    %c0_i32_0 = arith.constant 0 : i32
    return %arg1, %arg0, %c0_i32 : i32, i32, i32
  }
  func.func @transform_1(%arg0: i32, %arg1: i32) -> (i32, i32) {
    %c0_i32 = arith.constant 0 : i32
    %c0_i32_0 = arith.constant 0 : i32
    %c0_i32_1 = arith.constant 0 : i32
    return %c0_i32, %c0_i32_0 : i32, i32
  }
  func.func @transform_2(%arg0: i32, %arg1: i32) -> (i32, i32) {
    %c0_i32 = arith.constant 0 : i32
    %c0_i32_0 = arith.constant 0 : i32
    %c0_i32_1 = arith.constant 0 : i32
    return %c0_i32, %c0_i32_0 : i32, i32
  }
  func.func @transform_3(%arg0: i32, %arg1: i32) -> (i32, i32) {
    %c0_i32 = arith.constant 0 : i32
    %c0_i32_0 = arith.constant 0 : i32
    %c0_i32_1 = arith.constant 0 : i32
    return %c0_i32, %c0_i32_0 : i32, i32
  }
  func.func @transform_4(%arg0: i32, %arg1: i32) -> (i32, i32) {
    %c0_i32 = arith.constant 0 : i32
    %c0_i32_0 = arith.constant 0 : i32
    %c0_i32_1 = arith.constant 0 : i32
    return %c0_i32, %c0_i32_0 : i32, i32
  }
  func.func @transform_5(%arg0: i32, %arg1: i32) -> (i32, i32) {
    %c0_i32 = arith.constant 0 : i32
    %c0_i32_0 = arith.constant 0 : i32
    %c0_i32_1 = arith.constant 0 : i32
    return %c0_i32, %c0_i32_0 : i32, i32
  }
  func.func @transform_6(%arg0: i32, %arg1: i32) -> (i32, i32) {
    %c0_i32 = arith.constant 0 : i32
    %c0_i32_0 = arith.constant 0 : i32
    %c0_i32_1 = arith.constant 0 : i32
    return %c0_i32, %c0_i32_0 : i32, i32
  }
  func.func @transform_7(%arg0: i32, %arg1: i32) -> (i32, i32) {
    %c0_i32 = arith.constant 0 : i32
    %c0_i32_0 = arith.constant 0 : i32
    %c0_i32_1 = arith.constant 0 : i32
    return %c0_i32, %c0_i32_0 : i32, i32
  }
  func.func @transform_8(%arg0: i32, %arg1: i32) -> (i32, i32) {
    %c0_i32 = arith.constant 0 : i32
    %c0_i32_0 = arith.constant 0 : i32
    return %arg0, %c0_i32 : i32, i32
  }
}

module attributes {stable_mosaic.version = 11 : i64} {
  func.func @kernel(%arg0: i32, %arg1: i32, %arg2: memref<8x8x4xf32, #tpu.memory_space<vmem>>, %arg3: memref<4x512xf32, #tpu.memory_space<vmem>>, %arg4: memref<128x512xf32, #tpu.memory_space<vmem>>, %arg5: memref<1x512xf32, #tpu.memory_space<vmem>>, %arg6: memref<256x512xf32, #tpu.memory_space<vmem>>, %arg7: memref<1x512xf32, #tpu.memory_space<vmem>>, %arg8: memref<128x128xf32, #tpu.memory_space<vmem>>, %arg9: memref<1x128xf32, #tpu.memory_space<vmem>>, %arg10: memref<8x128xf32, #tpu.memory_space<vmem>>, %arg11: memref<8x128xf32, #tpu.memory_space<vmem>>, %arg12: memref<8x128xf32, #tpu.memory_space<vmem>>, %arg13: memref<8x128xf32, #tpu.memory_space<vmem>>, %arg14: memref<8x128xf32, #tpu.memory_space<vmem>>, %arg15: memref<8x8x512xf32, #tpu.memory_space<vmem>>) attributes {dimension_semantics = [#tpu.dimension_semantics<parallel>, #tpu.dimension_semantics<arbitrary>], iteration_bounds = array<i64: 1, 1>, scalar_prefetch = 0 : i64, scratch_operands = 5 : i64, tpu.core_type = #tpu.core_type<tc>, window_params = [{transform_indices = @transform_0, window_bounds = array<i64: 8, 8, 4>}, {pipeline_mode = #tpu.pipeline_mode<synchronous>, transform_indices = @transform_1, window_bounds = array<i64: 4, 512>}, {pipeline_mode = #tpu.pipeline_mode<synchronous>, transform_indices = @transform_2, window_bounds = array<i64: 128, 512>}, {pipeline_mode = #tpu.pipeline_mode<synchronous>, transform_indices = @transform_3, window_bounds = array<i64: 1, 512>}, {pipeline_mode = #tpu.pipeline_mode<synchronous>, transform_indices = @transform_4, window_bounds = array<i64: 256, 512>}, {pipeline_mode = #tpu.pipeline_mode<synchronous>, transform_indices = @transform_5, window_bounds = array<i64: 1, 512>}, {pipeline_mode = #tpu.pipeline_mode<synchronous>, transform_indices = @transform_6, window_bounds = array<i64: 128, 128>}, {pipeline_mode = #tpu.pipeline_mode<synchronous>, transform_indices = @transform_7, window_bounds = array<i64: 1, 128>}, {transform_indices = @transform_8, window_bounds = array<i64: 8, 128>}]} {
    %c0_i32 = arith.constant 0 : i32
    %0 = arith.cmpi eq, %arg1, %c0_i32 : i32
    %1 = arith.extui %0 : i1 to i32
    %c0_i32_0 = arith.constant 0 : i32
    %2 = arith.cmpi ne, %1, %c0_i32_0 : i32
    scf.if %2 {
      %cst_211 = arith.constant 0.000000e+00 : f32
      %588 = vector.broadcast %cst_211 : f32 to vector<8x128xf32>
      %c0_212 = arith.constant 0 : index
      %c0_213 = arith.constant 0 : index
      %589 = vector.load %arg11[%c0_212, %c0_213] : memref<8x128xf32, #tpu.memory_space<vmem>>, vector<8x128xf32>
      tpu.vector_store %arg11[%c0_212, %c0_213], %588 {strides = array<i32>} : memref<8x128xf32, #tpu.memory_space<vmem>>, vector<8x128xf32>,
      %cst_214 = arith.constant 0.000000e+00 : f32
      %590 = vector.broadcast %cst_214 : f32 to vector<8x128xf32>
      %c0_215 = arith.constant 0 : index
      %c0_216 = arith.constant 0 : index
      %591 = vector.load %arg13[%c0_215, %c0_216] : memref<8x128xf32, #tpu.memory_space<vmem>>, vector<8x128xf32>
      tpu.vector_store %arg13[%c0_215, %c0_216], %590 {strides = array<i32>} : memref<8x128xf32, #tpu.memory_space<vmem>>, vector<8x128xf32>,
      %cst_217 = arith.constant 0.000000e+00 : f32
      %592 = vector.broadcast %cst_217 : f32 to vector<8x128xf32>
      %c0_218 = arith.constant 0 : index
      %c0_219 = arith.constant 0 : index
      %593 = vector.load %arg12[%c0_218, %c0_219] : memref<8x128xf32, #tpu.memory_space<vmem>>, vector<8x128xf32>
      tpu.vector_store %arg12[%c0_218, %c0_219], %592 {strides = array<i32>} : memref<8x128xf32, #tpu.memory_space<vmem>>, vector<8x128xf32>,
      %cst_220 = arith.constant 0.000000e+00 : f32
      %594 = vector.broadcast %cst_220 : f32 to vector<8x128xf32>
      %c0_221 = arith.constant 0 : index
      %c0_222 = arith.constant 0 : index
      %595 = vector.load %arg14[%c0_221, %c0_222] : memref<8x128xf32, #tpu.memory_space<vmem>>, vector<8x128xf32>
      tpu.vector_store %arg14[%c0_221, %c0_222], %594 {strides = array<i32>} : memref<8x128xf32, #tpu.memory_space<vmem>>, vector<8x128xf32>,
    } else {
    }
    %c0 = arith.constant 0 : index
    %c0_1 = arith.constant 0 : index
    %3 = vector.load %arg4[%c0, %c0_1] : memref<128x512xf32, #tpu.memory_space<vmem>>, vector<128x512xf32>
    %c0_2 = arith.constant 0 : index
    %c0_3 = arith.constant 0 : index
    %4 = vector.load %arg6[%c0_2, %c0_3] : memref<256x512xf32, #tpu.memory_space<vmem>>, vector<256x512xf32>
    %c0_4 = arith.constant 0 : index
    %c0_5 = arith.constant 0 : index
    %5 = vector.load %arg7[%c0_4, %c0_5] : memref<1x512xf32, #tpu.memory_space<vmem>>, vector<1x512xf32>
    %6 = vector.shape_cast %5 : vector<1x512xf32> to vector<1x512xf32>
    %7 = vector.broadcast %6 : vector<1x512xf32> to vector<8x512xf32>
    %c0_6 = arith.constant 0 : index
    %c0_7 = arith.constant 0 : index
    %c0_8 = arith.constant 0 : index
    %8 = vector.load %arg2[%c0_6, %c0_7, %c0_8] : memref<8x8x4xf32, #tpu.memory_space<vmem>>, vector<8x8x4xf32>
    %9 = vector.shape_cast %8 : vector<8x8x4xf32> to vector<64x4xf32>
    %c0_9 = arith.constant 0 : index
    %c0_10 = arith.constant 0 : index
    %10 = vector.load %arg3[%c0_9, %c0_10] : memref<4x512xf32, #tpu.memory_space<vmem>>, vector<4x512xf32>
    %cst = arith.constant dense<0.000000e+00> : vector<64x512xf32>
    %11 = tpu.matmul %9, %10, %cst {dimension_numbers = #tpu.dot_dimension_numbers<[1], [0], [0], [1], [0, 0, 1, 1], [], []>} : vector<64x4xf32>, vector<4x512xf32>, vector<64x512xf32> -> vector<64x512xf32>
    %c0_11 = arith.constant 0 : index
    %c0_12 = arith.constant 0 : index
    %12 = vector.load %arg5[%c0_11, %c0_12] : memref<1x512xf32, #tpu.memory_space<vmem>>, vector<1x512xf32>
    %13 = vector.broadcast %12 : vector<1x512xf32> to vector<64x512xf32>
    %14 = arith.addf %11, %13 : vector<64x512xf32>
    %15 = vector.shape_cast %14 : vector<64x512xf32> to vector<8x8x512xf32>
    %c0_13 = arith.constant 0 : index
    %c0_14 = arith.constant 0 : index
    %c0_15 = arith.constant 0 : index
    %16 = vector.load %arg15[%c0_13, %c0_14, %c0_15] : memref<8x8x512xf32, #tpu.memory_space<vmem>>, vector<8x8x512xf32>
    tpu.vector_store %arg15[%c0_13, %c0_14, %c0_15], %15 {strides = array<i32>} : memref<8x8x512xf32, #tpu.memory_space<vmem>>, vector<8x8x512xf32>,
    %c0_16 = arith.constant 0 : index
    %c0_17 = arith.constant 0 : index
    %17 = vector.load %arg11[%c0_16, %c0_17] : memref<8x128xf32, #tpu.memory_space<vmem>>, vector<8x128xf32>
    %c0_18 = arith.constant 0 : index
    %c0_19 = arith.constant 0 : index
    %18 = vector.load %arg12[%c0_18, %c0_19] : memref<8x128xf32, #tpu.memory_space<vmem>>, vector<8x128xf32>
    %c0_20 = arith.constant 0 : index
    %c0_21 = arith.constant 0 : index
    %19 = vector.load %arg13[%c0_20, %c0_21] : memref<8x128xf32, #tpu.memory_space<vmem>>, vector<8x128xf32>
    %c0_22 = arith.constant 0 : index
    %c0_23 = arith.constant 0 : index
    %20 = vector.load %arg14[%c0_22, %c0_23] : memref<8x128xf32, #tpu.memory_space<vmem>>, vector<8x128xf32>
    %c0_i32_24 = arith.constant 0 : i32
    %21 = arith.index_cast %c0_i32_24 : i32 to index
    %c0_25 = arith.constant 0 : index
    %c0_26 = arith.constant 0 : index
    %22 = vector.load %arg15[%21, %c0_25, %c0_26] : memref<8x8x512xf32, #tpu.memory_space<vmem>>, vector<1x8x512xf32>
    %23 = vector.shape_cast %22 : vector<1x8x512xf32> to vector<8x512xf32>
    %cst_27 = arith.constant dense<0.000000e+00> : vector<8x512xf32>
    %24 = tpu.matmul %17, %3, %cst_27 {dimension_numbers = #tpu.dot_dimension_numbers<[1], [0], [0], [1], [0, 0, 1, 1], [], []>} : vector<8x128xf32>, vector<128x512xf32>, vector<8x512xf32> -> vector<8x512xf32>
    %25 = arith.addf %23, %24 : vector<8x512xf32>
    %26 = vector.extract_strided_slice %25 {offsets = [0, 0], sizes = [8, 128], strides = [1, 1]} : vector<8x512xf32> to vector<8x128xf32>
    %cst_28 = arith.constant 5.000000e-01 : f32
    %27 = vector.broadcast %cst_28 : f32 to vector<8x128xf32>
    %28 = arith.mulf %27, %26 : vector<8x128xf32>
    %29 = math.tanh %28 : vector<8x128xf32>
    %cst_29 = arith.constant 5.000000e-01 : f32
    %30 = vector.broadcast %cst_29 : f32 to vector<8x128xf32>
    %31 = arith.mulf %30, %29 : vector<8x128xf32>
    %cst_30 = arith.constant 5.000000e-01 : f32
    %32 = vector.broadcast %cst_30 : f32 to vector<8x128xf32>
    %33 = arith.addf %31, %32 : vector<8x128xf32>
    %34 = vector.extract_strided_slice %25 {offsets = [0, 128], sizes = [8, 128], strides = [1, 1]} : vector<8x512xf32> to vector<8x128xf32>
    %cst_31 = arith.constant 5.000000e-01 : f32
    %35 = vector.broadcast %cst_31 : f32 to vector<8x128xf32>
    %36 = arith.mulf %35, %34 : vector<8x128xf32>
    %37 = math.tanh %36 : vector<8x128xf32>
    %cst_32 = arith.constant 5.000000e-01 : f32
    %38 = vector.broadcast %cst_32 : f32 to vector<8x128xf32>
    %39 = arith.mulf %38, %37 : vector<8x128xf32>
    %cst_33 = arith.constant 5.000000e-01 : f32
    %40 = vector.broadcast %cst_33 : f32 to vector<8x128xf32>
    %41 = arith.addf %39, %40 : vector<8x128xf32>
    %42 = vector.extract_strided_slice %25 {offsets = [0, 256], sizes = [8, 128], strides = [1, 1]} : vector<8x512xf32> to vector<8x128xf32>
    %43 = math.tanh %42 : vector<8x128xf32>
    %44 = vector.extract_strided_slice %25 {offsets = [0, 384], sizes = [8, 128], strides = [1, 1]} : vector<8x512xf32> to vector<8x128xf32>
    %cst_34 = arith.constant 5.000000e-01 : f32
    %45 = vector.broadcast %cst_34 : f32 to vector<8x128xf32>
    %46 = arith.mulf %45, %44 : vector<8x128xf32>
    %47 = math.tanh %46 : vector<8x128xf32>
    %cst_35 = arith.constant 5.000000e-01 : f32
    %48 = vector.broadcast %cst_35 : f32 to vector<8x128xf32>
    %49 = arith.mulf %48, %47 : vector<8x128xf32>
    %cst_36 = arith.constant 5.000000e-01 : f32
    %50 = vector.broadcast %cst_36 : f32 to vector<8x128xf32>
    %51 = arith.addf %49, %50 : vector<8x128xf32>
    %52 = arith.mulf %41, %19 : vector<8x128xf32>
    %53 = arith.mulf %33, %43 : vector<8x128xf32>
    %54 = arith.addf %52, %53 : vector<8x128xf32>
    %55 = math.tanh %54 : vector<8x128xf32>
    %56 = arith.mulf %51, %55 : vector<8x128xf32>
    %57 = tpu.concatenate %56, %18 in 1 : vector<8x128xf32>, vector<8x128xf32> -> vector<8x256xf32>
    %cst_37 = arith.constant dense<0.000000e+00> : vector<8x512xf32>
    %58 = tpu.matmul %57, %4, %cst_37 {dimension_numbers = #tpu.dot_dimension_numbers<[1], [0], [0], [1], [0, 0, 1, 1], [], []>} : vector<8x256xf32>, vector<256x512xf32>, vector<8x512xf32> -> vector<8x512xf32>
    %59 = arith.addf %58, %7 : vector<8x512xf32>
    %60 = vector.extract_strided_slice %59 {offsets = [0, 0], sizes = [8, 128], strides = [1, 1]} : vector<8x512xf32> to vector<8x128xf32>
    %cst_38 = arith.constant 5.000000e-01 : f32
    %61 = vector.broadcast %cst_38 : f32 to vector<8x128xf32>
    %62 = arith.mulf %61, %60 : vector<8x128xf32>
    %63 = math.tanh %62 : vector<8x128xf32>
    %cst_39 = arith.constant 5.000000e-01 : f32
    %64 = vector.broadcast %cst_39 : f32 to vector<8x128xf32>
    %65 = arith.mulf %64, %63 : vector<8x128xf32>
    %cst_40 = arith.constant 5.000000e-01 : f32
    %66 = vector.broadcast %cst_40 : f32 to vector<8x128xf32>
    %67 = arith.addf %65, %66 : vector<8x128xf32>
    %68 = vector.extract_strided_slice %59 {offsets = [0, 128], sizes = [8, 128], strides = [1, 1]} : vector<8x512xf32> to vector<8x128xf32>
    %cst_41 = arith.constant 5.000000e-01 : f32
    %69 = vector.broadcast %cst_41 : f32 to vector<8x128xf32>
    %70 = arith.mulf %69, %68 : vector<8x128xf32>
    %71 = math.tanh %70 : vector<8x128xf32>
    %cst_42 = arith.constant 5.000000e-01 : f32
    %72 = vector.broadcast %cst_42 : f32 to vector<8x128xf32>
    %73 = arith.mulf %72, %71 : vector<8x128xf32>
    %cst_43 = arith.constant 5.000000e-01 : f32
    %74 = vector.broadcast %cst_43 : f32 to vector<8x128xf32>
    %75 = arith.addf %73, %74 : vector<8x128xf32>
    %76 = vector.extract_strided_slice %59 {offsets = [0, 256], sizes = [8, 128], strides = [1, 1]} : vector<8x512xf32> to vector<8x128xf32>
    %77 = math.tanh %76 : vector<8x128xf32>
    %78 = vector.extract_strided_slice %59 {offsets = [0, 384], sizes = [8, 128], strides = [1, 1]} : vector<8x512xf32> to vector<8x128xf32>
    %cst_44 = arith.constant 5.000000e-01 : f32
    %79 = vector.broadcast %cst_44 : f32 to vector<8x128xf32>
    %80 = arith.mulf %79, %78 : vector<8x128xf32>
    %81 = math.tanh %80 : vector<8x128xf32>
    %cst_45 = arith.constant 5.000000e-01 : f32
    %82 = vector.broadcast %cst_45 : f32 to vector<8x128xf32>
    %83 = arith.mulf %82, %81 : vector<8x128xf32>
    %cst_46 = arith.constant 5.000000e-01 : f32
    %84 = vector.broadcast %cst_46 : f32 to vector<8x128xf32>
    %85 = arith.addf %83, %84 : vector<8x128xf32>
    %86 = arith.mulf %75, %20 : vector<8x128xf32>
    %87 = arith.mulf %67, %77 : vector<8x128xf32>
    %88 = arith.addf %86, %87 : vector<8x128xf32>
    %89 = math.tanh %88 : vector<8x128xf32>
    %90 = arith.mulf %85, %89 : vector<8x128xf32>
    %c1_i32 = arith.constant 1 : i32
    %91 = arith.index_cast %c1_i32 : i32 to index
    %c0_47 = arith.constant 0 : index
    %c0_48 = arith.constant 0 : index
    %92 = vector.load %arg15[%91, %c0_47, %c0_48] : memref<8x8x512xf32, #tpu.memory_space<vmem>>, vector<1x8x512xf32>
    %93 = vector.shape_cast %92 : vector<1x8x512xf32> to vector<8x512xf32>
    %cst_49 = arith.constant dense<0.000000e+00> : vector<8x512xf32>
    %94 = tpu.matmul %56, %3, %cst_49 {dimension_numbers = #tpu.dot_dimension_numbers<[1], [0], [0], [1], [0, 0, 1, 1], [], []>} : vector<8x128xf32>, vector<128x512xf32>, vector<8x512xf32> -> vector<8x512xf32>
    %95 = arith.addf %93, %94 : vector<8x512xf32>
    %96 = vector.extract_strided_slice %95 {offsets = [0, 0], sizes = [8, 128], strides = [1, 1]} : vector<8x512xf32> to vector<8x128xf32>
    %cst_50 = arith.constant 5.000000e-01 : f32
    %97 = vector.broadcast %cst_50 : f32 to vector<8x128xf32>
    %98 = arith.mulf %97, %96 : vector<8x128xf32>
    %99 = math.tanh %98 : vector<8x128xf32>
    %cst_51 = arith.constant 5.000000e-01 : f32
    %100 = vector.broadcast %cst_51 : f32 to vector<8x128xf32>
    %101 = arith.mulf %100, %99 : vector<8x128xf32>
    %cst_52 = arith.constant 5.000000e-01 : f32
    %102 = vector.broadcast %cst_52 : f32 to vector<8x128xf32>
    %103 = arith.addf %101, %102 : vector<8x128xf32>
    %104 = vector.extract_strided_slice %95 {offsets = [0, 128], sizes = [8, 128], strides = [1, 1]} : vector<8x512xf32> to vector<8x128xf32>
    %cst_53 = arith.constant 5.000000e-01 : f32
    %105 = vector.broadcast %cst_53 : f32 to vector<8x128xf32>
    %106 = arith.mulf %105, %104 : vector<8x128xf32>
    %107 = math.tanh %106 : vector<8x128xf32>
    %cst_54 = arith.constant 5.000000e-01 : f32
    %108 = vector.broadcast %cst_54 : f32 to vector<8x128xf32>
    %109 = arith.mulf %108, %107 : vector<8x128xf32>
    %cst_55 = arith.constant 5.000000e-01 : f32
    %110 = vector.broadcast %cst_55 : f32 to vector<8x128xf32>
    %111 = arith.addf %109, %110 : vector<8x128xf32>
    %112 = vector.extract_strided_slice %95 {offsets = [0, 256], sizes = [8, 128], strides = [1, 1]} : vector<8x512xf32> to vector<8x128xf32>
    %113 = math.tanh %112 : vector<8x128xf32>
    %114 = vector.extract_strided_slice %95 {offsets = [0, 384], sizes = [8, 128], strides = [1, 1]} : vector<8x512xf32> to vector<8x128xf32>
    %cst_56 = arith.constant 5.000000e-01 : f32
    %115 = vector.broadcast %cst_56 : f32 to vector<8x128xf32>
    %116 = arith.mulf %115, %114 : vector<8x128xf32>
    %117 = math.tanh %116 : vector<8x128xf32>
    %cst_57 = arith.constant 5.000000e-01 : f32
    %118 = vector.broadcast %cst_57 : f32 to vector<8x128xf32>
    %119 = arith.mulf %118, %117 : vector<8x128xf32>
    %cst_58 = arith.constant 5.000000e-01 : f32
    %120 = vector.broadcast %cst_58 : f32 to vector<8x128xf32>
    %121 = arith.addf %119, %120 : vector<8x128xf32>
    %122 = arith.mulf %111, %54 : vector<8x128xf32>
    %123 = arith.mulf %103, %113 : vector<8x128xf32>
    %124 = arith.addf %122, %123 : vector<8x128xf32>
    %125 = math.tanh %124 : vector<8x128xf32>
    %126 = arith.mulf %121, %125 : vector<8x128xf32>
    %127 = tpu.concatenate %126, %90 in 1 : vector<8x128xf32>, vector<8x128xf32> -> vector<8x256xf32>
    %cst_59 = arith.constant dense<0.000000e+00> : vector<8x512xf32>
    %128 = tpu.matmul %127, %4, %cst_59 {dimension_numbers = #tpu.dot_dimension_numbers<[1], [0], [0], [1], [0, 0, 1, 1], [], []>} : vector<8x256xf32>, vector<256x512xf32>, vector<8x512xf32> -> vector<8x512xf32>
    %129 = arith.addf %128, %7 : vector<8x512xf32>
    %130 = vector.extract_strided_slice %129 {offsets = [0, 0], sizes = [8, 128], strides = [1, 1]} : vector<8x512xf32> to vector<8x128xf32>
    %cst_60 = arith.constant 5.000000e-01 : f32
    %131 = vector.broadcast %cst_60 : f32 to vector<8x128xf32>
    %132 = arith.mulf %131, %130 : vector<8x128xf32>
    %133 = math.tanh %132 : vector<8x128xf32>
    %cst_61 = arith.constant 5.000000e-01 : f32
    %134 = vector.broadcast %cst_61 : f32 to vector<8x128xf32>
    %135 = arith.mulf %134, %133 : vector<8x128xf32>
    %cst_62 = arith.constant 5.000000e-01 : f32
    %136 = vector.broadcast %cst_62 : f32 to vector<8x128xf32>
    %137 = arith.addf %135, %136 : vector<8x128xf32>
    %138 = vector.extract_strided_slice %129 {offsets = [0, 128], sizes = [8, 128], strides = [1, 1]} : vector<8x512xf32> to vector<8x128xf32>
    %cst_63 = arith.constant 5.000000e-01 : f32
    %139 = vector.broadcast %cst_63 : f32 to vector<8x128xf32>
    %140 = arith.mulf %139, %138 : vector<8x128xf32>
    %141 = math.tanh %140 : vector<8x128xf32>
    %cst_64 = arith.constant 5.000000e-01 : f32
    %142 = vector.broadcast %cst_64 : f32 to vector<8x128xf32>
    %143 = arith.mulf %142, %141 : vector<8x128xf32>
    %cst_65 = arith.constant 5.000000e-01 : f32
    %144 = vector.broadcast %cst_65 : f32 to vector<8x128xf32>
    %145 = arith.addf %143, %144 : vector<8x128xf32>
    %146 = vector.extract_strided_slice %129 {offsets = [0, 256], sizes = [8, 128], strides = [1, 1]} : vector<8x512xf32> to vector<8x128xf32>
    %147 = math.tanh %146 : vector<8x128xf32>
    %148 = vector.extract_strided_slice %129 {offsets = [0, 384], sizes = [8, 128], strides = [1, 1]} : vector<8x512xf32> to vector<8x128xf32>
    %cst_66 = arith.constant 5.000000e-01 : f32
    %149 = vector.broadcast %cst_66 : f32 to vector<8x128xf32>
    %150 = arith.mulf %149, %148 : vector<8x128xf32>
    %151 = math.tanh %150 : vector<8x128xf32>
    %cst_67 = arith.constant 5.000000e-01 : f32
    %152 = vector.broadcast %cst_67 : f32 to vector<8x128xf32>
    %153 = arith.mulf %152, %151 : vector<8x128xf32>
    %cst_68 = arith.constant 5.000000e-01 : f32
    %154 = vector.broadcast %cst_68 : f32 to vector<8x128xf32>
    %155 = arith.addf %153, %154 : vector<8x128xf32>
    %156 = arith.mulf %145, %88 : vector<8x128xf32>
    %157 = arith.mulf %137, %147 : vector<8x128xf32>
    %158 = arith.addf %156, %157 : vector<8x128xf32>
    %159 = math.tanh %158 : vector<8x128xf32>
    %160 = arith.mulf %155, %159 : vector<8x128xf32>
    %c2_i32 = arith.constant 2 : i32
    %161 = arith.index_cast %c2_i32 : i32 to index
    %c0_69 = arith.constant 0 : index
    %c0_70 = arith.constant 0 : index
    %162 = vector.load %arg15[%161, %c0_69, %c0_70] : memref<8x8x512xf32, #tpu.memory_space<vmem>>, vector<1x8x512xf32>
    %163 = vector.shape_cast %162 : vector<1x8x512xf32> to vector<8x512xf32>
    %cst_71 = arith.constant dense<0.000000e+00> : vector<8x512xf32>
    %164 = tpu.matmul %126, %3, %cst_71 {dimension_numbers = #tpu.dot_dimension_numbers<[1], [0], [0], [1], [0, 0, 1, 1], [], []>} : vector<8x128xf32>, vector<128x512xf32>, vector<8x512xf32> -> vector<8x512xf32>
    %165 = arith.addf %163, %164 : vector<8x512xf32>
    %166 = vector.extract_strided_slice %165 {offsets = [0, 0], sizes = [8, 128], strides = [1, 1]} : vector<8x512xf32> to vector<8x128xf32>
    %cst_72 = arith.constant 5.000000e-01 : f32
    %167 = vector.broadcast %cst_72 : f32 to vector<8x128xf32>
    %168 = arith.mulf %167, %166 : vector<8x128xf32>
    %169 = math.tanh %168 : vector<8x128xf32>
    %cst_73 = arith.constant 5.000000e-01 : f32
    %170 = vector.broadcast %cst_73 : f32 to vector<8x128xf32>
    %171 = arith.mulf %170, %169 : vector<8x128xf32>
    %cst_74 = arith.constant 5.000000e-01 : f32
    %172 = vector.broadcast %cst_74 : f32 to vector<8x128xf32>
    %173 = arith.addf %171, %172 : vector<8x128xf32>
    %174 = vector.extract_strided_slice %165 {offsets = [0, 128], sizes = [8, 128], strides = [1, 1]} : vector<8x512xf32> to vector<8x128xf32>
    %cst_75 = arith.constant 5.000000e-01 : f32
    %175 = vector.broadcast %cst_75 : f32 to vector<8x128xf32>
    %176 = arith.mulf %175, %174 : vector<8x128xf32>
    %177 = math.tanh %176 : vector<8x128xf32>
    %cst_76 = arith.constant 5.000000e-01 : f32
    %178 = vector.broadcast %cst_76 : f32 to vector<8x128xf32>
    %179 = arith.mulf %178, %177 : vector<8x128xf32>
    %cst_77 = arith.constant 5.000000e-01 : f32
    %180 = vector.broadcast %cst_77 : f32 to vector<8x128xf32>
    %181 = arith.addf %179, %180 : vector<8x128xf32>
    %182 = vector.extract_strided_slice %165 {offsets = [0, 256], sizes = [8, 128], strides = [1, 1]} : vector<8x512xf32> to vector<8x128xf32>
    %183 = math.tanh %182 : vector<8x128xf32>
    %184 = vector.extract_strided_slice %165 {offsets = [0, 384], sizes = [8, 128], strides = [1, 1]} : vector<8x512xf32> to vector<8x128xf32>
    %cst_78 = arith.constant 5.000000e-01 : f32
    %185 = vector.broadcast %cst_78 : f32 to vector<8x128xf32>
    %186 = arith.mulf %185, %184 : vector<8x128xf32>
    %187 = math.tanh %186 : vector<8x128xf32>
    %cst_79 = arith.constant 5.000000e-01 : f32
    %188 = vector.broadcast %cst_79 : f32 to vector<8x128xf32>
    %189 = arith.mulf %188, %187 : vector<8x128xf32>
    %cst_80 = arith.constant 5.000000e-01 : f32
    %190 = vector.broadcast %cst_80 : f32 to vector<8x128xf32>
    %191 = arith.addf %189, %190 : vector<8x128xf32>
    %192 = arith.mulf %181, %124 : vector<8x128xf32>
    %193 = arith.mulf %173, %183 : vector<8x128xf32>
    %194 = arith.addf %192, %193 : vector<8x128xf32>
    %195 = math.tanh %194 : vector<8x128xf32>
    %196 = arith.mulf %191, %195 : vector<8x128xf32>
    %197 = tpu.concatenate %196, %160 in 1 : vector<8x128xf32>, vector<8x128xf32> -> vector<8x256xf32>
    %cst_81 = arith.constant dense<0.000000e+00> : vector<8x512xf32>
    %198 = tpu.matmul %197, %4, %cst_81 {dimension_numbers = #tpu.dot_dimension_numbers<[1], [0], [0], [1], [0, 0, 1, 1], [], []>} : vector<8x256xf32>, vector<256x512xf32>, vector<8x512xf32> -> vector<8x512xf32>
    %199 = arith.addf %198, %7 : vector<8x512xf32>
    %200 = vector.extract_strided_slice %199 {offsets = [0, 0], sizes = [8, 128], strides = [1, 1]} : vector<8x512xf32> to vector<8x128xf32>
    %cst_82 = arith.constant 5.000000e-01 : f32
    %201 = vector.broadcast %cst_82 : f32 to vector<8x128xf32>
    %202 = arith.mulf %201, %200 : vector<8x128xf32>
    %203 = math.tanh %202 : vector<8x128xf32>
    %cst_83 = arith.constant 5.000000e-01 : f32
    %204 = vector.broadcast %cst_83 : f32 to vector<8x128xf32>
    %205 = arith.mulf %204, %203 : vector<8x128xf32>
    %cst_84 = arith.constant 5.000000e-01 : f32
    %206 = vector.broadcast %cst_84 : f32 to vector<8x128xf32>
    %207 = arith.addf %205, %206 : vector<8x128xf32>
    %208 = vector.extract_strided_slice %199 {offsets = [0, 128], sizes = [8, 128], strides = [1, 1]} : vector<8x512xf32> to vector<8x128xf32>
    %cst_85 = arith.constant 5.000000e-01 : f32
    %209 = vector.broadcast %cst_85 : f32 to vector<8x128xf32>
    %210 = arith.mulf %209, %208 : vector<8x128xf32>
    %211 = math.tanh %210 : vector<8x128xf32>
    %cst_86 = arith.constant 5.000000e-01 : f32
    %212 = vector.broadcast %cst_86 : f32 to vector<8x128xf32>
    %213 = arith.mulf %212, %211 : vector<8x128xf32>
    %cst_87 = arith.constant 5.000000e-01 : f32
    %214 = vector.broadcast %cst_87 : f32 to vector<8x128xf32>
    %215 = arith.addf %213, %214 : vector<8x128xf32>
    %216 = vector.extract_strided_slice %199 {offsets = [0, 256], sizes = [8, 128], strides = [1, 1]} : vector<8x512xf32> to vector<8x128xf32>
    %217 = math.tanh %216 : vector<8x128xf32>
    %218 = vector.extract_strided_slice %199 {offsets = [0, 384], sizes = [8, 128], strides = [1, 1]} : vector<8x512xf32> to vector<8x128xf32>
    %cst_88 = arith.constant 5.000000e-01 : f32
    %219 = vector.broadcast %cst_88 : f32 to vector<8x128xf32>
    %220 = arith.mulf %219, %218 : vector<8x128xf32>
    %221 = math.tanh %220 : vector<8x128xf32>
    %cst_89 = arith.constant 5.000000e-01 : f32
    %222 = vector.broadcast %cst_89 : f32 to vector<8x128xf32>
    %223 = arith.mulf %222, %221 : vector<8x128xf32>
    %cst_90 = arith.constant 5.000000e-01 : f32
    %224 = vector.broadcast %cst_90 : f32 to vector<8x128xf32>
    %225 = arith.addf %223, %224 : vector<8x128xf32>
    %226 = arith.mulf %215, %158 : vector<8x128xf32>
    %227 = arith.mulf %207, %217 : vector<8x128xf32>
    %228 = arith.addf %226, %227 : vector<8x128xf32>
    %229 = math.tanh %228 : vector<8x128xf32>
    %230 = arith.mulf %225, %229 : vector<8x128xf32>
    %c3_i32 = arith.constant 3 : i32
    %231 = arith.index_cast %c3_i32 : i32 to index
    %c0_91 = arith.constant 0 : index
    %c0_92 = arith.constant 0 : index
    %232 = vector.load %arg15[%231, %c0_91, %c0_92] : memref<8x8x512xf32, #tpu.memory_space<vmem>>, vector<1x8x512xf32>
    %233 = vector.shape_cast %232 : vector<1x8x512xf32> to vector<8x512xf32>
    %cst_93 = arith.constant dense<0.000000e+00> : vector<8x512xf32>
    %234 = tpu.matmul %196, %3, %cst_93 {dimension_numbers = #tpu.dot_dimension_numbers<[1], [0], [0], [1], [0, 0, 1, 1], [], []>} : vector<8x128xf32>, vector<128x512xf32>, vector<8x512xf32> -> vector<8x512xf32>
    %235 = arith.addf %233, %234 : vector<8x512xf32>
    %236 = vector.extract_strided_slice %235 {offsets = [0, 0], sizes = [8, 128], strides = [1, 1]} : vector<8x512xf32> to vector<8x128xf32>
    %cst_94 = arith.constant 5.000000e-01 : f32
    %237 = vector.broadcast %cst_94 : f32 to vector<8x128xf32>
    %238 = arith.mulf %237, %236 : vector<8x128xf32>
    %239 = math.tanh %238 : vector<8x128xf32>
    %cst_95 = arith.constant 5.000000e-01 : f32
    %240 = vector.broadcast %cst_95 : f32 to vector<8x128xf32>
    %241 = arith.mulf %240, %239 : vector<8x128xf32>
    %cst_96 = arith.constant 5.000000e-01 : f32
    %242 = vector.broadcast %cst_96 : f32 to vector<8x128xf32>
    %243 = arith.addf %241, %242 : vector<8x128xf32>
    %244 = vector.extract_strided_slice %235 {offsets = [0, 128], sizes = [8, 128], strides = [1, 1]} : vector<8x512xf32> to vector<8x128xf32>
    %cst_97 = arith.constant 5.000000e-01 : f32
    %245 = vector.broadcast %cst_97 : f32 to vector<8x128xf32>
    %246 = arith.mulf %245, %244 : vector<8x128xf32>
    %247 = math.tanh %246 : vector<8x128xf32>
    %cst_98 = arith.constant 5.000000e-01 : f32
    %248 = vector.broadcast %cst_98 : f32 to vector<8x128xf32>
    %249 = arith.mulf %248, %247 : vector<8x128xf32>
    %cst_99 = arith.constant 5.000000e-01 : f32
    %250 = vector.broadcast %cst_99 : f32 to vector<8x128xf32>
    %251 = arith.addf %249, %250 : vector<8x128xf32>
    %252 = vector.extract_strided_slice %235 {offsets = [0, 256], sizes = [8, 128], strides = [1, 1]} : vector<8x512xf32> to vector<8x128xf32>
    %253 = math.tanh %252 : vector<8x128xf32>
    %254 = vector.extract_strided_slice %235 {offsets = [0, 384], sizes = [8, 128], strides = [1, 1]} : vector<8x512xf32> to vector<8x128xf32>
    %cst_100 = arith.constant 5.000000e-01 : f32
    %255 = vector.broadcast %cst_100 : f32 to vector<8x128xf32>
    %256 = arith.mulf %255, %254 : vector<8x128xf32>
    %257 = math.tanh %256 : vector<8x128xf32>
    %cst_101 = arith.constant 5.000000e-01 : f32
    %258 = vector.broadcast %cst_101 : f32 to vector<8x128xf32>
    %259 = arith.mulf %258, %257 : vector<8x128xf32>
    %cst_102 = arith.constant 5.000000e-01 : f32
    %260 = vector.broadcast %cst_102 : f32 to vector<8x128xf32>
    %261 = arith.addf %259, %260 : vector<8x128xf32>
    %262 = arith.mulf %251, %194 : vector<8x128xf32>
    %263 = arith.mulf %243, %253 : vector<8x128xf32>
    %264 = arith.addf %262, %263 : vector<8x128xf32>
    %265 = math.tanh %264 : vector<8x128xf32>
    %266 = arith.mulf %261, %265 : vector<8x128xf32>
    %267 = tpu.concatenate %266, %230 in 1 : vector<8x128xf32>, vector<8x128xf32> -> vector<8x256xf32>
    %cst_103 = arith.constant dense<0.000000e+00> : vector<8x512xf32>
    %268 = tpu.matmul %267, %4, %cst_103 {dimension_numbers = #tpu.dot_dimension_numbers<[1], [0], [0], [1], [0, 0, 1, 1], [], []>} : vector<8x256xf32>, vector<256x512xf32>, vector<8x512xf32> -> vector<8x512xf32>
    %269 = arith.addf %268, %7 : vector<8x512xf32>
    %270 = vector.extract_strided_slice %269 {offsets = [0, 0], sizes = [8, 128], strides = [1, 1]} : vector<8x512xf32> to vector<8x128xf32>
    %cst_104 = arith.constant 5.000000e-01 : f32
    %271 = vector.broadcast %cst_104 : f32 to vector<8x128xf32>
    %272 = arith.mulf %271, %270 : vector<8x128xf32>
    %273 = math.tanh %272 : vector<8x128xf32>
    %cst_105 = arith.constant 5.000000e-01 : f32
    %274 = vector.broadcast %cst_105 : f32 to vector<8x128xf32>
    %275 = arith.mulf %274, %273 : vector<8x128xf32>
    %cst_106 = arith.constant 5.000000e-01 : f32
    %276 = vector.broadcast %cst_106 : f32 to vector<8x128xf32>
    %277 = arith.addf %275, %276 : vector<8x128xf32>
    %278 = vector.extract_strided_slice %269 {offsets = [0, 128], sizes = [8, 128], strides = [1, 1]} : vector<8x512xf32> to vector<8x128xf32>
    %cst_107 = arith.constant 5.000000e-01 : f32
    %279 = vector.broadcast %cst_107 : f32 to vector<8x128xf32>
    %280 = arith.mulf %279, %278 : vector<8x128xf32>
    %281 = math.tanh %280 : vector<8x128xf32>
    %cst_108 = arith.constant 5.000000e-01 : f32
    %282 = vector.broadcast %cst_108 : f32 to vector<8x128xf32>
    %283 = arith.mulf %282, %281 : vector<8x128xf32>
    %cst_109 = arith.constant 5.000000e-01 : f32
    %284 = vector.broadcast %cst_109 : f32 to vector<8x128xf32>
    %285 = arith.addf %283, %284 : vector<8x128xf32>
    %286 = vector.extract_strided_slice %269 {offsets = [0, 256], sizes = [8, 128], strides = [1, 1]} : vector<8x512xf32> to vector<8x128xf32>
    %287 = math.tanh %286 : vector<8x128xf32>
    %288 = vector.extract_strided_slice %269 {offsets = [0, 384], sizes = [8, 128], strides = [1, 1]} : vector<8x512xf32> to vector<8x128xf32>
    %cst_110 = arith.constant 5.000000e-01 : f32
    %289 = vector.broadcast %cst_110 : f32 to vector<8x128xf32>
    %290 = arith.mulf %289, %288 : vector<8x128xf32>
    %291 = math.tanh %290 : vector<8x128xf32>
    %cst_111 = arith.constant 5.000000e-01 : f32
    %292 = vector.broadcast %cst_111 : f32 to vector<8x128xf32>
    %293 = arith.mulf %292, %291 : vector<8x128xf32>
    %cst_112 = arith.constant 5.000000e-01 : f32
    %294 = vector.broadcast %cst_112 : f32 to vector<8x128xf32>
    %295 = arith.addf %293, %294 : vector<8x128xf32>
    %296 = arith.mulf %285, %228 : vector<8x128xf32>
    %297 = arith.mulf %277, %287 : vector<8x128xf32>
    %298 = arith.addf %296, %297 : vector<8x128xf32>
    %299 = math.tanh %298 : vector<8x128xf32>
    %300 = arith.mulf %295, %299 : vector<8x128xf32>
    %c4_i32 = arith.constant 4 : i32
    %301 = arith.index_cast %c4_i32 : i32 to index
    %c0_113 = arith.constant 0 : index
    %c0_114 = arith.constant 0 : index
    %302 = vector.load %arg15[%301, %c0_113, %c0_114] : memref<8x8x512xf32, #tpu.memory_space<vmem>>, vector<1x8x512xf32>
    %303 = vector.shape_cast %302 : vector<1x8x512xf32> to vector<8x512xf32>
    %cst_115 = arith.constant dense<0.000000e+00> : vector<8x512xf32>
    %304 = tpu.matmul %266, %3, %cst_115 {dimension_numbers = #tpu.dot_dimension_numbers<[1], [0], [0], [1], [0, 0, 1, 1], [], []>} : vector<8x128xf32>, vector<128x512xf32>, vector<8x512xf32> -> vector<8x512xf32>
    %305 = arith.addf %303, %304 : vector<8x512xf32>
    %306 = vector.extract_strided_slice %305 {offsets = [0, 0], sizes = [8, 128], strides = [1, 1]} : vector<8x512xf32> to vector<8x128xf32>
    %cst_116 = arith.constant 5.000000e-01 : f32
    %307 = vector.broadcast %cst_116 : f32 to vector<8x128xf32>
    %308 = arith.mulf %307, %306 : vector<8x128xf32>
    %309 = math.tanh %308 : vector<8x128xf32>
    %cst_117 = arith.constant 5.000000e-01 : f32
    %310 = vector.broadcast %cst_117 : f32 to vector<8x128xf32>
    %311 = arith.mulf %310, %309 : vector<8x128xf32>
    %cst_118 = arith.constant 5.000000e-01 : f32
    %312 = vector.broadcast %cst_118 : f32 to vector<8x128xf32>
    %313 = arith.addf %311, %312 : vector<8x128xf32>
    %314 = vector.extract_strided_slice %305 {offsets = [0, 128], sizes = [8, 128], strides = [1, 1]} : vector<8x512xf32> to vector<8x128xf32>
    %cst_119 = arith.constant 5.000000e-01 : f32
    %315 = vector.broadcast %cst_119 : f32 to vector<8x128xf32>
    %316 = arith.mulf %315, %314 : vector<8x128xf32>
    %317 = math.tanh %316 : vector<8x128xf32>
    %cst_120 = arith.constant 5.000000e-01 : f32
    %318 = vector.broadcast %cst_120 : f32 to vector<8x128xf32>
    %319 = arith.mulf %318, %317 : vector<8x128xf32>
    %cst_121 = arith.constant 5.000000e-01 : f32
    %320 = vector.broadcast %cst_121 : f32 to vector<8x128xf32>
    %321 = arith.addf %319, %320 : vector<8x128xf32>
    %322 = vector.extract_strided_slice %305 {offsets = [0, 256], sizes = [8, 128], strides = [1, 1]} : vector<8x512xf32> to vector<8x128xf32>
    %323 = math.tanh %322 : vector<8x128xf32>
    %324 = vector.extract_strided_slice %305 {offsets = [0, 384], sizes = [8, 128], strides = [1, 1]} : vector<8x512xf32> to vector<8x128xf32>
    %cst_122 = arith.constant 5.000000e-01 : f32
    %325 = vector.broadcast %cst_122 : f32 to vector<8x128xf32>
    %326 = arith.mulf %325, %324 : vector<8x128xf32>
    %327 = math.tanh %326 : vector<8x128xf32>
    %cst_123 = arith.constant 5.000000e-01 : f32
    %328 = vector.broadcast %cst_123 : f32 to vector<8x128xf32>
    %329 = arith.mulf %328, %327 : vector<8x128xf32>
    %cst_124 = arith.constant 5.000000e-01 : f32
    %330 = vector.broadcast %cst_124 : f32 to vector<8x128xf32>
    %331 = arith.addf %329, %330 : vector<8x128xf32>
    %332 = arith.mulf %321, %264 : vector<8x128xf32>
    %333 = arith.mulf %313, %323 : vector<8x128xf32>
    %334 = arith.addf %332, %333 : vector<8x128xf32>
    %335 = math.tanh %334 : vector<8x128xf32>
    %336 = arith.mulf %331, %335 : vector<8x128xf32>
    %337 = tpu.concatenate %336, %300 in 1 : vector<8x128xf32>, vector<8x128xf32> -> vector<8x256xf32>
    %cst_125 = arith.constant dense<0.000000e+00> : vector<8x512xf32>
    %338 = tpu.matmul %337, %4, %cst_125 {dimension_numbers = #tpu.dot_dimension_numbers<[1], [0], [0], [1], [0, 0, 1, 1], [], []>} : vector<8x256xf32>, vector<256x512xf32>, vector<8x512xf32> -> vector<8x512xf32>
    %339 = arith.addf %338, %7 : vector<8x512xf32>
    %340 = vector.extract_strided_slice %339 {offsets = [0, 0], sizes = [8, 128], strides = [1, 1]} : vector<8x512xf32> to vector<8x128xf32>
    %cst_126 = arith.constant 5.000000e-01 : f32
    %341 = vector.broadcast %cst_126 : f32 to vector<8x128xf32>
    %342 = arith.mulf %341, %340 : vector<8x128xf32>
    %343 = math.tanh %342 : vector<8x128xf32>
    %cst_127 = arith.constant 5.000000e-01 : f32
    %344 = vector.broadcast %cst_127 : f32 to vector<8x128xf32>
    %345 = arith.mulf %344, %343 : vector<8x128xf32>
    %cst_128 = arith.constant 5.000000e-01 : f32
    %346 = vector.broadcast %cst_128 : f32 to vector<8x128xf32>
    %347 = arith.addf %345, %346 : vector<8x128xf32>
    %348 = vector.extract_strided_slice %339 {offsets = [0, 128], sizes = [8, 128], strides = [1, 1]} : vector<8x512xf32> to vector<8x128xf32>
    %cst_129 = arith.constant 5.000000e-01 : f32
    %349 = vector.broadcast %cst_129 : f32 to vector<8x128xf32>
    %350 = arith.mulf %349, %348 : vector<8x128xf32>
    %351 = math.tanh %350 : vector<8x128xf32>
    %cst_130 = arith.constant 5.000000e-01 : f32
    %352 = vector.broadcast %cst_130 : f32 to vector<8x128xf32>
    %353 = arith.mulf %352, %351 : vector<8x128xf32>
    %cst_131 = arith.constant 5.000000e-01 : f32
    %354 = vector.broadcast %cst_131 : f32 to vector<8x128xf32>
    %355 = arith.addf %353, %354 : vector<8x128xf32>
    %356 = vector.extract_strided_slice %339 {offsets = [0, 256], sizes = [8, 128], strides = [1, 1]} : vector<8x512xf32> to vector<8x128xf32>
    %357 = math.tanh %356 : vector<8x128xf32>
    %358 = vector.extract_strided_slice %339 {offsets = [0, 384], sizes = [8, 128], strides = [1, 1]} : vector<8x512xf32> to vector<8x128xf32>
    %cst_132 = arith.constant 5.000000e-01 : f32
    %359 = vector.broadcast %cst_132 : f32 to vector<8x128xf32>
    %360 = arith.mulf %359, %358 : vector<8x128xf32>
    %361 = math.tanh %360 : vector<8x128xf32>
    %cst_133 = arith.constant 5.000000e-01 : f32
    %362 = vector.broadcast %cst_133 : f32 to vector<8x128xf32>
    %363 = arith.mulf %362, %361 : vector<8x128xf32>
    %cst_134 = arith.constant 5.000000e-01 : f32
    %364 = vector.broadcast %cst_134 : f32 to vector<8x128xf32>
    %365 = arith.addf %363, %364 : vector<8x128xf32>
    %366 = arith.mulf %355, %298 : vector<8x128xf32>
    %367 = arith.mulf %347, %357 : vector<8x128xf32>
    %368 = arith.addf %366, %367 : vector<8x128xf32>
    %369 = math.tanh %368 : vector<8x128xf32>
    %370 = arith.mulf %365, %369 : vector<8x128xf32>
    %c5_i32 = arith.constant 5 : i32
    %371 = arith.index_cast %c5_i32 : i32 to index
    %c0_135 = arith.constant 0 : index
    %c0_136 = arith.constant 0 : index
    %372 = vector.load %arg15[%371, %c0_135, %c0_136] : memref<8x8x512xf32, #tpu.memory_space<vmem>>, vector<1x8x512xf32>
    %373 = vector.shape_cast %372 : vector<1x8x512xf32> to vector<8x512xf32>
    %cst_137 = arith.constant dense<0.000000e+00> : vector<8x512xf32>
    %374 = tpu.matmul %336, %3, %cst_137 {dimension_numbers = #tpu.dot_dimension_numbers<[1], [0], [0], [1], [0, 0, 1, 1], [], []>} : vector<8x128xf32>, vector<128x512xf32>, vector<8x512xf32> -> vector<8x512xf32>
    %375 = arith.addf %373, %374 : vector<8x512xf32>
    %376 = vector.extract_strided_slice %375 {offsets = [0, 0], sizes = [8, 128], strides = [1, 1]} : vector<8x512xf32> to vector<8x128xf32>
    %cst_138 = arith.constant 5.000000e-01 : f32
    %377 = vector.broadcast %cst_138 : f32 to vector<8x128xf32>
    %378 = arith.mulf %377, %376 : vector<8x128xf32>
    %379 = math.tanh %378 : vector<8x128xf32>
    %cst_139 = arith.constant 5.000000e-01 : f32
    %380 = vector.broadcast %cst_139 : f32 to vector<8x128xf32>
    %381 = arith.mulf %380, %379 : vector<8x128xf32>
    %cst_140 = arith.constant 5.000000e-01 : f32
    %382 = vector.broadcast %cst_140 : f32 to vector<8x128xf32>
    %383 = arith.addf %381, %382 : vector<8x128xf32>
    %384 = vector.extract_strided_slice %375 {offsets = [0, 128], sizes = [8, 128], strides = [1, 1]} : vector<8x512xf32> to vector<8x128xf32>
    %cst_141 = arith.constant 5.000000e-01 : f32
    %385 = vector.broadcast %cst_141 : f32 to vector<8x128xf32>
    %386 = arith.mulf %385, %384 : vector<8x128xf32>
    %387 = math.tanh %386 : vector<8x128xf32>
    %cst_142 = arith.constant 5.000000e-01 : f32
    %388 = vector.broadcast %cst_142 : f32 to vector<8x128xf32>
    %389 = arith.mulf %388, %387 : vector<8x128xf32>
    %cst_143 = arith.constant 5.000000e-01 : f32
    %390 = vector.broadcast %cst_143 : f32 to vector<8x128xf32>
    %391 = arith.addf %389, %390 : vector<8x128xf32>
    %392 = vector.extract_strided_slice %375 {offsets = [0, 256], sizes = [8, 128], strides = [1, 1]} : vector<8x512xf32> to vector<8x128xf32>
    %393 = math.tanh %392 : vector<8x128xf32>
    %394 = vector.extract_strided_slice %375 {offsets = [0, 384], sizes = [8, 128], strides = [1, 1]} : vector<8x512xf32> to vector<8x128xf32>
    %cst_144 = arith.constant 5.000000e-01 : f32
    %395 = vector.broadcast %cst_144 : f32 to vector<8x128xf32>
    %396 = arith.mulf %395, %394 : vector<8x128xf32>
    %397 = math.tanh %396 : vector<8x128xf32>
    %cst_145 = arith.constant 5.000000e-01 : f32
    %398 = vector.broadcast %cst_145 : f32 to vector<8x128xf32>
    %399 = arith.mulf %398, %397 : vector<8x128xf32>
    %cst_146 = arith.constant 5.000000e-01 : f32
    %400 = vector.broadcast %cst_146 : f32 to vector<8x128xf32>
    %401 = arith.addf %399, %400 : vector<8x128xf32>
    %402 = arith.mulf %391, %334 : vector<8x128xf32>
    %403 = arith.mulf %383, %393 : vector<8x128xf32>
    %404 = arith.addf %402, %403 : vector<8x128xf32>
    %405 = math.tanh %404 : vector<8x128xf32>
    %406 = arith.mulf %401, %405 : vector<8x128xf32>
    %407 = tpu.concatenate %406, %370 in 1 : vector<8x128xf32>, vector<8x128xf32> -> vector<8x256xf32>
    %cst_147 = arith.constant dense<0.000000e+00> : vector<8x512xf32>
    %408 = tpu.matmul %407, %4, %cst_147 {dimension_numbers = #tpu.dot_dimension_numbers<[1], [0], [0], [1], [0, 0, 1, 1], [], []>} : vector<8x256xf32>, vector<256x512xf32>, vector<8x512xf32> -> vector<8x512xf32>
    %409 = arith.addf %408, %7 : vector<8x512xf32>
    %410 = vector.extract_strided_slice %409 {offsets = [0, 0], sizes = [8, 128], strides = [1, 1]} : vector<8x512xf32> to vector<8x128xf32>
    %cst_148 = arith.constant 5.000000e-01 : f32
    %411 = vector.broadcast %cst_148 : f32 to vector<8x128xf32>
    %412 = arith.mulf %411, %410 : vector<8x128xf32>
    %413 = math.tanh %412 : vector<8x128xf32>
    %cst_149 = arith.constant 5.000000e-01 : f32
    %414 = vector.broadcast %cst_149 : f32 to vector<8x128xf32>
    %415 = arith.mulf %414, %413 : vector<8x128xf32>
    %cst_150 = arith.constant 5.000000e-01 : f32
    %416 = vector.broadcast %cst_150 : f32 to vector<8x128xf32>
    %417 = arith.addf %415, %416 : vector<8x128xf32>
    %418 = vector.extract_strided_slice %409 {offsets = [0, 128], sizes = [8, 128], strides = [1, 1]} : vector<8x512xf32> to vector<8x128xf32>
    %cst_151 = arith.constant 5.000000e-01 : f32
    %419 = vector.broadcast %cst_151 : f32 to vector<8x128xf32>
    %420 = arith.mulf %419, %418 : vector<8x128xf32>
    %421 = math.tanh %420 : vector<8x128xf32>
    %cst_152 = arith.constant 5.000000e-01 : f32
    %422 = vector.broadcast %cst_152 : f32 to vector<8x128xf32>
    %423 = arith.mulf %422, %421 : vector<8x128xf32>
    %cst_153 = arith.constant 5.000000e-01 : f32
    %424 = vector.broadcast %cst_153 : f32 to vector<8x128xf32>
    %425 = arith.addf %423, %424 : vector<8x128xf32>
    %426 = vector.extract_strided_slice %409 {offsets = [0, 256], sizes = [8, 128], strides = [1, 1]} : vector<8x512xf32> to vector<8x128xf32>
    %427 = math.tanh %426 : vector<8x128xf32>
    %428 = vector.extract_strided_slice %409 {offsets = [0, 384], sizes = [8, 128], strides = [1, 1]} : vector<8x512xf32> to vector<8x128xf32>
    %cst_154 = arith.constant 5.000000e-01 : f32
    %429 = vector.broadcast %cst_154 : f32 to vector<8x128xf32>
    %430 = arith.mulf %429, %428 : vector<8x128xf32>
    %431 = math.tanh %430 : vector<8x128xf32>
    %cst_155 = arith.constant 5.000000e-01 : f32
    %432 = vector.broadcast %cst_155 : f32 to vector<8x128xf32>
    %433 = arith.mulf %432, %431 : vector<8x128xf32>
    %cst_156 = arith.constant 5.000000e-01 : f32
    %434 = vector.broadcast %cst_156 : f32 to vector<8x128xf32>
    %435 = arith.addf %433, %434 : vector<8x128xf32>
    %436 = arith.mulf %425, %368 : vector<8x128xf32>
    %437 = arith.mulf %417, %427 : vector<8x128xf32>
    %438 = arith.addf %436, %437 : vector<8x128xf32>
    %439 = math.tanh %438 : vector<8x128xf32>
    %440 = arith.mulf %435, %439 : vector<8x128xf32>
    %c6_i32 = arith.constant 6 : i32
    %441 = arith.index_cast %c6_i32 : i32 to index
    %c0_157 = arith.constant 0 : index
    %c0_158 = arith.constant 0 : index
    %442 = vector.load %arg15[%441, %c0_157, %c0_158] : memref<8x8x512xf32, #tpu.memory_space<vmem>>, vector<1x8x512xf32>
    %443 = vector.shape_cast %442 : vector<1x8x512xf32> to vector<8x512xf32>
    %cst_159 = arith.constant dense<0.000000e+00> : vector<8x512xf32>
    %444 = tpu.matmul %406, %3, %cst_159 {dimension_numbers = #tpu.dot_dimension_numbers<[1], [0], [0], [1], [0, 0, 1, 1], [], []>} : vector<8x128xf32>, vector<128x512xf32>, vector<8x512xf32> -> vector<8x512xf32>
    %445 = arith.addf %443, %444 : vector<8x512xf32>
    %446 = vector.extract_strided_slice %445 {offsets = [0, 0], sizes = [8, 128], strides = [1, 1]} : vector<8x512xf32> to vector<8x128xf32>
    %cst_160 = arith.constant 5.000000e-01 : f32
    %447 = vector.broadcast %cst_160 : f32 to vector<8x128xf32>
    %448 = arith.mulf %447, %446 : vector<8x128xf32>
    %449 = math.tanh %448 : vector<8x128xf32>
    %cst_161 = arith.constant 5.000000e-01 : f32
    %450 = vector.broadcast %cst_161 : f32 to vector<8x128xf32>
    %451 = arith.mulf %450, %449 : vector<8x128xf32>
    %cst_162 = arith.constant 5.000000e-01 : f32
    %452 = vector.broadcast %cst_162 : f32 to vector<8x128xf32>
    %453 = arith.addf %451, %452 : vector<8x128xf32>
    %454 = vector.extract_strided_slice %445 {offsets = [0, 128], sizes = [8, 128], strides = [1, 1]} : vector<8x512xf32> to vector<8x128xf32>
    %cst_163 = arith.constant 5.000000e-01 : f32
    %455 = vector.broadcast %cst_163 : f32 to vector<8x128xf32>
    %456 = arith.mulf %455, %454 : vector<8x128xf32>
    %457 = math.tanh %456 : vector<8x128xf32>
    %cst_164 = arith.constant 5.000000e-01 : f32
    %458 = vector.broadcast %cst_164 : f32 to vector<8x128xf32>
    %459 = arith.mulf %458, %457 : vector<8x128xf32>
    %cst_165 = arith.constant 5.000000e-01 : f32
    %460 = vector.broadcast %cst_165 : f32 to vector<8x128xf32>
    %461 = arith.addf %459, %460 : vector<8x128xf32>
    %462 = vector.extract_strided_slice %445 {offsets = [0, 256], sizes = [8, 128], strides = [1, 1]} : vector<8x512xf32> to vector<8x128xf32>
    %463 = math.tanh %462 : vector<8x128xf32>
    %464 = vector.extract_strided_slice %445 {offsets = [0, 384], sizes = [8, 128], strides = [1, 1]} : vector<8x512xf32> to vector<8x128xf32>
    %cst_166 = arith.constant 5.000000e-01 : f32
    %465 = vector.broadcast %cst_166 : f32 to vector<8x128xf32>
    %466 = arith.mulf %465, %464 : vector<8x128xf32>
    %467 = math.tanh %466 : vector<8x128xf32>
    %cst_167 = arith.constant 5.000000e-01 : f32
    %468 = vector.broadcast %cst_167 : f32 to vector<8x128xf32>
    %469 = arith.mulf %468, %467 : vector<8x128xf32>
    %cst_168 = arith.constant 5.000000e-01 : f32
    %470 = vector.broadcast %cst_168 : f32 to vector<8x128xf32>
    %471 = arith.addf %469, %470 : vector<8x128xf32>
    %472 = arith.mulf %461, %404 : vector<8x128xf32>
    %473 = arith.mulf %453, %463 : vector<8x128xf32>
    %474 = arith.addf %472, %473 : vector<8x128xf32>
    %475 = math.tanh %474 : vector<8x128xf32>
    %476 = arith.mulf %471, %475 : vector<8x128xf32>
    %477 = tpu.concatenate %476, %440 in 1 : vector<8x128xf32>, vector<8x128xf32> -> vector<8x256xf32>
    %cst_169 = arith.constant dense<0.000000e+00> : vector<8x512xf32>
    %478 = tpu.matmul %477, %4, %cst_169 {dimension_numbers = #tpu.dot_dimension_numbers<[1], [0], [0], [1], [0, 0, 1, 1], [], []>} : vector<8x256xf32>, vector<256x512xf32>, vector<8x512xf32> -> vector<8x512xf32>
    %479 = arith.addf %478, %7 : vector<8x512xf32>
    %480 = vector.extract_strided_slice %479 {offsets = [0, 0], sizes = [8, 128], strides = [1, 1]} : vector<8x512xf32> to vector<8x128xf32>
    %cst_170 = arith.constant 5.000000e-01 : f32
    %481 = vector.broadcast %cst_170 : f32 to vector<8x128xf32>
    %482 = arith.mulf %481, %480 : vector<8x128xf32>
    %483 = math.tanh %482 : vector<8x128xf32>
    %cst_171 = arith.constant 5.000000e-01 : f32
    %484 = vector.broadcast %cst_171 : f32 to vector<8x128xf32>
    %485 = arith.mulf %484, %483 : vector<8x128xf32>
    %cst_172 = arith.constant 5.000000e-01 : f32
    %486 = vector.broadcast %cst_172 : f32 to vector<8x128xf32>
    %487 = arith.addf %485, %486 : vector<8x128xf32>
    %488 = vector.extract_strided_slice %479 {offsets = [0, 128], sizes = [8, 128], strides = [1, 1]} : vector<8x512xf32> to vector<8x128xf32>
    %cst_173 = arith.constant 5.000000e-01 : f32
    %489 = vector.broadcast %cst_173 : f32 to vector<8x128xf32>
    %490 = arith.mulf %489, %488 : vector<8x128xf32>
    %491 = math.tanh %490 : vector<8x128xf32>
    %cst_174 = arith.constant 5.000000e-01 : f32
    %492 = vector.broadcast %cst_174 : f32 to vector<8x128xf32>
    %493 = arith.mulf %492, %491 : vector<8x128xf32>
    %cst_175 = arith.constant 5.000000e-01 : f32
    %494 = vector.broadcast %cst_175 : f32 to vector<8x128xf32>
    %495 = arith.addf %493, %494 : vector<8x128xf32>
    %496 = vector.extract_strided_slice %479 {offsets = [0, 256], sizes = [8, 128], strides = [1, 1]} : vector<8x512xf32> to vector<8x128xf32>
    %497 = math.tanh %496 : vector<8x128xf32>
    %498 = vector.extract_strided_slice %479 {offsets = [0, 384], sizes = [8, 128], strides = [1, 1]} : vector<8x512xf32> to vector<8x128xf32>
    %cst_176 = arith.constant 5.000000e-01 : f32
    %499 = vector.broadcast %cst_176 : f32 to vector<8x128xf32>
    %500 = arith.mulf %499, %498 : vector<8x128xf32>
    %501 = math.tanh %500 : vector<8x128xf32>
    %cst_177 = arith.constant 5.000000e-01 : f32
    %502 = vector.broadcast %cst_177 : f32 to vector<8x128xf32>
    %503 = arith.mulf %502, %501 : vector<8x128xf32>
    %cst_178 = arith.constant 5.000000e-01 : f32
    %504 = vector.broadcast %cst_178 : f32 to vector<8x128xf32>
    %505 = arith.addf %503, %504 : vector<8x128xf32>
    %506 = arith.mulf %495, %438 : vector<8x128xf32>
    %507 = arith.mulf %487, %497 : vector<8x128xf32>
    %508 = arith.addf %506, %507 : vector<8x128xf32>
    %509 = math.tanh %508 : vector<8x128xf32>
    %510 = arith.mulf %505, %509 : vector<8x128xf32>
    %c7_i32 = arith.constant 7 : i32
    %511 = arith.index_cast %c7_i32 : i32 to index
    %c0_179 = arith.constant 0 : index
    %c0_180 = arith.constant 0 : index
    %512 = vector.load %arg15[%511, %c0_179, %c0_180] : memref<8x8x512xf32, #tpu.memory_space<vmem>>, vector<1x8x512xf32>
    %513 = vector.shape_cast %512 : vector<1x8x512xf32> to vector<8x512xf32>
    %cst_181 = arith.constant dense<0.000000e+00> : vector<8x512xf32>
    %514 = tpu.matmul %476, %3, %cst_181 {dimension_numbers = #tpu.dot_dimension_numbers<[1], [0], [0], [1], [0, 0, 1, 1], [], []>} : vector<8x128xf32>, vector<128x512xf32>, vector<8x512xf32> -> vector<8x512xf32>
    %515 = arith.addf %513, %514 : vector<8x512xf32>
    %516 = vector.extract_strided_slice %515 {offsets = [0, 0], sizes = [8, 128], strides = [1, 1]} : vector<8x512xf32> to vector<8x128xf32>
    %cst_182 = arith.constant 5.000000e-01 : f32
    %517 = vector.broadcast %cst_182 : f32 to vector<8x128xf32>
    %518 = arith.mulf %517, %516 : vector<8x128xf32>
    %519 = math.tanh %518 : vector<8x128xf32>
    %cst_183 = arith.constant 5.000000e-01 : f32
    %520 = vector.broadcast %cst_183 : f32 to vector<8x128xf32>
    %521 = arith.mulf %520, %519 : vector<8x128xf32>
    %cst_184 = arith.constant 5.000000e-01 : f32
    %522 = vector.broadcast %cst_184 : f32 to vector<8x128xf32>
    %523 = arith.addf %521, %522 : vector<8x128xf32>
    %524 = vector.extract_strided_slice %515 {offsets = [0, 128], sizes = [8, 128], strides = [1, 1]} : vector<8x512xf32> to vector<8x128xf32>
    %cst_185 = arith.constant 5.000000e-01 : f32
    %525 = vector.broadcast %cst_185 : f32 to vector<8x128xf32>
    %526 = arith.mulf %525, %524 : vector<8x128xf32>
    %527 = math.tanh %526 : vector<8x128xf32>
    %cst_186 = arith.constant 5.000000e-01 : f32
    %528 = vector.broadcast %cst_186 : f32 to vector<8x128xf32>
    %529 = arith.mulf %528, %527 : vector<8x128xf32>
    %cst_187 = arith.constant 5.000000e-01 : f32
    %530 = vector.broadcast %cst_187 : f32 to vector<8x128xf32>
    %531 = arith.addf %529, %530 : vector<8x128xf32>
    %532 = vector.extract_strided_slice %515 {offsets = [0, 256], sizes = [8, 128], strides = [1, 1]} : vector<8x512xf32> to vector<8x128xf32>
    %533 = math.tanh %532 : vector<8x128xf32>
    %534 = vector.extract_strided_slice %515 {offsets = [0, 384], sizes = [8, 128], strides = [1, 1]} : vector<8x512xf32> to vector<8x128xf32>
    %cst_188 = arith.constant 5.000000e-01 : f32
    %535 = vector.broadcast %cst_188 : f32 to vector<8x128xf32>
    %536 = arith.mulf %535, %534 : vector<8x128xf32>
    %537 = math.tanh %536 : vector<8x128xf32>
    %cst_189 = arith.constant 5.000000e-01 : f32
    %538 = vector.broadcast %cst_189 : f32 to vector<8x128xf32>
    %539 = arith.mulf %538, %537 : vector<8x128xf32>
    %cst_190 = arith.constant 5.000000e-01 : f32
    %540 = vector.broadcast %cst_190 : f32 to vector<8x128xf32>
    %541 = arith.addf %539, %540 : vector<8x128xf32>
    %542 = arith.mulf %531, %474 : vector<8x128xf32>
    %543 = arith.mulf %523, %533 : vector<8x128xf32>
    %544 = arith.addf %542, %543 : vector<8x128xf32>
    %545 = math.tanh %544 : vector<8x128xf32>
    %546 = arith.mulf %541, %545 : vector<8x128xf32>
    %547 = tpu.concatenate %546, %510 in 1 : vector<8x128xf32>, vector<8x128xf32> -> vector<8x256xf32>
    %cst_191 = arith.constant dense<0.000000e+00> : vector<8x512xf32>
    %548 = tpu.matmul %547, %4, %cst_191 {dimension_numbers = #tpu.dot_dimension_numbers<[1], [0], [0], [1], [0, 0, 1, 1], [], []>} : vector<8x256xf32>, vector<256x512xf32>, vector<8x512xf32> -> vector<8x512xf32>
    %549 = arith.addf %548, %7 : vector<8x512xf32>
    %550 = vector.extract_strided_slice %549 {offsets = [0, 0], sizes = [8, 128], strides = [1, 1]} : vector<8x512xf32> to vector<8x128xf32>
    %cst_192 = arith.constant 5.000000e-01 : f32
    %551 = vector.broadcast %cst_192 : f32 to vector<8x128xf32>
    %552 = arith.mulf %551, %550 : vector<8x128xf32>
    %553 = math.tanh %552 : vector<8x128xf32>
    %cst_193 = arith.constant 5.000000e-01 : f32
    %554 = vector.broadcast %cst_193 : f32 to vector<8x128xf32>
    %555 = arith.mulf %554, %553 : vector<8x128xf32>
    %cst_194 = arith.constant 5.000000e-01 : f32
    %556 = vector.broadcast %cst_194 : f32 to vector<8x128xf32>
    %557 = arith.addf %555, %556 : vector<8x128xf32>
    %558 = vector.extract_strided_slice %549 {offsets = [0, 128], sizes = [8, 128], strides = [1, 1]} : vector<8x512xf32> to vector<8x128xf32>
    %cst_195 = arith.constant 5.000000e-01 : f32
    %559 = vector.broadcast %cst_195 : f32 to vector<8x128xf32>
    %560 = arith.mulf %559, %558 : vector<8x128xf32>
    %561 = math.tanh %560 : vector<8x128xf32>
    %cst_196 = arith.constant 5.000000e-01 : f32
    %562 = vector.broadcast %cst_196 : f32 to vector<8x128xf32>
    %563 = arith.mulf %562, %561 : vector<8x128xf32>
    %cst_197 = arith.constant 5.000000e-01 : f32
    %564 = vector.broadcast %cst_197 : f32 to vector<8x128xf32>
    %565 = arith.addf %563, %564 : vector<8x128xf32>
    %566 = vector.extract_strided_slice %549 {offsets = [0, 256], sizes = [8, 128], strides = [1, 1]} : vector<8x512xf32> to vector<8x128xf32>
    %567 = math.tanh %566 : vector<8x128xf32>
    %568 = vector.extract_strided_slice %549 {offsets = [0, 384], sizes = [8, 128], strides = [1, 1]} : vector<8x512xf32> to vector<8x128xf32>
    %cst_198 = arith.constant 5.000000e-01 : f32
    %569 = vector.broadcast %cst_198 : f32 to vector<8x128xf32>
    %570 = arith.mulf %569, %568 : vector<8x128xf32>
    %571 = math.tanh %570 : vector<8x128xf32>
    %cst_199 = arith.constant 5.000000e-01 : f32
    %572 = vector.broadcast %cst_199 : f32 to vector<8x128xf32>
    %573 = arith.mulf %572, %571 : vector<8x128xf32>
    %cst_200 = arith.constant 5.000000e-01 : f32
    %574 = vector.broadcast %cst_200 : f32 to vector<8x128xf32>
    %575 = arith.addf %573, %574 : vector<8x128xf32>
    %576 = arith.mulf %565, %508 : vector<8x128xf32>
    %577 = arith.mulf %557, %567 : vector<8x128xf32>
    %578 = arith.addf %576, %577 : vector<8x128xf32>
    %579 = math.tanh %578 : vector<8x128xf32>
    %580 = arith.mulf %575, %579 : vector<8x128xf32>
    %c8_i32 = arith.constant 8 : i32
    %c0_201 = arith.constant 0 : index
    %c0_202 = arith.constant 0 : index
    %581 = vector.load %arg11[%c0_201, %c0_202] : memref<8x128xf32, #tpu.memory_space<vmem>>, vector<8x128xf32>
    tpu.vector_store %arg11[%c0_201, %c0_202], %546 {strides = array<i32>} : memref<8x128xf32, #tpu.memory_space<vmem>>, vector<8x128xf32>,
    %c0_203 = arith.constant 0 : index
    %c0_204 = arith.constant 0 : index
    %582 = vector.load %arg13[%c0_203, %c0_204] : memref<8x128xf32, #tpu.memory_space<vmem>>, vector<8x128xf32>
    tpu.vector_store %arg13[%c0_203, %c0_204], %544 {strides = array<i32>} : memref<8x128xf32, #tpu.memory_space<vmem>>, vector<8x128xf32>,
    %c0_205 = arith.constant 0 : index
    %c0_206 = arith.constant 0 : index
    %583 = vector.load %arg12[%c0_205, %c0_206] : memref<8x128xf32, #tpu.memory_space<vmem>>, vector<8x128xf32>
    tpu.vector_store %arg12[%c0_205, %c0_206], %580 {strides = array<i32>} : memref<8x128xf32, #tpu.memory_space<vmem>>, vector<8x128xf32>,
    %c0_207 = arith.constant 0 : index
    %c0_208 = arith.constant 0 : index
    %584 = vector.load %arg14[%c0_207, %c0_208] : memref<8x128xf32, #tpu.memory_space<vmem>>, vector<8x128xf32>
    tpu.vector_store %arg14[%c0_207, %c0_208], %578 {strides = array<i32>} : memref<8x128xf32, #tpu.memory_space<vmem>>, vector<8x128xf32>,
    %c0_i32_209 = arith.constant 0 : i32
    %585 = arith.cmpi eq, %arg1, %c0_i32_209 : i32
    %586 = arith.extui %585 : i1 to i32
    %c0_i32_210 = arith.constant 0 : i32
    %587 = arith.cmpi ne, %586, %c0_i32_210 : i32
    scf.if %587 {
      %c0_211 = arith.constant 0 : index
      %c0_212 = arith.constant 0 : index
      %588 = vector.load %arg8[%c0_211, %c0_212] : memref<128x128xf32, #tpu.memory_space<vmem>>, vector<128x128xf32>
      %cst_213 = arith.constant dense<0.000000e+00> : vector<8x128xf32>
      %589 = tpu.matmul %580, %588, %cst_213 {dimension_numbers = #tpu.dot_dimension_numbers<[1], [0], [0], [1], [0, 0, 1, 1], [], []>} : vector<8x128xf32>, vector<128x128xf32>, vector<8x128xf32> -> vector<8x128xf32>
      %c0_214 = arith.constant 0 : index
      %c0_215 = arith.constant 0 : index
      %590 = vector.load %arg9[%c0_214, %c0_215] : memref<1x128xf32, #tpu.memory_space<vmem>>, vector<1x128xf32>
      %591 = vector.broadcast %590 : vector<1x128xf32> to vector<8x128xf32>
      %592 = arith.addf %589, %591 : vector<8x128xf32>
      %c0_216 = arith.constant 0 : index
      %c0_217 = arith.constant 0 : index
      %593 = vector.load %arg10[%c0_216, %c0_217] : memref<8x128xf32, #tpu.memory_space<vmem>>, vector<8x128xf32>
      tpu.vector_store %arg10[%c0_216, %c0_217], %592 {strides = array<i32>} : memref<8x128xf32, #tpu.memory_space<vmem>>, vector<8x128xf32>,
    } else {
    }
    return
  }
  func.func @transform_0(%arg0: i32, %arg1: i32) -> (i32, i32, i32) {
    %c0_i32 = arith.constant 0 : i32
    %c0_i32_0 = arith.constant 0 : i32
    return %arg1, %arg0, %c0_i32 : i32, i32, i32
  }
  func.func @transform_1(%arg0: i32, %arg1: i32) -> (i32, i32) {
    %c0_i32 = arith.constant 0 : i32
    %c0_i32_0 = arith.constant 0 : i32
    %c0_i32_1 = arith.constant 0 : i32
    return %c0_i32, %c0_i32_0 : i32, i32
  }
  func.func @transform_2(%arg0: i32, %arg1: i32) -> (i32, i32) {
    %c0_i32 = arith.constant 0 : i32
    %c0_i32_0 = arith.constant 0 : i32
    %c0_i32_1 = arith.constant 0 : i32
    return %c0_i32, %c0_i32_0 : i32, i32
  }
  func.func @transform_3(%arg0: i32, %arg1: i32) -> (i32, i32) {
    %c0_i32 = arith.constant 0 : i32
    %c0_i32_0 = arith.constant 0 : i32
    %c0_i32_1 = arith.constant 0 : i32
    return %c0_i32, %c0_i32_0 : i32, i32
  }
  func.func @transform_4(%arg0: i32, %arg1: i32) -> (i32, i32) {
    %c0_i32 = arith.constant 0 : i32
    %c0_i32_0 = arith.constant 0 : i32
    %c0_i32_1 = arith.constant 0 : i32
    return %c0_i32, %c0_i32_0 : i32, i32
  }
  func.func @transform_5(%arg0: i32, %arg1: i32) -> (i32, i32) {
    %c0_i32 = arith.constant 0 : i32
    %c0_i32_0 = arith.constant 0 : i32
    %c0_i32_1 = arith.constant 0 : i32
    return %c0_i32, %c0_i32_0 : i32, i32
  }
  func.func @transform_6(%arg0: i32, %arg1: i32) -> (i32, i32) {
    %c0_i32 = arith.constant 0 : i32
    %c0_i32_0 = arith.constant 0 : i32
    %c0_i32_1 = arith.constant 0 : i32
    return %c0_i32, %c0_i32_0 : i32, i32
  }
  func.func @transform_7(%arg0: i32, %arg1: i32) -> (i32, i32) {
    %c0_i32 = arith.constant 0 : i32
    %c0_i32_0 = arith.constant 0 : i32
    %c0_i32_1 = arith.constant 0 : i32
    return %c0_i32, %c0_i32_0 : i32, i32
  }
  func.func @transform_8(%arg0: i32, %arg1: i32) -> (i32, i32) {
    %c0_i32 = arith.constant 0 : i32
    %c0_i32_0 = arith.constant 0 : i32
    return %arg0, %c0_i32 : i32, i32
  }
}

</mosaic_0001>

<llo_original>
// kernel: fwd.1
$region0: #{fwd.1}
  #allocation0 [shape = 'u32[]', space=smem, size = 0x4, offset = 0x4, fixed_abs, tag = 'smem constant byte address 0x4 - core index']
  #allocation1 [shape = 'u32[144,128]{1,0:T(1,128)}', space=vmem, size = 0x12000, scoped, tag = 'internal scratch']
  #allocation2 [shape = 'f32[8,128]{1,0:T(8,128)}', space=vmem, size = 0x1000, scoped, tag = 'scratch operand']
  #allocation3 [shape = 'f32[8,128]{1,0:T(8,128)}', space=vmem, size = 0x1000, scoped, tag = 'scratch operand']
  #allocation4 [shape = 'f32[8,128]{1,0:T(8,128)}', space=vmem, size = 0x1000, scoped, tag = 'scratch operand']
  #allocation5 [shape = 'f32[8,128]{1,0:T(8,128)}', space=vmem, size = 0x1000, scoped, tag = 'scratch operand']
  #allocation6 [shape = 'f32[8,8,512]{2,1,0:T(8,128)}', space=vmem, size = 0x20000, scoped, tag = 'scratch operand']
  %s0 = inlined_call_operand.vmem [shape: f32[8,8,4], index: 0, kind: input, shape index: {}]
  %s1 = inlined_call_operand.vmem [shape: f32[4,512], index: 1, kind: input, shape index: {}]
  %s2 = inlined_call_operand.vmem [shape: f32[128,512], index: 2, kind: input, shape index: {}]
  %s3 = inlined_call_operand.vmem [shape: f32[1,512], index: 3, kind: input, shape index: {}]
  %s4 = inlined_call_operand.vmem [shape: f32[256,512], index: 4, kind: input, shape index: {}]
  %s5 = inlined_call_operand.vmem [shape: f32[1,512], index: 5, kind: input, shape index: {}]
  %s6 = inlined_call_operand.vmem [shape: f32[128,128], index: 6, kind: input, shape index: {}]
  %s7 = inlined_call_operand.vmem [shape: f32[1,128], index: 7, kind: input, shape index: {}]
  %s8 = inlined_call_operand.vmem [shape: f32[8,128], index: 8, kind: output, shape index: {}]
  %s9 = sld [smem:[#allocation0]]
  $region50: #{fwd.1} parent=0
    _
  %s11 = ssub.s32 1, %s9
  %s12 = scalar_select 0, %s11, %s9
  // Predicated region
  $region2: #{fwd.1} parent=0 // pred_check
    _
  $region3: #{fwd.1} parent=0 // pred_check_branch
    %14 = sbr.rel (0) target = $region5
  $region4: #{fwd.1} parent=0 // pred_region
    _
  $region5: #{fwd.1} parent=0 // pred_fallthru
    _
  // Predicated region
  $region6: #{fwd.1} parent=0 // pred_check
    _
  $region7: #{fwd.1} parent=0 // pred_check_branch
    %16 = sbr.rel (0) target = $region9
  $region8: #{fwd.1} parent=0 // pred_region
    _
  $region9: #{fwd.1} parent=0 // pred_fallthru
    _
  // Predicated region
  $region10: #{fwd.1} parent=0 // pred_check
    _
  $region11: #{fwd.1} parent=0 // pred_check_branch
    %18 = sbr.rel (0) target = $region13
  $region12: #{fwd.1} parent=0 // pred_region
    _
  $region13: #{fwd.1} parent=0 // pred_fallthru
    _
  // Predicated region
  $region14: #{fwd.1} parent=0 // pred_check
    _
  $region15: #{fwd.1} parent=0 // pred_check_branch
    %20 = sbr.rel (0) target = $region17
  $region16: #{fwd.1} parent=0 // pred_region
    _
  $region17: #{fwd.1} parent=0 // pred_fallthru
    _
  // Predicated region
  $region18: #{fwd.1} parent=0 // pred_check
    _
  $region19: #{fwd.1} parent=0 // pred_check_branch
    %22 = sbr.rel (0) target = $region21
  $region20: #{fwd.1} parent=0 // pred_region
    _
  $region21: #{fwd.1} parent=0 // pred_fallthru
    _
  // Predicated region
  $region22: #{fwd.1} parent=0 // pred_check
    _
  $region23: #{fwd.1} parent=0 // pred_check_branch
    %24 = sbr.rel (0) target = $region25
  $region24: #{fwd.1} parent=0 // pred_region
    _
  $region25: #{fwd.1} parent=0 // pred_fallthru
    _
  // Predicated region
  $region26: #{fwd.1} parent=0 // pred_check
    _
  $region27: #{fwd.1} parent=0 // pred_check_branch
    %26 = sbr.rel (0) target = $region29
  $region28: #{fwd.1} parent=0 // pred_region
    _
  $region29: #{fwd.1} parent=0 // pred_fallthru
    _
  // Predicated region
  $region30: #{fwd.1} parent=0 // pred_check
    _
  $region31: #{fwd.1} parent=0 // pred_check_branch
    %28 = sbr.rel (0) target = $region33
  $region32: #{fwd.1} parent=0 // pred_region
    _
  $region33: #{fwd.1} parent=0 // pred_fallthru
    _
  %p29 = scmp.eq.s32.totalorder 0, 0
  // Predicated region
  $region34: #{fwd.1} parent=0 // pred_check
    %p30 = pneg %p29
  $region35: #{fwd.1} parent=0 // pred_check_branch
    %32 = sbr.rel (%p30) target = $region37
  $region36: #{fwd.1} parent=0 // pred_region
    %33 = vst [vmem:[#allocation2] sm:$0xff] 0.0
    %34 = vst [vmem:[#allocation4] sm:$0xff] 0.0
    %35 = vst [vmem:[#allocation3] sm:$0xff] 0.0
    %36 = vst [vmem:[#allocation5] sm:$0xff] 0.0
  $region37: #{fwd.1} parent=0 // pred_fallthru
    _
  %v37 = vld [vmem:[%s2] sm:$0xff]
  %v38 = vld [vmem:[%s2 + $0x8] sm:$0xff]
  %v39 = vld [vmem:[%s2 + $0x10] sm:$0xff]
  %v40 = vld [vmem:[%s2 + $0x18] sm:$0xff]
  %v41 = vld [vmem:[%s2 + $0x20] sm:$0xff]
  %v42 = vld [vmem:[%s2 + $0x28] sm:$0xff]
  %v43 = vld [vmem:[%s2 + $0x30] sm:$0xff]
  %v44 = vld [vmem:[%s2 + $0x38] sm:$0xff]
  %v45 = vld [vmem:[%s2 + $0x40] sm:$0xff]
  %v46 = vld [vmem:[%s2 + $0x48] sm:$0xff]
  %v47 = vld [vmem:[%s2 + $0x50] sm:$0xff]
  %v48 = vld [vmem:[%s2 + $0x58] sm:$0xff]
  %v49 = vld [vmem:[%s2 + $0x60] sm:$0xff]
  %v50 = vld [vmem:[%s2 + $0x68] sm:$0xff]
  %v51 = vld [vmem:[%s2 + $0x70] sm:$0xff]
  %v52 = vld [vmem:[%s2 + $0x78] sm:$0xff]
  %v53 = vld [vmem:[%s2 + $0x80] sm:$0xff]
  %v54 = vld [vmem:[%s2 + $0x88] sm:$0xff]
  %v55 = vld [vmem:[%s2 + $0x90] sm:$0xff]
  %v56 = vld [vmem:[%s2 + $0x98] sm:$0xff]
  %v57 = vld [vmem:[%s2 + $0xa0] sm:$0xff]
  %v58 = vld [vmem:[%s2 + $0xa8] sm:$0xff]
  %v59 = vld [vmem:[%s2 + $0xb0] sm:$0xff]
  %v60 = vld [vmem:[%s2 + $0xb8] sm:$0xff]
  %v61 = vld [vmem:[%s2 + $0xc0] sm:$0xff]
  %v62 = vld [vmem:[%s2 + $0xc8] sm:$0xff]
  %v63 = vld [vmem:[%s2 + $0xd0] sm:$0xff]
  %v64 = vld [vmem:[%s2 + $0xd8] sm:$0xff]
  %v65 = vld [vmem:[%s2 + $0xe0] sm:$0xff]
  %v66 = vld [vmem:[%s2 + $0xe8] sm:$0xff]
  %v67 = vld [vmem:[%s2 + $0xf0] sm:$0xff]
  %v68 = vld [vmem:[%s2 + $0xf8] sm:$0xff]
  %v69 = vld [vmem:[%s2 + $0x100] sm:$0xff]
  %v70 = vld [vmem:[%s2 + $0x108] sm:$0xff]
  %v71 = vld [vmem:[%s2 + $0x110] sm:$0xff]
  %v72 = vld [vmem:[%s2 + $0x118] sm:$0xff]
  %v73 = vld [vmem:[%s2 + $0x120] sm:$0xff]
  %v74 = vld [vmem:[%s2 + $0x128] sm:$0xff]
  %v75 = vld [vmem:[%s2 + $0x130] sm:$0xff]
  %v76 = vld [vmem:[%s2 + $0x138] sm:$0xff]
  %v77 = vld [vmem:[%s2 + $0x140] sm:$0xff]
  %v78 = vld [vmem:[%s2 + $0x148] sm:$0xff]
  %v79 = vld [vmem:[%s2 + $0x150] sm:$0xff]
  %v80 = vld [vmem:[%s2 + $0x158] sm:$0xff]
  %v81 = vld [vmem:[%s2 + $0x160] sm:$0xff]
  %v82 = vld [vmem:[%s2 + $0x168] sm:$0xff]
  %v83 = vld [vmem:[%s2 + $0x170] sm:$0xff]
  %v84 = vld [vmem:[%s2 + $0x178] sm:$0xff]
  %v85 = vld [vmem:[%s2 + $0x180] sm:$0xff]
  %v86 = vld [vmem:[%s2 + $0x188] sm:$0xff]
  %v87 = vld [vmem:[%s2 + $0x190] sm:$0xff]
  %v88 = vld [vmem:[%s2 + $0x198] sm:$0xff]
  %v89 = vld [vmem:[%s2 + $0x1a0] sm:$0xff]
  %v90 = vld [vmem:[%s2 + $0x1a8] sm:$0xff]
  %v91 = vld [vmem:[%s2 + $0x1b0] sm:$0xff]
  %v92 = vld [vmem:[%s2 + $0x1b8] sm:$0xff]
  %v93 = vld [vmem:[%s2 + $0x1c0] sm:$0xff]
  %v94 = vld [vmem:[%s2 + $0x1c8] sm:$0xff]
  %v95 = vld [vmem:[%s2 + $0x1d0] sm:$0xff]
  %v96 = vld [vmem:[%s2 + $0x1d8] sm:$0xff]
  %v97 = vld [vmem:[%s2 + $0x1e0] sm:$0xff]
  %v98 = vld [vmem:[%s2 + $0x1e8] sm:$0xff]
  %v99 = vld [vmem:[%s2 + $0x1f0] sm:$0xff]
  %v100 = vld [vmem:[%s2 + $0x1f8] sm:$0xff]
  %v101 = vld [vmem:[%s4] sm:$0xff]
  %v102 = vld [vmem:[%s4 + $0x8] sm:$0xff]
  %v103 = vld [vmem:[%s4 + $0x10] sm:$0xff]
  %v104 = vld [vmem:[%s4 + $0x18] sm:$0xff]
  %v105 = vld [vmem:[%s4 + $0x20] sm:$0xff]
  %v106 = vld [vmem:[%s4 + $0x28] sm:$0xff]
  %v107 = vld [vmem:[%s4 + $0x30] sm:$0xff]
  %v108 = vld [vmem:[%s4 + $0x38] sm:$0xff]
  %v109 = vld [vmem:[%s4 + $0x40] sm:$0xff]
  %v110 = vld [vmem:[%s4 + $0x48] sm:$0xff]
  %v111 = vld [vmem:[%s4 + $0x50] sm:$0xff]
  %v112 = vld [vmem:[%s4 + $0x58] sm:$0xff]
  %v113 = vld [vmem:[%s4 + $0x60] sm:$0xff]
  %v114 = vld [vmem:[%s4 + $0x68] sm:$0xff]
  %v115 = vld [vmem:[%s4 + $0x70] sm:$0xff]
  %v116 = vld [vmem:[%s4 + $0x78] sm:$0xff]
  %v117 = vld [vmem:[%s4 + $0x80] sm:$0xff]
  %v118 = vld [vmem:[%s4 + $0x88] sm:$0xff]
  %v119 = vld [vmem:[%s4 + $0x90] sm:$0xff]
  %v120 = vld [vmem:[%s4 + $0x98] sm:$0xff]
  %v121 = vld [vmem:[%s4 + $0xa0] sm:$0xff]
  %v122 = vld [vmem:[%s4 + $0xa8] sm:$0xff]
  %v123 = vld [vmem:[%s4 + $0xb0] sm:$0xff]
  %v124 = vld [vmem:[%s4 + $0xb8] sm:$0xff]
  %v125 = vld [vmem:[%s4 + $0xc0] sm:$0xff]
  %v126 = vld [vmem:[%s4 + $0xc8] sm:$0xff]
  %v127 = vld [vmem:[%s4 + $0xd0] sm:$0xff]
  %v128 = vld [vmem:[%s4 + $0xd8] sm:$0xff]
  %v129 = vld [vmem:[%s4 + $0xe0] sm:$0xff]
  %v130 = vld [vmem:[%s4 + $0xe8] sm:$0xff]
  %v131 = vld [vmem:[%s4 + $0xf0] sm:$0xff]
  %v132 = vld [vmem:[%s4 + $0xf8] sm:$0xff]
  %v133 = vld [vmem:[%s4 + $0x100] sm:$0xff]
  %v134 = vld [vmem:[%s4 + $0x108] sm:$0xff]
  %v135 = vld [vmem:[%s4 + $0x110] sm:$0xff]
  %v136 = vld [vmem:[%s4 + $0x118] sm:$0xff]
  %v137 = vld [vmem:[%s4 + $0x120] sm:$0xff]
  %v138 = vld [vmem:[%s4 + $0x128] sm:$0xff]
  %v139 = vld [vmem:[%s4 + $0x130] sm:$0xff]
  %v140 = vld [vmem:[%s4 + $0x138] sm:$0xff]
  %v141 = vld [vmem:[%s4 + $0x140] sm:$0xff]
  %v142 = vld [vmem:[%s4 + $0x148] sm:$0xff]
  %v143 = vld [vmem:[%s4 + $0x150] sm:$0xff]
  %v144 = vld [vmem:[%s4 + $0x158] sm:$0xff]
  %v145 = vld [vmem:[%s4 + $0x160] sm:$0xff]
  %v146 = vld [vmem:[%s4 + $0x168] sm:$0xff]
  %v147 = vld [vmem:[%s4 + $0x170] sm:$0xff]
  %v148 = vld [vmem:[%s4 + $0x178] sm:$0xff]
  %v149 = vld [vmem:[%s4 + $0x180] sm:$0xff]
  %v150 = vld [vmem:[%s4 + $0x188] sm:$0xff]
  %v151 = vld [vmem:[%s4 + $0x190] sm:$0xff]
  %v152 = vld [vmem:[%s4 + $0x198] sm:$0xff]
  %v153 = vld [vmem:[%s4 + $0x1a0] sm:$0xff]
  %v154 = vld [vmem:[%s4 + $0x1a8] sm:$0xff]
  %v155 = vld [vmem:[%s4 + $0x1b0] sm:$0xff]
  %v156 = vld [vmem:[%s4 + $0x1b8] sm:$0xff]
  %v157 = vld [vmem:[%s4 + $0x1c0] sm:$0xff]
  %v158 = vld [vmem:[%s4 + $0x1c8] sm:$0xff]
  %v159 = vld [vmem:[%s4 + $0x1d0] sm:$0xff]
  %v160 = vld [vmem:[%s4 + $0x1d8] sm:$0xff]
  %v161 = vld [vmem:[%s4 + $0x1e0] sm:$0xff]
  %v162 = vld [vmem:[%s4 + $0x1e8] sm:$0xff]
  %v163 = vld [vmem:[%s4 + $0x1f0] sm:$0xff]
  %v164 = vld [vmem:[%s4 + $0x1f8] sm:$0xff]
  %v165 = vld [vmem:[%s4 + $0x200] sm:$0xff]
  %v166 = vld [vmem:[%s4 + $0x208] sm:$0xff]
  %v167 = vld [vmem:[%s4 + $0x210] sm:$0xff]
  %v168 = vld [vmem:[%s4 + $0x218] sm:$0xff]
  %v169 = vld [vmem:[%s4 + $0x220] sm:$0xff]
  %v170 = vld [vmem:[%s4 + $0x228] sm:$0xff]
  %v171 = vld [vmem:[%s4 + $0x230] sm:$0xff]
  %v172 = vld [vmem:[%s4 + $0x238] sm:$0xff]
  %v173 = vld [vmem:[%s4 + $0x240] sm:$0xff]
  %v174 = vld [vmem:[%s4 + $0x248] sm:$0xff]
  %v175 = vld [vmem:[%s4 + $0x250] sm:$0xff]
  %v176 = vld [vmem:[%s4 + $0x258] sm:$0xff]
  %v177 = vld [vmem:[%s4 + $0x260] sm:$0xff]
  %v178 = vld [vmem:[%s4 + $0x268] sm:$0xff]
  %v179 = vld [vmem:[%s4 + $0x270] sm:$0xff]
  %v180 = vld [vmem:[%s4 + $0x278] sm:$0xff]
  %v181 = vld [vmem:[%s4 + $0x280] sm:$0xff]
  %v182 = vld [vmem:[%s4 + $0x288] sm:$0xff]
  %v183 = vld [vmem:[%s4 + $0x290] sm:$0xff]
  %v184 = vld [vmem:[%s4 + $0x298] sm:$0xff]
  %v185 = vld [vmem:[%s4 + $0x2a0] sm:$0xff]
  %v186 = vld [vmem:[%s4 + $0x2a8] sm:$0xff]
  %v187 = vld [vmem:[%s4 + $0x2b0] sm:$0xff]
  %v188 = vld [vmem:[%s4 + $0x2b8] sm:$0xff]
  %v189 = vld [vmem:[%s4 + $0x2c0] sm:$0xff]
  %v190 = vld [vmem:[%s4 + $0x2c8] sm:$0xff]
  %v191 = vld [vmem:[%s4 + $0x2d0] sm:$0xff]
  %v192 = vld [vmem:[%s4 + $0x2d8] sm:$0xff]
  %v193 = vld [vmem:[%s4 + $0x2e0] sm:$0xff]
  %v194 = vld [vmem:[%s4 + $0x2e8] sm:$0xff]
  %v195 = vld [vmem:[%s4 + $0x2f0] sm:$0xff]
  %v196 = vld [vmem:[%s4 + $0x2f8] sm:$0xff]
  %v197 = vld [vmem:[%s4 + $0x300] sm:$0xff]
  %v198 = vld [vmem:[%s4 + $0x308] sm:$0xff]
  %v199 = vld [vmem:[%s4 + $0x310] sm:$0xff]
  %v200 = vld [vmem:[%s4 + $0x318] sm:$0xff]
  %v201 = vld [vmem:[%s4 + $0x320] sm:$0xff]
  %v202 = vld [vmem:[%s4 + $0x328] sm:$0xff]
  %v203 = vld [vmem:[%s4 + $0x330] sm:$0xff]
  %v204 = vld [vmem:[%s4 + $0x338] sm:$0xff]
  %v205 = vld [vmem:[%s4 + $0x340] sm:$0xff]
  %v206 = vld [vmem:[%s4 + $0x348] sm:$0xff]
  %v207 = vld [vmem:[%s4 + $0x350] sm:$0xff]
  %v208 = vld [vmem:[%s4 + $0x358] sm:$0xff]
  %v209 = vld [vmem:[%s4 + $0x360] sm:$0xff]
  %v210 = vld [vmem:[%s4 + $0x368] sm:$0xff]
  %v211 = vld [vmem:[%s4 + $0x370] sm:$0xff]
  %v212 = vld [vmem:[%s4 + $0x378] sm:$0xff]
  %v213 = vld [vmem:[%s4 + $0x380] sm:$0xff]
  %v214 = vld [vmem:[%s4 + $0x388] sm:$0xff]
  %v215 = vld [vmem:[%s4 + $0x390] sm:$0xff]
  %v216 = vld [vmem:[%s4 + $0x398] sm:$0xff]
  %v217 = vld [vmem:[%s4 + $0x3a0] sm:$0xff]
  %v218 = vld [vmem:[%s4 + $0x3a8] sm:$0xff]
  %v219 = vld [vmem:[%s4 + $0x3b0] sm:$0xff]
  %v220 = vld [vmem:[%s4 + $0x3b8] sm:$0xff]
  %v221 = vld [vmem:[%s4 + $0x3c0] sm:$0xff]
  %v222 = vld [vmem:[%s4 + $0x3c8] sm:$0xff]
  %v223 = vld [vmem:[%s4 + $0x3d0] sm:$0xff]
  %v224 = vld [vmem:[%s4 + $0x3d8] sm:$0xff]
  %v225 = vld [vmem:[%s4 + $0x3e0] sm:$0xff]
  %v226 = vld [vmem:[%s4 + $0x3e8] sm:$0xff]
  %v227 = vld [vmem:[%s4 + $0x3f0] sm:$0xff]
  %v228 = vld [vmem:[%s4 + $0x3f8] sm:$0xff]
  %v229 = vld [vmem:[%s5] sm:$0xf]
  %v231 = vlaneseq
  %v232 = vshrl.u32 %v231, 7
  %v233 = vsub.s32 0, %v232
  %v234 = vrot.slane %v229, %v233
  %v235 = vlaneseq
  %v236 = vshrl.u32 %v235, 7
  %v237 = vsub.s32 1, %v236
  %v238 = vrot.slane %v229, %v237
  %v239 = vlaneseq
  %v240 = vshrl.u32 %v239, 7
  %v241 = vsub.s32 2, %v240
  %v242 = vrot.slane %v229, %v241
  %v243 = vlaneseq
  %v244 = vshrl.u32 %v243, 7
  %v245 = vsub.s32 3, %v244
  %v246 = vrot.slane %v229, %v245
  %v251 = vld [vmem:[%s0] sm:$0xff]
  %v252 = vld [vmem:[%s0 + $0x8] sm:$0xff]
  %v253 = vld [vmem:[%s0 + $0x10] sm:$0xff]
  %v254 = vld [vmem:[%s0 + $0x18] sm:$0xff]
  %v255 = vld [vmem:[%s0 + $0x20] sm:$0xff]
  %v256 = vld [vmem:[%s0 + $0x28] sm:$0xff]
  %v257 = vld [vmem:[%s0 + $0x30] sm:$0xff]
  %v258 = vld [vmem:[%s0 + $0x38] sm:$0xff]
  %v259 = vld [vmem:[%s1] sm:$0xff]
  %v260 = vld [vmem:[%s1 + $0x8] sm:$0xff]
  %v261 = vld [vmem:[%s3] sm:$0xf]
  %v263 = vlaneseq
  %v264 = vshrl.u32 %v263, 7
  %v265 = vsub.s32 0, %v264
  %v266 = vrot.slane %v261, %v265
  %v267 = vlaneseq
  %v268 = vshrl.u32 %v267, 7
  %v269 = vsub.s32 1, %v268
  %v270 = vrot.slane %v261, %v269
  %v271 = vlaneseq
  %v272 = vshrl.u32 %v271, 7
  %v273 = vsub.s32 2, %v272
  %v274 = vrot.slane %v261, %v273
  %v275 = vlaneseq
  %v276 = vshrl.u32 %v275, 7
  %v277 = vsub.s32 3, %v276
  %v278 = vrot.slane %v261, %v277
  %v285 = vcombine.high %v259, %v259
  %v286 = vcombine.high %v260, %v260
  %vm287 = vcmask 31744
  %v289 = vsel %vm287, %v251, 0
  %v292 = vsel %vm287, %v252, 0
  %v295 = vsel %vm287, %v253, 0
  %v298 = vsel %vm287, %v254, 0
  %v301 = vsel %vm287, %v255, 0
  %v304 = vsel %vm287, %v256, 0
  %v307 = vsel %vm287, %v257, 0
  %v310 = vsel %vm287, %v258, 0
  %vm312 = vcmask 1043456
  %v313 = vsel %vm312, %v259, 0
  %v315 = vsel %vm312, %v285, 0
  %v317 = vsel %vm312, %v260, 0
  %v319 = vsel %vm312, %v286, 0
  %321 = vmatprep.subr.mxu0 %v315
  %322 = vmatpush1.msra.mxu0 %v313
  %323 = vmatprep.subr.mxu0 0.0
  %324 = vmatpush1.msra.mxu0 0.0
  %325 = vmatprep.subr.mxu0 0.0
  %326 = vmatpush1.msra.mxu0 0.0
  %327 = vmatprep.subr.mxu0 0.0
  %328 = vmatpush1.msra.mxu0 0.0
  %329 = vmatprep.subr.mxu0 0.0
  %330 = vmatpush1.msra.mxu0 0.0
  %331 = vmatprep.subr.mxu0 0.0
  %332 = vmatpush1.msra.mxu0 0.0
  %333 = vmatprep.subr.mxu0 0.0
  %334 = vmatpush1.msra.mxu0 0.0
  %335 = vmatprep.subr.mxu0 0.0
  %336 = vmatpush1.msra.mxu0 0.0
  %337 = vmatprep.subr.mxu0 0.0
  %338 = vmatpush1.msra.mxu0 0.0
  %339 = vmatprep.subr.mxu0 0.0
  %340 = vmatpush1.msra.mxu0 0.0
  %341 = vmatprep.subr.mxu0 0.0
  %342 = vmatpush1.msra.mxu0 0.0
  %343 = vmatprep.subr.mxu0 0.0
  %344 = vmatpush1.msra.mxu0 0.0
  %345 = vmatprep.subr.mxu0 0.0
  %346 = vmatpush1.msra.mxu0 0.0
  %347 = vmatprep.subr.mxu0 0.0
  %348 = vmatpush1.msra.mxu0 0.0
  %349 = vmatprep.subr.mxu0 0.0
  %350 = vmatpush1.msra.mxu0 0.0
  %351 = vmatprep.subr.mxu0 0.0
  %352 = vmatpush1.msra.mxu0 0.0
  %353 = vmatprep.subr.mxu0 0.0
  %354 = vmatpush1.msra.mxu0 0.0
  %355 = vmatprep.subr.mxu0 0.0
  %356 = vmatpush1.msra.mxu0 0.0
  %357 = vmatprep.subr.mxu0 0.0
  %358 = vmatpush1.msra.mxu0 0.0
  %359 = vmatprep.subr.mxu0 0.0
  %360 = vmatpush1.msra.mxu0 0.0
  %361 = vmatprep.subr.mxu0 0.0
  %362 = vmatpush1.msra.mxu0 0.0
  %363 = vmatprep.subr.mxu0 0.0
  %364 = vmatpush1.msra.mxu0 0.0
  %365 = vmatprep.subr.mxu0 0.0
  %366 = vmatpush1.msra.mxu0 0.0
  %367 = vmatprep.subr.mxu0 0.0
  %368 = vmatpush1.msra.mxu0 0.0
  %369 = vmatprep.subr.mxu0 0.0
  %370 = vmatpush1.msra.mxu0 0.0
  %371 = vmatprep.subr.mxu0 0.0
  %372 = vmatpush1.msra.mxu0 0.0
  %373 = vmatprep.subr.mxu0 0.0
  %374 = vmatpush1.msra.mxu0 0.0
  %375 = vmatprep.subr.mxu0 0.0
  %376 = vmatpush1.msra.mxu0 0.0
  %377 = vmatprep.subr.mxu0 0.0
  %378 = vmatpush1.msra.mxu0 0.0
  %379 = vmatprep.subr.mxu0 0.0
  %380 = vmatpush1.msra.mxu0 0.0
  %381 = vmatprep.subr.mxu0 0.0
  %382 = vmatpush1.msra.mxu0 0.0
  %383 = vmatprep.subr.mxu0 0.0
  %384 = vmatpush1.msra.mxu0 0.0
  %385 = vmatprep.mubr.f32.mxu0 0.0
  %386 = vmatmul.mubr.f32.gmra.mrb[0].mxu0 %v289
  %v387 = vpop.f32.mrb[0].mxu0
  %v388 = vadd.f32 %v266, %v387
  %v389 = vpop.f32.mrb[0].mxu0
  %v390 = vadd.f32 %v270, %v389
  %391 = vmatprep.mubr.f32.mxu0 0.0
  %392 = vmatmul.mubr.f32.gmra.mrb[0].mxu0 %v292
  %v393 = vpop.f32.mrb[0].mxu0
  %v394 = vadd.f32 %v266, %v393
  %v395 = vpop.f32.mrb[0].mxu0
  %v396 = vadd.f32 %v270, %v395
  %397 = vmatprep.mubr.f32.mxu0 0.0
  %398 = vmatmul.mubr.f32.gmra.mrb[0].mxu0 %v295
  %v399 = vpop.f32.mrb[0].mxu0
  %v400 = vadd.f32 %v266, %v399
  %v401 = vpop.f32.mrb[0].mxu0
  %v402 = vadd.f32 %v270, %v401
  %403 = vmatprep.mubr.f32.mxu0 0.0
  %404 = vmatmul.mubr.f32.gmra.mrb[0].mxu0 %v298
  %v405 = vpop.f32.mrb[0].mxu0
  %v406 = vadd.f32 %v266, %v405
  %v407 = vpop.f32.mrb[0].mxu0
  %v408 = vadd.f32 %v270, %v407
  %409 = vmatprep.mubr.f32.mxu0 0.0
  %410 = vmatmul.mubr.f32.gmra.mrb[0].mxu0 %v301
  %v411 = vpop.f32.mrb[0].mxu0
  %v412 = vadd.f32 %v266, %v411
  %v413 = vpop.f32.mrb[0].mxu0
  %v414 = vadd.f32 %v270, %v413
  %415 = vmatprep.mubr.f32.mxu0 0.0
  %416 = vmatmul.mubr.f32.gmra.mrb[0].mxu0 %v304
  %v417 = vpop.f32.mrb[0].mxu0
  %v418 = vadd.f32 %v266, %v417
  %v419 = vpop.f32.mrb[0].mxu0
  %v420 = vadd.f32 %v270, %v419
  %421 = vmatprep.mubr.f32.mxu0 0.0
  %422 = vmatmul.mubr.f32.gmra.mrb[0].mxu0 %v307
  %v423 = vpop.f32.mrb[0].mxu0
  %v424 = vadd.f32 %v266, %v423
  %v425 = vpop.f32.mrb[0].mxu0
  %v426 = vadd.f32 %v270, %v425
  %427 = vmatprep.mubr.f32.mxu0 0.0
  %428 = vmatmul.mubr.f32.gmra.mrb[0].mxu0 %v310
  %v429 = vpop.f32.mrb[0].mxu0
  %v430 = vadd.f32 %v266, %v429
  %v431 = vpop.f32.mrb[0].mxu0
  %v432 = vadd.f32 %v270, %v431
  %433 = vdwg.mxu0
  %434 = vmatprep.subr.mxu0 %v319
  %435 = vmatpush1.msra.mxu0 %v317
  %436 = vmatprep.subr.mxu0 0.0
  %437 = vmatpush1.msra.mxu0 0.0
  %438 = vmatprep.subr.mxu0 0.0
  %439 = vmatpush1.msra.mxu0 0.0
  %440 = vmatprep.subr.mxu0 0.0
  %441 = vmatpush1.msra.mxu0 0.0
  %442 = vmatprep.subr.mxu0 0.0
  %443 = vmatpush1.msra.mxu0 0.0
  %444 = vmatprep.subr.mxu0 0.0
  %445 = vmatpush1.msra.mxu0 0.0
  %446 = vmatprep.subr.mxu0 0.0
  %447 = vmatpush1.msra.mxu0 0.0
  %448 = vmatprep.subr.mxu0 0.0
  %449 = vmatpush1.msra.mxu0 0.0
  %450 = vmatprep.subr.mxu0 0.0
  %451 = vmatpush1.msra.mxu0 0.0
  %452 = vmatprep.subr.mxu0 0.0
  %453 = vmatpush1.msra.mxu0 0.0
  %454 = vmatprep.subr.mxu0 0.0
  %455 = vmatpush1.msra.mxu0 0.0
  %456 = vmatprep.subr.mxu0 0.0
  %457 = vmatpush1.msra.mxu0 0.0
  %458 = vmatprep.subr.mxu0 0.0
  %459 = vmatpush1.msra.mxu0 0.0
  %460 = vmatprep.subr.mxu0 0.0
  %461 = vmatpush1.msra.mxu0 0.0
  %462 = vmatprep.subr.mxu0 0.0
  %463 = vmatpush1.msra.mxu0 0.0
  %464 = vmatprep.subr.mxu0 0.0
  %465 = vmatpush1.msra.mxu0 0.0
  %466 = vmatprep.subr.mxu0 0.0
  %467 = vmatpush1.msra.mxu0 0.0
  %468 = vmatprep.subr.mxu0 0.0
  %469 = vmatpush1.msra.mxu0 0.0
  %470 = vmatprep.subr.mxu0 0.0
  %471 = vmatpush1.msra.mxu0 0.0
  %472 = vmatprep.subr.mxu0 0.0
  %473 = vmatpush1.msra.mxu0 0.0
  %474 = vmatprep.subr.mxu0 0.0
  %475 = vmatpush1.msra.mxu0 0.0
  %476 = vmatprep.subr.mxu0 0.0
  %477 = vmatpush1.msra.mxu0 0.0
  %478 = vmatprep.subr.mxu0 0.0
  %479 = vmatpush1.msra.mxu0 0.0
  %480 = vmatprep.subr.mxu0 0.0
  %481 = vmatpush1.msra.mxu0 0.0
  %482 = vmatprep.subr.mxu0 0.0
  %483 = vmatpush1.msra.mxu0 0.0
  %484 = vmatprep.subr.mxu0 0.0
  %485 = vmatpush1.msra.mxu0 0.0
  %486 = vmatprep.subr.mxu0 0.0
  %487 = vmatpush1.msra.mxu0 0.0
  %488 = vmatprep.subr.mxu0 0.0
  %489 = vmatpush1.msra.mxu0 0.0
  %490 = vmatprep.subr.mxu0 0.0
  %491 = vmatpush1.msra.mxu0 0.0
  %492 = vmatprep.subr.mxu0 0.0
  %493 = vmatpush1.msra.mxu0 0.0
  %494 = vmatprep.subr.mxu0 0.0
  %495 = vmatpush1.msra.mxu0 0.0
  %496 = vmatprep.subr.mxu0 0.0
  %497 = vmatpush1.msra.mxu0 0.0
  %498 = vmatprep.mubr.f32.mxu0 0.0
  %499 = vmatmul.mubr.f32.gmra.mrb[0].mxu0 %v289
  %v500 = vpop.f32.mrb[0].mxu0
  %v501 = vadd.f32 %v274, %v500
  %v502 = vpop.f32.mrb[0].mxu0
  %v503 = vadd.f32 %v278, %v502
  %504 = vmatprep.mubr.f32.mxu0 0.0
  %505 = vmatmul.mubr.f32.gmra.mrb[0].mxu0 %v292
  %v506 = vpop.f32.mrb[0].mxu0
  %v507 = vadd.f32 %v274, %v506
  %v508 = vpop.f32.mrb[0].mxu0
  %v509 = vadd.f32 %v278, %v508
  %510 = vmatprep.mubr.f32.mxu0 0.0
  %511 = vmatmul.mubr.f32.gmra.mrb[0].mxu0 %v295
  %v512 = vpop.f32.mrb[0].mxu0
  %v513 = vadd.f32 %v274, %v512
  %v514 = vpop.f32.mrb[0].mxu0
  %v515 = vadd.f32 %v278, %v514
  %516 = vmatprep.mubr.f32.mxu0 0.0
  %517 = vmatmul.mubr.f32.gmra.mrb[0].mxu0 %v298
  %v518 = vpop.f32.mrb[0].mxu0
  %v519 = vadd.f32 %v274, %v518
  %v520 = vpop.f32.mrb[0].mxu0
  %v521 = vadd.f32 %v278, %v520
  %522 = vmatprep.mubr.f32.mxu0 0.0
  %523 = vmatmul.mubr.f32.gmra.mrb[0].mxu0 %v301
  %v524 = vpop.f32.mrb[0].mxu0
  %v525 = vadd.f32 %v274, %v524
  %v526 = vpop.f32.mrb[0].mxu0
  %v527 = vadd.f32 %v278, %v526
  %528 = vmatprep.mubr.f32.mxu0 0.0
  %529 = vmatmul.mubr.f32.gmra.mrb[0].mxu0 %v304
  %v530 = vpop.f32.mrb[0].mxu0
  %v531 = vadd.f32 %v274, %v530
  %v532 = vpop.f32.mrb[0].mxu0
  %v533 = vadd.f32 %v278, %v532
  %534 = vmatprep.mubr.f32.mxu0 0.0
  %535 = vmatmul.mubr.f32.gmra.mrb[0].mxu0 %v307
  %v536 = vpop.f32.mrb[0].mxu0
  %v537 = vadd.f32 %v274, %v536
  %v538 = vpop.f32.mrb[0].mxu0
  %v539 = vadd.f32 %v278, %v538
  %540 = vmatprep.mubr.f32.mxu0 0.0
  %541 = vmatmul.mubr.f32.gmra.mrb[0].mxu0 %v310
  %v542 = vpop.f32.mrb[0].mxu0
  %v543 = vadd.f32 %v274, %v542
  %v544 = vpop.f32.mrb[0].mxu0
  %v545 = vadd.f32 %v278, %v544
  %546 = vdwg.mxu0
  %547 = vst [vmem:[#allocation6] sm:$0xff] %v388
  %548 = vst [vmem:[#allocation6 + $0x8] sm:$0xff] %v390
  %549 = vst [vmem:[#allocation6 + $0x10] sm:$0xff] %v501
  %550 = vst [vmem:[#allocation6 + $0x18] sm:$0xff] %v503
  %551 = vst [vmem:[#allocation6 + $0x20] sm:$0xff] %v394
  %552 = vst [vmem:[#allocation6 + $0x28] sm:$0xff] %v396
  %553 = vst [vmem:[#allocation6 + $0x30] sm:$0xff] %v507
  %554 = vst [vmem:[#allocation6 + $0x38] sm:$0xff] %v509
  %555 = vst [vmem:[#allocation6 + $0x40] sm:$0xff] %v400
  %556 = vst [vmem:[#allocation6 + $0x48] sm:$0xff] %v402
  %557 = vst [vmem:[#allocation6 + $0x50] sm:$0xff] %v513
  %558 = vst [vmem:[#allocation6 + $0x58] sm:$0xff] %v515
  %559 = vst [vmem:[#allocation6 + $0x60] sm:$0xff] %v406
  %560 = vst [vmem:[#allocation6 + $0x68] sm:$0xff] %v408
  %561 = vst [vmem:[#allocation6 + $0x70] sm:$0xff] %v519
  %562 = vst [vmem:[#allocation6 + $0x78] sm:$0xff] %v521
  %563 = vst [vmem:[#allocation6 + $0x80] sm:$0xff] %v412
  %564 = vst [vmem:[#allocation6 + $0x88] sm:$0xff] %v414
  %565 = vst [vmem:[#allocation6 + $0x90] sm:$0xff] %v525
  %566 = vst [vmem:[#allocation6 + $0x98] sm:$0xff] %v527
  %567 = vst [vmem:[#allocation6 + $0xa0] sm:$0xff] %v418
  %568 = vst [vmem:[#allocation6 + $0xa8] sm:$0xff] %v420
  %569 = vst [vmem:[#allocation6 + $0xb0] sm:$0xff] %v531
  %570 = vst [vmem:[#allocation6 + $0xb8] sm:$0xff] %v533
  %571 = vst [vmem:[#allocation6 + $0xc0] sm:$0xff] %v424
  %572 = vst [vmem:[#allocation6 + $0xc8] sm:$0xff] %v426
  %573 = vst [vmem:[#allocation6 + $0xd0] sm:$0xff] %v537
  %574 = vst [vmem:[#allocation6 + $0xd8] sm:$0xff] %v539
  %575 = vst [vmem:[#allocation6 + $0xe0] sm:$0xff] %v430
  %576 = vst [vmem:[#allocation6 + $0xe8] sm:$0xff] %v432
  %577 = vst [vmem:[#allocation6 + $0xf0] sm:$0xff] %v543
  %578 = vst [vmem:[#allocation6 + $0xf8] sm:$0xff] %v545
  %v579 = vld [vmem:[#allocation2] sm:$0xff]
  %v580 = vld [vmem:[#allocation3] sm:$0xff]
  %v581 = vld [vmem:[#allocation4] sm:$0xff]
  %v582 = vld [vmem:[#allocation5] sm:$0xff]
  %v583 = vld [vmem:[#allocation6] sm:$0xff]
  %v584 = vld [vmem:[#allocation6 + $0x8] sm:$0xff]
  %v585 = vld [vmem:[#allocation6 + $0x10] sm:$0xff]
  %v586 = vld [vmem:[#allocation6 + $0x18] sm:$0xff]
  %587 = vmatprep.subr.mxu0 %v38
  %588 = vmatpush1.msra.mxu0 %v37
  %589 = vmatprep.subr.mxu0 %v42
  %590 = vmatpush1.msra.mxu0 %v41
  %591 = vmatprep.subr.mxu0 %v46
  %592 = vmatpush1.msra.mxu0 %v45
  %593 = vmatprep.subr.mxu0 %v50
  %594 = vmatpush1.msra.mxu0 %v49
  %595 = vmatprep.subr.mxu0 %v54
  %596 = vmatpush1.msra.mxu0 %v53
  %597 = vmatprep.subr.mxu0 %v58
  %598 = vmatpush1.msra.mxu0 %v57
  %599 = vmatprep.subr.mxu0 %v62
  %600 = vmatpush1.msra.mxu0 %v61
  %601 = vmatprep.subr.mxu0 %v66
  %602 = vmatpush1.msra.mxu0 %v65
  %603 = vmatprep.subr.mxu0 %v70
  %604 = vmatpush1.msra.mxu0 %v69
  %605 = vmatprep.subr.mxu0 %v74
  %606 = vmatpush1.msra.mxu0 %v73
  %607 = vmatprep.subr.mxu0 %v78
  %608 = vmatpush1.msra.mxu0 %v77
  %609 = vmatprep.subr.mxu0 %v82
  %610 = vmatpush1.msra.mxu0 %v81
  %611 = vmatprep.subr.mxu0 %v86
  %612 = vmatpush1.msra.mxu0 %v85
  %613 = vmatprep.subr.mxu0 %v90
  %614 = vmatpush1.msra.mxu0 %v89
  %615 = vmatprep.subr.mxu0 %v94
  %616 = vmatpush1.msra.mxu0 %v93
  %617 = vmatprep.subr.mxu0 %v98
  %618 = vmatpush1.msra.mxu0 %v97
  %619 = vmatprep.subr.mxu0 0.0
  %620 = vmatpush1.msra.mxu0 0.0
  %621 = vmatprep.subr.mxu0 0.0
  %622 = vmatpush1.msra.mxu0 0.0
  %623 = vmatprep.subr.mxu0 0.0
  %624 = vmatpush1.msra.mxu0 0.0
  %625 = vmatprep.subr.mxu0 0.0
  %626 = vmatpush1.msra.mxu0 0.0
  %627 = vmatprep.subr.mxu0 0.0
  %628 = vmatpush1.msra.mxu0 0.0
  %629 = vmatprep.subr.mxu0 0.0
  %630 = vmatpush1.msra.mxu0 0.0
  %631 = vmatprep.subr.mxu0 0.0
  %632 = vmatpush1.msra.mxu0 0.0
  %633 = vmatprep.subr.mxu0 0.0
  %634 = vmatpush1.msra.mxu0 0.0
  %635 = vmatprep.subr.mxu0 0.0
  %636 = vmatpush1.msra.mxu0 0.0
  %637 = vmatprep.subr.mxu0 0.0
  %638 = vmatpush1.msra.mxu0 0.0
  %639 = vmatprep.subr.mxu0 0.0
  %640 = vmatpush1.msra.mxu0 0.0
  %641 = vmatprep.subr.mxu0 0.0
  %642 = vmatpush1.msra.mxu0 0.0
  %643 = vmatprep.subr.mxu0 0.0
  %644 = vmatpush1.msra.mxu0 0.0
  %645 = vmatprep.subr.mxu0 0.0
  %646 = vmatpush1.msra.mxu0 0.0
  %647 = vmatprep.subr.mxu0 0.0
  %648 = vmatpush1.msra.mxu0 0.0
  %649 = vmatprep.subr.mxu0 0.0
  %650 = vmatpush1.msra.mxu0 0.0
  %651 = vmatprep.mubr.f32.mxu0 0.0
  %652 = vmatmul.mubr.f32.gmra.mrb[0].mxu0 %v579
  %v653 = vpop.f32.mrb[0].mxu0
  %v654 = vadd.f32 0.0, %v653
  %v655 = vpop.f32.mrb[0].mxu0
  %v656 = vadd.f32 0.0, %v655
  %657 = vdwg.mxu0
  %658 = vmatprep.subr.mxu0 %v40
  %659 = vmatpush1.msra.mxu0 %v39
  %660 = vmatprep.subr.mxu0 %v44
  %661 = vmatpush1.msra.mxu0 %v43
  %662 = vmatprep.subr.mxu0 %v48
  %663 = vmatpush1.msra.mxu0 %v47
  %664 = vmatprep.subr.mxu0 %v52
  %665 = vmatpush1.msra.mxu0 %v51
  %666 = vmatprep.subr.mxu0 %v56
  %667 = vmatpush1.msra.mxu0 %v55
  %668 = vmatprep.subr.mxu0 %v60
  %669 = vmatpush1.msra.mxu0 %v59
  %670 = vmatprep.subr.mxu0 %v64
  %671 = vmatpush1.msra.mxu0 %v63
  %672 = vmatprep.subr.mxu0 %v68
  %673 = vmatpush1.msra.mxu0 %v67
  %674 = vmatprep.subr.mxu0 %v72
  %675 = vmatpush1.msra.mxu0 %v71
  %676 = vmatprep.subr.mxu0 %v76
  %677 = vmatpush1.msra.mxu0 %v75
  %678 = vmatprep.subr.mxu0 %v80
  %679 = vmatpush1.msra.mxu0 %v79
  %680 = vmatprep.subr.mxu0 %v84
  %681 = vmatpush1.msra.mxu0 %v83
  %682 = vmatprep.subr.mxu0 %v88
  %683 = vmatpush1.msra.mxu0 %v87
  %684 = vmatprep.subr.mxu0 %v92
  %685 = vmatpush1.msra.mxu0 %v91
  %686 = vmatprep.subr.mxu0 %v96
  %687 = vmatpush1.msra.mxu0 %v95
  %688 = vmatprep.subr.mxu0 %v100
  %689 = vmatpush1.msra.mxu0 %v99
  %690 = vmatprep.subr.mxu0 0.0
  %691 = vmatpush1.msra.mxu0 0.0
  %692 = vmatprep.subr.mxu0 0.0
  %693 = vmatpush1.msra.mxu0 0.0
  %694 = vmatprep.subr.mxu0 0.0
  %695 = vmatpush1.msra.mxu0 0.0
  %696 = vmatprep.subr.mxu0 0.0
  %697 = vmatpush1.msra.mxu0 0.0
  %698 = vmatprep.subr.mxu0 0.0
  %699 = vmatpush1.msra.mxu0 0.0
  %700 = vmatprep.subr.mxu0 0.0
  %701 = vmatpush1.msra.mxu0 0.0
  %702 = vmatprep.subr.mxu0 0.0
  %703 = vmatpush1.msra.mxu0 0.0
  %704 = vmatprep.subr.mxu0 0.0
  %705 = vmatpush1.msra.mxu0 0.0
  %706 = vmatprep.subr.mxu0 0.0
  %707 = vmatpush1.msra.mxu0 0.0
  %708 = vmatprep.subr.mxu0 0.0
  %709 = vmatpush1.msra.mxu0 0.0
  %710 = vmatprep.subr.mxu0 0.0
  %711 = vmatpush1.msra.mxu0 0.0
  %712 = vmatprep.subr.mxu0 0.0
  %713 = vmatpush1.msra.mxu0 0.0
  %714 = vmatprep.subr.mxu0 0.0
  %715 = vmatpush1.msra.mxu0 0.0
  %716 = vmatprep.subr.mxu0 0.0
  %717 = vmatpush1.msra.mxu0 0.0
  %718 = vmatprep.subr.mxu0 0.0
  %719 = vmatpush1.msra.mxu0 0.0
  %720 = vmatprep.subr.mxu0 0.0
  %721 = vmatpush1.msra.mxu0 0.0
  %722 = vmatprep.mubr.f32.mxu0 0.0
  %723 = vmatmul.mubr.f32.gmra.mrb[0].mxu0 %v579
  %v724 = vpop.f32.mrb[0].mxu0
  %v725 = vadd.f32 0.0, %v724
  %v726 = vpop.f32.mrb[0].mxu0
  %v727 = vadd.f32 0.0, %v726
  %728 = vdwg.mxu0
  %v729 = vadd.f32 %v583, %v654
  %v730 = vadd.f32 %v584, %v656
  %v731 = vadd.f32 %v585, %v725
  %v732 = vadd.f32 %v586, %v727
  %v733 = vmul.f32 %v729, 0.5
  %v734 = vtanh.pop %v733
  %v735 = vmul.f32 %v734, 0.5
  %v736 = vadd.f32 %v735, 0.5
  %v737 = vmul.f32 %v730, 0.5
  %v738 = vtanh.pop %v737
  %v739 = vmul.f32 %v738, 0.5
  %v740 = vadd.f32 %v739, 0.5
  %v741 = vtanh.pop %v731
  %v742 = vmul.f32 %v732, 0.5
  %v743 = vtanh.pop %v742
  %v744 = vmul.f32 %v743, 0.5
  %v745 = vadd.f32 %v744, 0.5
  %v746 = vmul.f32 %v740, %v581
  %v747 = vmul.f32 %v736, %v741
  %v748 = vadd.f32 %v746, %v747
  %v749 = vtanh.pop %v748
  %v750 = vmul.f32 %v745, %v749
  %751 = vmatprep.subr.mxu0 %v102
  %752 = vmatpush1.msra.mxu0 %v101
  %753 = vmatprep.subr.mxu0 %v106
  %754 = vmatpush1.msra.mxu0 %v105
  %755 = vmatprep.subr.mxu0 %v110
  %756 = vmatpush1.msra.mxu0 %v109
  %757 = vmatprep.subr.mxu0 %v114
  %758 = vmatpush1.msra.mxu0 %v113
  %759 = vmatprep.subr.mxu0 %v118
  %760 = vmatpush1.msra.mxu0 %v117
  %761 = vmatprep.subr.mxu0 %v122
  %762 = vmatpush1.msra.mxu0 %v121
  %763 = vmatprep.subr.mxu0 %v126
  %764 = vmatpush1.msra.mxu0 %v125
  %765 = vmatprep.subr.mxu0 %v130
  %766 = vmatpush1.msra.mxu0 %v129
  %767 = vmatprep.subr.mxu0 %v134
  %768 = vmatpush1.msra.mxu0 %v133
  %769 = vmatprep.subr.mxu0 %v138
  %770 = vmatpush1.msra.mxu0 %v137
  %771 = vmatprep.subr.mxu0 %v142
  %772 = vmatpush1.msra.mxu0 %v141
  %773 = vmatprep.subr.mxu0 %v146
  %774 = vmatpush1.msra.mxu0 %v145
  %775 = vmatprep.subr.mxu0 %v150
  %776 = vmatpush1.msra.mxu0 %v149
  %777 = vmatprep.subr.mxu0 %v154
  %778 = vmatpush1.msra.mxu0 %v153
  %779 = vmatprep.subr.mxu0 %v158
  %780 = vmatpush1.msra.mxu0 %v157
  %781 = vmatprep.subr.mxu0 %v162
  %782 = vmatpush1.msra.mxu0 %v161
  %783 = vmatprep.subr.mxu0 %v166
  %784 = vmatpush1.msra.mxu0 %v165
  %785 = vmatprep.subr.mxu0 %v170
  %786 = vmatpush1.msra.mxu0 %v169
  %787 = vmatprep.subr.mxu0 %v174
  %788 = vmatpush1.msra.mxu0 %v173
  %789 = vmatprep.subr.mxu0 %v178
  %790 = vmatpush1.msra.mxu0 %v177
  %791 = vmatprep.subr.mxu0 %v182
  %792 = vmatpush1.msra.mxu0 %v181
  %793 = vmatprep.subr.mxu0 %v186
  %794 = vmatpush1.msra.mxu0 %v185
  %795 = vmatprep.subr.mxu0 %v190
  %796 = vmatpush1.msra.mxu0 %v189
  %797 = vmatprep.subr.mxu0 %v194
  %798 = vmatpush1.msra.mxu0 %v193
  %799 = vmatprep.subr.mxu0 %v198
  %800 = vmatpush1.msra.mxu0 %v197
  %801 = vmatprep.subr.mxu0 %v202
  %802 = vmatpush1.msra.mxu0 %v201
  %803 = vmatprep.subr.mxu0 %v206
  %804 = vmatpush1.msra.mxu0 %v205
  %805 = vmatprep.subr.mxu0 %v210
  %806 = vmatpush1.msra.mxu0 %v209
  %807 = vmatprep.subr.mxu0 %v214
  %808 = vmatpush1.msra.mxu0 %v213
  %809 = vmatprep.subr.mxu0 %v218
  %810 = vmatpush1.msra.mxu0 %v217
  %811 = vmatprep.subr.mxu0 %v222
  %812 = vmatpush1.msra.mxu0 %v221
  %813 = vmatprep.subr.mxu0 %v226
  %814 = vmatpush1.msra.mxu0 %v225
  %815 = vmatprep.mubr.f32.mxu0 %v580
  %816 = vmatmul.mubr.f32.gmra.mrb[0].mxu0 %v750
  %v817 = vpop.f32.mrb[0].mxu0
  %v818 = vadd.f32 %v234, %v817
  %v819 = vpop.f32.mrb[0].mxu0
  %v820 = vadd.f32 %v238, %v819
  %821 = vdwg.mxu0
  %822 = vmatprep.subr.mxu0 %v104
  %823 = vmatpush1.msra.mxu0 %v103
  %824 = vmatprep.subr.mxu0 %v108
  %825 = vmatpush1.msra.mxu0 %v107
  %826 = vmatprep.subr.mxu0 %v112
  %827 = vmatpush1.msra.mxu0 %v111
  %828 = vmatprep.subr.mxu0 %v116
  %829 = vmatpush1.msra.mxu0 %v115
  %830 = vmatprep.subr.mxu0 %v120
  %831 = vmatpush1.msra.mxu0 %v119
  %832 = vmatprep.subr.mxu0 %v124
  %833 = vmatpush1.msra.mxu0 %v123
  %834 = vmatprep.subr.mxu0 %v128
  %835 = vmatpush1.msra.mxu0 %v127
  %836 = vmatprep.subr.mxu0 %v132
  %837 = vmatpush1.msra.mxu0 %v131
  %838 = vmatprep.subr.mxu0 %v136
  %839 = vmatpush1.msra.mxu0 %v135
  %840 = vmatprep.subr.mxu0 %v140
  %841 = vmatpush1.msra.mxu0 %v139
  %842 = vmatprep.subr.mxu0 %v144
  %843 = vmatpush1.msra.mxu0 %v143
  %844 = vmatprep.subr.mxu0 %v148
  %845 = vmatpush1.msra.mxu0 %v147
  %846 = vmatprep.subr.mxu0 %v152
  %847 = vmatpush1.msra.mxu0 %v151
  %848 = vmatprep.subr.mxu0 %v156
  %849 = vmatpush1.msra.mxu0 %v155
  %850 = vmatprep.subr.mxu0 %v160
  %851 = vmatpush1.msra.mxu0 %v159
  %852 = vmatprep.subr.mxu0 %v164
  %853 = vmatpush1.msra.mxu0 %v163
  %854 = vmatprep.subr.mxu0 %v168
  %855 = vmatpush1.msra.mxu0 %v167
  %856 = vmatprep.subr.mxu0 %v172
  %857 = vmatpush1.msra.mxu0 %v171
  %858 = vmatprep.subr.mxu0 %v176
  %859 = vmatpush1.msra.mxu0 %v175
  %860 = vmatprep.subr.mxu0 %v180
  %861 = vmatpush1.msra.mxu0 %v179
  %862 = vmatprep.subr.mxu0 %v184
  %863 = vmatpush1.msra.mxu0 %v183
  %864 = vmatprep.subr.mxu0 %v188
  %865 = vmatpush1.msra.mxu0 %v187
  %866 = vmatprep.subr.mxu0 %v192
  %867 = vmatpush1.msra.mxu0 %v191
  %868 = vmatprep.subr.mxu0 %v196
  %869 = vmatpush1.msra.mxu0 %v195
  %870 = vmatprep.subr.mxu0 %v200
  %871 = vmatpush1.msra.mxu0 %v199
  %872 = vmatprep.subr.mxu0 %v204
  %873 = vmatpush1.msra.mxu0 %v203
  %874 = vmatprep.subr.mxu0 %v208
  %875 = vmatpush1.msra.mxu0 %v207
  %876 = vmatprep.subr.mxu0 %v212
  %877 = vmatpush1.msra.mxu0 %v211
  %878 = vmatprep.subr.mxu0 %v216
  %879 = vmatpush1.msra.mxu0 %v215
  %880 = vmatprep.subr.mxu0 %v220
  %881 = vmatpush1.msra.mxu0 %v219
  %882 = vmatprep.subr.mxu0 %v224
  %883 = vmatpush1.msra.mxu0 %v223
  %884 = vmatprep.subr.mxu0 %v228
  %885 = vmatpush1.msra.mxu0 %v227
  %886 = vmatprep.mubr.f32.mxu0 %v580
  %887 = vmatmul.mubr.f32.gmra.mrb[0].mxu0 %v750
  %v888 = vpop.f32.mrb[0].mxu0
  %v889 = vadd.f32 %v242, %v888
  %v890 = vpop.f32.mrb[0].mxu0
  %v891 = vadd.f32 %v246, %v890
  %892 = vdwg.mxu0
  %v893 = vmul.f32 %v818, 0.5
  %v894 = vtanh.pop %v893
  %v895 = vmul.f32 %v894, 0.5
  %v896 = vadd.f32 %v895, 0.5
  %v897 = vmul.f32 %v820, 0.5
  %v898 = vtanh.pop %v897
  %v899 = vmul.f32 %v898, 0.5
  %v900 = vadd.f32 %v899, 0.5
  %v901 = vtanh.pop %v889
  %v902 = vmul.f32 %v891, 0.5
  %v903 = vtanh.pop %v902
  %v904 = vmul.f32 %v903, 0.5
  %v905 = vadd.f32 %v904, 0.5
  %v906 = vmul.f32 %v900, %v582
  %v907 = vmul.f32 %v896, %v901
  %v908 = vadd.f32 %v906, %v907
  %v909 = vtanh.pop %v908
  %v910 = vmul.f32 %v905, %v909
  %s911 = scalar_lea.vmem [#allocation6], 32
  %v912 = vld [vmem:[%s911] sm:$0xff]
  %v913 = vld [vmem:[%s911 + $0x8] sm:$0xff]
  %v914 = vld [vmem:[%s911 + $0x10] sm:$0xff]
  %v915 = vld [vmem:[%s911 + $0x18] sm:$0xff]
  %916 = vmatprep.subr.mxu0 %v38
  %917 = vmatpush1.msra.mxu0 %v37
  %918 = vmatprep.subr.mxu0 %v42
  %919 = vmatpush1.msra.mxu0 %v41
  %920 = vmatprep.subr.mxu0 %v46
  %921 = vmatpush1.msra.mxu0 %v45
  %922 = vmatprep.subr.mxu0 %v50
  %923 = vmatpush1.msra.mxu0 %v49
  %924 = vmatprep.subr.mxu0 %v54
  %925 = vmatpush1.msra.mxu0 %v53
  %926 = vmatprep.subr.mxu0 %v58
  %927 = vmatpush1.msra.mxu0 %v57
  %928 = vmatprep.subr.mxu0 %v62
  %929 = vmatpush1.msra.mxu0 %v61
  %930 = vmatprep.subr.mxu0 %v66
  %931 = vmatpush1.msra.mxu0 %v65
  %932 = vmatprep.subr.mxu0 %v70
  %933 = vmatpush1.msra.mxu0 %v69
  %934 = vmatprep.subr.mxu0 %v74
  %935 = vmatpush1.msra.mxu0 %v73
  %936 = vmatprep.subr.mxu0 %v78
  %937 = vmatpush1.msra.mxu0 %v77
  %938 = vmatprep.subr.mxu0 %v82
  %939 = vmatpush1.msra.mxu0 %v81
  %940 = vmatprep.subr.mxu0 %v86
  %941 = vmatpush1.msra.mxu0 %v85
  %942 = vmatprep.subr.mxu0 %v90
  %943 = vmatpush1.msra.mxu0 %v89
  %944 = vmatprep.subr.mxu0 %v94
  %945 = vmatpush1.msra.mxu0 %v93
  %946 = vmatprep.subr.mxu0 %v98
  %947 = vmatpush1.msra.mxu0 %v97
  %948 = vmatprep.subr.mxu0 0.0
  %949 = vmatpush1.msra.mxu0 0.0
  %950 = vmatprep.subr.mxu0 0.0
  %951 = vmatpush1.msra.mxu0 0.0
  %952 = vmatprep.subr.mxu0 0.0
  %953 = vmatpush1.msra.mxu0 0.0
  %954 = vmatprep.subr.mxu0 0.0
  %955 = vmatpush1.msra.mxu0 0.0
  %956 = vmatprep.subr.mxu0 0.0
  %957 = vmatpush1.msra.mxu0 0.0
  %958 = vmatprep.subr.mxu0 0.0
  %959 = vmatpush1.msra.mxu0 0.0
  %960 = vmatprep.subr.mxu0 0.0
  %961 = vmatpush1.msra.mxu0 0.0
  %962 = vmatprep.subr.mxu0 0.0
  %963 = vmatpush1.msra.mxu0 0.0
  %964 = vmatprep.subr.mxu0 0.0
  %965 = vmatpush1.msra.mxu0 0.0
  %966 = vmatprep.subr.mxu0 0.0
  %967 = vmatpush1.msra.mxu0 0.0
  %968 = vmatprep.subr.mxu0 0.0
  %969 = vmatpush1.msra.mxu0 0.0
  %970 = vmatprep.subr.mxu0 0.0
  %971 = vmatpush1.msra.mxu0 0.0
  %972 = vmatprep.subr.mxu0 0.0
  %973 = vmatpush1.msra.mxu0 0.0
  %974 = vmatprep.subr.mxu0 0.0
  %975 = vmatpush1.msra.mxu0 0.0
  %976 = vmatprep.subr.mxu0 0.0
  %977 = vmatpush1.msra.mxu0 0.0
  %978 = vmatprep.subr.mxu0 0.0
  %979 = vmatpush1.msra.mxu0 0.0
  %980 = vmatprep.mubr.f32.mxu0 0.0
  %981 = vmatmul.mubr.f32.gmra.mrb[0].mxu0 %v750
  %v982 = vpop.f32.mrb[0].mxu0
  %v983 = vadd.f32 0.0, %v982
  %v984 = vpop.f32.mrb[0].mxu0
  %v985 = vadd.f32 0.0, %v984
  %986 = vdwg.mxu0
  %987 = vmatprep.subr.mxu0 %v40
  %988 = vmatpush1.msra.mxu0 %v39
  %989 = vmatprep.subr.mxu0 %v44
  %990 = vmatpush1.msra.mxu0 %v43
  %991 = vmatprep.subr.mxu0 %v48
  %992 = vmatpush1.msra.mxu0 %v47
  %993 = vmatprep.subr.mxu0 %v52
  %994 = vmatpush1.msra.mxu0 %v51
  %995 = vmatprep.subr.mxu0 %v56
  %996 = vmatpush1.msra.mxu0 %v55
  %997 = vmatprep.subr.mxu0 %v60
  %998 = vmatpush1.msra.mxu0 %v59
  %999 = vmatprep.subr.mxu0 %v64
  %1000 = vmatpush1.msra.mxu0 %v63
  %1001 = vmatprep.subr.mxu0 %v68
  %1002 = vmatpush1.msra.mxu0 %v67
  %1003 = vmatprep.subr.mxu0 %v72
  %1004 = vmatpush1.msra.mxu0 %v71
  %1005 = vmatprep.subr.mxu0 %v76
  %1006 = vmatpush1.msra.mxu0 %v75
  %1007 = vmatprep.subr.mxu0 %v80
  %1008 = vmatpush1.msra.mxu0 %v79
  %1009 = vmatprep.subr.mxu0 %v84
  %1010 = vmatpush1.msra.mxu0 %v83
  %1011 = vmatprep.subr.mxu0 %v88
  %1012 = vmatpush1.msra.mxu0 %v87
  %1013 = vmatprep.subr.mxu0 %v92
  %1014 = vmatpush1.msra.mxu0 %v91
  %1015 = vmatprep.subr.mxu0 %v96
  %1016 = vmatpush1.msra.mxu0 %v95
  %1017 = vmatprep.subr.mxu0 %v100
  %1018 = vmatpush1.msra.mxu0 %v99
  %1019 = vmatprep.subr.mxu0 0.0
  %1020 = vmatpush1.msra.mxu0 0.0
  %1021 = vmatprep.subr.mxu0 0.0
  %1022 = vmatpush1.msra.mxu0 0.0
  %1023 = vmatprep.subr.mxu0 0.0
  %1024 = vmatpush1.msra.mxu0 0.0
  %1025 = vmatprep.subr.mxu0 0.0
  %1026 = vmatpush1.msra.mxu0 0.0
  %1027 = vmatprep.subr.mxu0 0.0
  %1028 = vmatpush1.msra.mxu0 0.0
  %1029 = vmatprep.subr.mxu0 0.0
  %1030 = vmatpush1.msra.mxu0 0.0
  %1031 = vmatprep.subr.mxu0 0.0
  %1032 = vmatpush1.msra.mxu0 0.0
  %1033 = vmatprep.subr.mxu0 0.0
  %1034 = vmatpush1.msra.mxu0 0.0
  %1035 = vmatprep.subr.mxu0 0.0
  %1036 = vmatpush1.msra.mxu0 0.0
  %1037 = vmatprep.subr.mxu0 0.0
  %1038 = vmatpush1.msra.mxu0 0.0
  %1039 = vmatprep.subr.mxu0 0.0
  %1040 = vmatpush1.msra.mxu0 0.0
  %1041 = vmatprep.subr.mxu0 0.0
  %1042 = vmatpush1.msra.mxu0 0.0
  %1043 = vmatprep.subr.mxu0 0.0
  %1044 = vmatpush1.msra.mxu0 0.0
  %1045 = vmatprep.subr.mxu0 0.0
  %1046 = vmatpush1.msra.mxu0 0.0
  %1047 = vmatprep.subr.mxu0 0.0
  %1048 = vmatpush1.msra.mxu0 0.0
  %1049 = vmatprep.subr.mxu0 0.0
  %1050 = vmatpush1.msra.mxu0 0.0
  %1051 = vmatprep.mubr.f32.mxu0 0.0
  %1052 = vmatmul.mubr.f32.gmra.mrb[0].mxu0 %v750
  %v1053 = vpop.f32.mrb[0].mxu0
  %v1054 = vadd.f32 0.0, %v1053
  %v1055 = vpop.f32.mrb[0].mxu0
  %v1056 = vadd.f32 0.0, %v1055
  %1057 = vdwg.mxu0
  %v1058 = vadd.f32 %v912, %v983
  %v1059 = vadd.f32 %v913, %v985
  %v1060 = vadd.f32 %v914, %v1054
  %v1061 = vadd.f32 %v915, %v1056
  %v1062 = vmul.f32 %v1058, 0.5
  %v1063 = vtanh.pop %v1062
  %v1064 = vmul.f32 %v1063, 0.5
  %v1065 = vadd.f32 %v1064, 0.5
  %v1066 = vmul.f32 %v1059, 0.5
  %v1067 = vtanh.pop %v1066
  %v1068 = vmul.f32 %v1067, 0.5
  %v1069 = vadd.f32 %v1068, 0.5
  %v1070 = vtanh.pop %v1060
  %v1071 = vmul.f32 %v1061, 0.5
  %v1072 = vtanh.pop %v1071
  %v1073 = vmul.f32 %v1072, 0.5
  %v1074 = vadd.f32 %v1073, 0.5
  %v1075 = vmul.f32 %v1069, %v748
  %v1076 = vmul.f32 %v1065, %v1070
  %v1077 = vadd.f32 %v1075, %v1076
  %v1078 = vtanh.pop %v1077
  %v1079 = vmul.f32 %v1074, %v1078
  %1080 = vmatprep.subr.mxu0 %v102
  %1081 = vmatpush1.msra.mxu0 %v101
  %1082 = vmatprep.subr.mxu0 %v106
  %1083 = vmatpush1.msra.mxu0 %v105
  %1084 = vmatprep.subr.mxu0 %v110
  %1085 = vmatpush1.msra.mxu0 %v109
  %1086 = vmatprep.subr.mxu0 %v114
  %1087 = vmatpush1.msra.mxu0 %v113
  %1088 = vmatprep.subr.mxu0 %v118
  %1089 = vmatpush1.msra.mxu0 %v117
  %1090 = vmatprep.subr.mxu0 %v122
  %1091 = vmatpush1.msra.mxu0 %v121
  %1092 = vmatprep.subr.mxu0 %v126
  %1093 = vmatpush1.msra.mxu0 %v125
  %1094 = vmatprep.subr.mxu0 %v130
  %1095 = vmatpush1.msra.mxu0 %v129
  %1096 = vmatprep.subr.mxu0 %v134
  %1097 = vmatpush1.msra.mxu0 %v133
  %1098 = vmatprep.subr.mxu0 %v138
  %1099 = vmatpush1.msra.mxu0 %v137
  %1100 = vmatprep.subr.mxu0 %v142
  %1101 = vmatpush1.msra.mxu0 %v141
  %1102 = vmatprep.subr.mxu0 %v146
  %1103 = vmatpush1.msra.mxu0 %v145
  %1104 = vmatprep.subr.mxu0 %v150
  %1105 = vmatpush1.msra.mxu0 %v149
  %1106 = vmatprep.subr.mxu0 %v154
  %1107 = vmatpush1.msra.mxu0 %v153
  %1108 = vmatprep.subr.mxu0 %v158
  %1109 = vmatpush1.msra.mxu0 %v157
  %1110 = vmatprep.subr.mxu0 %v162
  %1111 = vmatpush1.msra.mxu0 %v161
  %1112 = vmatprep.subr.mxu0 %v166
  %1113 = vmatpush1.msra.mxu0 %v165
  %1114 = vmatprep.subr.mxu0 %v170
  %1115 = vmatpush1.msra.mxu0 %v169
  %1116 = vmatprep.subr.mxu0 %v174
  %1117 = vmatpush1.msra.mxu0 %v173
  %1118 = vmatprep.subr.mxu0 %v178
  %1119 = vmatpush1.msra.mxu0 %v177
  %1120 = vmatprep.subr.mxu0 %v182
  %1121 = vmatpush1.msra.mxu0 %v181
  %1122 = vmatprep.subr.mxu0 %v186
  %1123 = vmatpush1.msra.mxu0 %v185
  %1124 = vmatprep.subr.mxu0 %v190
  %1125 = vmatpush1.msra.mxu0 %v189
  %1126 = vmatprep.subr.mxu0 %v194
  %1127 = vmatpush1.msra.mxu0 %v193
  %1128 = vmatprep.subr.mxu0 %v198
  %1129 = vmatpush1.msra.mxu0 %v197
  %1130 = vmatprep.subr.mxu0 %v202
  %1131 = vmatpush1.msra.mxu0 %v201
  %1132 = vmatprep.subr.mxu0 %v206
  %1133 = vmatpush1.msra.mxu0 %v205
  %1134 = vmatprep.subr.mxu0 %v210
  %1135 = vmatpush1.msra.mxu0 %v209
  %1136 = vmatprep.subr.mxu0 %v214
  %1137 = vmatpush1.msra.mxu0 %v213
  %1138 = vmatprep.subr.mxu0 %v218
  %1139 = vmatpush1.msra.mxu0 %v217
  %1140 = vmatprep.subr.mxu0 %v222
  %1141 = vmatpush1.msra.mxu0 %v221
  %1142 = vmatprep.subr.mxu0 %v226
  %1143 = vmatpush1.msra.mxu0 %v225
  %1144 = vmatprep.mubr.f32.mxu0 %v910
  %1145 = vmatmul.mubr.f32.gmra.mrb[0].mxu0 %v1079
  %v1146 = vpop.f32.mrb[0].mxu0
  %v1147 = vadd.f32 %v234, %v1146
  %v1148 = vpop.f32.mrb[0].mxu0
  %v1149 = vadd.f32 %v238, %v1148
  %1150 = vdwg.mxu0
  %1151 = vmatprep.subr.mxu0 %v104
  %1152 = vmatpush1.msra.mxu0 %v103
  %1153 = vmatprep.subr.mxu0 %v108
  %1154 = vmatpush1.msra.mxu0 %v107
  %1155 = vmatprep.subr.mxu0 %v112
  %1156 = vmatpush1.msra.mxu0 %v111
  %1157 = vmatprep.subr.mxu0 %v116
  %1158 = vmatpush1.msra.mxu0 %v115
  %1159 = vmatprep.subr.mxu0 %v120
  %1160 = vmatpush1.msra.mxu0 %v119
  %1161 = vmatprep.subr.mxu0 %v124
  %1162 = vmatpush1.msra.mxu0 %v123
  %1163 = vmatprep.subr.mxu0 %v128
  %1164 = vmatpush1.msra.mxu0 %v127
  %1165 = vmatprep.subr.mxu0 %v132
  %1166 = vmatpush1.msra.mxu0 %v131
  %1167 = vmatprep.subr.mxu0 %v136
  %1168 = vmatpush1.msra.mxu0 %v135
  %1169 = vmatprep.subr.mxu0 %v140
  %1170 = vmatpush1.msra.mxu0 %v139
  %1171 = vmatprep.subr.mxu0 %v144
  %1172 = vmatpush1.msra.mxu0 %v143
  %1173 = vmatprep.subr.mxu0 %v148
  %1174 = vmatpush1.msra.mxu0 %v147
  %1175 = vmatprep.subr.mxu0 %v152
  %1176 = vmatpush1.msra.mxu0 %v151
  %1177 = vmatprep.subr.mxu0 %v156
  %1178 = vmatpush1.msra.mxu0 %v155
  %1179 = vmatprep.subr.mxu0 %v160
  %1180 = vmatpush1.msra.mxu0 %v159
  %1181 = vmatprep.subr.mxu0 %v164
  %1182 = vmatpush1.msra.mxu0 %v163
  %1183 = vmatprep.subr.mxu0 %v168
  %1184 = vmatpush1.msra.mxu0 %v167
  %1185 = vmatprep.subr.mxu0 %v172
  %1186 = vmatpush1.msra.mxu0 %v171
  %1187 = vmatprep.subr.mxu0 %v176
  %1188 = vmatpush1.msra.mxu0 %v175
  %1189 = vmatprep.subr.mxu0 %v180
  %1190 = vmatpush1.msra.mxu0 %v179
  %1191 = vmatprep.subr.mxu0 %v184
  %1192 = vmatpush1.msra.mxu0 %v183
  %1193 = vmatprep.subr.mxu0 %v188
  %1194 = vmatpush1.msra.mxu0 %v187
  %1195 = vmatprep.subr.mxu0 %v192
  %1196 = vmatpush1.msra.mxu0 %v191
  %1197 = vmatprep.subr.mxu0 %v196
  %1198 = vmatpush1.msra.mxu0 %v195
  %1199 = vmatprep.subr.mxu0 %v200
  %1200 = vmatpush1.msra.mxu0 %v199
  %1201 = vmatprep.subr.mxu0 %v204
  %1202 = vmatpush1.msra.mxu0 %v203
  %1203 = vmatprep.subr.mxu0 %v208
  %1204 = vmatpush1.msra.mxu0 %v207
  %1205 = vmatprep.subr.mxu0 %v212
  %1206 = vmatpush1.msra.mxu0 %v211
  %1207 = vmatprep.subr.mxu0 %v216
  %1208 = vmatpush1.msra.mxu0 %v215
  %1209 = vmatprep.subr.mxu0 %v220
  %1210 = vmatpush1.msra.mxu0 %v219
  %1211 = vmatprep.subr.mxu0 %v224
  %1212 = vmatpush1.msra.mxu0 %v223
  %1213 = vmatprep.subr.mxu0 %v228
  %1214 = vmatpush1.msra.mxu0 %v227
  %1215 = vmatprep.mubr.f32.mxu0 %v910
  %1216 = vmatmul.mubr.f32.gmra.mrb[0].mxu0 %v1079
  %v1217 = vpop.f32.mrb[0].mxu0
  %v1218 = vadd.f32 %v242, %v1217
  %v1219 = vpop.f32.mrb[0].mxu0
  %v1220 = vadd.f32 %v246, %v1219
  %1221 = vdwg.mxu0
  %v1222 = vmul.f32 %v1147, 0.5
  %v1223 = vtanh.pop %v1222
  %v1224 = vmul.f32 %v1223, 0.5
  %v1225 = vadd.f32 %v1224, 0.5
  %v1226 = vmul.f32 %v1149, 0.5
  %v1227 = vtanh.pop %v1226
  %v1228 = vmul.f32 %v1227, 0.5
  %v1229 = vadd.f32 %v1228, 0.5
  %v1230 = vtanh.pop %v1218
  %v1231 = vmul.f32 %v1220, 0.5
  %v1232 = vtanh.pop %v1231
  %v1233 = vmul.f32 %v1232, 0.5
  %v1234 = vadd.f32 %v1233, 0.5
  %v1235 = vmul.f32 %v1229, %v908
  %v1236 = vmul.f32 %v1225, %v1230
  %v1237 = vadd.f32 %v1235, %v1236
  %v1238 = vtanh.pop %v1237
  %v1239 = vmul.f32 %v1234, %v1238
  %s1240 = scalar_lea.vmem [#allocation6], 64
  %v1241 = vld [vmem:[%s1240] sm:$0xff]
  %v1242 = vld [vmem:[%s1240 + $0x8] sm:$0xff]
  %v1243 = vld [vmem:[%s1240 + $0x10] sm:$0xff]
  %v1244 = vld [vmem:[%s1240 + $0x18] sm:$0xff]
  %1245 = vmatprep.subr.mxu0 %v38
  %1246 = vmatpush1.msra.mxu0 %v37
  %1247 = vmatprep.subr.mxu0 %v42
  %1248 = vmatpush1.msra.mxu0 %v41
  %1249 = vmatprep.subr.mxu0 %v46
  %1250 = vmatpush1.msra.mxu0 %v45
  %1251 = vmatprep.subr.mxu0 %v50
  %1252 = vmatpush1.msra.mxu0 %v49
  %1253 = vmatprep.subr.mxu0 %v54
  %1254 = vmatpush1.msra.mxu0 %v53
  %1255 = vmatprep.subr.mxu0 %v58
  %1256 = vmatpush1.msra.mxu0 %v57
  %1257 = vmatprep.subr.mxu0 %v62
  %1258 = vmatpush1.msra.mxu0 %v61
  %1259 = vmatprep.subr.mxu0 %v66
  %1260 = vmatpush1.msra.mxu0 %v65
  %1261 = vmatprep.subr.mxu0 %v70
  %1262 = vmatpush1.msra.mxu0 %v69
  %1263 = vmatprep.subr.mxu0 %v74
  %1264 = vmatpush1.msra.mxu0 %v73
  %1265 = vmatprep.subr.mxu0 %v78
  %1266 = vmatpush1.msra.mxu0 %v77
  %1267 = vmatprep.subr.mxu0 %v82
  %1268 = vmatpush1.msra.mxu0 %v81
  %1269 = vmatprep.subr.mxu0 %v86
  %1270 = vmatpush1.msra.mxu0 %v85
  %1271 = vmatprep.subr.mxu0 %v90
  %1272 = vmatpush1.msra.mxu0 %v89
  %1273 = vmatprep.subr.mxu0 %v94
  %1274 = vmatpush1.msra.mxu0 %v93
  %1275 = vmatprep.subr.mxu0 %v98
  %1276 = vmatpush1.msra.mxu0 %v97
  %1277 = vmatprep.subr.mxu0 0.0
  %1278 = vmatpush1.msra.mxu0 0.0
  %1279 = vmatprep.subr.mxu0 0.0
  %1280 = vmatpush1.msra.mxu0 0.0
  %1281 = vmatprep.subr.mxu0 0.0
  %1282 = vmatpush1.msra.mxu0 0.0
  %1283 = vmatprep.subr.mxu0 0.0
  %1284 = vmatpush1.msra.mxu0 0.0
  %1285 = vmatprep.subr.mxu0 0.0
  %1286 = vmatpush1.msra.mxu0 0.0
  %1287 = vmatprep.subr.mxu0 0.0
  %1288 = vmatpush1.msra.mxu0 0.0
  %1289 = vmatprep.subr.mxu0 0.0
  %1290 = vmatpush1.msra.mxu0 0.0
  %1291 = vmatprep.subr.mxu0 0.0
  %1292 = vmatpush1.msra.mxu0 0.0
  %1293 = vmatprep.subr.mxu0 0.0
  %1294 = vmatpush1.msra.mxu0 0.0
  %1295 = vmatprep.subr.mxu0 0.0
  %1296 = vmatpush1.msra.mxu0 0.0
  %1297 = vmatprep.subr.mxu0 0.0
  %1298 = vmatpush1.msra.mxu0 0.0
  %1299 = vmatprep.subr.mxu0 0.0
  %1300 = vmatpush1.msra.mxu0 0.0
  %1301 = vmatprep.subr.mxu0 0.0
  %1302 = vmatpush1.msra.mxu0 0.0
  %1303 = vmatprep.subr.mxu0 0.0
  %1304 = vmatpush1.msra.mxu0 0.0
  %1305 = vmatprep.subr.mxu0 0.0
  %1306 = vmatpush1.msra.mxu0 0.0
  %1307 = vmatprep.subr.mxu0 0.0
  %1308 = vmatpush1.msra.mxu0 0.0
  %1309 = vmatprep.mubr.f32.mxu0 0.0
  %1310 = vmatmul.mubr.f32.gmra.mrb[0].mxu0 %v1079
  %v1311 = vpop.f32.mrb[0].mxu0
  %v1312 = vadd.f32 0.0, %v1311
  %v1313 = vpop.f32.mrb[0].mxu0
  %v1314 = vadd.f32 0.0, %v1313
  %1315 = vdwg.mxu0
  %1316 = vmatprep.subr.mxu0 %v40
  %1317 = vmatpush1.msra.mxu0 %v39
  %1318 = vmatprep.subr.mxu0 %v44
  %1319 = vmatpush1.msra.mxu0 %v43
  %1320 = vmatprep.subr.mxu0 %v48
  %1321 = vmatpush1.msra.mxu0 %v47
  %1322 = vmatprep.subr.mxu0 %v52
  %1323 = vmatpush1.msra.mxu0 %v51
  %1324 = vmatprep.subr.mxu0 %v56
  %1325 = vmatpush1.msra.mxu0 %v55
  %1326 = vmatprep.subr.mxu0 %v60
  %1327 = vmatpush1.msra.mxu0 %v59
  %1328 = vmatprep.subr.mxu0 %v64
  %1329 = vmatpush1.msra.mxu0 %v63
  %1330 = vmatprep.subr.mxu0 %v68
  %1331 = vmatpush1.msra.mxu0 %v67
  %1332 = vmatprep.subr.mxu0 %v72
  %1333 = vmatpush1.msra.mxu0 %v71
  %1334 = vmatprep.subr.mxu0 %v76
  %1335 = vmatpush1.msra.mxu0 %v75
  %1336 = vmatprep.subr.mxu0 %v80
  %1337 = vmatpush1.msra.mxu0 %v79
  %1338 = vmatprep.subr.mxu0 %v84
  %1339 = vmatpush1.msra.mxu0 %v83
  %1340 = vmatprep.subr.mxu0 %v88
  %1341 = vmatpush1.msra.mxu0 %v87
  %1342 = vmatprep.subr.mxu0 %v92
  %1343 = vmatpush1.msra.mxu0 %v91
  %1344 = vmatprep.subr.mxu0 %v96
  %1345 = vmatpush1.msra.mxu0 %v95
  %1346 = vmatprep.subr.mxu0 %v100
  %1347 = vmatpush1.msra.mxu0 %v99
  %1348 = vmatprep.subr.mxu0 0.0
  %1349 = vmatpush1.msra.mxu0 0.0
  %1350 = vmatprep.subr.mxu0 0.0
  %1351 = vmatpush1.msra.mxu0 0.0
  %1352 = vmatprep.subr.mxu0 0.0
  %1353 = vmatpush1.msra.mxu0 0.0
  %1354 = vmatprep.subr.mxu0 0.0
  %1355 = vmatpush1.msra.mxu0 0.0
  %1356 = vmatprep.subr.mxu0 0.0
  %1357 = vmatpush1.msra.mxu0 0.0
  %1358 = vmatprep.subr.mxu0 0.0
  %1359 = vmatpush1.msra.mxu0 0.0
  %1360 = vmatprep.subr.mxu0 0.0
  %1361 = vmatpush1.msra.mxu0 0.0
  %1362 = vmatprep.subr.mxu0 0.0
  %1363 = vmatpush1.msra.mxu0 0.0
  %1364 = vmatprep.subr.mxu0 0.0
  %1365 = vmatpush1.msra.mxu0 0.0
  %1366 = vmatprep.subr.mxu0 0.0
  %1367 = vmatpush1.msra.mxu0 0.0
  %1368 = vmatprep.subr.mxu0 0.0
  %1369 = vmatpush1.msra.mxu0 0.0
  %1370 = vmatprep.subr.mxu0 0.0
  %1371 = vmatpush1.msra.mxu0 0.0
  %1372 = vmatprep.subr.mxu0 0.0
  %1373 = vmatpush1.msra.mxu0 0.0
  %1374 = vmatprep.subr.mxu0 0.0
  %1375 = vmatpush1.msra.mxu0 0.0
  %1376 = vmatprep.subr.mxu0 0.0
  %1377 = vmatpush1.msra.mxu0 0.0
  %1378 = vmatprep.subr.mxu0 0.0
  %1379 = vmatpush1.msra.mxu0 0.0
  %1380 = vmatprep.mubr.f32.mxu0 0.0
  %1381 = vmatmul.mubr.f32.gmra.mrb[0].mxu0 %v1079
  %v1382 = vpop.f32.mrb[0].mxu0
  %v1383 = vadd.f32 0.0, %v1382
  %v1384 = vpop.f32.mrb[0].mxu0
  %v1385 = vadd.f32 0.0, %v1384
  %1386 = vdwg.mxu0
  %v1387 = vadd.f32 %v1241, %v1312
  %v1388 = vadd.f32 %v1242, %v1314
  %v1389 = vadd.f32 %v1243, %v1383
  %v1390 = vadd.f32 %v1244, %v1385
  %v1391 = vmul.f32 %v1387, 0.5
  %v1392 = vtanh.pop %v1391
  %v1393 = vmul.f32 %v1392, 0.5
  %v1394 = vadd.f32 %v1393, 0.5
  %v1395 = vmul.f32 %v1388, 0.5
  %v1396 = vtanh.pop %v1395
  %v1397 = vmul.f32 %v1396, 0.5
  %v1398 = vadd.f32 %v1397, 0.5
  %v1399 = vtanh.pop %v1389
  %v1400 = vmul.f32 %v1390, 0.5
  %v1401 = vtanh.pop %v1400
  %v1402 = vmul.f32 %v1401, 0.5
  %v1403 = vadd.f32 %v1402, 0.5
  %v1404 = vmul.f32 %v1398, %v1077
  %v1405 = vmul.f32 %v1394, %v1399
  %v1406 = vadd.f32 %v1404, %v1405
  %v1407 = vtanh.pop %v1406
  %v1408 = vmul.f32 %v1403, %v1407
  %1409 = vmatprep.subr.mxu0 %v102
  %1410 = vmatpush1.msra.mxu0 %v101
  %1411 = vmatprep.subr.mxu0 %v106
  %1412 = vmatpush1.msra.mxu0 %v105
  %1413 = vmatprep.subr.mxu0 %v110
  %1414 = vmatpush1.msra.mxu0 %v109
  %1415 = vmatprep.subr.mxu0 %v114
  %1416 = vmatpush1.msra.mxu0 %v113
  %1417 = vmatprep.subr.mxu0 %v118
  %1418 = vmatpush1.msra.mxu0 %v117
  %1419 = vmatprep.subr.mxu0 %v122
  %1420 = vmatpush1.msra.mxu0 %v121
  %1421 = vmatprep.subr.mxu0 %v126
  %1422 = vmatpush1.msra.mxu0 %v125
  %1423 = vmatprep.subr.mxu0 %v130
  %1424 = vmatpush1.msra.mxu0 %v129
  %1425 = vmatprep.subr.mxu0 %v134
  %1426 = vmatpush1.msra.mxu0 %v133
  %1427 = vmatprep.subr.mxu0 %v138
  %1428 = vmatpush1.msra.mxu0 %v137
  %1429 = vmatprep.subr.mxu0 %v142
  %1430 = vmatpush1.msra.mxu0 %v141
  %1431 = vmatprep.subr.mxu0 %v146
  %1432 = vmatpush1.msra.mxu0 %v145
  %1433 = vmatprep.subr.mxu0 %v150
  %1434 = vmatpush1.msra.mxu0 %v149
  %1435 = vmatprep.subr.mxu0 %v154
  %1436 = vmatpush1.msra.mxu0 %v153
  %1437 = vmatprep.subr.mxu0 %v158
  %1438 = vmatpush1.msra.mxu0 %v157
  %1439 = vmatprep.subr.mxu0 %v162
  %1440 = vmatpush1.msra.mxu0 %v161
  %1441 = vmatprep.subr.mxu0 %v166
  %1442 = vmatpush1.msra.mxu0 %v165
  %1443 = vmatprep.subr.mxu0 %v170
  %1444 = vmatpush1.msra.mxu0 %v169
  %1445 = vmatprep.subr.mxu0 %v174
  %1446 = vmatpush1.msra.mxu0 %v173
  %1447 = vmatprep.subr.mxu0 %v178
  %1448 = vmatpush1.msra.mxu0 %v177
  %1449 = vmatprep.subr.mxu0 %v182
  %1450 = vmatpush1.msra.mxu0 %v181
  %1451 = vmatprep.subr.mxu0 %v186
  %1452 = vmatpush1.msra.mxu0 %v185
  %1453 = vmatprep.subr.mxu0 %v190
  %1454 = vmatpush1.msra.mxu0 %v189
  %1455 = vmatprep.subr.mxu0 %v194
  %1456 = vmatpush1.msra.mxu0 %v193
  %1457 = vmatprep.subr.mxu0 %v198
  %1458 = vmatpush1.msra.mxu0 %v197
  %1459 = vmatprep.subr.mxu0 %v202
  %1460 = vmatpush1.msra.mxu0 %v201
  %1461 = vmatprep.subr.mxu0 %v206
  %1462 = vmatpush1.msra.mxu0 %v205
  %1463 = vmatprep.subr.mxu0 %v210
  %1464 = vmatpush1.msra.mxu0 %v209
  %1465 = vmatprep.subr.mxu0 %v214
  %1466 = vmatpush1.msra.mxu0 %v213
  %1467 = vmatprep.subr.mxu0 %v218
  %1468 = vmatpush1.msra.mxu0 %v217
  %1469 = vmatprep.subr.mxu0 %v222
  %1470 = vmatpush1.msra.mxu0 %v221
  %1471 = vmatprep.subr.mxu0 %v226
  %1472 = vmatpush1.msra.mxu0 %v225
  %1473 = vmatprep.mubr.f32.mxu0 %v1239
  %1474 = vmatmul.mubr.f32.gmra.mrb[0].mxu0 %v1408
  %v1475 = vpop.f32.mrb[0].mxu0
  %v1476 = vadd.f32 %v234, %v1475
  %v1477 = vpop.f32.mrb[0].mxu0
  %v1478 = vadd.f32 %v238, %v1477
  %1479 = vdwg.mxu0
  %1480 = vmatprep.subr.mxu0 %v104
  %1481 = vmatpush1.msra.mxu0 %v103
  %1482 = vmatprep.subr.mxu0 %v108
  %1483 = vmatpush1.msra.mxu0 %v107
  %1484 = vmatprep.subr.mxu0 %v112
  %1485 = vmatpush1.msra.mxu0 %v111
  %1486 = vmatprep.subr.mxu0 %v116
  %1487 = vmatpush1.msra.mxu0 %v115
  %1488 = vmatprep.subr.mxu0 %v120
  %1489 = vmatpush1.msra.mxu0 %v119
  %1490 = vmatprep.subr.mxu0 %v124
  %1491 = vmatpush1.msra.mxu0 %v123
  %1492 = vmatprep.subr.mxu0 %v128
  %1493 = vmatpush1.msra.mxu0 %v127
  %1494 = vmatprep.subr.mxu0 %v132
  %1495 = vmatpush1.msra.mxu0 %v131
  %1496 = vmatprep.subr.mxu0 %v136
  %1497 = vmatpush1.msra.mxu0 %v135
  %1498 = vmatprep.subr.mxu0 %v140
  %1499 = vmatpush1.msra.mxu0 %v139
  %1500 = vmatprep.subr.mxu0 %v144
  %1501 = vmatpush1.msra.mxu0 %v143
  %1502 = vmatprep.subr.mxu0 %v148
  %1503 = vmatpush1.msra.mxu0 %v147
  %1504 = vmatprep.subr.mxu0 %v152
  %1505 = vmatpush1.msra.mxu0 %v151
  %1506 = vmatprep.subr.mxu0 %v156
  %1507 = vmatpush1.msra.mxu0 %v155
  %1508 = vmatprep.subr.mxu0 %v160
  %1509 = vmatpush1.msra.mxu0 %v159
  %1510 = vmatprep.subr.mxu0 %v164
  %1511 = vmatpush1.msra.mxu0 %v163
  %1512 = vmatprep.subr.mxu0 %v168
  %1513 = vmatpush1.msra.mxu0 %v167
  %1514 = vmatprep.subr.mxu0 %v172
  %1515 = vmatpush1.msra.mxu0 %v171
  %1516 = vmatprep.subr.mxu0 %v176
  %1517 = vmatpush1.msra.mxu0 %v175
  %1518 = vmatprep.subr.mxu0 %v180
  %1519 = vmatpush1.msra.mxu0 %v179
  %1520 = vmatprep.subr.mxu0 %v184
  %1521 = vmatpush1.msra.mxu0 %v183
  %1522 = vmatprep.subr.mxu0 %v188
  %1523 = vmatpush1.msra.mxu0 %v187
  %1524 = vmatprep.subr.mxu0 %v192
  %1525 = vmatpush1.msra.mxu0 %v191
  %1526 = vmatprep.subr.mxu0 %v196
  %1527 = vmatpush1.msra.mxu0 %v195
  %1528 = vmatprep.subr.mxu0 %v200
  %1529 = vmatpush1.msra.mxu0 %v199
  %1530 = vmatprep.subr.mxu0 %v204
  %1531 = vmatpush1.msra.mxu0 %v203
  %1532 = vmatprep.subr.mxu0 %v208
  %1533 = vmatpush1.msra.mxu0 %v207
  %1534 = vmatprep.subr.mxu0 %v212
  %1535 = vmatpush1.msra.mxu0 %v211
  %1536 = vmatprep.subr.mxu0 %v216
  %1537 = vmatpush1.msra.mxu0 %v215
  %1538 = vmatprep.subr.mxu0 %v220
  %1539 = vmatpush1.msra.mxu0 %v219
  %1540 = vmatprep.subr.mxu0 %v224
  %1541 = vmatpush1.msra.mxu0 %v223
  %1542 = vmatprep.subr.mxu0 %v228
  %1543 = vmatpush1.msra.mxu0 %v227
  %1544 = vmatprep.mubr.f32.mxu0 %v1239
  %1545 = vmatmul.mubr.f32.gmra.mrb[0].mxu0 %v1408
  %v1546 = vpop.f32.mrb[0].mxu0
  %v1547 = vadd.f32 %v242, %v1546
  %v1548 = vpop.f32.mrb[0].mxu0
  %v1549 = vadd.f32 %v246, %v1548
  %1550 = vdwg.mxu0
  %v1551 = vmul.f32 %v1476, 0.5
  %v1552 = vtanh.pop %v1551
  %v1553 = vmul.f32 %v1552, 0.5
  %v1554 = vadd.f32 %v1553, 0.5
  %v1555 = vmul.f32 %v1478, 0.5
  %v1556 = vtanh.pop %v1555
  %v1557 = vmul.f32 %v1556, 0.5
  %v1558 = vadd.f32 %v1557, 0.5
  %v1559 = vtanh.pop %v1547
  %v1560 = vmul.f32 %v1549, 0.5
  %v1561 = vtanh.pop %v1560
  %v1562 = vmul.f32 %v1561, 0.5
  %v1563 = vadd.f32 %v1562, 0.5
  %v1564 = vmul.f32 %v1558, %v1237
  %v1565 = vmul.f32 %v1554, %v1559
  %v1566 = vadd.f32 %v1564, %v1565
  %v1567 = vtanh.pop %v1566
  %v1568 = vmul.f32 %v1563, %v1567
  %s1569 = scalar_lea.vmem [#allocation6], 96
  %v1570 = vld [vmem:[%s1569] sm:$0xff]
  %v1571 = vld [vmem:[%s1569 + $0x8] sm:$0xff]
  %v1572 = vld [vmem:[%s1569 + $0x10] sm:$0xff]
  %v1573 = vld [vmem:[%s1569 + $0x18] sm:$0xff]
  %1574 = vmatprep.subr.mxu0 %v38
  %1575 = vmatpush1.msra.mxu0 %v37
  %1576 = vmatprep.subr.mxu0 %v42
  %1577 = vmatpush1.msra.mxu0 %v41
  %1578 = vmatprep.subr.mxu0 %v46
  %1579 = vmatpush1.msra.mxu0 %v45
  %1580 = vmatprep.subr.mxu0 %v50
  %1581 = vmatpush1.msra.mxu0 %v49
  %1582 = vmatprep.subr.mxu0 %v54
  %1583 = vmatpush1.msra.mxu0 %v53
  %1584 = vmatprep.subr.mxu0 %v58
  %1585 = vmatpush1.msra.mxu0 %v57
  %1586 = vmatprep.subr.mxu0 %v62
  %1587 = vmatpush1.msra.mxu0 %v61
  %1588 = vmatprep.subr.mxu0 %v66
  %1589 = vmatpush1.msra.mxu0 %v65
  %1590 = vmatprep.subr.mxu0 %v70
  %1591 = vmatpush1.msra.mxu0 %v69
  %1592 = vmatprep.subr.mxu0 %v74
  %1593 = vmatpush1.msra.mxu0 %v73
  %1594 = vmatprep.subr.mxu0 %v78
  %1595 = vmatpush1.msra.mxu0 %v77
  %1596 = vmatprep.subr.mxu0 %v82
  %1597 = vmatpush1.msra.mxu0 %v81
  %1598 = vmatprep.subr.mxu0 %v86
  %1599 = vmatpush1.msra.mxu0 %v85
  %1600 = vmatprep.subr.mxu0 %v90
  %1601 = vmatpush1.msra.mxu0 %v89
  %1602 = vmatprep.subr.mxu0 %v94
  %1603 = vmatpush1.msra.mxu0 %v93
  %1604 = vmatprep.subr.mxu0 %v98
  %1605 = vmatpush1.msra.mxu0 %v97
  %1606 = vmatprep.subr.mxu0 0.0
  %1607 = vmatpush1.msra.mxu0 0.0
  %1608 = vmatprep.subr.mxu0 0.0
  %1609 = vmatpush1.msra.mxu0 0.0
  %1610 = vmatprep.subr.mxu0 0.0
  %1611 = vmatpush1.msra.mxu0 0.0
  %1612 = vmatprep.subr.mxu0 0.0
  %1613 = vmatpush1.msra.mxu0 0.0
  %1614 = vmatprep.subr.mxu0 0.0
  %1615 = vmatpush1.msra.mxu0 0.0
  %1616 = vmatprep.subr.mxu0 0.0
  %1617 = vmatpush1.msra.mxu0 0.0
  %1618 = vmatprep.subr.mxu0 0.0
  %1619 = vmatpush1.msra.mxu0 0.0
  %1620 = vmatprep.subr.mxu0 0.0
  %1621 = vmatpush1.msra.mxu0 0.0
  %1622 = vmatprep.subr.mxu0 0.0
  %1623 = vmatpush1.msra.mxu0 0.0
  %1624 = vmatprep.subr.mxu0 0.0
  %1625 = vmatpush1.msra.mxu0 0.0
  %1626 = vmatprep.subr.mxu0 0.0
  %1627 = vmatpush1.msra.mxu0 0.0
  %1628 = vmatprep.subr.mxu0 0.0
  %1629 = vmatpush1.msra.mxu0 0.0
  %1630 = vmatprep.subr.mxu0 0.0
  %1631 = vmatpush1.msra.mxu0 0.0
  %1632 = vmatprep.subr.mxu0 0.0
  %1633 = vmatpush1.msra.mxu0 0.0
  %1634 = vmatprep.subr.mxu0 0.0
  %1635 = vmatpush1.msra.mxu0 0.0
  %1636 = vmatprep.subr.mxu0 0.0
  %1637 = vmatpush1.msra.mxu0 0.0
  %1638 = vmatprep.mubr.f32.mxu0 0.0
  %1639 = vmatmul.mubr.f32.gmra.mrb[0].mxu0 %v1408
  %v1640 = vpop.f32.mrb[0].mxu0
  %v1641 = vadd.f32 0.0, %v1640
  %v1642 = vpop.f32.mrb[0].mxu0
  %v1643 = vadd.f32 0.0, %v1642
  %1644 = vdwg.mxu0
  %1645 = vmatprep.subr.mxu0 %v40
  %1646 = vmatpush1.msra.mxu0 %v39
  %1647 = vmatprep.subr.mxu0 %v44
  %1648 = vmatpush1.msra.mxu0 %v43
  %1649 = vmatprep.subr.mxu0 %v48
  %1650 = vmatpush1.msra.mxu0 %v47
  %1651 = vmatprep.subr.mxu0 %v52
  %1652 = vmatpush1.msra.mxu0 %v51
  %1653 = vmatprep.subr.mxu0 %v56
  %1654 = vmatpush1.msra.mxu0 %v55
  %1655 = vmatprep.subr.mxu0 %v60
  %1656 = vmatpush1.msra.mxu0 %v59
  %1657 = vmatprep.subr.mxu0 %v64
  %1658 = vmatpush1.msra.mxu0 %v63
  %1659 = vmatprep.subr.mxu0 %v68
  %1660 = vmatpush1.msra.mxu0 %v67
  %1661 = vmatprep.subr.mxu0 %v72
  %1662 = vmatpush1.msra.mxu0 %v71
  %1663 = vmatprep.subr.mxu0 %v76
  %1664 = vmatpush1.msra.mxu0 %v75
  %1665 = vmatprep.subr.mxu0 %v80
  %1666 = vmatpush1.msra.mxu0 %v79
  %1667 = vmatprep.subr.mxu0 %v84
  %1668 = vmatpush1.msra.mxu0 %v83
  %1669 = vmatprep.subr.mxu0 %v88
  %1670 = vmatpush1.msra.mxu0 %v87
  %1671 = vmatprep.subr.mxu0 %v92
  %1672 = vmatpush1.msra.mxu0 %v91
  %1673 = vmatprep.subr.mxu0 %v96
  %1674 = vmatpush1.msra.mxu0 %v95
  %1675 = vmatprep.subr.mxu0 %v100
  %1676 = vmatpush1.msra.mxu0 %v99
  %1677 = vmatprep.subr.mxu0 0.0
  %1678 = vmatpush1.msra.mxu0 0.0
  %1679 = vmatprep.subr.mxu0 0.0
  %1680 = vmatpush1.msra.mxu0 0.0
  %1681 = vmatprep.subr.mxu0 0.0
  %1682 = vmatpush1.msra.mxu0 0.0
  %1683 = vmatprep.subr.mxu0 0.0
  %1684 = vmatpush1.msra.mxu0 0.0
  %1685 = vmatprep.subr.mxu0 0.0
  %1686 = vmatpush1.msra.mxu0 0.0
  %1687 = vmatprep.subr.mxu0 0.0
  %1688 = vmatpush1.msra.mxu0 0.0
  %1689 = vmatprep.subr.mxu0 0.0
  %1690 = vmatpush1.msra.mxu0 0.0
  %1691 = vmatprep.subr.mxu0 0.0
  %1692 = vmatpush1.msra.mxu0 0.0
  %1693 = vmatprep.subr.mxu0 0.0
  %1694 = vmatpush1.msra.mxu0 0.0
  %1695 = vmatprep.subr.mxu0 0.0
  %1696 = vmatpush1.msra.mxu0 0.0
  %1697 = vmatprep.subr.mxu0 0.0
  %1698 = vmatpush1.msra.mxu0 0.0
  %1699 = vmatprep.subr.mxu0 0.0
  %1700 = vmatpush1.msra.mxu0 0.0
  %1701 = vmatprep.subr.mxu0 0.0
  %1702 = vmatpush1.msra.mxu0 0.0
  %1703 = vmatprep.subr.mxu0 0.0
  %1704 = vmatpush1.msra.mxu0 0.0
  %1705 = vmatprep.subr.mxu0 0.0
  %1706 = vmatpush1.msra.mxu0 0.0
  %1707 = vmatprep.subr.mxu0 0.0
  %1708 = vmatpush1.msra.mxu0 0.0
  %1709 = vmatprep.mubr.f32.mxu0 0.0
  %1710 = vmatmul.mubr.f32.gmra.mrb[0].mxu0 %v1408
  %v1711 = vpop.f32.mrb[0].mxu0
  %v1712 = vadd.f32 0.0, %v1711
  %v1713 = vpop.f32.mrb[0].mxu0
  %v1714 = vadd.f32 0.0, %v1713
  %1715 = vdwg.mxu0
  %v1716 = vadd.f32 %v1570, %v1641
  %v1717 = vadd.f32 %v1571, %v1643
  %v1718 = vadd.f32 %v1572, %v1712
  %v1719 = vadd.f32 %v1573, %v1714
  %v1720 = vmul.f32 %v1716, 0.5
  %v1721 = vtanh.pop %v1720
  %v1722 = vmul.f32 %v1721, 0.5
  %v1723 = vadd.f32 %v1722, 0.5
  %v1724 = vmul.f32 %v1717, 0.5
  %v1725 = vtanh.pop %v1724
  %v1726 = vmul.f32 %v1725, 0.5
  %v1727 = vadd.f32 %v1726, 0.5
  %v1728 = vtanh.pop %v1718
  %v1729 = vmul.f32 %v1719, 0.5
  %v1730 = vtanh.pop %v1729
  %v1731 = vmul.f32 %v1730, 0.5
  %v1732 = vadd.f32 %v1731, 0.5
  %v1733 = vmul.f32 %v1727, %v1406
  %v1734 = vmul.f32 %v1723, %v1728
  %v1735 = vadd.f32 %v1733, %v1734
  %v1736 = vtanh.pop %v1735
  %v1737 = vmul.f32 %v1732, %v1736
  %1738 = vmatprep.subr.mxu0 %v102
  %1739 = vmatpush1.msra.mxu0 %v101
  %1740 = vmatprep.subr.mxu0 %v106
  %1741 = vmatpush1.msra.mxu0 %v105
  %1742 = vmatprep.subr.mxu0 %v110
  %1743 = vmatpush1.msra.mxu0 %v109
  %1744 = vmatprep.subr.mxu0 %v114
  %1745 = vmatpush1.msra.mxu0 %v113
  %1746 = vmatprep.subr.mxu0 %v118
  %1747 = vmatpush1.msra.mxu0 %v117
  %1748 = vmatprep.subr.mxu0 %v122
  %1749 = vmatpush1.msra.mxu0 %v121
  %1750 = vmatprep.subr.mxu0 %v126
  %1751 = vmatpush1.msra.mxu0 %v125
  %1752 = vmatprep.subr.mxu0 %v130
  %1753 = vmatpush1.msra.mxu0 %v129
  %1754 = vmatprep.subr.mxu0 %v134
  %1755 = vmatpush1.msra.mxu0 %v133
  %1756 = vmatprep.subr.mxu0 %v138
  %1757 = vmatpush1.msra.mxu0 %v137
  %1758 = vmatprep.subr.mxu0 %v142
  %1759 = vmatpush1.msra.mxu0 %v141
  %1760 = vmatprep.subr.mxu0 %v146
  %1761 = vmatpush1.msra.mxu0 %v145
  %1762 = vmatprep.subr.mxu0 %v150
  %1763 = vmatpush1.msra.mxu0 %v149
  %1764 = vmatprep.subr.mxu0 %v154
  %1765 = vmatpush1.msra.mxu0 %v153
  %1766 = vmatprep.subr.mxu0 %v158
  %1767 = vmatpush1.msra.mxu0 %v157
  %1768 = vmatprep.subr.mxu0 %v162
  %1769 = vmatpush1.msra.mxu0 %v161
  %1770 = vmatprep.subr.mxu0 %v166
  %1771 = vmatpush1.msra.mxu0 %v165
  %1772 = vmatprep.subr.mxu0 %v170
  %1773 = vmatpush1.msra.mxu0 %v169
  %1774 = vmatprep.subr.mxu0 %v174
  %1775 = vmatpush1.msra.mxu0 %v173
  %1776 = vmatprep.subr.mxu0 %v178
  %1777 = vmatpush1.msra.mxu0 %v177
  %1778 = vmatprep.subr.mxu0 %v182
  %1779 = vmatpush1.msra.mxu0 %v181
  %1780 = vmatprep.subr.mxu0 %v186
  %1781 = vmatpush1.msra.mxu0 %v185
  %1782 = vmatprep.subr.mxu0 %v190
  %1783 = vmatpush1.msra.mxu0 %v189
  %1784 = vmatprep.subr.mxu0 %v194
  %1785 = vmatpush1.msra.mxu0 %v193
  %1786 = vmatprep.subr.mxu0 %v198
  %1787 = vmatpush1.msra.mxu0 %v197
  %1788 = vmatprep.subr.mxu0 %v202
  %1789 = vmatpush1.msra.mxu0 %v201
  %1790 = vmatprep.subr.mxu0 %v206
  %1791 = vmatpush1.msra.mxu0 %v205
  %1792 = vmatprep.subr.mxu0 %v210
  %1793 = vmatpush1.msra.mxu0 %v209
  %1794 = vmatprep.subr.mxu0 %v214
  %1795 = vmatpush1.msra.mxu0 %v213
  %1796 = vmatprep.subr.mxu0 %v218
  %1797 = vmatpush1.msra.mxu0 %v217
  %1798 = vmatprep.subr.mxu0 %v222
  %1799 = vmatpush1.msra.mxu0 %v221
  %1800 = vmatprep.subr.mxu0 %v226
  %1801 = vmatpush1.msra.mxu0 %v225
  %1802 = vmatprep.mubr.f32.mxu0 %v1568
  %1803 = vmatmul.mubr.f32.gmra.mrb[0].mxu0 %v1737
  %v1804 = vpop.f32.mrb[0].mxu0
  %v1805 = vadd.f32 %v234, %v1804
  %v1806 = vpop.f32.mrb[0].mxu0
  %v1807 = vadd.f32 %v238, %v1806
  %1808 = vdwg.mxu0
  %1809 = vmatprep.subr.mxu0 %v104
  %1810 = vmatpush1.msra.mxu0 %v103
  %1811 = vmatprep.subr.mxu0 %v108
  %1812 = vmatpush1.msra.mxu0 %v107
  %1813 = vmatprep.subr.mxu0 %v112
  %1814 = vmatpush1.msra.mxu0 %v111
  %1815 = vmatprep.subr.mxu0 %v116
  %1816 = vmatpush1.msra.mxu0 %v115
  %1817 = vmatprep.subr.mxu0 %v120
  %1818 = vmatpush1.msra.mxu0 %v119
  %1819 = vmatprep.subr.mxu0 %v124
  %1820 = vmatpush1.msra.mxu0 %v123
  %1821 = vmatprep.subr.mxu0 %v128
  %1822 = vmatpush1.msra.mxu0 %v127
  %1823 = vmatprep.subr.mxu0 %v132
  %1824 = vmatpush1.msra.mxu0 %v131
  %1825 = vmatprep.subr.mxu0 %v136
  %1826 = vmatpush1.msra.mxu0 %v135
  %1827 = vmatprep.subr.mxu0 %v140
  %1828 = vmatpush1.msra.mxu0 %v139
  %1829 = vmatprep.subr.mxu0 %v144
  %1830 = vmatpush1.msra.mxu0 %v143
  %1831 = vmatprep.subr.mxu0 %v148
  %1832 = vmatpush1.msra.mxu0 %v147
  %1833 = vmatprep.subr.mxu0 %v152
  %1834 = vmatpush1.msra.mxu0 %v151
  %1835 = vmatprep.subr.mxu0 %v156
  %1836 = vmatpush1.msra.mxu0 %v155
  %1837 = vmatprep.subr.mxu0 %v160
  %1838 = vmatpush1.msra.mxu0 %v159
  %1839 = vmatprep.subr.mxu0 %v164
  %1840 = vmatpush1.msra.mxu0 %v163
  %1841 = vmatprep.subr.mxu0 %v168
  %1842 = vmatpush1.msra.mxu0 %v167
  %1843 = vmatprep.subr.mxu0 %v172
  %1844 = vmatpush1.msra.mxu0 %v171
  %1845 = vmatprep.subr.mxu0 %v176
  %1846 = vmatpush1.msra.mxu0 %v175
  %1847 = vmatprep.subr.mxu0 %v180
  %1848 = vmatpush1.msra.mxu0 %v179
  %1849 = vmatprep.subr.mxu0 %v184
  %1850 = vmatpush1.msra.mxu0 %v183
  %1851 = vmatprep.subr.mxu0 %v188
  %1852 = vmatpush1.msra.mxu0 %v187
  %1853 = vmatprep.subr.mxu0 %v192
  %1854 = vmatpush1.msra.mxu0 %v191
  %1855 = vmatprep.subr.mxu0 %v196
  %1856 = vmatpush1.msra.mxu0 %v195
  %1857 = vmatprep.subr.mxu0 %v200
  %1858 = vmatpush1.msra.mxu0 %v199
  %1859 = vmatprep.subr.mxu0 %v204
  %1860 = vmatpush1.msra.mxu0 %v203
  %1861 = vmatprep.subr.mxu0 %v208
  %1862 = vmatpush1.msra.mxu0 %v207
  %1863 = vmatprep.subr.mxu0 %v212
  %1864 = vmatpush1.msra.mxu0 %v211
  %1865 = vmatprep.subr.mxu0 %v216
  %1866 = vmatpush1.msra.mxu0 %v215
  %1867 = vmatprep.subr.mxu0 %v220
  %1868 = vmatpush1.msra.mxu0 %v219
  %1869 = vmatprep.subr.mxu0 %v224
  %1870 = vmatpush1.msra.mxu0 %v223
  %1871 = vmatprep.subr.mxu0 %v228
  %1872 = vmatpush1.msra.mxu0 %v227
  %1873 = vmatprep.mubr.f32.mxu0 %v1568
  %1874 = vmatmul.mubr.f32.gmra.mrb[0].mxu0 %v1737
  %v1875 = vpop.f32.mrb[0].mxu0
  %v1876 = vadd.f32 %v242, %v1875
  %v1877 = vpop.f32.mrb[0].mxu0
  %v1878 = vadd.f32 %v246, %v1877
  %1879 = vdwg.mxu0
  %v1880 = vmul.f32 %v1805, 0.5
  %v1881 = vtanh.pop %v1880
  %v1882 = vmul.f32 %v1881, 0.5
  %v1883 = vadd.f32 %v1882, 0.5
  %v1884 = vmul.f32 %v1807, 0.5
  %v1885 = vtanh.pop %v1884
  %v1886 = vmul.f32 %v1885, 0.5
  %v1887 = vadd.f32 %v1886, 0.5
  %v1888 = vtanh.pop %v1876
  %v1889 = vmul.f32 %v1878, 0.5
  %v1890 = vtanh.pop %v1889
  %v1891 = vmul.f32 %v1890, 0.5
  %v1892 = vadd.f32 %v1891, 0.5
  %v1893 = vmul.f32 %v1887, %v1566
  %v1894 = vmul.f32 %v1883, %v1888
  %v1895 = vadd.f32 %v1893, %v1894
  %v1896 = vtanh.pop %v1895
  %v1897 = vmul.f32 %v1892, %v1896
  %s1898 = scalar_lea.vmem [#allocation6], 128
  %v1899 = vld [vmem:[%s1898] sm:$0xff]
  %v1900 = vld [vmem:[%s1898 + $0x8] sm:$0xff]
  %v1901 = vld [vmem:[%s1898 + $0x10] sm:$0xff]
  %v1902 = vld [vmem:[%s1898 + $0x18] sm:$0xff]
  %1903 = vmatprep.subr.mxu0 %v38
  %1904 = vmatpush1.msra.mxu0 %v37
  %1905 = vmatprep.subr.mxu0 %v42
  %1906 = vmatpush1.msra.mxu0 %v41
  %1907 = vmatprep.subr.mxu0 %v46
  %1908 = vmatpush1.msra.mxu0 %v45
  %1909 = vmatprep.subr.mxu0 %v50
  %1910 = vmatpush1.msra.mxu0 %v49
  %1911 = vmatprep.subr.mxu0 %v54
  %1912 = vmatpush1.msra.mxu0 %v53
  %1913 = vmatprep.subr.mxu0 %v58
  %1914 = vmatpush1.msra.mxu0 %v57
  %1915 = vmatprep.subr.mxu0 %v62
  %1916 = vmatpush1.msra.mxu0 %v61
  %1917 = vmatprep.subr.mxu0 %v66
  %1918 = vmatpush1.msra.mxu0 %v65
  %1919 = vmatprep.subr.mxu0 %v70
  %1920 = vmatpush1.msra.mxu0 %v69
  %1921 = vmatprep.subr.mxu0 %v74
  %1922 = vmatpush1.msra.mxu0 %v73
  %1923 = vmatprep.subr.mxu0 %v78
  %1924 = vmatpush1.msra.mxu0 %v77
  %1925 = vmatprep.subr.mxu0 %v82
  %1926 = vmatpush1.msra.mxu0 %v81
  %1927 = vmatprep.subr.mxu0 %v86
  %1928 = vmatpush1.msra.mxu0 %v85
  %1929 = vmatprep.subr.mxu0 %v90
  %1930 = vmatpush1.msra.mxu0 %v89
  %1931 = vmatprep.subr.mxu0 %v94
  %1932 = vmatpush1.msra.mxu0 %v93
  %1933 = vmatprep.subr.mxu0 %v98
  %1934 = vmatpush1.msra.mxu0 %v97
  %1935 = vmatprep.subr.mxu0 0.0
  %1936 = vmatpush1.msra.mxu0 0.0
  %1937 = vmatprep.subr.mxu0 0.0
  %1938 = vmatpush1.msra.mxu0 0.0
  %1939 = vmatprep.subr.mxu0 0.0
  %1940 = vmatpush1.msra.mxu0 0.0
  %1941 = vmatprep.subr.mxu0 0.0
  %1942 = vmatpush1.msra.mxu0 0.0
  %1943 = vmatprep.subr.mxu0 0.0
  %1944 = vmatpush1.msra.mxu0 0.0
  %1945 = vmatprep.subr.mxu0 0.0
  %1946 = vmatpush1.msra.mxu0 0.0
  %1947 = vmatprep.subr.mxu0 0.0
  %1948 = vmatpush1.msra.mxu0 0.0
  %1949 = vmatprep.subr.mxu0 0.0
  %1950 = vmatpush1.msra.mxu0 0.0
  %1951 = vmatprep.subr.mxu0 0.0
  %1952 = vmatpush1.msra.mxu0 0.0
  %1953 = vmatprep.subr.mxu0 0.0
  %1954 = vmatpush1.msra.mxu0 0.0
  %1955 = vmatprep.subr.mxu0 0.0
  %1956 = vmatpush1.msra.mxu0 0.0
  %1957 = vmatprep.subr.mxu0 0.0
  %1958 = vmatpush1.msra.mxu0 0.0
  %1959 = vmatprep.subr.mxu0 0.0
  %1960 = vmatpush1.msra.mxu0 0.0
  %1961 = vmatprep.subr.mxu0 0.0
  %1962 = vmatpush1.msra.mxu0 0.0
  %1963 = vmatprep.subr.mxu0 0.0
  %1964 = vmatpush1.msra.mxu0 0.0
  %1965 = vmatprep.subr.mxu0 0.0
  %1966 = vmatpush1.msra.mxu0 0.0
  %1967 = vmatprep.mubr.f32.mxu0 0.0
  %1968 = vmatmul.mubr.f32.gmra.mrb[0].mxu0 %v1737
  %v1969 = vpop.f32.mrb[0].mxu0
  %v1970 = vadd.f32 0.0, %v1969
  %v1971 = vpop.f32.mrb[0].mxu0
  %v1972 = vadd.f32 0.0, %v1971
  %1973 = vdwg.mxu0
  %1974 = vmatprep.subr.mxu0 %v40
  %1975 = vmatpush1.msra.mxu0 %v39
  %1976 = vmatprep.subr.mxu0 %v44
  %1977 = vmatpush1.msra.mxu0 %v43
  %1978 = vmatprep.subr.mxu0 %v48
  %1979 = vmatpush1.msra.mxu0 %v47
  %1980 = vmatprep.subr.mxu0 %v52
  %1981 = vmatpush1.msra.mxu0 %v51
  %1982 = vmatprep.subr.mxu0 %v56
  %1983 = vmatpush1.msra.mxu0 %v55
  %1984 = vmatprep.subr.mxu0 %v60
  %1985 = vmatpush1.msra.mxu0 %v59
  %1986 = vmatprep.subr.mxu0 %v64
  %1987 = vmatpush1.msra.mxu0 %v63
  %1988 = vmatprep.subr.mxu0 %v68
  %1989 = vmatpush1.msra.mxu0 %v67
  %1990 = vmatprep.subr.mxu0 %v72
  %1991 = vmatpush1.msra.mxu0 %v71
  %1992 = vmatprep.subr.mxu0 %v76
  %1993 = vmatpush1.msra.mxu0 %v75
  %1994 = vmatprep.subr.mxu0 %v80
  %1995 = vmatpush1.msra.mxu0 %v79
  %1996 = vmatprep.subr.mxu0 %v84
  %1997 = vmatpush1.msra.mxu0 %v83
  %1998 = vmatprep.subr.mxu0 %v88
  %1999 = vmatpush1.msra.mxu0 %v87
  %2000 = vmatprep.subr.mxu0 %v92
  %2001 = vmatpush1.msra.mxu0 %v91
  %2002 = vmatprep.subr.mxu0 %v96
  %2003 = vmatpush1.msra.mxu0 %v95
  %2004 = vmatprep.subr.mxu0 %v100
  %2005 = vmatpush1.msra.mxu0 %v99
  %2006 = vmatprep.subr.mxu0 0.0
  %2007 = vmatpush1.msra.mxu0 0.0
  %2008 = vmatprep.subr.mxu0 0.0
  %2009 = vmatpush1.msra.mxu0 0.0
  %2010 = vmatprep.subr.mxu0 0.0
  %2011 = vmatpush1.msra.mxu0 0.0
  %2012 = vmatprep.subr.mxu0 0.0
  %2013 = vmatpush1.msra.mxu0 0.0
  %2014 = vmatprep.subr.mxu0 0.0
  %2015 = vmatpush1.msra.mxu0 0.0
  %2016 = vmatprep.subr.mxu0 0.0
  %2017 = vmatpush1.msra.mxu0 0.0
  %2018 = vmatprep.subr.mxu0 0.0
  %2019 = vmatpush1.msra.mxu0 0.0
  %2020 = vmatprep.subr.mxu0 0.0
  %2021 = vmatpush1.msra.mxu0 0.0
  %2022 = vmatprep.subr.mxu0 0.0
  %2023 = vmatpush1.msra.mxu0 0.0
  %2024 = vmatprep.subr.mxu0 0.0
  %2025 = vmatpush1.msra.mxu0 0.0
  %2026 = vmatprep.subr.mxu0 0.0
  %2027 = vmatpush1.msra.mxu0 0.0
  %2028 = vmatprep.subr.mxu0 0.0
  %2029 = vmatpush1.msra.mxu0 0.0
  %2030 = vmatprep.subr.mxu0 0.0
  %2031 = vmatpush1.msra.mxu0 0.0
  %2032 = vmatprep.subr.mxu0 0.0
  %2033 = vmatpush1.msra.mxu0 0.0
  %2034 = vmatprep.subr.mxu0 0.0
  %2035 = vmatpush1.msra.mxu0 0.0
  %2036 = vmatprep.subr.mxu0 0.0
  %2037 = vmatpush1.msra.mxu0 0.0
  %2038 = vmatprep.mubr.f32.mxu0 0.0
  %2039 = vmatmul.mubr.f32.gmra.mrb[0].mxu0 %v1737
  %v2040 = vpop.f32.mrb[0].mxu0
  %v2041 = vadd.f32 0.0, %v2040
  %v2042 = vpop.f32.mrb[0].mxu0
  %v2043 = vadd.f32 0.0, %v2042
  %2044 = vdwg.mxu0
  %v2045 = vadd.f32 %v1899, %v1970
  %v2046 = vadd.f32 %v1900, %v1972
  %v2047 = vadd.f32 %v1901, %v2041
  %v2048 = vadd.f32 %v1902, %v2043
  %v2049 = vmul.f32 %v2045, 0.5
  %v2050 = vtanh.pop %v2049
  %v2051 = vmul.f32 %v2050, 0.5
  %v2052 = vadd.f32 %v2051, 0.5
  %v2053 = vmul.f32 %v2046, 0.5
  %v2054 = vtanh.pop %v2053
  %v2055 = vmul.f32 %v2054, 0.5
  %v2056 = vadd.f32 %v2055, 0.5
  %v2057 = vtanh.pop %v2047
  %v2058 = vmul.f32 %v2048, 0.5
  %v2059 = vtanh.pop %v2058
  %v2060 = vmul.f32 %v2059, 0.5
  %v2061 = vadd.f32 %v2060, 0.5
  %v2062 = vmul.f32 %v2056, %v1735
  %v2063 = vmul.f32 %v2052, %v2057
  %v2064 = vadd.f32 %v2062, %v2063
  %v2065 = vtanh.pop %v2064
  %v2066 = vmul.f32 %v2061, %v2065
  %2067 = vmatprep.subr.mxu0 %v102
  %2068 = vmatpush1.msra.mxu0 %v101
  %2069 = vmatprep.subr.mxu0 %v106
  %2070 = vmatpush1.msra.mxu0 %v105
  %2071 = vmatprep.subr.mxu0 %v110
  %2072 = vmatpush1.msra.mxu0 %v109
  %2073 = vmatprep.subr.mxu0 %v114
  %2074 = vmatpush1.msra.mxu0 %v113
  %2075 = vmatprep.subr.mxu0 %v118
  %2076 = vmatpush1.msra.mxu0 %v117
  %2077 = vmatprep.subr.mxu0 %v122
  %2078 = vmatpush1.msra.mxu0 %v121
  %2079 = vmatprep.subr.mxu0 %v126
  %2080 = vmatpush1.msra.mxu0 %v125
  %2081 = vmatprep.subr.mxu0 %v130
  %2082 = vmatpush1.msra.mxu0 %v129
  %2083 = vmatprep.subr.mxu0 %v134
  %2084 = vmatpush1.msra.mxu0 %v133
  %2085 = vmatprep.subr.mxu0 %v138
  %2086 = vmatpush1.msra.mxu0 %v137
  %2087 = vmatprep.subr.mxu0 %v142
  %2088 = vmatpush1.msra.mxu0 %v141
  %2089 = vmatprep.subr.mxu0 %v146
  %2090 = vmatpush1.msra.mxu0 %v145
  %2091 = vmatprep.subr.mxu0 %v150
  %2092 = vmatpush1.msra.mxu0 %v149
  %2093 = vmatprep.subr.mxu0 %v154
  %2094 = vmatpush1.msra.mxu0 %v153
  %2095 = vmatprep.subr.mxu0 %v158
  %2096 = vmatpush1.msra.mxu0 %v157
  %2097 = vmatprep.subr.mxu0 %v162
  %2098 = vmatpush1.msra.mxu0 %v161
  %2099 = vmatprep.subr.mxu0 %v166
  %2100 = vmatpush1.msra.mxu0 %v165
  %2101 = vmatprep.subr.mxu0 %v170
  %2102 = vmatpush1.msra.mxu0 %v169
  %2103 = vmatprep.subr.mxu0 %v174
  %2104 = vmatpush1.msra.mxu0 %v173
  %2105 = vmatprep.subr.mxu0 %v178
  %2106 = vmatpush1.msra.mxu0 %v177
  %2107 = vmatprep.subr.mxu0 %v182
  %2108 = vmatpush1.msra.mxu0 %v181
  %2109 = vmatprep.subr.mxu0 %v186
  %2110 = vmatpush1.msra.mxu0 %v185
  %2111 = vmatprep.subr.mxu0 %v190
  %2112 = vmatpush1.msra.mxu0 %v189
  %2113 = vmatprep.subr.mxu0 %v194
  %2114 = vmatpush1.msra.mxu0 %v193
  %2115 = vmatprep.subr.mxu0 %v198
  %2116 = vmatpush1.msra.mxu0 %v197
  %2117 = vmatprep.subr.mxu0 %v202
  %2118 = vmatpush1.msra.mxu0 %v201
  %2119 = vmatprep.subr.mxu0 %v206
  %2120 = vmatpush1.msra.mxu0 %v205
  %2121 = vmatprep.subr.mxu0 %v210
  %2122 = vmatpush1.msra.mxu0 %v209
  %2123 = vmatprep.subr.mxu0 %v214
  %2124 = vmatpush1.msra.mxu0 %v213
  %2125 = vmatprep.subr.mxu0 %v218
  %2126 = vmatpush1.msra.mxu0 %v217
  %2127 = vmatprep.subr.mxu0 %v222
  %2128 = vmatpush1.msra.mxu0 %v221
  %2129 = vmatprep.subr.mxu0 %v226
  %2130 = vmatpush1.msra.mxu0 %v225
  %2131 = vmatprep.mubr.f32.mxu0 %v1897
  %2132 = vmatmul.mubr.f32.gmra.mrb[0].mxu0 %v2066
  %v2133 = vpop.f32.mrb[0].mxu0
  %v2134 = vadd.f32 %v234, %v2133
  %v2135 = vpop.f32.mrb[0].mxu0
  %v2136 = vadd.f32 %v238, %v2135
  %2137 = vdwg.mxu0
  %2138 = vmatprep.subr.mxu0 %v104
  %2139 = vmatpush1.msra.mxu0 %v103
  %2140 = vmatprep.subr.mxu0 %v108
  %2141 = vmatpush1.msra.mxu0 %v107
  %2142 = vmatprep.subr.mxu0 %v112
  %2143 = vmatpush1.msra.mxu0 %v111
  %2144 = vmatprep.subr.mxu0 %v116
  %2145 = vmatpush1.msra.mxu0 %v115
  %2146 = vmatprep.subr.mxu0 %v120
  %2147 = vmatpush1.msra.mxu0 %v119
  %2148 = vmatprep.subr.mxu0 %v124
  %2149 = vmatpush1.msra.mxu0 %v123
  %2150 = vmatprep.subr.mxu0 %v128
  %2151 = vmatpush1.msra.mxu0 %v127
  %2152 = vmatprep.subr.mxu0 %v132
  %2153 = vmatpush1.msra.mxu0 %v131
  %2154 = vmatprep.subr.mxu0 %v136
  %2155 = vmatpush1.msra.mxu0 %v135
  %2156 = vmatprep.subr.mxu0 %v140
  %2157 = vmatpush1.msra.mxu0 %v139
  %2158 = vmatprep.subr.mxu0 %v144
  %2159 = vmatpush1.msra.mxu0 %v143
  %2160 = vmatprep.subr.mxu0 %v148
  %2161 = vmatpush1.msra.mxu0 %v147
  %2162 = vmatprep.subr.mxu0 %v152
  %2163 = vmatpush1.msra.mxu0 %v151
  %2164 = vmatprep.subr.mxu0 %v156
  %2165 = vmatpush1.msra.mxu0 %v155
  %2166 = vmatprep.subr.mxu0 %v160
  %2167 = vmatpush1.msra.mxu0 %v159
  %2168 = vmatprep.subr.mxu0 %v164
  %2169 = vmatpush1.msra.mxu0 %v163
  %2170 = vmatprep.subr.mxu0 %v168
  %2171 = vmatpush1.msra.mxu0 %v167
  %2172 = vmatprep.subr.mxu0 %v172
  %2173 = vmatpush1.msra.mxu0 %v171
  %2174 = vmatprep.subr.mxu0 %v176
  %2175 = vmatpush1.msra.mxu0 %v175
  %2176 = vmatprep.subr.mxu0 %v180
  %2177 = vmatpush1.msra.mxu0 %v179
  %2178 = vmatprep.subr.mxu0 %v184
  %2179 = vmatpush1.msra.mxu0 %v183
  %2180 = vmatprep.subr.mxu0 %v188
  %2181 = vmatpush1.msra.mxu0 %v187
  %2182 = vmatprep.subr.mxu0 %v192
  %2183 = vmatpush1.msra.mxu0 %v191
  %2184 = vmatprep.subr.mxu0 %v196
  %2185 = vmatpush1.msra.mxu0 %v195
  %2186 = vmatprep.subr.mxu0 %v200
  %2187 = vmatpush1.msra.mxu0 %v199
  %2188 = vmatprep.subr.mxu0 %v204
  %2189 = vmatpush1.msra.mxu0 %v203
  %2190 = vmatprep.subr.mxu0 %v208
  %2191 = vmatpush1.msra.mxu0 %v207
  %2192 = vmatprep.subr.mxu0 %v212
  %2193 = vmatpush1.msra.mxu0 %v211
  %2194 = vmatprep.subr.mxu0 %v216
  %2195 = vmatpush1.msra.mxu0 %v215
  %2196 = vmatprep.subr.mxu0 %v220
  %2197 = vmatpush1.msra.mxu0 %v219
  %2198 = vmatprep.subr.mxu0 %v224
  %2199 = vmatpush1.msra.mxu0 %v223
  %2200 = vmatprep.subr.mxu0 %v228
  %2201 = vmatpush1.msra.mxu0 %v227
  %2202 = vmatprep.mubr.f32.mxu0 %v1897
  %2203 = vmatmul.mubr.f32.gmra.mrb[0].mxu0 %v2066
  %v2204 = vpop.f32.mrb[0].mxu0
  %v2205 = vadd.f32 %v242, %v2204
  %v2206 = vpop.f32.mrb[0].mxu0
  %v2207 = vadd.f32 %v246, %v2206
  %2208 = vdwg.mxu0
  %v2209 = vmul.f32 %v2134, 0.5
  %v2210 = vtanh.pop %v2209
  %v2211 = vmul.f32 %v2210, 0.5
  %v2212 = vadd.f32 %v2211, 0.5
  %v2213 = vmul.f32 %v2136, 0.5
  %v2214 = vtanh.pop %v2213
  %v2215 = vmul.f32 %v2214, 0.5
  %v2216 = vadd.f32 %v2215, 0.5
  %v2217 = vtanh.pop %v2205
  %v2218 = vmul.f32 %v2207, 0.5
  %v2219 = vtanh.pop %v2218
  %v2220 = vmul.f32 %v2219, 0.5
  %v2221 = vadd.f32 %v2220, 0.5
  %v2222 = vmul.f32 %v2216, %v1895
  %v2223 = vmul.f32 %v2212, %v2217
  %v2224 = vadd.f32 %v2222, %v2223
  %v2225 = vtanh.pop %v2224
  %v2226 = vmul.f32 %v2221, %v2225
  %s2227 = scalar_lea.vmem [#allocation6], 160
  %v2228 = vld [vmem:[%s2227] sm:$0xff]
  %v2229 = vld [vmem:[%s2227 + $0x8] sm:$0xff]
  %v2230 = vld [vmem:[%s2227 + $0x10] sm:$0xff]
  %v2231 = vld [vmem:[%s2227 + $0x18] sm:$0xff]
  %2232 = vmatprep.subr.mxu0 %v38
  %2233 = vmatpush1.msra.mxu0 %v37
  %2234 = vmatprep.subr.mxu0 %v42
  %2235 = vmatpush1.msra.mxu0 %v41
  %2236 = vmatprep.subr.mxu0 %v46
  %2237 = vmatpush1.msra.mxu0 %v45
  %2238 = vmatprep.subr.mxu0 %v50
  %2239 = vmatpush1.msra.mxu0 %v49
  %2240 = vmatprep.subr.mxu0 %v54
  %2241 = vmatpush1.msra.mxu0 %v53
  %2242 = vmatprep.subr.mxu0 %v58
  %2243 = vmatpush1.msra.mxu0 %v57
  %2244 = vmatprep.subr.mxu0 %v62
  %2245 = vmatpush1.msra.mxu0 %v61
  %2246 = vmatprep.subr.mxu0 %v66
  %2247 = vmatpush1.msra.mxu0 %v65
  %2248 = vmatprep.subr.mxu0 %v70
  %2249 = vmatpush1.msra.mxu0 %v69
  %2250 = vmatprep.subr.mxu0 %v74
  %2251 = vmatpush1.msra.mxu0 %v73
  %2252 = vmatprep.subr.mxu0 %v78
  %2253 = vmatpush1.msra.mxu0 %v77
  %2254 = vmatprep.subr.mxu0 %v82
  %2255 = vmatpush1.msra.mxu0 %v81
  %2256 = vmatprep.subr.mxu0 %v86
  %2257 = vmatpush1.msra.mxu0 %v85
  %2258 = vmatprep.subr.mxu0 %v90
  %2259 = vmatpush1.msra.mxu0 %v89
  %2260 = vmatprep.subr.mxu0 %v94
  %2261 = vmatpush1.msra.mxu0 %v93
  %2262 = vmatprep.subr.mxu0 %v98
  %2263 = vmatpush1.msra.mxu0 %v97
  %2264 = vmatprep.subr.mxu0 0.0
  %2265 = vmatpush1.msra.mxu0 0.0
  %2266 = vmatprep.subr.mxu0 0.0
  %2267 = vmatpush1.msra.mxu0 0.0
  %2268 = vmatprep.subr.mxu0 0.0
  %2269 = vmatpush1.msra.mxu0 0.0
  %2270 = vmatprep.subr.mxu0 0.0
  %2271 = vmatpush1.msra.mxu0 0.0
  %2272 = vmatprep.subr.mxu0 0.0
  %2273 = vmatpush1.msra.mxu0 0.0
  %2274 = vmatprep.subr.mxu0 0.0
  %2275 = vmatpush1.msra.mxu0 0.0
  %2276 = vmatprep.subr.mxu0 0.0
  %2277 = vmatpush1.msra.mxu0 0.0
  %2278 = vmatprep.subr.mxu0 0.0
  %2279 = vmatpush1.msra.mxu0 0.0
  %2280 = vmatprep.subr.mxu0 0.0
  %2281 = vmatpush1.msra.mxu0 0.0
  %2282 = vmatprep.subr.mxu0 0.0
  %2283 = vmatpush1.msra.mxu0 0.0
  %2284 = vmatprep.subr.mxu0 0.0
  %2285 = vmatpush1.msra.mxu0 0.0
  %2286 = vmatprep.subr.mxu0 0.0
  %2287 = vmatpush1.msra.mxu0 0.0
  %2288 = vmatprep.subr.mxu0 0.0
  %2289 = vmatpush1.msra.mxu0 0.0
  %2290 = vmatprep.subr.mxu0 0.0
  %2291 = vmatpush1.msra.mxu0 0.0
  %2292 = vmatprep.subr.mxu0 0.0
  %2293 = vmatpush1.msra.mxu0 0.0
  %2294 = vmatprep.subr.mxu0 0.0
  %2295 = vmatpush1.msra.mxu0 0.0
  %2296 = vmatprep.mubr.f32.mxu0 0.0
  %2297 = vmatmul.mubr.f32.gmra.mrb[0].mxu0 %v2066
  %v2298 = vpop.f32.mrb[0].mxu0
  %v2299 = vadd.f32 0.0, %v2298
  %v2300 = vpop.f32.mrb[0].mxu0
  %v2301 = vadd.f32 0.0, %v2300
  %2302 = vdwg.mxu0
  %2303 = vmatprep.subr.mxu0 %v40
  %2304 = vmatpush1.msra.mxu0 %v39
  %2305 = vmatprep.subr.mxu0 %v44
  %2306 = vmatpush1.msra.mxu0 %v43
  %2307 = vmatprep.subr.mxu0 %v48
  %2308 = vmatpush1.msra.mxu0 %v47
  %2309 = vmatprep.subr.mxu0 %v52
  %2310 = vmatpush1.msra.mxu0 %v51
  %2311 = vmatprep.subr.mxu0 %v56
  %2312 = vmatpush1.msra.mxu0 %v55
  %2313 = vmatprep.subr.mxu0 %v60
  %2314 = vmatpush1.msra.mxu0 %v59
  %2315 = vmatprep.subr.mxu0 %v64
  %2316 = vmatpush1.msra.mxu0 %v63
  %2317 = vmatprep.subr.mxu0 %v68
  %2318 = vmatpush1.msra.mxu0 %v67
  %2319 = vmatprep.subr.mxu0 %v72
  %2320 = vmatpush1.msra.mxu0 %v71
  %2321 = vmatprep.subr.mxu0 %v76
  %2322 = vmatpush1.msra.mxu0 %v75
  %2323 = vmatprep.subr.mxu0 %v80
  %2324 = vmatpush1.msra.mxu0 %v79
  %2325 = vmatprep.subr.mxu0 %v84
  %2326 = vmatpush1.msra.mxu0 %v83
  %2327 = vmatprep.subr.mxu0 %v88
  %2328 = vmatpush1.msra.mxu0 %v87
  %2329 = vmatprep.subr.mxu0 %v92
  %2330 = vmatpush1.msra.mxu0 %v91
  %2331 = vmatprep.subr.mxu0 %v96
  %2332 = vmatpush1.msra.mxu0 %v95
  %2333 = vmatprep.subr.mxu0 %v100
  %2334 = vmatpush1.msra.mxu0 %v99
  %2335 = vmatprep.subr.mxu0 0.0
  %2336 = vmatpush1.msra.mxu0 0.0
  %2337 = vmatprep.subr.mxu0 0.0
  %2338 = vmatpush1.msra.mxu0 0.0
  %2339 = vmatprep.subr.mxu0 0.0
  %2340 = vmatpush1.msra.mxu0 0.0
  %2341 = vmatprep.subr.mxu0 0.0
  %2342 = vmatpush1.msra.mxu0 0.0
  %2343 = vmatprep.subr.mxu0 0.0
  %2344 = vmatpush1.msra.mxu0 0.0
  %2345 = vmatprep.subr.mxu0 0.0
  %2346 = vmatpush1.msra.mxu0 0.0
  %2347 = vmatprep.subr.mxu0 0.0
  %2348 = vmatpush1.msra.mxu0 0.0
  %2349 = vmatprep.subr.mxu0 0.0
  %2350 = vmatpush1.msra.mxu0 0.0
  %2351 = vmatprep.subr.mxu0 0.0
  %2352 = vmatpush1.msra.mxu0 0.0
  %2353 = vmatprep.subr.mxu0 0.0
  %2354 = vmatpush1.msra.mxu0 0.0
  %2355 = vmatprep.subr.mxu0 0.0
  %2356 = vmatpush1.msra.mxu0 0.0
  %2357 = vmatprep.subr.mxu0 0.0
  %2358 = vmatpush1.msra.mxu0 0.0
  %2359 = vmatprep.subr.mxu0 0.0
  %2360 = vmatpush1.msra.mxu0 0.0
  %2361 = vmatprep.subr.mxu0 0.0
  %2362 = vmatpush1.msra.mxu0 0.0
  %2363 = vmatprep.subr.mxu0 0.0
  %2364 = vmatpush1.msra.mxu0 0.0
  %2365 = vmatprep.subr.mxu0 0.0
  %2366 = vmatpush1.msra.mxu0 0.0
  %2367 = vmatprep.mubr.f32.mxu0 0.0
  %2368 = vmatmul.mubr.f32.gmra.mrb[0].mxu0 %v2066
  %v2369 = vpop.f32.mrb[0].mxu0
  %v2370 = vadd.f32 0.0, %v2369
  %v2371 = vpop.f32.mrb[0].mxu0
  %v2372 = vadd.f32 0.0, %v2371
  %2373 = vdwg.mxu0
  %v2374 = vadd.f32 %v2228, %v2299
  %v2375 = vadd.f32 %v2229, %v2301
  %v2376 = vadd.f32 %v2230, %v2370
  %v2377 = vadd.f32 %v2231, %v2372
  %v2378 = vmul.f32 %v2374, 0.5
  %v2379 = vtanh.pop %v2378
  %v2380 = vmul.f32 %v2379, 0.5
  %v2381 = vadd.f32 %v2380, 0.5
  %v2382 = vmul.f32 %v2375, 0.5
  %v2383 = vtanh.pop %v2382
  %v2384 = vmul.f32 %v2383, 0.5
  %v2385 = vadd.f32 %v2384, 0.5
  %v2386 = vtanh.pop %v2376
  %v2387 = vmul.f32 %v2377, 0.5
  %v2388 = vtanh.pop %v2387
  %v2389 = vmul.f32 %v2388, 0.5
  %v2390 = vadd.f32 %v2389, 0.5
  %v2391 = vmul.f32 %v2385, %v2064
  %v2392 = vmul.f32 %v2381, %v2386
  %v2393 = vadd.f32 %v2391, %v2392
  %v2394 = vtanh.pop %v2393
  %v2395 = vmul.f32 %v2390, %v2394
  %2396 = vmatprep.subr.mxu0 %v102
  %2397 = vmatpush1.msra.mxu0 %v101
  %2398 = vmatprep.subr.mxu0 %v106
  %2399 = vmatpush1.msra.mxu0 %v105
  %2400 = vmatprep.subr.mxu0 %v110
  %2401 = vmatpush1.msra.mxu0 %v109
  %2402 = vmatprep.subr.mxu0 %v114
  %2403 = vmatpush1.msra.mxu0 %v113
  %2404 = vmatprep.subr.mxu0 %v118
  %2405 = vmatpush1.msra.mxu0 %v117
  %2406 = vmatprep.subr.mxu0 %v122
  %2407 = vmatpush1.msra.mxu0 %v121
  %2408 = vmatprep.subr.mxu0 %v126
  %2409 = vmatpush1.msra.mxu0 %v125
  %2410 = vmatprep.subr.mxu0 %v130
  %2411 = vmatpush1.msra.mxu0 %v129
  %2412 = vmatprep.subr.mxu0 %v134
  %2413 = vmatpush1.msra.mxu0 %v133
  %2414 = vmatprep.subr.mxu0 %v138
  %2415 = vmatpush1.msra.mxu0 %v137
  %2416 = vmatprep.subr.mxu0 %v142
  %2417 = vmatpush1.msra.mxu0 %v141
  %2418 = vmatprep.subr.mxu0 %v146
  %2419 = vmatpush1.msra.mxu0 %v145
  %2420 = vmatprep.subr.mxu0 %v150
  %2421 = vmatpush1.msra.mxu0 %v149
  %2422 = vmatprep.subr.mxu0 %v154
  %2423 = vmatpush1.msra.mxu0 %v153
  %2424 = vmatprep.subr.mxu0 %v158
  %2425 = vmatpush1.msra.mxu0 %v157
  %2426 = vmatprep.subr.mxu0 %v162
  %2427 = vmatpush1.msra.mxu0 %v161
  %2428 = vmatprep.subr.mxu0 %v166
  %2429 = vmatpush1.msra.mxu0 %v165
  %2430 = vmatprep.subr.mxu0 %v170
  %2431 = vmatpush1.msra.mxu0 %v169
  %2432 = vmatprep.subr.mxu0 %v174
  %2433 = vmatpush1.msra.mxu0 %v173
  %2434 = vmatprep.subr.mxu0 %v178
  %2435 = vmatpush1.msra.mxu0 %v177
  %2436 = vmatprep.subr.mxu0 %v182
  %2437 = vmatpush1.msra.mxu0 %v181
  %2438 = vmatprep.subr.mxu0 %v186
  %2439 = vmatpush1.msra.mxu0 %v185
  %2440 = vmatprep.subr.mxu0 %v190
  %2441 = vmatpush1.msra.mxu0 %v189
  %2442 = vmatprep.subr.mxu0 %v194
  %2443 = vmatpush1.msra.mxu0 %v193
  %2444 = vmatprep.subr.mxu0 %v198
  %2445 = vmatpush1.msra.mxu0 %v197
  %2446 = vmatprep.subr.mxu0 %v202
  %2447 = vmatpush1.msra.mxu0 %v201
  %2448 = vmatprep.subr.mxu0 %v206
  %2449 = vmatpush1.msra.mxu0 %v205
  %2450 = vmatprep.subr.mxu0 %v210
  %2451 = vmatpush1.msra.mxu0 %v209
  %2452 = vmatprep.subr.mxu0 %v214
  %2453 = vmatpush1.msra.mxu0 %v213
  %2454 = vmatprep.subr.mxu0 %v218
  %2455 = vmatpush1.msra.mxu0 %v217
  %2456 = vmatprep.subr.mxu0 %v222
  %2457 = vmatpush1.msra.mxu0 %v221
  %2458 = vmatprep.subr.mxu0 %v226
  %2459 = vmatpush1.msra.mxu0 %v225
  %2460 = vmatprep.mubr.f32.mxu0 %v2226
  %2461 = vmatmul.mubr.f32.gmra.mrb[0].mxu0 %v2395
  %v2462 = vpop.f32.mrb[0].mxu0
  %v2463 = vadd.f32 %v234, %v2462
  %v2464 = vpop.f32.mrb[0].mxu0
  %v2465 = vadd.f32 %v238, %v2464
  %2466 = vdwg.mxu0
  %2467 = vmatprep.subr.mxu0 %v104
  %2468 = vmatpush1.msra.mxu0 %v103
  %2469 = vmatprep.subr.mxu0 %v108
  %2470 = vmatpush1.msra.mxu0 %v107
  %2471 = vmatprep.subr.mxu0 %v112
  %2472 = vmatpush1.msra.mxu0 %v111
  %2473 = vmatprep.subr.mxu0 %v116
  %2474 = vmatpush1.msra.mxu0 %v115
  %2475 = vmatprep.subr.mxu0 %v120
  %2476 = vmatpush1.msra.mxu0 %v119
  %2477 = vmatprep.subr.mxu0 %v124
  %2478 = vmatpush1.msra.mxu0 %v123
  %2479 = vmatprep.subr.mxu0 %v128
  %2480 = vmatpush1.msra.mxu0 %v127
  %2481 = vmatprep.subr.mxu0 %v132
  %2482 = vmatpush1.msra.mxu0 %v131
  %2483 = vmatprep.subr.mxu0 %v136
  %2484 = vmatpush1.msra.mxu0 %v135
  %2485 = vmatprep.subr.mxu0 %v140
  %2486 = vmatpush1.msra.mxu0 %v139
  %2487 = vmatprep.subr.mxu0 %v144
  %2488 = vmatpush1.msra.mxu0 %v143
  %2489 = vmatprep.subr.mxu0 %v148
  %2490 = vmatpush1.msra.mxu0 %v147
  %2491 = vmatprep.subr.mxu0 %v152
  %2492 = vmatpush1.msra.mxu0 %v151
  %2493 = vmatprep.subr.mxu0 %v156
  %2494 = vmatpush1.msra.mxu0 %v155
  %2495 = vmatprep.subr.mxu0 %v160
  %2496 = vmatpush1.msra.mxu0 %v159
  %2497 = vmatprep.subr.mxu0 %v164
  %2498 = vmatpush1.msra.mxu0 %v163
  %2499 = vmatprep.subr.mxu0 %v168
  %2500 = vmatpush1.msra.mxu0 %v167
  %2501 = vmatprep.subr.mxu0 %v172
  %2502 = vmatpush1.msra.mxu0 %v171
  %2503 = vmatprep.subr.mxu0 %v176
  %2504 = vmatpush1.msra.mxu0 %v175
  %2505 = vmatprep.subr.mxu0 %v180
  %2506 = vmatpush1.msra.mxu0 %v179
  %2507 = vmatprep.subr.mxu0 %v184
  %2508 = vmatpush1.msra.mxu0 %v183
  %2509 = vmatprep.subr.mxu0 %v188
  %2510 = vmatpush1.msra.mxu0 %v187
  %2511 = vmatprep.subr.mxu0 %v192
  %2512 = vmatpush1.msra.mxu0 %v191
  %2513 = vmatprep.subr.mxu0 %v196
  %2514 = vmatpush1.msra.mxu0 %v195
  %2515 = vmatprep.subr.mxu0 %v200
  %2516 = vmatpush1.msra.mxu0 %v199
  %2517 = vmatprep.subr.mxu0 %v204
  %2518 = vmatpush1.msra.mxu0 %v203
  %2519 = vmatprep.subr.mxu0 %v208
  %2520 = vmatpush1.msra.mxu0 %v207
  %2521 = vmatprep.subr.mxu0 %v212
  %2522 = vmatpush1.msra.mxu0 %v211
  %2523 = vmatprep.subr.mxu0 %v216
  %2524 = vmatpush1.msra.mxu0 %v215
  %2525 = vmatprep.subr.mxu0 %v220
  %2526 = vmatpush1.msra.mxu0 %v219
  %2527 = vmatprep.subr.mxu0 %v224
  %2528 = vmatpush1.msra.mxu0 %v223
  %2529 = vmatprep.subr.mxu0 %v228
  %2530 = vmatpush1.msra.mxu0 %v227
  %2531 = vmatprep.mubr.f32.mxu0 %v2226
  %2532 = vmatmul.mubr.f32.gmra.mrb[0].mxu0 %v2395
  %v2533 = vpop.f32.mrb[0].mxu0
  %v2534 = vadd.f32 %v242, %v2533
  %v2535 = vpop.f32.mrb[0].mxu0
  %v2536 = vadd.f32 %v246, %v2535
  %2537 = vdwg.mxu0
  %v2538 = vmul.f32 %v2463, 0.5
  %v2539 = vtanh.pop %v2538
  %v2540 = vmul.f32 %v2539, 0.5
  %v2541 = vadd.f32 %v2540, 0.5
  %v2542 = vmul.f32 %v2465, 0.5
  %v2543 = vtanh.pop %v2542
  %v2544 = vmul.f32 %v2543, 0.5
  %v2545 = vadd.f32 %v2544, 0.5
  %v2546 = vtanh.pop %v2534
  %v2547 = vmul.f32 %v2536, 0.5
  %v2548 = vtanh.pop %v2547
  %v2549 = vmul.f32 %v2548, 0.5
  %v2550 = vadd.f32 %v2549, 0.5
  %v2551 = vmul.f32 %v2545, %v2224
  %v2552 = vmul.f32 %v2541, %v2546
  %v2553 = vadd.f32 %v2551, %v2552
  %v2554 = vtanh.pop %v2553
  %v2555 = vmul.f32 %v2550, %v2554
  %s2556 = scalar_lea.vmem [#allocation6], 192
  %v2557 = vld [vmem:[%s2556] sm:$0xff]
  %v2558 = vld [vmem:[%s2556 + $0x8] sm:$0xff]
  %v2559 = vld [vmem:[%s2556 + $0x10] sm:$0xff]
  %v2560 = vld [vmem:[%s2556 + $0x18] sm:$0xff]
  %2561 = vmatprep.subr.mxu0 %v38
  %2562 = vmatpush1.msra.mxu0 %v37
  %2563 = vmatprep.subr.mxu0 %v42
  %2564 = vmatpush1.msra.mxu0 %v41
  %2565 = vmatprep.subr.mxu0 %v46
  %2566 = vmatpush1.msra.mxu0 %v45
  %2567 = vmatprep.subr.mxu0 %v50
  %2568 = vmatpush1.msra.mxu0 %v49
  %2569 = vmatprep.subr.mxu0 %v54
  %2570 = vmatpush1.msra.mxu0 %v53
  %2571 = vmatprep.subr.mxu0 %v58
  %2572 = vmatpush1.msra.mxu0 %v57
  %2573 = vmatprep.subr.mxu0 %v62
  %2574 = vmatpush1.msra.mxu0 %v61
  %2575 = vmatprep.subr.mxu0 %v66
  %2576 = vmatpush1.msra.mxu0 %v65
  %2577 = vmatprep.subr.mxu0 %v70
  %2578 = vmatpush1.msra.mxu0 %v69
  %2579 = vmatprep.subr.mxu0 %v74
  %2580 = vmatpush1.msra.mxu0 %v73
  %2581 = vmatprep.subr.mxu0 %v78
  %2582 = vmatpush1.msra.mxu0 %v77
  %2583 = vmatprep.subr.mxu0 %v82
  %2584 = vmatpush1.msra.mxu0 %v81
  %2585 = vmatprep.subr.mxu0 %v86
  %2586 = vmatpush1.msra.mxu0 %v85
  %2587 = vmatprep.subr.mxu0 %v90
  %2588 = vmatpush1.msra.mxu0 %v89
  %2589 = vmatprep.subr.mxu0 %v94
  %2590 = vmatpush1.msra.mxu0 %v93
  %2591 = vmatprep.subr.mxu0 %v98
  %2592 = vmatpush1.msra.mxu0 %v97
  %2593 = vmatprep.subr.mxu0 0.0
  %2594 = vmatpush1.msra.mxu0 0.0
  %2595 = vmatprep.subr.mxu0 0.0
  %2596 = vmatpush1.msra.mxu0 0.0
  %2597 = vmatprep.subr.mxu0 0.0
  %2598 = vmatpush1.msra.mxu0 0.0
  %2599 = vmatprep.subr.mxu0 0.0
  %2600 = vmatpush1.msra.mxu0 0.0
  %2601 = vmatprep.subr.mxu0 0.0
  %2602 = vmatpush1.msra.mxu0 0.0
  %2603 = vmatprep.subr.mxu0 0.0
  %2604 = vmatpush1.msra.mxu0 0.0
  %2605 = vmatprep.subr.mxu0 0.0
  %2606 = vmatpush1.msra.mxu0 0.0
  %2607 = vmatprep.subr.mxu0 0.0
  %2608 = vmatpush1.msra.mxu0 0.0
  %2609 = vmatprep.subr.mxu0 0.0
  %2610 = vmatpush1.msra.mxu0 0.0
  %2611 = vmatprep.subr.mxu0 0.0
  %2612 = vmatpush1.msra.mxu0 0.0
  %2613 = vmatprep.subr.mxu0 0.0
  %2614 = vmatpush1.msra.mxu0 0.0
  %2615 = vmatprep.subr.mxu0 0.0
  %2616 = vmatpush1.msra.mxu0 0.0
  %2617 = vmatprep.subr.mxu0 0.0
  %2618 = vmatpush1.msra.mxu0 0.0
  %2619 = vmatprep.subr.mxu0 0.0
  %2620 = vmatpush1.msra.mxu0 0.0
  %2621 = vmatprep.subr.mxu0 0.0
  %2622 = vmatpush1.msra.mxu0 0.0
  %2623 = vmatprep.subr.mxu0 0.0
  %2624 = vmatpush1.msra.mxu0 0.0
  %2625 = vmatprep.mubr.f32.mxu0 0.0
  %2626 = vmatmul.mubr.f32.gmra.mrb[0].mxu0 %v2395
  %v2627 = vpop.f32.mrb[0].mxu0
  %v2628 = vadd.f32 0.0, %v2627
  %v2629 = vpop.f32.mrb[0].mxu0
  %v2630 = vadd.f32 0.0, %v2629
  %2631 = vdwg.mxu0
  %2632 = vmatprep.subr.mxu0 %v40
  %2633 = vmatpush1.msra.mxu0 %v39
  %2634 = vmatprep.subr.mxu0 %v44
  %2635 = vmatpush1.msra.mxu0 %v43
  %2636 = vmatprep.subr.mxu0 %v48
  %2637 = vmatpush1.msra.mxu0 %v47
  %2638 = vmatprep.subr.mxu0 %v52
  %2639 = vmatpush1.msra.mxu0 %v51
  %2640 = vmatprep.subr.mxu0 %v56
  %2641 = vmatpush1.msra.mxu0 %v55
  %2642 = vmatprep.subr.mxu0 %v60
  %2643 = vmatpush1.msra.mxu0 %v59
  %2644 = vmatprep.subr.mxu0 %v64
  %2645 = vmatpush1.msra.mxu0 %v63
  %2646 = vmatprep.subr.mxu0 %v68
  %2647 = vmatpush1.msra.mxu0 %v67
  %2648 = vmatprep.subr.mxu0 %v72
  %2649 = vmatpush1.msra.mxu0 %v71
  %2650 = vmatprep.subr.mxu0 %v76
  %2651 = vmatpush1.msra.mxu0 %v75
  %2652 = vmatprep.subr.mxu0 %v80
  %2653 = vmatpush1.msra.mxu0 %v79
  %2654 = vmatprep.subr.mxu0 %v84
  %2655 = vmatpush1.msra.mxu0 %v83
  %2656 = vmatprep.subr.mxu0 %v88
  %2657 = vmatpush1.msra.mxu0 %v87
  %2658 = vmatprep.subr.mxu0 %v92
  %2659 = vmatpush1.msra.mxu0 %v91
  %2660 = vmatprep.subr.mxu0 %v96
  %2661 = vmatpush1.msra.mxu0 %v95
  %2662 = vmatprep.subr.mxu0 %v100
  %2663 = vmatpush1.msra.mxu0 %v99
  %2664 = vmatprep.subr.mxu0 0.0
  %2665 = vmatpush1.msra.mxu0 0.0
  %2666 = vmatprep.subr.mxu0 0.0
  %2667 = vmatpush1.msra.mxu0 0.0
  %2668 = vmatprep.subr.mxu0 0.0
  %2669 = vmatpush1.msra.mxu0 0.0
  %2670 = vmatprep.subr.mxu0 0.0
  %2671 = vmatpush1.msra.mxu0 0.0
  %2672 = vmatprep.subr.mxu0 0.0
  %2673 = vmatpush1.msra.mxu0 0.0
  %2674 = vmatprep.subr.mxu0 0.0
  %2675 = vmatpush1.msra.mxu0 0.0
  %2676 = vmatprep.subr.mxu0 0.0
  %2677 = vmatpush1.msra.mxu0 0.0
  %2678 = vmatprep.subr.mxu0 0.0
  %2679 = vmatpush1.msra.mxu0 0.0
  %2680 = vmatprep.subr.mxu0 0.0
  %2681 = vmatpush1.msra.mxu0 0.0
  %2682 = vmatprep.subr.mxu0 0.0
  %2683 = vmatpush1.msra.mxu0 0.0
  %2684 = vmatprep.subr.mxu0 0.0
  %2685 = vmatpush1.msra.mxu0 0.0
  %2686 = vmatprep.subr.mxu0 0.0
  %2687 = vmatpush1.msra.mxu0 0.0
  %2688 = vmatprep.subr.mxu0 0.0
  %2689 = vmatpush1.msra.mxu0 0.0
  %2690 = vmatprep.subr.mxu0 0.0
  %2691 = vmatpush1.msra.mxu0 0.0
  %2692 = vmatprep.subr.mxu0 0.0
  %2693 = vmatpush1.msra.mxu0 0.0
  %2694 = vmatprep.subr.mxu0 0.0
  %2695 = vmatpush1.msra.mxu0 0.0
  %2696 = vmatprep.mubr.f32.mxu0 0.0
  %2697 = vmatmul.mubr.f32.gmra.mrb[0].mxu0 %v2395
  %v2698 = vpop.f32.mrb[0].mxu0
  %v2699 = vadd.f32 0.0, %v2698
  %v2700 = vpop.f32.mrb[0].mxu0
  %v2701 = vadd.f32 0.0, %v2700
  %2702 = vdwg.mxu0
  %v2703 = vadd.f32 %v2557, %v2628
  %v2704 = vadd.f32 %v2558, %v2630
  %v2705 = vadd.f32 %v2559, %v2699
  %v2706 = vadd.f32 %v2560, %v2701
  %v2707 = vmul.f32 %v2703, 0.5
  %v2708 = vtanh.pop %v2707
  %v2709 = vmul.f32 %v2708, 0.5
  %v2710 = vadd.f32 %v2709, 0.5
  %v2711 = vmul.f32 %v2704, 0.5
  %v2712 = vtanh.pop %v2711
  %v2713 = vmul.f32 %v2712, 0.5
  %v2714 = vadd.f32 %v2713, 0.5
  %v2715 = vtanh.pop %v2705
  %v2716 = vmul.f32 %v2706, 0.5
  %v2717 = vtanh.pop %v2716
  %v2718 = vmul.f32 %v2717, 0.5
  %v2719 = vadd.f32 %v2718, 0.5
  %v2720 = vmul.f32 %v2714, %v2393
  %v2721 = vmul.f32 %v2710, %v2715
  %v2722 = vadd.f32 %v2720, %v2721
  %v2723 = vtanh.pop %v2722
  %v2724 = vmul.f32 %v2719, %v2723
  %2725 = vmatprep.subr.mxu0 %v102
  %2726 = vmatpush1.msra.mxu0 %v101
  %2727 = vmatprep.subr.mxu0 %v106
  %2728 = vmatpush1.msra.mxu0 %v105
  %2729 = vmatprep.subr.mxu0 %v110
  %2730 = vmatpush1.msra.mxu0 %v109
  %2731 = vmatprep.subr.mxu0 %v114
  %2732 = vmatpush1.msra.mxu0 %v113
  %2733 = vmatprep.subr.mxu0 %v118
  %2734 = vmatpush1.msra.mxu0 %v117
  %2735 = vmatprep.subr.mxu0 %v122
  %2736 = vmatpush1.msra.mxu0 %v121
  %2737 = vmatprep.subr.mxu0 %v126
  %2738 = vmatpush1.msra.mxu0 %v125
  %2739 = vmatprep.subr.mxu0 %v130
  %2740 = vmatpush1.msra.mxu0 %v129
  %2741 = vmatprep.subr.mxu0 %v134
  %2742 = vmatpush1.msra.mxu0 %v133
  %2743 = vmatprep.subr.mxu0 %v138
  %2744 = vmatpush1.msra.mxu0 %v137
  %2745 = vmatprep.subr.mxu0 %v142
  %2746 = vmatpush1.msra.mxu0 %v141
  %2747 = vmatprep.subr.mxu0 %v146
  %2748 = vmatpush1.msra.mxu0 %v145
  %2749 = vmatprep.subr.mxu0 %v150
  %2750 = vmatpush1.msra.mxu0 %v149
  %2751 = vmatprep.subr.mxu0 %v154
  %2752 = vmatpush1.msra.mxu0 %v153
  %2753 = vmatprep.subr.mxu0 %v158
  %2754 = vmatpush1.msra.mxu0 %v157
  %2755 = vmatprep.subr.mxu0 %v162
  %2756 = vmatpush1.msra.mxu0 %v161
  %2757 = vmatprep.subr.mxu0 %v166
  %2758 = vmatpush1.msra.mxu0 %v165
  %2759 = vmatprep.subr.mxu0 %v170
  %2760 = vmatpush1.msra.mxu0 %v169
  %2761 = vmatprep.subr.mxu0 %v174
  %2762 = vmatpush1.msra.mxu0 %v173
  %2763 = vmatprep.subr.mxu0 %v178
  %2764 = vmatpush1.msra.mxu0 %v177
  %2765 = vmatprep.subr.mxu0 %v182
  %2766 = vmatpush1.msra.mxu0 %v181
  %2767 = vmatprep.subr.mxu0 %v186
  %2768 = vmatpush1.msra.mxu0 %v185
  %2769 = vmatprep.subr.mxu0 %v190
  %2770 = vmatpush1.msra.mxu0 %v189
  %2771 = vmatprep.subr.mxu0 %v194
  %2772 = vmatpush1.msra.mxu0 %v193
  %2773 = vmatprep.subr.mxu0 %v198
  %2774 = vmatpush1.msra.mxu0 %v197
  %2775 = vmatprep.subr.mxu0 %v202
  %2776 = vmatpush1.msra.mxu0 %v201
  %2777 = vmatprep.subr.mxu0 %v206
  %2778 = vmatpush1.msra.mxu0 %v205
  %2779 = vmatprep.subr.mxu0 %v210
  %2780 = vmatpush1.msra.mxu0 %v209
  %2781 = vmatprep.subr.mxu0 %v214
  %2782 = vmatpush1.msra.mxu0 %v213
  %2783 = vmatprep.subr.mxu0 %v218
  %2784 = vmatpush1.msra.mxu0 %v217
  %2785 = vmatprep.subr.mxu0 %v222
  %2786 = vmatpush1.msra.mxu0 %v221
  %2787 = vmatprep.subr.mxu0 %v226
  %2788 = vmatpush1.msra.mxu0 %v225
  %2789 = vmatprep.mubr.f32.mxu0 %v2555
  %2790 = vmatmul.mubr.f32.gmra.mrb[0].mxu0 %v2724
  %v2791 = vpop.f32.mrb[0].mxu0
  %v2792 = vadd.f32 %v234, %v2791
  %v2793 = vpop.f32.mrb[0].mxu0
  %v2794 = vadd.f32 %v238, %v2793
  %2795 = vdwg.mxu0
  %2796 = vmatprep.subr.mxu0 %v104
  %2797 = vmatpush1.msra.mxu0 %v103
  %2798 = vmatprep.subr.mxu0 %v108
  %2799 = vmatpush1.msra.mxu0 %v107
  %2800 = vmatprep.subr.mxu0 %v112
  %2801 = vmatpush1.msra.mxu0 %v111
  %2802 = vmatprep.subr.mxu0 %v116
  %2803 = vmatpush1.msra.mxu0 %v115
  %2804 = vmatprep.subr.mxu0 %v120
  %2805 = vmatpush1.msra.mxu0 %v119
  %2806 = vmatprep.subr.mxu0 %v124
  %2807 = vmatpush1.msra.mxu0 %v123
  %2808 = vmatprep.subr.mxu0 %v128
  %2809 = vmatpush1.msra.mxu0 %v127
  %2810 = vmatprep.subr.mxu0 %v132
  %2811 = vmatpush1.msra.mxu0 %v131
  %2812 = vmatprep.subr.mxu0 %v136
  %2813 = vmatpush1.msra.mxu0 %v135
  %2814 = vmatprep.subr.mxu0 %v140
  %2815 = vmatpush1.msra.mxu0 %v139
  %2816 = vmatprep.subr.mxu0 %v144
  %2817 = vmatpush1.msra.mxu0 %v143
  %2818 = vmatprep.subr.mxu0 %v148
  %2819 = vmatpush1.msra.mxu0 %v147
  %2820 = vmatprep.subr.mxu0 %v152
  %2821 = vmatpush1.msra.mxu0 %v151
  %2822 = vmatprep.subr.mxu0 %v156
  %2823 = vmatpush1.msra.mxu0 %v155
  %2824 = vmatprep.subr.mxu0 %v160
  %2825 = vmatpush1.msra.mxu0 %v159
  %2826 = vmatprep.subr.mxu0 %v164
  %2827 = vmatpush1.msra.mxu0 %v163
  %2828 = vmatprep.subr.mxu0 %v168
  %2829 = vmatpush1.msra.mxu0 %v167
  %2830 = vmatprep.subr.mxu0 %v172
  %2831 = vmatpush1.msra.mxu0 %v171
  %2832 = vmatprep.subr.mxu0 %v176
  %2833 = vmatpush1.msra.mxu0 %v175
  %2834 = vmatprep.subr.mxu0 %v180
  %2835 = vmatpush1.msra.mxu0 %v179
  %2836 = vmatprep.subr.mxu0 %v184
  %2837 = vmatpush1.msra.mxu0 %v183
  %2838 = vmatprep.subr.mxu0 %v188
  %2839 = vmatpush1.msra.mxu0 %v187
  %2840 = vmatprep.subr.mxu0 %v192
  %2841 = vmatpush1.msra.mxu0 %v191
  %2842 = vmatprep.subr.mxu0 %v196
  %2843 = vmatpush1.msra.mxu0 %v195
  %2844 = vmatprep.subr.mxu0 %v200
  %2845 = vmatpush1.msra.mxu0 %v199
  %2846 = vmatprep.subr.mxu0 %v204
  %2847 = vmatpush1.msra.mxu0 %v203
  %2848 = vmatprep.subr.mxu0 %v208
  %2849 = vmatpush1.msra.mxu0 %v207
  %2850 = vmatprep.subr.mxu0 %v212
  %2851 = vmatpush1.msra.mxu0 %v211
  %2852 = vmatprep.subr.mxu0 %v216
  %2853 = vmatpush1.msra.mxu0 %v215
  %2854 = vmatprep.subr.mxu0 %v220
  %2855 = vmatpush1.msra.mxu0 %v219
  %2856 = vmatprep.subr.mxu0 %v224
  %2857 = vmatpush1.msra.mxu0 %v223
  %2858 = vmatprep.subr.mxu0 %v228
  %2859 = vmatpush1.msra.mxu0 %v227
  %2860 = vmatprep.mubr.f32.mxu0 %v2555
  %2861 = vmatmul.mubr.f32.gmra.mrb[0].mxu0 %v2724
  %v2862 = vpop.f32.mrb[0].mxu0
  %v2863 = vadd.f32 %v242, %v2862
  %v2864 = vpop.f32.mrb[0].mxu0
  %v2865 = vadd.f32 %v246, %v2864
  %2866 = vdwg.mxu0
  %v2867 = vmul.f32 %v2792, 0.5
  %v2868 = vtanh.pop %v2867
  %v2869 = vmul.f32 %v2868, 0.5
  %v2870 = vadd.f32 %v2869, 0.5
  %v2871 = vmul.f32 %v2794, 0.5
  %v2872 = vtanh.pop %v2871
  %v2873 = vmul.f32 %v2872, 0.5
  %v2874 = vadd.f32 %v2873, 0.5
  %v2875 = vtanh.pop %v2863
  %v2876 = vmul.f32 %v2865, 0.5
  %v2877 = vtanh.pop %v2876
  %v2878 = vmul.f32 %v2877, 0.5
  %v2879 = vadd.f32 %v2878, 0.5
  %v2880 = vmul.f32 %v2874, %v2553
  %v2881 = vmul.f32 %v2870, %v2875
  %v2882 = vadd.f32 %v2880, %v2881
  %v2883 = vtanh.pop %v2882
  %v2884 = vmul.f32 %v2879, %v2883
  %s2885 = scalar_lea.vmem [#allocation6], 224
  %v2886 = vld [vmem:[%s2885] sm:$0xff]
  %v2887 = vld [vmem:[%s2885 + $0x8] sm:$0xff]
  %v2888 = vld [vmem:[%s2885 + $0x10] sm:$0xff]
  %v2889 = vld [vmem:[%s2885 + $0x18] sm:$0xff]
  %2890 = vmatprep.subr.mxu0 %v38
  %2891 = vmatpush1.msra.mxu0 %v37
  %2892 = vmatprep.subr.mxu0 %v42
  %2893 = vmatpush1.msra.mxu0 %v41
  %2894 = vmatprep.subr.mxu0 %v46
  %2895 = vmatpush1.msra.mxu0 %v45
  %2896 = vmatprep.subr.mxu0 %v50
  %2897 = vmatpush1.msra.mxu0 %v49
  %2898 = vmatprep.subr.mxu0 %v54
  %2899 = vmatpush1.msra.mxu0 %v53
  %2900 = vmatprep.subr.mxu0 %v58
  %2901 = vmatpush1.msra.mxu0 %v57
  %2902 = vmatprep.subr.mxu0 %v62
  %2903 = vmatpush1.msra.mxu0 %v61
  %2904 = vmatprep.subr.mxu0 %v66
  %2905 = vmatpush1.msra.mxu0 %v65
  %2906 = vmatprep.subr.mxu0 %v70
  %2907 = vmatpush1.msra.mxu0 %v69
  %2908 = vmatprep.subr.mxu0 %v74
  %2909 = vmatpush1.msra.mxu0 %v73
  %2910 = vmatprep.subr.mxu0 %v78
  %2911 = vmatpush1.msra.mxu0 %v77
  %2912 = vmatprep.subr.mxu0 %v82
  %2913 = vmatpush1.msra.mxu0 %v81
  %2914 = vmatprep.subr.mxu0 %v86
  %2915 = vmatpush1.msra.mxu0 %v85
  %2916 = vmatprep.subr.mxu0 %v90
  %2917 = vmatpush1.msra.mxu0 %v89
  %2918 = vmatprep.subr.mxu0 %v94
  %2919 = vmatpush1.msra.mxu0 %v93
  %2920 = vmatprep.subr.mxu0 %v98
  %2921 = vmatpush1.msra.mxu0 %v97
  %2922 = vmatprep.subr.mxu0 0.0
  %2923 = vmatpush1.msra.mxu0 0.0
  %2924 = vmatprep.subr.mxu0 0.0
  %2925 = vmatpush1.msra.mxu0 0.0
  %2926 = vmatprep.subr.mxu0 0.0
  %2927 = vmatpush1.msra.mxu0 0.0
  %2928 = vmatprep.subr.mxu0 0.0
  %2929 = vmatpush1.msra.mxu0 0.0
  %2930 = vmatprep.subr.mxu0 0.0
  %2931 = vmatpush1.msra.mxu0 0.0
  %2932 = vmatprep.subr.mxu0 0.0
  %2933 = vmatpush1.msra.mxu0 0.0
  %2934 = vmatprep.subr.mxu0 0.0
  %2935 = vmatpush1.msra.mxu0 0.0
  %2936 = vmatprep.subr.mxu0 0.0
  %2937 = vmatpush1.msra.mxu0 0.0
  %2938 = vmatprep.subr.mxu0 0.0
  %2939 = vmatpush1.msra.mxu0 0.0
  %2940 = vmatprep.subr.mxu0 0.0
  %2941 = vmatpush1.msra.mxu0 0.0
  %2942 = vmatprep.subr.mxu0 0.0
  %2943 = vmatpush1.msra.mxu0 0.0
  %2944 = vmatprep.subr.mxu0 0.0
  %2945 = vmatpush1.msra.mxu0 0.0
  %2946 = vmatprep.subr.mxu0 0.0
  %2947 = vmatpush1.msra.mxu0 0.0
  %2948 = vmatprep.subr.mxu0 0.0
  %2949 = vmatpush1.msra.mxu0 0.0
  %2950 = vmatprep.subr.mxu0 0.0
  %2951 = vmatpush1.msra.mxu0 0.0
  %2952 = vmatprep.subr.mxu0 0.0
  %2953 = vmatpush1.msra.mxu0 0.0
  %2954 = vmatprep.mubr.f32.mxu0 0.0
  %2955 = vmatmul.mubr.f32.gmra.mrb[0].mxu0 %v2724
  %v2956 = vpop.f32.mrb[0].mxu0
  %v2957 = vadd.f32 0.0, %v2956
  %v2958 = vpop.f32.mrb[0].mxu0
  %v2959 = vadd.f32 0.0, %v2958
  %2960 = vdwg.mxu0
  %2961 = vmatprep.subr.mxu0 %v40
  %2962 = vmatpush1.msra.mxu0 %v39
  %2963 = vmatprep.subr.mxu0 %v44
  %2964 = vmatpush1.msra.mxu0 %v43
  %2965 = vmatprep.subr.mxu0 %v48
  %2966 = vmatpush1.msra.mxu0 %v47
  %2967 = vmatprep.subr.mxu0 %v52
  %2968 = vmatpush1.msra.mxu0 %v51
  %2969 = vmatprep.subr.mxu0 %v56
  %2970 = vmatpush1.msra.mxu0 %v55
  %2971 = vmatprep.subr.mxu0 %v60
  %2972 = vmatpush1.msra.mxu0 %v59
  %2973 = vmatprep.subr.mxu0 %v64
  %2974 = vmatpush1.msra.mxu0 %v63
  %2975 = vmatprep.subr.mxu0 %v68
  %2976 = vmatpush1.msra.mxu0 %v67
  %2977 = vmatprep.subr.mxu0 %v72
  %2978 = vmatpush1.msra.mxu0 %v71
  %2979 = vmatprep.subr.mxu0 %v76
  %2980 = vmatpush1.msra.mxu0 %v75
  %2981 = vmatprep.subr.mxu0 %v80
  %2982 = vmatpush1.msra.mxu0 %v79
  %2983 = vmatprep.subr.mxu0 %v84
  %2984 = vmatpush1.msra.mxu0 %v83
  %2985 = vmatprep.subr.mxu0 %v88
  %2986 = vmatpush1.msra.mxu0 %v87
  %2987 = vmatprep.subr.mxu0 %v92
  %2988 = vmatpush1.msra.mxu0 %v91
  %2989 = vmatprep.subr.mxu0 %v96
  %2990 = vmatpush1.msra.mxu0 %v95
  %2991 = vmatprep.subr.mxu0 %v100
  %2992 = vmatpush1.msra.mxu0 %v99
  %2993 = vmatprep.subr.mxu0 0.0
  %2994 = vmatpush1.msra.mxu0 0.0
  %2995 = vmatprep.subr.mxu0 0.0
  %2996 = vmatpush1.msra.mxu0 0.0
  %2997 = vmatprep.subr.mxu0 0.0
  %2998 = vmatpush1.msra.mxu0 0.0
  %2999 = vmatprep.subr.mxu0 0.0
  %3000 = vmatpush1.msra.mxu0 0.0
  %3001 = vmatprep.subr.mxu0 0.0
  %3002 = vmatpush1.msra.mxu0 0.0
  %3003 = vmatprep.subr.mxu0 0.0
  %3004 = vmatpush1.msra.mxu0 0.0
  %3005 = vmatprep.subr.mxu0 0.0
  %3006 = vmatpush1.msra.mxu0 0.0
  %3007 = vmatprep.subr.mxu0 0.0
  %3008 = vmatpush1.msra.mxu0 0.0
  %3009 = vmatprep.subr.mxu0 0.0
  %3010 = vmatpush1.msra.mxu0 0.0
  %3011 = vmatprep.subr.mxu0 0.0
  %3012 = vmatpush1.msra.mxu0 0.0
  %3013 = vmatprep.subr.mxu0 0.0
  %3014 = vmatpush1.msra.mxu0 0.0
  %3015 = vmatprep.subr.mxu0 0.0
  %3016 = vmatpush1.msra.mxu0 0.0
  %3017 = vmatprep.subr.mxu0 0.0
  %3018 = vmatpush1.msra.mxu0 0.0
  %3019 = vmatprep.subr.mxu0 0.0
  %3020 = vmatpush1.msra.mxu0 0.0
  %3021 = vmatprep.subr.mxu0 0.0
  %3022 = vmatpush1.msra.mxu0 0.0
  %3023 = vmatprep.subr.mxu0 0.0
  %3024 = vmatpush1.msra.mxu0 0.0
  %3025 = vmatprep.mubr.f32.mxu0 0.0
  %3026 = vmatmul.mubr.f32.gmra.mrb[0].mxu0 %v2724
  %v3027 = vpop.f32.mrb[0].mxu0
  %v3028 = vadd.f32 0.0, %v3027
  %v3029 = vpop.f32.mrb[0].mxu0
  %v3030 = vadd.f32 0.0, %v3029
  %3031 = vdwg.mxu0
  %v3032 = vadd.f32 %v2886, %v2957
  %v3033 = vadd.f32 %v2887, %v2959
  %v3034 = vadd.f32 %v2888, %v3028
  %v3035 = vadd.f32 %v2889, %v3030
  %v3036 = vmul.f32 %v3032, 0.5
  %v3037 = vtanh.pop %v3036
  %v3038 = vmul.f32 %v3037, 0.5
  %v3039 = vadd.f32 %v3038, 0.5
  %v3040 = vmul.f32 %v3033, 0.5
  %v3041 = vtanh.pop %v3040
  %v3042 = vmul.f32 %v3041, 0.5
  %v3043 = vadd.f32 %v3042, 0.5
  %v3044 = vtanh.pop %v3034
  %v3045 = vmul.f32 %v3035, 0.5
  %v3046 = vtanh.pop %v3045
  %v3047 = vmul.f32 %v3046, 0.5
  %v3048 = vadd.f32 %v3047, 0.5
  %v3049 = vmul.f32 %v3043, %v2722
  %v3050 = vmul.f32 %v3039, %v3044
  %v3051 = vadd.f32 %v3049, %v3050
  %v3052 = vtanh.pop %v3051
  %v3053 = vmul.f32 %v3048, %v3052
  %3054 = vmatprep.subr.mxu0 %v102
  %3055 = vmatpush1.msra.mxu0 %v101
  %3056 = vmatprep.subr.mxu0 %v106
  %3057 = vmatpush1.msra.mxu0 %v105
  %3058 = vmatprep.subr.mxu0 %v110
  %3059 = vmatpush1.msra.mxu0 %v109
  %3060 = vmatprep.subr.mxu0 %v114
  %3061 = vmatpush1.msra.mxu0 %v113
  %3062 = vmatprep.subr.mxu0 %v118
  %3063 = vmatpush1.msra.mxu0 %v117
  %3064 = vmatprep.subr.mxu0 %v122
  %3065 = vmatpush1.msra.mxu0 %v121
  %3066 = vmatprep.subr.mxu0 %v126
  %3067 = vmatpush1.msra.mxu0 %v125
  %3068 = vmatprep.subr.mxu0 %v130
  %3069 = vmatpush1.msra.mxu0 %v129
  %3070 = vmatprep.subr.mxu0 %v134
  %3071 = vmatpush1.msra.mxu0 %v133
  %3072 = vmatprep.subr.mxu0 %v138
  %3073 = vmatpush1.msra.mxu0 %v137
  %3074 = vmatprep.subr.mxu0 %v142
  %3075 = vmatpush1.msra.mxu0 %v141
  %3076 = vmatprep.subr.mxu0 %v146
  %3077 = vmatpush1.msra.mxu0 %v145
  %3078 = vmatprep.subr.mxu0 %v150
  %3079 = vmatpush1.msra.mxu0 %v149
  %3080 = vmatprep.subr.mxu0 %v154
  %3081 = vmatpush1.msra.mxu0 %v153
  %3082 = vmatprep.subr.mxu0 %v158
  %3083 = vmatpush1.msra.mxu0 %v157
  %3084 = vmatprep.subr.mxu0 %v162
  %3085 = vmatpush1.msra.mxu0 %v161
  %3086 = vmatprep.subr.mxu0 %v166
  %3087 = vmatpush1.msra.mxu0 %v165
  %3088 = vmatprep.subr.mxu0 %v170
  %3089 = vmatpush1.msra.mxu0 %v169
  %3090 = vmatprep.subr.mxu0 %v174
  %3091 = vmatpush1.msra.mxu0 %v173
  %3092 = vmatprep.subr.mxu0 %v178
  %3093 = vmatpush1.msra.mxu0 %v177
  %3094 = vmatprep.subr.mxu0 %v182
  %3095 = vmatpush1.msra.mxu0 %v181
  %3096 = vmatprep.subr.mxu0 %v186
  %3097 = vmatpush1.msra.mxu0 %v185
  %3098 = vmatprep.subr.mxu0 %v190
  %3099 = vmatpush1.msra.mxu0 %v189
  %3100 = vmatprep.subr.mxu0 %v194
  %3101 = vmatpush1.msra.mxu0 %v193
  %3102 = vmatprep.subr.mxu0 %v198
  %3103 = vmatpush1.msra.mxu0 %v197
  %3104 = vmatprep.subr.mxu0 %v202
  %3105 = vmatpush1.msra.mxu0 %v201
  %3106 = vmatprep.subr.mxu0 %v206
  %3107 = vmatpush1.msra.mxu0 %v205
  %3108 = vmatprep.subr.mxu0 %v210
  %3109 = vmatpush1.msra.mxu0 %v209
  %3110 = vmatprep.subr.mxu0 %v214
  %3111 = vmatpush1.msra.mxu0 %v213
  %3112 = vmatprep.subr.mxu0 %v218
  %3113 = vmatpush1.msra.mxu0 %v217
  %3114 = vmatprep.subr.mxu0 %v222
  %3115 = vmatpush1.msra.mxu0 %v221
  %3116 = vmatprep.subr.mxu0 %v226
  %3117 = vmatpush1.msra.mxu0 %v225
  %3118 = vmatprep.mubr.f32.mxu0 %v2884
  %3119 = vmatmul.mubr.f32.gmra.mrb[0].mxu0 %v3053
  %v3120 = vpop.f32.mrb[0].mxu0
  %v3121 = vadd.f32 %v234, %v3120
  %v3122 = vpop.f32.mrb[0].mxu0
  %v3123 = vadd.f32 %v238, %v3122
  %3124 = vdwg.mxu0
  %3125 = vmatprep.subr.mxu0 %v104
  %3126 = vmatpush1.msra.mxu0 %v103
  %3127 = vmatprep.subr.mxu0 %v108
  %3128 = vmatpush1.msra.mxu0 %v107
  %3129 = vmatprep.subr.mxu0 %v112
  %3130 = vmatpush1.msra.mxu0 %v111
  %3131 = vmatprep.subr.mxu0 %v116
  %3132 = vmatpush1.msra.mxu0 %v115
  %3133 = vmatprep.subr.mxu0 %v120
  %3134 = vmatpush1.msra.mxu0 %v119
  %3135 = vmatprep.subr.mxu0 %v124
  %3136 = vmatpush1.msra.mxu0 %v123
  %3137 = vmatprep.subr.mxu0 %v128
  %3138 = vmatpush1.msra.mxu0 %v127
  %3139 = vmatprep.subr.mxu0 %v132
  %3140 = vmatpush1.msra.mxu0 %v131
  %3141 = vmatprep.subr.mxu0 %v136
  %3142 = vmatpush1.msra.mxu0 %v135
  %3143 = vmatprep.subr.mxu0 %v140
  %3144 = vmatpush1.msra.mxu0 %v139
  %3145 = vmatprep.subr.mxu0 %v144
  %3146 = vmatpush1.msra.mxu0 %v143
  %3147 = vmatprep.subr.mxu0 %v148
  %3148 = vmatpush1.msra.mxu0 %v147
  %3149 = vmatprep.subr.mxu0 %v152
  %3150 = vmatpush1.msra.mxu0 %v151
  %3151 = vmatprep.subr.mxu0 %v156
  %3152 = vmatpush1.msra.mxu0 %v155
  %3153 = vmatprep.subr.mxu0 %v160
  %3154 = vmatpush1.msra.mxu0 %v159
  %3155 = vmatprep.subr.mxu0 %v164
  %3156 = vmatpush1.msra.mxu0 %v163
  %3157 = vmatprep.subr.mxu0 %v168
  %3158 = vmatpush1.msra.mxu0 %v167
  %3159 = vmatprep.subr.mxu0 %v172
  %3160 = vmatpush1.msra.mxu0 %v171
  %3161 = vmatprep.subr.mxu0 %v176
  %3162 = vmatpush1.msra.mxu0 %v175
  %3163 = vmatprep.subr.mxu0 %v180
  %3164 = vmatpush1.msra.mxu0 %v179
  %3165 = vmatprep.subr.mxu0 %v184
  %3166 = vmatpush1.msra.mxu0 %v183
  %3167 = vmatprep.subr.mxu0 %v188
  %3168 = vmatpush1.msra.mxu0 %v187
  %3169 = vmatprep.subr.mxu0 %v192
  %3170 = vmatpush1.msra.mxu0 %v191
  %3171 = vmatprep.subr.mxu0 %v196
  %3172 = vmatpush1.msra.mxu0 %v195
  %3173 = vmatprep.subr.mxu0 %v200
  %3174 = vmatpush1.msra.mxu0 %v199
  %3175 = vmatprep.subr.mxu0 %v204
  %3176 = vmatpush1.msra.mxu0 %v203
  %3177 = vmatprep.subr.mxu0 %v208
  %3178 = vmatpush1.msra.mxu0 %v207
  %3179 = vmatprep.subr.mxu0 %v212
  %3180 = vmatpush1.msra.mxu0 %v211
  %3181 = vmatprep.subr.mxu0 %v216
  %3182 = vmatpush1.msra.mxu0 %v215
  %3183 = vmatprep.subr.mxu0 %v220
  %3184 = vmatpush1.msra.mxu0 %v219
  %3185 = vmatprep.subr.mxu0 %v224
  %3186 = vmatpush1.msra.mxu0 %v223
  %3187 = vmatprep.subr.mxu0 %v228
  %3188 = vmatpush1.msra.mxu0 %v227
  %3189 = vmatprep.mubr.f32.mxu0 %v2884
  %3190 = vmatmul.mubr.f32.gmra.mrb[0].mxu0 %v3053
  %v3191 = vpop.f32.mrb[0].mxu0
  %v3192 = vadd.f32 %v242, %v3191
  %v3193 = vpop.f32.mrb[0].mxu0
  %v3194 = vadd.f32 %v246, %v3193
  %3195 = vdwg.mxu0
  %v3196 = vmul.f32 %v3121, 0.5
  %v3197 = vtanh.pop %v3196
  %v3198 = vmul.f32 %v3197, 0.5
  %v3199 = vadd.f32 %v3198, 0.5
  %v3200 = vmul.f32 %v3123, 0.5
  %v3201 = vtanh.pop %v3200
  %v3202 = vmul.f32 %v3201, 0.5
  %v3203 = vadd.f32 %v3202, 0.5
  %v3204 = vtanh.pop %v3192
  %v3205 = vmul.f32 %v3194, 0.5
  %v3206 = vtanh.pop %v3205
  %v3207 = vmul.f32 %v3206, 0.5
  %v3208 = vadd.f32 %v3207, 0.5
  %v3209 = vmul.f32 %v3203, %v2882
  %v3210 = vmul.f32 %v3199, %v3204
  %v3211 = vadd.f32 %v3209, %v3210
  %v3212 = vtanh.pop %v3211
  %v3213 = vmul.f32 %v3208, %v3212
  %3214 = vst [vmem:[#allocation2] sm:$0xff] %v3053
  %3215 = vst [vmem:[#allocation4] sm:$0xff] %v3051
  %3216 = vst [vmem:[#allocation3] sm:$0xff] %v3213
  %3217 = vst [vmem:[#allocation5] sm:$0xff] %v3211
  // Predicated region
  $region38: #{fwd.1} parent=0 // pred_check
    %p3218 = pneg %p29
  $region39: #{fwd.1} parent=0 // pred_check_branch
    %3220 = sbr.rel (%p3218) target = $region41
  $region40: #{fwd.1} parent=0 // pred_region
    %v3221 = vld [vmem:[%s6] sm:$0xff]
    %v3222 = vld [vmem:[%s6 + $0x8] sm:$0xff]
    %v3223 = vld [vmem:[%s6 + $0x10] sm:$0xff]
    %v3224 = vld [vmem:[%s6 + $0x18] sm:$0xff]
    %v3225 = vld [vmem:[%s6 + $0x20] sm:$0xff]
    %v3226 = vld [vmem:[%s6 + $0x28] sm:$0xff]
    %v3227 = vld [vmem:[%s6 + $0x30] sm:$0xff]
    %v3228 = vld [vmem:[%s6 + $0x38] sm:$0xff]
    %v3229 = vld [vmem:[%s6 + $0x40] sm:$0xff]
    %v3230 = vld [vmem:[%s6 + $0x48] sm:$0xff]
    %v3231 = vld [vmem:[%s6 + $0x50] sm:$0xff]
    %v3232 = vld [vmem:[%s6 + $0x58] sm:$0xff]
    %v3233 = vld [vmem:[%s6 + $0x60] sm:$0xff]
    %v3234 = vld [vmem:[%s6 + $0x68] sm:$0xff]
    %v3235 = vld [vmem:[%s6 + $0x70] sm:$0xff]
    %v3236 = vld [vmem:[%s6 + $0x78] sm:$0xff]
    %v3237 = vld [vmem:[%s7] sm:$0x1]
    %v3239 = vlaneseq
    %v3240 = vshrl.u32 %v3239, 7
    %v3241 = vsub.s32 0, %v3240
    %v3242 = vrot.slane %v3237, %v3241
    %3244 = vmatprep.subr.mxu0 0.0
    %3245 = vmatpush1.msra.mxu0 %v3221
    %3246 = vmatprep.subr.mxu0 0.0
    %3247 = vmatpush1.msra.mxu0 %v3222
    %3248 = vmatprep.subr.mxu0 0.0
    %3249 = vmatpush1.msra.mxu0 %v3223
    %3250 = vmatprep.subr.mxu0 0.0
    %3251 = vmatpush1.msra.mxu0 %v3224
    %3252 = vmatprep.subr.mxu0 0.0
    %3253 = vmatpush1.msra.mxu0 %v3225
    %3254 = vmatprep.subr.mxu0 0.0
    %3255 = vmatpush1.msra.mxu0 %v3226
    %3256 = vmatprep.subr.mxu0 0.0
    %3257 = vmatpush1.msra.mxu0 %v3227
    %3258 = vmatprep.subr.mxu0 0.0
    %3259 = vmatpush1.msra.mxu0 %v3228
    %3260 = vmatprep.subr.mxu0 0.0
    %3261 = vmatpush1.msra.mxu0 %v3229
    %3262 = vmatprep.subr.mxu0 0.0
    %3263 = vmatpush1.msra.mxu0 %v3230
    %3264 = vmatprep.subr.mxu0 0.0
    %3265 = vmatpush1.msra.mxu0 %v3231
    %3266 = vmatprep.subr.mxu0 0.0
    %3267 = vmatpush1.msra.mxu0 %v3232
    %3268 = vmatprep.subr.mxu0 0.0
    %3269 = vmatpush1.msra.mxu0 %v3233
    %3270 = vmatprep.subr.mxu0 0.0
    %3271 = vmatpush1.msra.mxu0 %v3234
    %3272 = vmatprep.subr.mxu0 0.0
    %3273 = vmatpush1.msra.mxu0 %v3235
    %3274 = vmatprep.subr.mxu0 0.0
    %3275 = vmatpush1.msra.mxu0 %v3236
    %3276 = vmatprep.subr.mxu0 0.0
    %3277 = vmatpush1.msra.mxu0 0.0
    %3278 = vmatprep.subr.mxu0 0.0
    %3279 = vmatpush1.msra.mxu0 0.0
    %3280 = vmatprep.subr.mxu0 0.0
    %3281 = vmatpush1.msra.mxu0 0.0
    %3282 = vmatprep.subr.mxu0 0.0
    %3283 = vmatpush1.msra.mxu0 0.0
    %3284 = vmatprep.subr.mxu0 0.0
    %3285 = vmatpush1.msra.mxu0 0.0
    %3286 = vmatprep.subr.mxu0 0.0
    %3287 = vmatpush1.msra.mxu0 0.0
    %3288 = vmatprep.subr.mxu0 0.0
    %3289 = vmatpush1.msra.mxu0 0.0
    %3290 = vmatprep.subr.mxu0 0.0
    %3291 = vmatpush1.msra.mxu0 0.0
    %3292 = vmatprep.subr.mxu0 0.0
    %3293 = vmatpush1.msra.mxu0 0.0
    %3294 = vmatprep.subr.mxu0 0.0
    %3295 = vmatpush1.msra.mxu0 0.0
    %3296 = vmatprep.subr.mxu0 0.0
    %3297 = vmatpush1.msra.mxu0 0.0
    %3298 = vmatprep.subr.mxu0 0.0
    %3299 = vmatpush1.msra.mxu0 0.0
    %3300 = vmatprep.subr.mxu0 0.0
    %3301 = vmatpush1.msra.mxu0 0.0
    %3302 = vmatprep.subr.mxu0 0.0
    %3303 = vmatpush1.msra.mxu0 0.0
    %3304 = vmatprep.subr.mxu0 0.0
    %3305 = vmatpush1.msra.mxu0 0.0
    %3306 = vmatprep.subr.mxu0 0.0
    %3307 = vmatpush1.msra.mxu0 0.0
    %3308 = vmatprep.mubr.f32.mxu0 0.0
    %3309 = vmatmul.mubr.f32.gmra.mrb[0].mxu0 %v3213
    %v3310 = vpop.f32.mrb[0].mxu0
    %v3311 = vadd.f32 %v3242, %v3310
    %v3312 = vpop.f32.mrb[0].mxu0
    %3313 = vdwg.mxu0
    %3314 = vst [vmem:[%s8] sm:$0xff] %v3311
  $region41: #{fwd.1} parent=0 // pred_fallthru
    _
  // Predicated region
  $region42: #{fwd.1} parent=0 // pred_check
    _
  $region43: #{fwd.1} parent=0 // pred_check_branch
    %3316 = sbr.rel (0) target = $region45
  $region44: #{fwd.1} parent=0 // pred_region
    _
  $region45: #{fwd.1} parent=0 // pred_fallthru
    _
  // Predicated region
  $region46: #{fwd.1} parent=0 // pred_check
    _
  $region47: #{fwd.1} parent=0 // pred_check_branch
    %3318 = sbr.rel (0) target = $region49
  $region48: #{fwd.1} parent=0 // pred_region
    _
  $region49: #{fwd.1} parent=0 // pred_fallthru
    _

// kernel: fwd.1
$region0: #{fwd.1}
  #allocation0 [shape = 'u32[]', space=smem, size = 0x4, offset = 0x4, fixed_abs, tag = 'smem constant byte address 0x4 - core index']
  #allocation1 [shape = 'u32[144,128]{1,0:T(1,128)}', space=vmem, size = 0x12000, scoped, tag = 'internal scratch']
  #allocation2 [shape = 'f32[8,128]{1,0:T(8,128)}', space=vmem, size = 0x1000, scoped, tag = 'scratch operand']
  #allocation3 [shape = 'f32[8,128]{1,0:T(8,128)}', space=vmem, size = 0x1000, scoped, tag = 'scratch operand']
  #allocation4 [shape = 'f32[8,128]{1,0:T(8,128)}', space=vmem, size = 0x1000, scoped, tag = 'scratch operand']
  #allocation5 [shape = 'f32[8,128]{1,0:T(8,128)}', space=vmem, size = 0x1000, scoped, tag = 'scratch operand']
  #allocation6 [shape = 'f32[8,8,512]{2,1,0:T(8,128)}', space=vmem, size = 0x20000, scoped, tag = 'scratch operand']
  %s0 = inlined_call_operand.vmem [shape: f32[8,8,4], index: 0, kind: input, shape index: {}]
  %s1 = inlined_call_operand.vmem [shape: f32[4,512], index: 1, kind: input, shape index: {}]
  %s2 = inlined_call_operand.vmem [shape: f32[128,512], index: 2, kind: input, shape index: {}]
  %s3 = inlined_call_operand.vmem [shape: f32[1,512], index: 3, kind: input, shape index: {}]
  %s4 = inlined_call_operand.vmem [shape: f32[256,512], index: 4, kind: input, shape index: {}]
  %s5 = inlined_call_operand.vmem [shape: f32[1,512], index: 5, kind: input, shape index: {}]
  %s6 = inlined_call_operand.vmem [shape: f32[128,128], index: 6, kind: input, shape index: {}]
  %s7 = inlined_call_operand.vmem [shape: f32[1,128], index: 7, kind: input, shape index: {}]
  %s8 = inlined_call_operand.vmem [shape: f32[8,128], index: 8, kind: output, shape index: {}]
  %s9 = sld [smem:[#allocation0]]
  $region50: #{fwd.1} parent=0
    _
  %s11 = ssub.s32 1, %s9
  %s12 = scalar_select 0, %s11, %s9
  // Predicated region
  $region2: #{fwd.1} parent=0 // pred_check
    _
  $region3: #{fwd.1} parent=0 // pred_check_branch
    %14 = sbr.rel (0) target = $region5
  $region4: #{fwd.1} parent=0 // pred_region
    _
  $region5: #{fwd.1} parent=0 // pred_fallthru
    _
  // Predicated region
  $region6: #{fwd.1} parent=0 // pred_check
    _
  $region7: #{fwd.1} parent=0 // pred_check_branch
    %16 = sbr.rel (0) target = $region9
  $region8: #{fwd.1} parent=0 // pred_region
    _
  $region9: #{fwd.1} parent=0 // pred_fallthru
    _
  // Predicated region
  $region10: #{fwd.1} parent=0 // pred_check
    _
  $region11: #{fwd.1} parent=0 // pred_check_branch
    %18 = sbr.rel (0) target = $region13
  $region12: #{fwd.1} parent=0 // pred_region
    _
  $region13: #{fwd.1} parent=0 // pred_fallthru
    _
  // Predicated region
  $region14: #{fwd.1} parent=0 // pred_check
    _
  $region15: #{fwd.1} parent=0 // pred_check_branch
    %20 = sbr.rel (0) target = $region17
  $region16: #{fwd.1} parent=0 // pred_region
    _
  $region17: #{fwd.1} parent=0 // pred_fallthru
    _
  // Predicated region
  $region18: #{fwd.1} parent=0 // pred_check
    _
  $region19: #{fwd.1} parent=0 // pred_check_branch
    %22 = sbr.rel (0) target = $region21
  $region20: #{fwd.1} parent=0 // pred_region
    _
  $region21: #{fwd.1} parent=0 // pred_fallthru
    _
  // Predicated region
  $region22: #{fwd.1} parent=0 // pred_check
    _
  $region23: #{fwd.1} parent=0 // pred_check_branch
    %24 = sbr.rel (0) target = $region25
  $region24: #{fwd.1} parent=0 // pred_region
    _
  $region25: #{fwd.1} parent=0 // pred_fallthru
    _
  // Predicated region
  $region26: #{fwd.1} parent=0 // pred_check
    _
  $region27: #{fwd.1} parent=0 // pred_check_branch
    %26 = sbr.rel (0) target = $region29
  $region28: #{fwd.1} parent=0 // pred_region
    _
  $region29: #{fwd.1} parent=0 // pred_fallthru
    _
  // Predicated region
  $region30: #{fwd.1} parent=0 // pred_check
    _
  $region31: #{fwd.1} parent=0 // pred_check_branch
    %28 = sbr.rel (0) target = $region33
  $region32: #{fwd.1} parent=0 // pred_region
    _
  $region33: #{fwd.1} parent=0 // pred_fallthru
    _
  %p29 = scmp.eq.s32.totalorder 0, 0
  // Predicated region
  $region34: #{fwd.1} parent=0 // pred_check
    %p30 = pneg %p29
  $region35: #{fwd.1} parent=0 // pred_check_branch
    %32 = sbr.rel (%p30) target = $region37
  $region36: #{fwd.1} parent=0 // pred_region
    %33 = vst [vmem:[#allocation2] sm:$0xff] 0.0
    %34 = vst [vmem:[#allocation4] sm:$0xff] 0.0
    %35 = vst [vmem:[#allocation3] sm:$0xff] 0.0
    %36 = vst [vmem:[#allocation5] sm:$0xff] 0.0
  $region37: #{fwd.1} parent=0 // pred_fallthru
    _
  %v37 = vld [vmem:[%s2] sm:$0xff]
  %v38 = vld [vmem:[%s2 + $0x8] sm:$0xff]
  %v39 = vld [vmem:[%s2 + $0x10] sm:$0xff]
  %v40 = vld [vmem:[%s2 + $0x18] sm:$0xff]
  %v41 = vld [vmem:[%s2 + $0x20] sm:$0xff]
  %v42 = vld [vmem:[%s2 + $0x28] sm:$0xff]
  %v43 = vld [vmem:[%s2 + $0x30] sm:$0xff]
  %v44 = vld [vmem:[%s2 + $0x38] sm:$0xff]
  %v45 = vld [vmem:[%s2 + $0x40] sm:$0xff]
  %v46 = vld [vmem:[%s2 + $0x48] sm:$0xff]
  %v47 = vld [vmem:[%s2 + $0x50] sm:$0xff]
  %v48 = vld [vmem:[%s2 + $0x58] sm:$0xff]
  %v49 = vld [vmem:[%s2 + $0x60] sm:$0xff]
  %v50 = vld [vmem:[%s2 + $0x68] sm:$0xff]
  %v51 = vld [vmem:[%s2 + $0x70] sm:$0xff]
  %v52 = vld [vmem:[%s2 + $0x78] sm:$0xff]
  %v53 = vld [vmem:[%s2 + $0x80] sm:$0xff]
  %v54 = vld [vmem:[%s2 + $0x88] sm:$0xff]
  %v55 = vld [vmem:[%s2 + $0x90] sm:$0xff]
  %v56 = vld [vmem:[%s2 + $0x98] sm:$0xff]
  %v57 = vld [vmem:[%s2 + $0xa0] sm:$0xff]
  %v58 = vld [vmem:[%s2 + $0xa8] sm:$0xff]
  %v59 = vld [vmem:[%s2 + $0xb0] sm:$0xff]
  %v60 = vld [vmem:[%s2 + $0xb8] sm:$0xff]
  %v61 = vld [vmem:[%s2 + $0xc0] sm:$0xff]
  %v62 = vld [vmem:[%s2 + $0xc8] sm:$0xff]
  %v63 = vld [vmem:[%s2 + $0xd0] sm:$0xff]
  %v64 = vld [vmem:[%s2 + $0xd8] sm:$0xff]
  %v65 = vld [vmem:[%s2 + $0xe0] sm:$0xff]
  %v66 = vld [vmem:[%s2 + $0xe8] sm:$0xff]
  %v67 = vld [vmem:[%s2 + $0xf0] sm:$0xff]
  %v68 = vld [vmem:[%s2 + $0xf8] sm:$0xff]
  %v69 = vld [vmem:[%s2 + $0x100] sm:$0xff]
  %v70 = vld [vmem:[%s2 + $0x108] sm:$0xff]
  %v71 = vld [vmem:[%s2 + $0x110] sm:$0xff]
  %v72 = vld [vmem:[%s2 + $0x118] sm:$0xff]
  %v73 = vld [vmem:[%s2 + $0x120] sm:$0xff]
  %v74 = vld [vmem:[%s2 + $0x128] sm:$0xff]
  %v75 = vld [vmem:[%s2 + $0x130] sm:$0xff]
  %v76 = vld [vmem:[%s2 + $0x138] sm:$0xff]
  %v77 = vld [vmem:[%s2 + $0x140] sm:$0xff]
  %v78 = vld [vmem:[%s2 + $0x148] sm:$0xff]
  %v79 = vld [vmem:[%s2 + $0x150] sm:$0xff]
  %v80 = vld [vmem:[%s2 + $0x158] sm:$0xff]
  %v81 = vld [vmem:[%s2 + $0x160] sm:$0xff]
  %v82 = vld [vmem:[%s2 + $0x168] sm:$0xff]
  %v83 = vld [vmem:[%s2 + $0x170] sm:$0xff]
  %v84 = vld [vmem:[%s2 + $0x178] sm:$0xff]
  %v85 = vld [vmem:[%s2 + $0x180] sm:$0xff]
  %v86 = vld [vmem:[%s2 + $0x188] sm:$0xff]
  %v87 = vld [vmem:[%s2 + $0x190] sm:$0xff]
  %v88 = vld [vmem:[%s2 + $0x198] sm:$0xff]
  %v89 = vld [vmem:[%s2 + $0x1a0] sm:$0xff]
  %v90 = vld [vmem:[%s2 + $0x1a8] sm:$0xff]
  %v91 = vld [vmem:[%s2 + $0x1b0] sm:$0xff]
  %v92 = vld [vmem:[%s2 + $0x1b8] sm:$0xff]
  %v93 = vld [vmem:[%s2 + $0x1c0] sm:$0xff]
  %v94 = vld [vmem:[%s2 + $0x1c8] sm:$0xff]
  %v95 = vld [vmem:[%s2 + $0x1d0] sm:$0xff]
  %v96 = vld [vmem:[%s2 + $0x1d8] sm:$0xff]
  %v97 = vld [vmem:[%s2 + $0x1e0] sm:$0xff]
  %v98 = vld [vmem:[%s2 + $0x1e8] sm:$0xff]
  %v99 = vld [vmem:[%s2 + $0x1f0] sm:$0xff]
  %v100 = vld [vmem:[%s2 + $0x1f8] sm:$0xff]
  %v101 = vld [vmem:[%s4] sm:$0xff]
  %v102 = vld [vmem:[%s4 + $0x8] sm:$0xff]
  %v103 = vld [vmem:[%s4 + $0x10] sm:$0xff]
  %v104 = vld [vmem:[%s4 + $0x18] sm:$0xff]
  %v105 = vld [vmem:[%s4 + $0x20] sm:$0xff]
  %v106 = vld [vmem:[%s4 + $0x28] sm:$0xff]
  %v107 = vld [vmem:[%s4 + $0x30] sm:$0xff]
  %v108 = vld [vmem:[%s4 + $0x38] sm:$0xff]
  %v109 = vld [vmem:[%s4 + $0x40] sm:$0xff]
  %v110 = vld [vmem:[%s4 + $0x48] sm:$0xff]
  %v111 = vld [vmem:[%s4 + $0x50] sm:$0xff]
  %v112 = vld [vmem:[%s4 + $0x58] sm:$0xff]
  %v113 = vld [vmem:[%s4 + $0x60] sm:$0xff]
  %v114 = vld [vmem:[%s4 + $0x68] sm:$0xff]
  %v115 = vld [vmem:[%s4 + $0x70] sm:$0xff]
  %v116 = vld [vmem:[%s4 + $0x78] sm:$0xff]
  %v117 = vld [vmem:[%s4 + $0x80] sm:$0xff]
  %v118 = vld [vmem:[%s4 + $0x88] sm:$0xff]
  %v119 = vld [vmem:[%s4 + $0x90] sm:$0xff]
  %v120 = vld [vmem:[%s4 + $0x98] sm:$0xff]
  %v121 = vld [vmem:[%s4 + $0xa0] sm:$0xff]
  %v122 = vld [vmem:[%s4 + $0xa8] sm:$0xff]
  %v123 = vld [vmem:[%s4 + $0xb0] sm:$0xff]
  %v124 = vld [vmem:[%s4 + $0xb8] sm:$0xff]
  %v125 = vld [vmem:[%s4 + $0xc0] sm:$0xff]
  %v126 = vld [vmem:[%s4 + $0xc8] sm:$0xff]
  %v127 = vld [vmem:[%s4 + $0xd0] sm:$0xff]
  %v128 = vld [vmem:[%s4 + $0xd8] sm:$0xff]
  %v129 = vld [vmem:[%s4 + $0xe0] sm:$0xff]
  %v130 = vld [vmem:[%s4 + $0xe8] sm:$0xff]
  %v131 = vld [vmem:[%s4 + $0xf0] sm:$0xff]
  %v132 = vld [vmem:[%s4 + $0xf8] sm:$0xff]
  %v133 = vld [vmem:[%s4 + $0x100] sm:$0xff]
  %v134 = vld [vmem:[%s4 + $0x108] sm:$0xff]
  %v135 = vld [vmem:[%s4 + $0x110] sm:$0xff]
  %v136 = vld [vmem:[%s4 + $0x118] sm:$0xff]
  %v137 = vld [vmem:[%s4 + $0x120] sm:$0xff]
  %v138 = vld [vmem:[%s4 + $0x128] sm:$0xff]
  %v139 = vld [vmem:[%s4 + $0x130] sm:$0xff]
  %v140 = vld [vmem:[%s4 + $0x138] sm:$0xff]
  %v141 = vld [vmem:[%s4 + $0x140] sm:$0xff]
  %v142 = vld [vmem:[%s4 + $0x148] sm:$0xff]
  %v143 = vld [vmem:[%s4 + $0x150] sm:$0xff]
  %v144 = vld [vmem:[%s4 + $0x158] sm:$0xff]
  %v145 = vld [vmem:[%s4 + $0x160] sm:$0xff]
  %v146 = vld [vmem:[%s4 + $0x168] sm:$0xff]
  %v147 = vld [vmem:[%s4 + $0x170] sm:$0xff]
  %v148 = vld [vmem:[%s4 + $0x178] sm:$0xff]
  %v149 = vld [vmem:[%s4 + $0x180] sm:$0xff]
  %v150 = vld [vmem:[%s4 + $0x188] sm:$0xff]
  %v151 = vld [vmem:[%s4 + $0x190] sm:$0xff]
  %v152 = vld [vmem:[%s4 + $0x198] sm:$0xff]
  %v153 = vld [vmem:[%s4 + $0x1a0] sm:$0xff]
  %v154 = vld [vmem:[%s4 + $0x1a8] sm:$0xff]
  %v155 = vld [vmem:[%s4 + $0x1b0] sm:$0xff]
  %v156 = vld [vmem:[%s4 + $0x1b8] sm:$0xff]
  %v157 = vld [vmem:[%s4 + $0x1c0] sm:$0xff]
  %v158 = vld [vmem:[%s4 + $0x1c8] sm:$0xff]
  %v159 = vld [vmem:[%s4 + $0x1d0] sm:$0xff]
  %v160 = vld [vmem:[%s4 + $0x1d8] sm:$0xff]
  %v161 = vld [vmem:[%s4 + $0x1e0] sm:$0xff]
  %v162 = vld [vmem:[%s4 + $0x1e8] sm:$0xff]
  %v163 = vld [vmem:[%s4 + $0x1f0] sm:$0xff]
  %v164 = vld [vmem:[%s4 + $0x1f8] sm:$0xff]
  %v165 = vld [vmem:[%s4 + $0x200] sm:$0xff]
  %v166 = vld [vmem:[%s4 + $0x208] sm:$0xff]
  %v167 = vld [vmem:[%s4 + $0x210] sm:$0xff]
  %v168 = vld [vmem:[%s4 + $0x218] sm:$0xff]
  %v169 = vld [vmem:[%s4 + $0x220] sm:$0xff]
  %v170 = vld [vmem:[%s4 + $0x228] sm:$0xff]
  %v171 = vld [vmem:[%s4 + $0x230] sm:$0xff]
  %v172 = vld [vmem:[%s4 + $0x238] sm:$0xff]
  %v173 = vld [vmem:[%s4 + $0x240] sm:$0xff]
  %v174 = vld [vmem:[%s4 + $0x248] sm:$0xff]
  %v175 = vld [vmem:[%s4 + $0x250] sm:$0xff]
  %v176 = vld [vmem:[%s4 + $0x258] sm:$0xff]
  %v177 = vld [vmem:[%s4 + $0x260] sm:$0xff]
  %v178 = vld [vmem:[%s4 + $0x268] sm:$0xff]
  %v179 = vld [vmem:[%s4 + $0x270] sm:$0xff]
  %v180 = vld [vmem:[%s4 + $0x278] sm:$0xff]
  %v181 = vld [vmem:[%s4 + $0x280] sm:$0xff]
  %v182 = vld [vmem:[%s4 + $0x288] sm:$0xff]
  %v183 = vld [vmem:[%s4 + $0x290] sm:$0xff]
  %v184 = vld [vmem:[%s4 + $0x298] sm:$0xff]
  %v185 = vld [vmem:[%s4 + $0x2a0] sm:$0xff]
  %v186 = vld [vmem:[%s4 + $0x2a8] sm:$0xff]
  %v187 = vld [vmem:[%s4 + $0x2b0] sm:$0xff]
  %v188 = vld [vmem:[%s4 + $0x2b8] sm:$0xff]
  %v189 = vld [vmem:[%s4 + $0x2c0] sm:$0xff]
  %v190 = vld [vmem:[%s4 + $0x2c8] sm:$0xff]
  %v191 = vld [vmem:[%s4 + $0x2d0] sm:$0xff]
  %v192 = vld [vmem:[%s4 + $0x2d8] sm:$0xff]
  %v193 = vld [vmem:[%s4 + $0x2e0] sm:$0xff]
  %v194 = vld [vmem:[%s4 + $0x2e8] sm:$0xff]
  %v195 = vld [vmem:[%s4 + $0x2f0] sm:$0xff]
  %v196 = vld [vmem:[%s4 + $0x2f8] sm:$0xff]
  %v197 = vld [vmem:[%s4 + $0x300] sm:$0xff]
  %v198 = vld [vmem:[%s4 + $0x308] sm:$0xff]
  %v199 = vld [vmem:[%s4 + $0x310] sm:$0xff]
  %v200 = vld [vmem:[%s4 + $0x318] sm:$0xff]
  %v201 = vld [vmem:[%s4 + $0x320] sm:$0xff]
  %v202 = vld [vmem:[%s4 + $0x328] sm:$0xff]
  %v203 = vld [vmem:[%s4 + $0x330] sm:$0xff]
  %v204 = vld [vmem:[%s4 + $0x338] sm:$0xff]
  %v205 = vld [vmem:[%s4 + $0x340] sm:$0xff]
  %v206 = vld [vmem:[%s4 + $0x348] sm:$0xff]
  %v207 = vld [vmem:[%s4 + $0x350] sm:$0xff]
  %v208 = vld [vmem:[%s4 + $0x358] sm:$0xff]
  %v209 = vld [vmem:[%s4 + $0x360] sm:$0xff]
  %v210 = vld [vmem:[%s4 + $0x368] sm:$0xff]
  %v211 = vld [vmem:[%s4 + $0x370] sm:$0xff]
  %v212 = vld [vmem:[%s4 + $0x378] sm:$0xff]
  %v213 = vld [vmem:[%s4 + $0x380] sm:$0xff]
  %v214 = vld [vmem:[%s4 + $0x388] sm:$0xff]
  %v215 = vld [vmem:[%s4 + $0x390] sm:$0xff]
  %v216 = vld [vmem:[%s4 + $0x398] sm:$0xff]
  %v217 = vld [vmem:[%s4 + $0x3a0] sm:$0xff]
  %v218 = vld [vmem:[%s4 + $0x3a8] sm:$0xff]
  %v219 = vld [vmem:[%s4 + $0x3b0] sm:$0xff]
  %v220 = vld [vmem:[%s4 + $0x3b8] sm:$0xff]
  %v221 = vld [vmem:[%s4 + $0x3c0] sm:$0xff]
  %v222 = vld [vmem:[%s4 + $0x3c8] sm:$0xff]
  %v223 = vld [vmem:[%s4 + $0x3d0] sm:$0xff]
  %v224 = vld [vmem:[%s4 + $0x3d8] sm:$0xff]
  %v225 = vld [vmem:[%s4 + $0x3e0] sm:$0xff]
  %v226 = vld [vmem:[%s4 + $0x3e8] sm:$0xff]
  %v227 = vld [vmem:[%s4 + $0x3f0] sm:$0xff]
  %v228 = vld [vmem:[%s4 + $0x3f8] sm:$0xff]
  %v229 = vld [vmem:[%s5] sm:$0xf]
  %v231 = vlaneseq
  %v232 = vshrl.u32 %v231, 7
  %v233 = vsub.s32 0, %v232
  %v234 = vrot.slane %v229, %v233
  %v235 = vlaneseq
  %v236 = vshrl.u32 %v235, 7
  %v237 = vsub.s32 1, %v236
  %v238 = vrot.slane %v229, %v237
  %v239 = vlaneseq
  %v240 = vshrl.u32 %v239, 7
  %v241 = vsub.s32 2, %v240
  %v242 = vrot.slane %v229, %v241
  %v243 = vlaneseq
  %v244 = vshrl.u32 %v243, 7
  %v245 = vsub.s32 3, %v244
  %v246 = vrot.slane %v229, %v245
  %v251 = vld [vmem:[%s0] sm:$0xff]
  %v252 = vld [vmem:[%s0 + $0x8] sm:$0xff]
  %v253 = vld [vmem:[%s0 + $0x10] sm:$0xff]
  %v254 = vld [vmem:[%s0 + $0x18] sm:$0xff]
  %v255 = vld [vmem:[%s0 + $0x20] sm:$0xff]
  %v256 = vld [vmem:[%s0 + $0x28] sm:$0xff]
  %v257 = vld [vmem:[%s0 + $0x30] sm:$0xff]
  %v258 = vld [vmem:[%s0 + $0x38] sm:$0xff]
  %v259 = vld [vmem:[%s1] sm:$0xff]
  %v260 = vld [vmem:[%s1 + $0x8] sm:$0xff]
  %v261 = vld [vmem:[%s3] sm:$0xf]
  %v263 = vlaneseq
  %v264 = vshrl.u32 %v263, 7
  %v265 = vsub.s32 0, %v264
  %v266 = vrot.slane %v261, %v265
  %v267 = vlaneseq
  %v268 = vshrl.u32 %v267, 7
  %v269 = vsub.s32 1, %v268
  %v270 = vrot.slane %v261, %v269
  %v271 = vlaneseq
  %v272 = vshrl.u32 %v271, 7
  %v273 = vsub.s32 2, %v272
  %v274 = vrot.slane %v261, %v273
  %v275 = vlaneseq
  %v276 = vshrl.u32 %v275, 7
  %v277 = vsub.s32 3, %v276
  %v278 = vrot.slane %v261, %v277
  %v285 = vcombine.high %v259, %v259
  %v286 = vcombine.high %v260, %v260
  %vm287 = vcmask 31744
  %v289 = vsel %vm287, %v251, 0
  %v292 = vsel %vm287, %v252, 0
  %v295 = vsel %vm287, %v253, 0
  %v298 = vsel %vm287, %v254, 0
  %v301 = vsel %vm287, %v255, 0
  %v304 = vsel %vm287, %v256, 0
  %v307 = vsel %vm287, %v257, 0
  %v310 = vsel %vm287, %v258, 0
  %vm312 = vcmask 1043456
  %v313 = vsel %vm312, %v259, 0
  %v315 = vsel %vm312, %v285, 0
  %v317 = vsel %vm312, %v260, 0
  %v319 = vsel %vm312, %v286, 0
  %321 = vmatprep.subr.mxu0 %v315
  %322 = vmatpush1.msra.mxu0 %v313
  %323 = vmatprep.subr.mxu0 0.0
  %324 = vmatpush1.msra.mxu0 0.0
  %325 = vmatprep.subr.mxu0 0.0
  %326 = vmatpush1.msra.mxu0 0.0
  %327 = vmatprep.subr.mxu0 0.0
  %328 = vmatpush1.msra.mxu0 0.0
  %329 = vmatprep.subr.mxu0 0.0
  %330 = vmatpush1.msra.mxu0 0.0
  %331 = vmatprep.subr.mxu0 0.0
  %332 = vmatpush1.msra.mxu0 0.0
  %333 = vmatprep.subr.mxu0 0.0
  %334 = vmatpush1.msra.mxu0 0.0
  %335 = vmatprep.subr.mxu0 0.0
  %336 = vmatpush1.msra.mxu0 0.0
  %337 = vmatprep.subr.mxu0 0.0
  %338 = vmatpush1.msra.mxu0 0.0
  %339 = vmatprep.subr.mxu0 0.0
  %340 = vmatpush1.msra.mxu0 0.0
  %341 = vmatprep.subr.mxu0 0.0
  %342 = vmatpush1.msra.mxu0 0.0
  %343 = vmatprep.subr.mxu0 0.0
  %344 = vmatpush1.msra.mxu0 0.0
  %345 = vmatprep.subr.mxu0 0.0
  %346 = vmatpush1.msra.mxu0 0.0
  %347 = vmatprep.subr.mxu0 0.0
  %348 = vmatpush1.msra.mxu0 0.0
  %349 = vmatprep.subr.mxu0 0.0
  %350 = vmatpush1.msra.mxu0 0.0
  %351 = vmatprep.subr.mxu0 0.0
  %352 = vmatpush1.msra.mxu0 0.0
  %353 = vmatprep.subr.mxu0 0.0
  %354 = vmatpush1.msra.mxu0 0.0
  %355 = vmatprep.subr.mxu0 0.0
  %356 = vmatpush1.msra.mxu0 0.0
  %357 = vmatprep.subr.mxu0 0.0
  %358 = vmatpush1.msra.mxu0 0.0
  %359 = vmatprep.subr.mxu0 0.0
  %360 = vmatpush1.msra.mxu0 0.0
  %361 = vmatprep.subr.mxu0 0.0
  %362 = vmatpush1.msra.mxu0 0.0
  %363 = vmatprep.subr.mxu0 0.0
  %364 = vmatpush1.msra.mxu0 0.0
  %365 = vmatprep.subr.mxu0 0.0
  %366 = vmatpush1.msra.mxu0 0.0
  %367 = vmatprep.subr.mxu0 0.0
  %368 = vmatpush1.msra.mxu0 0.0
  %369 = vmatprep.subr.mxu0 0.0
  %370 = vmatpush1.msra.mxu0 0.0
  %371 = vmatprep.subr.mxu0 0.0
  %372 = vmatpush1.msra.mxu0 0.0
  %373 = vmatprep.subr.mxu0 0.0
  %374 = vmatpush1.msra.mxu0 0.0
  %375 = vmatprep.subr.mxu0 0.0
  %376 = vmatpush1.msra.mxu0 0.0
  %377 = vmatprep.subr.mxu0 0.0
  %378 = vmatpush1.msra.mxu0 0.0
  %379 = vmatprep.subr.mxu0 0.0
  %380 = vmatpush1.msra.mxu0 0.0
  %381 = vmatprep.subr.mxu0 0.0
  %382 = vmatpush1.msra.mxu0 0.0
  %383 = vmatprep.subr.mxu0 0.0
  %384 = vmatpush1.msra.mxu0 0.0
  %385 = vmatprep.mubr.f32.mxu0 0.0
  %386 = vmatmul.mubr.f32.gmra.mrb[0].mxu0 %v289
  %v387 = vpop.f32.mrb[0].mxu0
  %v388 = vadd.f32 %v266, %v387
  %v389 = vpop.f32.mrb[0].mxu0
  %v390 = vadd.f32 %v270, %v389
  %391 = vmatprep.mubr.f32.mxu0 0.0
  %392 = vmatmul.mubr.f32.gmra.mrb[0].mxu0 %v292
  %v393 = vpop.f32.mrb[0].mxu0
  %v394 = vadd.f32 %v266, %v393
  %v395 = vpop.f32.mrb[0].mxu0
  %v396 = vadd.f32 %v270, %v395
  %397 = vmatprep.mubr.f32.mxu0 0.0
  %398 = vmatmul.mubr.f32.gmra.mrb[0].mxu0 %v295
  %v399 = vpop.f32.mrb[0].mxu0
  %v400 = vadd.f32 %v266, %v399
  %v401 = vpop.f32.mrb[0].mxu0
  %v402 = vadd.f32 %v270, %v401
  %403 = vmatprep.mubr.f32.mxu0 0.0
  %404 = vmatmul.mubr.f32.gmra.mrb[0].mxu0 %v298
  %v405 = vpop.f32.mrb[0].mxu0
  %v406 = vadd.f32 %v266, %v405
  %v407 = vpop.f32.mrb[0].mxu0
  %v408 = vadd.f32 %v270, %v407
  %409 = vmatprep.mubr.f32.mxu0 0.0
  %410 = vmatmul.mubr.f32.gmra.mrb[0].mxu0 %v301
  %v411 = vpop.f32.mrb[0].mxu0
  %v412 = vadd.f32 %v266, %v411
  %v413 = vpop.f32.mrb[0].mxu0
  %v414 = vadd.f32 %v270, %v413
  %415 = vmatprep.mubr.f32.mxu0 0.0
  %416 = vmatmul.mubr.f32.gmra.mrb[0].mxu0 %v304
  %v417 = vpop.f32.mrb[0].mxu0
  %v418 = vadd.f32 %v266, %v417
  %v419 = vpop.f32.mrb[0].mxu0
  %v420 = vadd.f32 %v270, %v419
  %421 = vmatprep.mubr.f32.mxu0 0.0
  %422 = vmatmul.mubr.f32.gmra.mrb[0].mxu0 %v307
  %v423 = vpop.f32.mrb[0].mxu0
  %v424 = vadd.f32 %v266, %v423
  %v425 = vpop.f32.mrb[0].mxu0
  %v426 = vadd.f32 %v270, %v425
  %427 = vmatprep.mubr.f32.mxu0 0.0
  %428 = vmatmul.mubr.f32.gmra.mrb[0].mxu0 %v310
  %v429 = vpop.f32.mrb[0].mxu0
  %v430 = vadd.f32 %v266, %v429
  %v431 = vpop.f32.mrb[0].mxu0
  %v432 = vadd.f32 %v270, %v431
  %433 = vdwg.mxu0
  %434 = vmatprep.subr.mxu0 %v319
  %435 = vmatpush1.msra.mxu0 %v317
  %436 = vmatprep.subr.mxu0 0.0
  %437 = vmatpush1.msra.mxu0 0.0
  %438 = vmatprep.subr.mxu0 0.0
  %439 = vmatpush1.msra.mxu0 0.0
  %440 = vmatprep.subr.mxu0 0.0
  %441 = vmatpush1.msra.mxu0 0.0
  %442 = vmatprep.subr.mxu0 0.0
  %443 = vmatpush1.msra.mxu0 0.0
  %444 = vmatprep.subr.mxu0 0.0
  %445 = vmatpush1.msra.mxu0 0.0
  %446 = vmatprep.subr.mxu0 0.0
  %447 = vmatpush1.msra.mxu0 0.0
  %448 = vmatprep.subr.mxu0 0.0
  %449 = vmatpush1.msra.mxu0 0.0
  %450 = vmatprep.subr.mxu0 0.0
  %451 = vmatpush1.msra.mxu0 0.0
  %452 = vmatprep.subr.mxu0 0.0
  %453 = vmatpush1.msra.mxu0 0.0
  %454 = vmatprep.subr.mxu0 0.0
  %455 = vmatpush1.msra.mxu0 0.0
  %456 = vmatprep.subr.mxu0 0.0
  %457 = vmatpush1.msra.mxu0 0.0
  %458 = vmatprep.subr.mxu0 0.0
  %459 = vmatpush1.msra.mxu0 0.0
  %460 = vmatprep.subr.mxu0 0.0
  %461 = vmatpush1.msra.mxu0 0.0
  %462 = vmatprep.subr.mxu0 0.0
  %463 = vmatpush1.msra.mxu0 0.0
  %464 = vmatprep.subr.mxu0 0.0
  %465 = vmatpush1.msra.mxu0 0.0
  %466 = vmatprep.subr.mxu0 0.0
  %467 = vmatpush1.msra.mxu0 0.0
  %468 = vmatprep.subr.mxu0 0.0
  %469 = vmatpush1.msra.mxu0 0.0
  %470 = vmatprep.subr.mxu0 0.0
  %471 = vmatpush1.msra.mxu0 0.0
  %472 = vmatprep.subr.mxu0 0.0
  %473 = vmatpush1.msra.mxu0 0.0
  %474 = vmatprep.subr.mxu0 0.0
  %475 = vmatpush1.msra.mxu0 0.0
  %476 = vmatprep.subr.mxu0 0.0
  %477 = vmatpush1.msra.mxu0 0.0
  %478 = vmatprep.subr.mxu0 0.0
  %479 = vmatpush1.msra.mxu0 0.0
  %480 = vmatprep.subr.mxu0 0.0
  %481 = vmatpush1.msra.mxu0 0.0
  %482 = vmatprep.subr.mxu0 0.0
  %483 = vmatpush1.msra.mxu0 0.0
  %484 = vmatprep.subr.mxu0 0.0
  %485 = vmatpush1.msra.mxu0 0.0
  %486 = vmatprep.subr.mxu0 0.0
  %487 = vmatpush1.msra.mxu0 0.0
  %488 = vmatprep.subr.mxu0 0.0
  %489 = vmatpush1.msra.mxu0 0.0
  %490 = vmatprep.subr.mxu0 0.0
  %491 = vmatpush1.msra.mxu0 0.0
  %492 = vmatprep.subr.mxu0 0.0
  %493 = vmatpush1.msra.mxu0 0.0
  %494 = vmatprep.subr.mxu0 0.0
  %495 = vmatpush1.msra.mxu0 0.0
  %496 = vmatprep.subr.mxu0 0.0
  %497 = vmatpush1.msra.mxu0 0.0
  %498 = vmatprep.mubr.f32.mxu0 0.0
  %499 = vmatmul.mubr.f32.gmra.mrb[0].mxu0 %v289
  %v500 = vpop.f32.mrb[0].mxu0
  %v501 = vadd.f32 %v274, %v500
  %v502 = vpop.f32.mrb[0].mxu0
  %v503 = vadd.f32 %v278, %v502
  %504 = vmatprep.mubr.f32.mxu0 0.0
  %505 = vmatmul.mubr.f32.gmra.mrb[0].mxu0 %v292
  %v506 = vpop.f32.mrb[0].mxu0
  %v507 = vadd.f32 %v274, %v506
  %v508 = vpop.f32.mrb[0].mxu0
  %v509 = vadd.f32 %v278, %v508
  %510 = vmatprep.mubr.f32.mxu0 0.0
  %511 = vmatmul.mubr.f32.gmra.mrb[0].mxu0 %v295
  %v512 = vpop.f32.mrb[0].mxu0
  %v513 = vadd.f32 %v274, %v512
  %v514 = vpop.f32.mrb[0].mxu0
  %v515 = vadd.f32 %v278, %v514
  %516 = vmatprep.mubr.f32.mxu0 0.0
  %517 = vmatmul.mubr.f32.gmra.mrb[0].mxu0 %v298
  %v518 = vpop.f32.mrb[0].mxu0
  %v519 = vadd.f32 %v274, %v518
  %v520 = vpop.f32.mrb[0].mxu0
  %v521 = vadd.f32 %v278, %v520
  %522 = vmatprep.mubr.f32.mxu0 0.0
  %523 = vmatmul.mubr.f32.gmra.mrb[0].mxu0 %v301
  %v524 = vpop.f32.mrb[0].mxu0
  %v525 = vadd.f32 %v274, %v524
  %v526 = vpop.f32.mrb[0].mxu0
  %v527 = vadd.f32 %v278, %v526
  %528 = vmatprep.mubr.f32.mxu0 0.0
  %529 = vmatmul.mubr.f32.gmra.mrb[0].mxu0 %v304
  %v530 = vpop.f32.mrb[0].mxu0
  %v531 = vadd.f32 %v274, %v530
  %v532 = vpop.f32.mrb[0].mxu0
  %v533 = vadd.f32 %v278, %v532
  %534 = vmatprep.mubr.f32.mxu0 0.0
  %535 = vmatmul.mubr.f32.gmra.mrb[0].mxu0 %v307
  %v536 = vpop.f32.mrb[0].mxu0
  %v537 = vadd.f32 %v274, %v536
  %v538 = vpop.f32.mrb[0].mxu0
  %v539 = vadd.f32 %v278, %v538
  %540 = vmatprep.mubr.f32.mxu0 0.0
  %541 = vmatmul.mubr.f32.gmra.mrb[0].mxu0 %v310
  %v542 = vpop.f32.mrb[0].mxu0
  %v543 = vadd.f32 %v274, %v542
  %v544 = vpop.f32.mrb[0].mxu0
  %v545 = vadd.f32 %v278, %v544
  %546 = vdwg.mxu0
  %547 = vst [vmem:[#allocation6] sm:$0xff] %v388
  %548 = vst [vmem:[#allocation6 + $0x8] sm:$0xff] %v390
  %549 = vst [vmem:[#allocation6 + $0x10] sm:$0xff] %v501
  %550 = vst [vmem:[#allocation6 + $0x18] sm:$0xff] %v503
  %551 = vst [vmem:[#allocation6 + $0x20] sm:$0xff] %v394
  %552 = vst [vmem:[#allocation6 + $0x28] sm:$0xff] %v396
  %553 = vst [vmem:[#allocation6 + $0x30] sm:$0xff] %v507
  %554 = vst [vmem:[#allocation6 + $0x38] sm:$0xff] %v509
  %555 = vst [vmem:[#allocation6 + $0x40] sm:$0xff] %v400
  %556 = vst [vmem:[#allocation6 + $0x48] sm:$0xff] %v402
  %557 = vst [vmem:[#allocation6 + $0x50] sm:$0xff] %v513
  %558 = vst [vmem:[#allocation6 + $0x58] sm:$0xff] %v515
  %559 = vst [vmem:[#allocation6 + $0x60] sm:$0xff] %v406
  %560 = vst [vmem:[#allocation6 + $0x68] sm:$0xff] %v408
  %561 = vst [vmem:[#allocation6 + $0x70] sm:$0xff] %v519
  %562 = vst [vmem:[#allocation6 + $0x78] sm:$0xff] %v521
  %563 = vst [vmem:[#allocation6 + $0x80] sm:$0xff] %v412
  %564 = vst [vmem:[#allocation6 + $0x88] sm:$0xff] %v414
  %565 = vst [vmem:[#allocation6 + $0x90] sm:$0xff] %v525
  %566 = vst [vmem:[#allocation6 + $0x98] sm:$0xff] %v527
  %567 = vst [vmem:[#allocation6 + $0xa0] sm:$0xff] %v418
  %568 = vst [vmem:[#allocation6 + $0xa8] sm:$0xff] %v420
  %569 = vst [vmem:[#allocation6 + $0xb0] sm:$0xff] %v531
  %570 = vst [vmem:[#allocation6 + $0xb8] sm:$0xff] %v533
  %571 = vst [vmem:[#allocation6 + $0xc0] sm:$0xff] %v424
  %572 = vst [vmem:[#allocation6 + $0xc8] sm:$0xff] %v426
  %573 = vst [vmem:[#allocation6 + $0xd0] sm:$0xff] %v537
  %574 = vst [vmem:[#allocation6 + $0xd8] sm:$0xff] %v539
  %575 = vst [vmem:[#allocation6 + $0xe0] sm:$0xff] %v430
  %576 = vst [vmem:[#allocation6 + $0xe8] sm:$0xff] %v432
  %577 = vst [vmem:[#allocation6 + $0xf0] sm:$0xff] %v543
  %578 = vst [vmem:[#allocation6 + $0xf8] sm:$0xff] %v545
  %v579 = vld [vmem:[#allocation2] sm:$0xff]
  %v580 = vld [vmem:[#allocation3] sm:$0xff]
  %v581 = vld [vmem:[#allocation4] sm:$0xff]
  %v582 = vld [vmem:[#allocation5] sm:$0xff]
  %v583 = vld [vmem:[#allocation6] sm:$0xff]
  %v584 = vld [vmem:[#allocation6 + $0x8] sm:$0xff]
  %v585 = vld [vmem:[#allocation6 + $0x10] sm:$0xff]
  %v586 = vld [vmem:[#allocation6 + $0x18] sm:$0xff]
  %587 = vmatprep.subr.mxu0 %v38
  %588 = vmatpush1.msra.mxu0 %v37
  %589 = vmatprep.subr.mxu0 %v42
  %590 = vmatpush1.msra.mxu0 %v41
  %591 = vmatprep.subr.mxu0 %v46
  %592 = vmatpush1.msra.mxu0 %v45
  %593 = vmatprep.subr.mxu0 %v50
  %594 = vmatpush1.msra.mxu0 %v49
  %595 = vmatprep.subr.mxu0 %v54
  %596 = vmatpush1.msra.mxu0 %v53
  %597 = vmatprep.subr.mxu0 %v58
  %598 = vmatpush1.msra.mxu0 %v57
  %599 = vmatprep.subr.mxu0 %v62
  %600 = vmatpush1.msra.mxu0 %v61
  %601 = vmatprep.subr.mxu0 %v66
  %602 = vmatpush1.msra.mxu0 %v65
  %603 = vmatprep.subr.mxu0 %v70
  %604 = vmatpush1.msra.mxu0 %v69
  %605 = vmatprep.subr.mxu0 %v74
  %606 = vmatpush1.msra.mxu0 %v73
  %607 = vmatprep.subr.mxu0 %v78
  %608 = vmatpush1.msra.mxu0 %v77
  %609 = vmatprep.subr.mxu0 %v82
  %610 = vmatpush1.msra.mxu0 %v81
  %611 = vmatprep.subr.mxu0 %v86
  %612 = vmatpush1.msra.mxu0 %v85
  %613 = vmatprep.subr.mxu0 %v90
  %614 = vmatpush1.msra.mxu0 %v89
  %615 = vmatprep.subr.mxu0 %v94
  %616 = vmatpush1.msra.mxu0 %v93
  %617 = vmatprep.subr.mxu0 %v98
  %618 = vmatpush1.msra.mxu0 %v97
  %619 = vmatprep.subr.mxu0 0.0
  %620 = vmatpush1.msra.mxu0 0.0
  %621 = vmatprep.subr.mxu0 0.0
  %622 = vmatpush1.msra.mxu0 0.0
  %623 = vmatprep.subr.mxu0 0.0
  %624 = vmatpush1.msra.mxu0 0.0
  %625 = vmatprep.subr.mxu0 0.0
  %626 = vmatpush1.msra.mxu0 0.0
  %627 = vmatprep.subr.mxu0 0.0
  %628 = vmatpush1.msra.mxu0 0.0
  %629 = vmatprep.subr.mxu0 0.0
  %630 = vmatpush1.msra.mxu0 0.0
  %631 = vmatprep.subr.mxu0 0.0
  %632 = vmatpush1.msra.mxu0 0.0
  %633 = vmatprep.subr.mxu0 0.0
  %634 = vmatpush1.msra.mxu0 0.0
  %635 = vmatprep.subr.mxu0 0.0
  %636 = vmatpush1.msra.mxu0 0.0
  %637 = vmatprep.subr.mxu0 0.0
  %638 = vmatpush1.msra.mxu0 0.0
  %639 = vmatprep.subr.mxu0 0.0
  %640 = vmatpush1.msra.mxu0 0.0
  %641 = vmatprep.subr.mxu0 0.0
  %642 = vmatpush1.msra.mxu0 0.0
  %643 = vmatprep.subr.mxu0 0.0
  %644 = vmatpush1.msra.mxu0 0.0
  %645 = vmatprep.subr.mxu0 0.0
  %646 = vmatpush1.msra.mxu0 0.0
  %647 = vmatprep.subr.mxu0 0.0
  %648 = vmatpush1.msra.mxu0 0.0
  %649 = vmatprep.subr.mxu0 0.0
  %650 = vmatpush1.msra.mxu0 0.0
  %651 = vmatprep.mubr.f32.mxu0 0.0
  %652 = vmatmul.mubr.f32.gmra.mrb[0].mxu0 %v579
  %v653 = vpop.f32.mrb[0].mxu0
  %v654 = vadd.f32 0.0, %v653
  %v655 = vpop.f32.mrb[0].mxu0
  %v656 = vadd.f32 0.0, %v655
  %657 = vdwg.mxu0
  %658 = vmatprep.subr.mxu0 %v40
  %659 = vmatpush1.msra.mxu0 %v39
  %660 = vmatprep.subr.mxu0 %v44
  %661 = vmatpush1.msra.mxu0 %v43
  %662 = vmatprep.subr.mxu0 %v48
  %663 = vmatpush1.msra.mxu0 %v47
  %664 = vmatprep.subr.mxu0 %v52
  %665 = vmatpush1.msra.mxu0 %v51
  %666 = vmatprep.subr.mxu0 %v56
  %667 = vmatpush1.msra.mxu0 %v55
  %668 = vmatprep.subr.mxu0 %v60
  %669 = vmatpush1.msra.mxu0 %v59
  %670 = vmatprep.subr.mxu0 %v64
  %671 = vmatpush1.msra.mxu0 %v63
  %672 = vmatprep.subr.mxu0 %v68
  %673 = vmatpush1.msra.mxu0 %v67
  %674 = vmatprep.subr.mxu0 %v72
  %675 = vmatpush1.msra.mxu0 %v71
  %676 = vmatprep.subr.mxu0 %v76
  %677 = vmatpush1.msra.mxu0 %v75
  %678 = vmatprep.subr.mxu0 %v80
  %679 = vmatpush1.msra.mxu0 %v79
  %680 = vmatprep.subr.mxu0 %v84
  %681 = vmatpush1.msra.mxu0 %v83
  %682 = vmatprep.subr.mxu0 %v88
  %683 = vmatpush1.msra.mxu0 %v87
  %684 = vmatprep.subr.mxu0 %v92
  %685 = vmatpush1.msra.mxu0 %v91
  %686 = vmatprep.subr.mxu0 %v96
  %687 = vmatpush1.msra.mxu0 %v95
  %688 = vmatprep.subr.mxu0 %v100
  %689 = vmatpush1.msra.mxu0 %v99
  %690 = vmatprep.subr.mxu0 0.0
  %691 = vmatpush1.msra.mxu0 0.0
  %692 = vmatprep.subr.mxu0 0.0
  %693 = vmatpush1.msra.mxu0 0.0
  %694 = vmatprep.subr.mxu0 0.0
  %695 = vmatpush1.msra.mxu0 0.0
  %696 = vmatprep.subr.mxu0 0.0
  %697 = vmatpush1.msra.mxu0 0.0
  %698 = vmatprep.subr.mxu0 0.0
  %699 = vmatpush1.msra.mxu0 0.0
  %700 = vmatprep.subr.mxu0 0.0
  %701 = vmatpush1.msra.mxu0 0.0
  %702 = vmatprep.subr.mxu0 0.0
  %703 = vmatpush1.msra.mxu0 0.0
  %704 = vmatprep.subr.mxu0 0.0
  %705 = vmatpush1.msra.mxu0 0.0
  %706 = vmatprep.subr.mxu0 0.0
  %707 = vmatpush1.msra.mxu0 0.0
  %708 = vmatprep.subr.mxu0 0.0
  %709 = vmatpush1.msra.mxu0 0.0
  %710 = vmatprep.subr.mxu0 0.0
  %711 = vmatpush1.msra.mxu0 0.0
  %712 = vmatprep.subr.mxu0 0.0
  %713 = vmatpush1.msra.mxu0 0.0
  %714 = vmatprep.subr.mxu0 0.0
  %715 = vmatpush1.msra.mxu0 0.0
  %716 = vmatprep.subr.mxu0 0.0
  %717 = vmatpush1.msra.mxu0 0.0
  %718 = vmatprep.subr.mxu0 0.0
  %719 = vmatpush1.msra.mxu0 0.0
  %720 = vmatprep.subr.mxu0 0.0
  %721 = vmatpush1.msra.mxu0 0.0
  %722 = vmatprep.mubr.f32.mxu0 0.0
  %723 = vmatmul.mubr.f32.gmra.mrb[0].mxu0 %v579
  %v724 = vpop.f32.mrb[0].mxu0
  %v725 = vadd.f32 0.0, %v724
  %v726 = vpop.f32.mrb[0].mxu0
  %v727 = vadd.f32 0.0, %v726
  %728 = vdwg.mxu0
  %v729 = vadd.f32 %v583, %v654
  %v730 = vadd.f32 %v584, %v656
  %v731 = vadd.f32 %v585, %v725
  %v732 = vadd.f32 %v586, %v727
  %v733 = vmul.f32 %v729, 0.5
  %v734 = vtanh.pop %v733
  %v735 = vmul.f32 %v734, 0.5
  %v736 = vadd.f32 %v735, 0.5
  %v737 = vmul.f32 %v730, 0.5
  %v738 = vtanh.pop %v737
  %v739 = vmul.f32 %v738, 0.5
  %v740 = vadd.f32 %v739, 0.5
  %v741 = vtanh.pop %v731
  %v742 = vmul.f32 %v732, 0.5
  %v743 = vtanh.pop %v742
  %v744 = vmul.f32 %v743, 0.5
  %v745 = vadd.f32 %v744, 0.5
  %v746 = vmul.f32 %v740, %v581
  %v747 = vmul.f32 %v736, %v741
  %v748 = vadd.f32 %v746, %v747
  %v749 = vtanh.pop %v748
  %v750 = vmul.f32 %v745, %v749
  %751 = vmatprep.subr.mxu0 %v102
  %752 = vmatpush1.msra.mxu0 %v101
  %753 = vmatprep.subr.mxu0 %v106
  %754 = vmatpush1.msra.mxu0 %v105
  %755 = vmatprep.subr.mxu0 %v110
  %756 = vmatpush1.msra.mxu0 %v109
  %757 = vmatprep.subr.mxu0 %v114
  %758 = vmatpush1.msra.mxu0 %v113
  %759 = vmatprep.subr.mxu0 %v118
  %760 = vmatpush1.msra.mxu0 %v117
  %761 = vmatprep.subr.mxu0 %v122
  %762 = vmatpush1.msra.mxu0 %v121
  %763 = vmatprep.subr.mxu0 %v126
  %764 = vmatpush1.msra.mxu0 %v125
  %765 = vmatprep.subr.mxu0 %v130
  %766 = vmatpush1.msra.mxu0 %v129
  %767 = vmatprep.subr.mxu0 %v134
  %768 = vmatpush1.msra.mxu0 %v133
  %769 = vmatprep.subr.mxu0 %v138
  %770 = vmatpush1.msra.mxu0 %v137
  %771 = vmatprep.subr.mxu0 %v142
  %772 = vmatpush1.msra.mxu0 %v141
  %773 = vmatprep.subr.mxu0 %v146
  %774 = vmatpush1.msra.mxu0 %v145
  %775 = vmatprep.subr.mxu0 %v150
  %776 = vmatpush1.msra.mxu0 %v149
  %777 = vmatprep.subr.mxu0 %v154
  %778 = vmatpush1.msra.mxu0 %v153
  %779 = vmatprep.subr.mxu0 %v158
  %780 = vmatpush1.msra.mxu0 %v157
  %781 = vmatprep.subr.mxu0 %v162
  %782 = vmatpush1.msra.mxu0 %v161
  %783 = vmatprep.subr.mxu0 %v166
  %784 = vmatpush1.msra.mxu0 %v165
  %785 = vmatprep.subr.mxu0 %v170
  %786 = vmatpush1.msra.mxu0 %v169
  %787 = vmatprep.subr.mxu0 %v174
  %788 = vmatpush1.msra.mxu0 %v173
  %789 = vmatprep.subr.mxu0 %v178
  %790 = vmatpush1.msra.mxu0 %v177
  %791 = vmatprep.subr.mxu0 %v182
  %792 = vmatpush1.msra.mxu0 %v181
  %793 = vmatprep.subr.mxu0 %v186
  %794 = vmatpush1.msra.mxu0 %v185
  %795 = vmatprep.subr.mxu0 %v190
  %796 = vmatpush1.msra.mxu0 %v189
  %797 = vmatprep.subr.mxu0 %v194
  %798 = vmatpush1.msra.mxu0 %v193
  %799 = vmatprep.subr.mxu0 %v198
  %800 = vmatpush1.msra.mxu0 %v197
  %801 = vmatprep.subr.mxu0 %v202
  %802 = vmatpush1.msra.mxu0 %v201
  %803 = vmatprep.subr.mxu0 %v206
  %804 = vmatpush1.msra.mxu0 %v205
  %805 = vmatprep.subr.mxu0 %v210
  %806 = vmatpush1.msra.mxu0 %v209
  %807 = vmatprep.subr.mxu0 %v214
  %808 = vmatpush1.msra.mxu0 %v213
  %809 = vmatprep.subr.mxu0 %v218
  %810 = vmatpush1.msra.mxu0 %v217
  %811 = vmatprep.subr.mxu0 %v222
  %812 = vmatpush1.msra.mxu0 %v221
  %813 = vmatprep.subr.mxu0 %v226
  %814 = vmatpush1.msra.mxu0 %v225
  %815 = vmatprep.mubr.f32.mxu0 %v580
  %816 = vmatmul.mubr.f32.gmra.mrb[0].mxu0 %v750
  %v817 = vpop.f32.mrb[0].mxu0
  %v818 = vadd.f32 %v234, %v817
  %v819 = vpop.f32.mrb[0].mxu0
  %v820 = vadd.f32 %v238, %v819
  %821 = vdwg.mxu0
  %822 = vmatprep.subr.mxu0 %v104
  %823 = vmatpush1.msra.mxu0 %v103
  %824 = vmatprep.subr.mxu0 %v108
  %825 = vmatpush1.msra.mxu0 %v107
  %826 = vmatprep.subr.mxu0 %v112
  %827 = vmatpush1.msra.mxu0 %v111
  %828 = vmatprep.subr.mxu0 %v116
  %829 = vmatpush1.msra.mxu0 %v115
  %830 = vmatprep.subr.mxu0 %v120
  %831 = vmatpush1.msra.mxu0 %v119
  %832 = vmatprep.subr.mxu0 %v124
  %833 = vmatpush1.msra.mxu0 %v123
  %834 = vmatprep.subr.mxu0 %v128
  %835 = vmatpush1.msra.mxu0 %v127
  %836 = vmatprep.subr.mxu0 %v132
  %837 = vmatpush1.msra.mxu0 %v131
  %838 = vmatprep.subr.mxu0 %v136
  %839 = vmatpush1.msra.mxu0 %v135
  %840 = vmatprep.subr.mxu0 %v140
  %841 = vmatpush1.msra.mxu0 %v139
  %842 = vmatprep.subr.mxu0 %v144
  %843 = vmatpush1.msra.mxu0 %v143
  %844 = vmatprep.subr.mxu0 %v148
  %845 = vmatpush1.msra.mxu0 %v147
  %846 = vmatprep.subr.mxu0 %v152
  %847 = vmatpush1.msra.mxu0 %v151
  %848 = vmatprep.subr.mxu0 %v156
  %849 = vmatpush1.msra.mxu0 %v155
  %850 = vmatprep.subr.mxu0 %v160
  %851 = vmatpush1.msra.mxu0 %v159
  %852 = vmatprep.subr.mxu0 %v164
  %853 = vmatpush1.msra.mxu0 %v163
  %854 = vmatprep.subr.mxu0 %v168
  %855 = vmatpush1.msra.mxu0 %v167
  %856 = vmatprep.subr.mxu0 %v172
  %857 = vmatpush1.msra.mxu0 %v171
  %858 = vmatprep.subr.mxu0 %v176
  %859 = vmatpush1.msra.mxu0 %v175
  %860 = vmatprep.subr.mxu0 %v180
  %861 = vmatpush1.msra.mxu0 %v179
  %862 = vmatprep.subr.mxu0 %v184
  %863 = vmatpush1.msra.mxu0 %v183
  %864 = vmatprep.subr.mxu0 %v188
  %865 = vmatpush1.msra.mxu0 %v187
  %866 = vmatprep.subr.mxu0 %v192
  %867 = vmatpush1.msra.mxu0 %v191
  %868 = vmatprep.subr.mxu0 %v196
  %869 = vmatpush1.msra.mxu0 %v195
  %870 = vmatprep.subr.mxu0 %v200
  %871 = vmatpush1.msra.mxu0 %v199
  %872 = vmatprep.subr.mxu0 %v204
  %873 = vmatpush1.msra.mxu0 %v203
  %874 = vmatprep.subr.mxu0 %v208
  %875 = vmatpush1.msra.mxu0 %v207
  %876 = vmatprep.subr.mxu0 %v212
  %877 = vmatpush1.msra.mxu0 %v211
  %878 = vmatprep.subr.mxu0 %v216
  %879 = vmatpush1.msra.mxu0 %v215
  %880 = vmatprep.subr.mxu0 %v220
  %881 = vmatpush1.msra.mxu0 %v219
  %882 = vmatprep.subr.mxu0 %v224
  %883 = vmatpush1.msra.mxu0 %v223
  %884 = vmatprep.subr.mxu0 %v228
  %885 = vmatpush1.msra.mxu0 %v227
  %886 = vmatprep.mubr.f32.mxu0 %v580
  %887 = vmatmul.mubr.f32.gmra.mrb[0].mxu0 %v750
  %v888 = vpop.f32.mrb[0].mxu0
  %v889 = vadd.f32 %v242, %v888
  %v890 = vpop.f32.mrb[0].mxu0
  %v891 = vadd.f32 %v246, %v890
  %892 = vdwg.mxu0
  %v893 = vmul.f32 %v818, 0.5
  %v894 = vtanh.pop %v893
  %v895 = vmul.f32 %v894, 0.5
  %v896 = vadd.f32 %v895, 0.5
  %v897 = vmul.f32 %v820, 0.5
  %v898 = vtanh.pop %v897
  %v899 = vmul.f32 %v898, 0.5
  %v900 = vadd.f32 %v899, 0.5
  %v901 = vtanh.pop %v889
  %v902 = vmul.f32 %v891, 0.5
  %v903 = vtanh.pop %v902
  %v904 = vmul.f32 %v903, 0.5
  %v905 = vadd.f32 %v904, 0.5
  %v906 = vmul.f32 %v900, %v582
  %v907 = vmul.f32 %v896, %v901
  %v908 = vadd.f32 %v906, %v907
  %v909 = vtanh.pop %v908
  %v910 = vmul.f32 %v905, %v909
  %s911 = scalar_lea.vmem [#allocation6], 32
  %v912 = vld [vmem:[%s911] sm:$0xff]
  %v913 = vld [vmem:[%s911 + $0x8] sm:$0xff]
  %v914 = vld [vmem:[%s911 + $0x10] sm:$0xff]
  %v915 = vld [vmem:[%s911 + $0x18] sm:$0xff]
  %916 = vmatprep.subr.mxu0 %v38
  %917 = vmatpush1.msra.mxu0 %v37
  %918 = vmatprep.subr.mxu0 %v42
  %919 = vmatpush1.msra.mxu0 %v41
  %920 = vmatprep.subr.mxu0 %v46
  %921 = vmatpush1.msra.mxu0 %v45
  %922 = vmatprep.subr.mxu0 %v50
  %923 = vmatpush1.msra.mxu0 %v49
  %924 = vmatprep.subr.mxu0 %v54
  %925 = vmatpush1.msra.mxu0 %v53
  %926 = vmatprep.subr.mxu0 %v58
  %927 = vmatpush1.msra.mxu0 %v57
  %928 = vmatprep.subr.mxu0 %v62
  %929 = vmatpush1.msra.mxu0 %v61
  %930 = vmatprep.subr.mxu0 %v66
  %931 = vmatpush1.msra.mxu0 %v65
  %932 = vmatprep.subr.mxu0 %v70
  %933 = vmatpush1.msra.mxu0 %v69
  %934 = vmatprep.subr.mxu0 %v74
  %935 = vmatpush1.msra.mxu0 %v73
  %936 = vmatprep.subr.mxu0 %v78
  %937 = vmatpush1.msra.mxu0 %v77
  %938 = vmatprep.subr.mxu0 %v82
  %939 = vmatpush1.msra.mxu0 %v81
  %940 = vmatprep.subr.mxu0 %v86
  %941 = vmatpush1.msra.mxu0 %v85
  %942 = vmatprep.subr.mxu0 %v90
  %943 = vmatpush1.msra.mxu0 %v89
  %944 = vmatprep.subr.mxu0 %v94
  %945 = vmatpush1.msra.mxu0 %v93
  %946 = vmatprep.subr.mxu0 %v98
  %947 = vmatpush1.msra.mxu0 %v97
  %948 = vmatprep.subr.mxu0 0.0
  %949 = vmatpush1.msra.mxu0 0.0
  %950 = vmatprep.subr.mxu0 0.0
  %951 = vmatpush1.msra.mxu0 0.0
  %952 = vmatprep.subr.mxu0 0.0
  %953 = vmatpush1.msra.mxu0 0.0
  %954 = vmatprep.subr.mxu0 0.0
  %955 = vmatpush1.msra.mxu0 0.0
  %956 = vmatprep.subr.mxu0 0.0
  %957 = vmatpush1.msra.mxu0 0.0
  %958 = vmatprep.subr.mxu0 0.0
  %959 = vmatpush1.msra.mxu0 0.0
  %960 = vmatprep.subr.mxu0 0.0
  %961 = vmatpush1.msra.mxu0 0.0
  %962 = vmatprep.subr.mxu0 0.0
  %963 = vmatpush1.msra.mxu0 0.0
  %964 = vmatprep.subr.mxu0 0.0
  %965 = vmatpush1.msra.mxu0 0.0
  %966 = vmatprep.subr.mxu0 0.0
  %967 = vmatpush1.msra.mxu0 0.0
  %968 = vmatprep.subr.mxu0 0.0
  %969 = vmatpush1.msra.mxu0 0.0
  %970 = vmatprep.subr.mxu0 0.0
  %971 = vmatpush1.msra.mxu0 0.0
  %972 = vmatprep.subr.mxu0 0.0
  %973 = vmatpush1.msra.mxu0 0.0
  %974 = vmatprep.subr.mxu0 0.0
  %975 = vmatpush1.msra.mxu0 0.0
  %976 = vmatprep.subr.mxu0 0.0
  %977 = vmatpush1.msra.mxu0 0.0
  %978 = vmatprep.subr.mxu0 0.0
  %979 = vmatpush1.msra.mxu0 0.0
  %980 = vmatprep.mubr.f32.mxu0 0.0
  %981 = vmatmul.mubr.f32.gmra.mrb[0].mxu0 %v750
  %v982 = vpop.f32.mrb[0].mxu0
  %v983 = vadd.f32 0.0, %v982
  %v984 = vpop.f32.mrb[0].mxu0
  %v985 = vadd.f32 0.0, %v984
  %986 = vdwg.mxu0
  %987 = vmatprep.subr.mxu0 %v40
  %988 = vmatpush1.msra.mxu0 %v39
  %989 = vmatprep.subr.mxu0 %v44
  %990 = vmatpush1.msra.mxu0 %v43
  %991 = vmatprep.subr.mxu0 %v48
  %992 = vmatpush1.msra.mxu0 %v47
  %993 = vmatprep.subr.mxu0 %v52
  %994 = vmatpush1.msra.mxu0 %v51
  %995 = vmatprep.subr.mxu0 %v56
  %996 = vmatpush1.msra.mxu0 %v55
  %997 = vmatprep.subr.mxu0 %v60
  %998 = vmatpush1.msra.mxu0 %v59
  %999 = vmatprep.subr.mxu0 %v64
  %1000 = vmatpush1.msra.mxu0 %v63
  %1001 = vmatprep.subr.mxu0 %v68
  %1002 = vmatpush1.msra.mxu0 %v67
  %1003 = vmatprep.subr.mxu0 %v72
  %1004 = vmatpush1.msra.mxu0 %v71
  %1005 = vmatprep.subr.mxu0 %v76
  %1006 = vmatpush1.msra.mxu0 %v75
  %1007 = vmatprep.subr.mxu0 %v80
  %1008 = vmatpush1.msra.mxu0 %v79
  %1009 = vmatprep.subr.mxu0 %v84
  %1010 = vmatpush1.msra.mxu0 %v83
  %1011 = vmatprep.subr.mxu0 %v88
  %1012 = vmatpush1.msra.mxu0 %v87
  %1013 = vmatprep.subr.mxu0 %v92
  %1014 = vmatpush1.msra.mxu0 %v91
  %1015 = vmatprep.subr.mxu0 %v96
  %1016 = vmatpush1.msra.mxu0 %v95
  %1017 = vmatprep.subr.mxu0 %v100
  %1018 = vmatpush1.msra.mxu0 %v99
  %1019 = vmatprep.subr.mxu0 0.0
  %1020 = vmatpush1.msra.mxu0 0.0
  %1021 = vmatprep.subr.mxu0 0.0
  %1022 = vmatpush1.msra.mxu0 0.0
  %1023 = vmatprep.subr.mxu0 0.0
  %1024 = vmatpush1.msra.mxu0 0.0
  %1025 = vmatprep.subr.mxu0 0.0
  %1026 = vmatpush1.msra.mxu0 0.0
  %1027 = vmatprep.subr.mxu0 0.0
  %1028 = vmatpush1.msra.mxu0 0.0
  %1029 = vmatprep.subr.mxu0 0.0
  %1030 = vmatpush1.msra.mxu0 0.0
  %1031 = vmatprep.subr.mxu0 0.0
  %1032 = vmatpush1.msra.mxu0 0.0
  %1033 = vmatprep.subr.mxu0 0.0
  %1034 = vmatpush1.msra.mxu0 0.0
  %1035 = vmatprep.subr.mxu0 0.0
  %1036 = vmatpush1.msra.mxu0 0.0
  %1037 = vmatprep.subr.mxu0 0.0
  %1038 = vmatpush1.msra.mxu0 0.0
  %1039 = vmatprep.subr.mxu0 0.0
  %1040 = vmatpush1.msra.mxu0 0.0
  %1041 = vmatprep.subr.mxu0 0.0
  %1042 = vmatpush1.msra.mxu0 0.0
  %1043 = vmatprep.subr.mxu0 0.0
  %1044 = vmatpush1.msra.mxu0 0.0
  %1045 = vmatprep.subr.mxu0 0.0
  %1046 = vmatpush1.msra.mxu0 0.0
  %1047 = vmatprep.subr.mxu0 0.0
  %1048 = vmatpush1.msra.mxu0 0.0
  %1049 = vmatprep.subr.mxu0 0.0
  %1050 = vmatpush1.msra.mxu0 0.0
  %1051 = vmatprep.mubr.f32.mxu0 0.0
  %1052 = vmatmul.mubr.f32.gmra.mrb[0].mxu0 %v750
  %v1053 = vpop.f32.mrb[0].mxu0
  %v1054 = vadd.f32 0.0, %v1053
  %v1055 = vpop.f32.mrb[0].mxu0
  %v1056 = vadd.f32 0.0, %v1055
  %1057 = vdwg.mxu0
  %v1058 = vadd.f32 %v912, %v983
  %v1059 = vadd.f32 %v913, %v985
  %v1060 = vadd.f32 %v914, %v1054
  %v1061 = vadd.f32 %v915, %v1056
  %v1062 = vmul.f32 %v1058, 0.5
  %v1063 = vtanh.pop %v1062
  %v1064 = vmul.f32 %v1063, 0.5
  %v1065 = vadd.f32 %v1064, 0.5
  %v1066 = vmul.f32 %v1059, 0.5
  %v1067 = vtanh.pop %v1066
  %v1068 = vmul.f32 %v1067, 0.5
  %v1069 = vadd.f32 %v1068, 0.5
  %v1070 = vtanh.pop %v1060
  %v1071 = vmul.f32 %v1061, 0.5
  %v1072 = vtanh.pop %v1071
  %v1073 = vmul.f32 %v1072, 0.5
  %v1074 = vadd.f32 %v1073, 0.5
  %v1075 = vmul.f32 %v1069, %v748
  %v1076 = vmul.f32 %v1065, %v1070
  %v1077 = vadd.f32 %v1075, %v1076
  %v1078 = vtanh.pop %v1077
  %v1079 = vmul.f32 %v1074, %v1078
  %1080 = vmatprep.subr.mxu0 %v102
  %1081 = vmatpush1.msra.mxu0 %v101
  %1082 = vmatprep.subr.mxu0 %v106
  %1083 = vmatpush1.msra.mxu0 %v105
  %1084 = vmatprep.subr.mxu0 %v110
  %1085 = vmatpush1.msra.mxu0 %v109
  %1086 = vmatprep.subr.mxu0 %v114
  %1087 = vmatpush1.msra.mxu0 %v113
  %1088 = vmatprep.subr.mxu0 %v118
  %1089 = vmatpush1.msra.mxu0 %v117
  %1090 = vmatprep.subr.mxu0 %v122
  %1091 = vmatpush1.msra.mxu0 %v121
  %1092 = vmatprep.subr.mxu0 %v126
  %1093 = vmatpush1.msra.mxu0 %v125
  %1094 = vmatprep.subr.mxu0 %v130
  %1095 = vmatpush1.msra.mxu0 %v129
  %1096 = vmatprep.subr.mxu0 %v134
  %1097 = vmatpush1.msra.mxu0 %v133
  %1098 = vmatprep.subr.mxu0 %v138
  %1099 = vmatpush1.msra.mxu0 %v137
  %1100 = vmatprep.subr.mxu0 %v142
  %1101 = vmatpush1.msra.mxu0 %v141
  %1102 = vmatprep.subr.mxu0 %v146
  %1103 = vmatpush1.msra.mxu0 %v145
  %1104 = vmatprep.subr.mxu0 %v150
  %1105 = vmatpush1.msra.mxu0 %v149
  %1106 = vmatprep.subr.mxu0 %v154
  %1107 = vmatpush1.msra.mxu0 %v153
  %1108 = vmatprep.subr.mxu0 %v158
  %1109 = vmatpush1.msra.mxu0 %v157
  %1110 = vmatprep.subr.mxu0 %v162
  %1111 = vmatpush1.msra.mxu0 %v161
  %1112 = vmatprep.subr.mxu0 %v166
  %1113 = vmatpush1.msra.mxu0 %v165
  %1114 = vmatprep.subr.mxu0 %v170
  %1115 = vmatpush1.msra.mxu0 %v169
  %1116 = vmatprep.subr.mxu0 %v174
  %1117 = vmatpush1.msra.mxu0 %v173
  %1118 = vmatprep.subr.mxu0 %v178
  %1119 = vmatpush1.msra.mxu0 %v177
  %1120 = vmatprep.subr.mxu0 %v182
  %1121 = vmatpush1.msra.mxu0 %v181
  %1122 = vmatprep.subr.mxu0 %v186
  %1123 = vmatpush1.msra.mxu0 %v185
  %1124 = vmatprep.subr.mxu0 %v190
  %1125 = vmatpush1.msra.mxu0 %v189
  %1126 = vmatprep.subr.mxu0 %v194
  %1127 = vmatpush1.msra.mxu0 %v193
  %1128 = vmatprep.subr.mxu0 %v198
  %1129 = vmatpush1.msra.mxu0 %v197
  %1130 = vmatprep.subr.mxu0 %v202
  %1131 = vmatpush1.msra.mxu0 %v201
  %1132 = vmatprep.subr.mxu0 %v206
  %1133 = vmatpush1.msra.mxu0 %v205
  %1134 = vmatprep.subr.mxu0 %v210
  %1135 = vmatpush1.msra.mxu0 %v209
  %1136 = vmatprep.subr.mxu0 %v214
  %1137 = vmatpush1.msra.mxu0 %v213
  %1138 = vmatprep.subr.mxu0 %v218
  %1139 = vmatpush1.msra.mxu0 %v217
  %1140 = vmatprep.subr.mxu0 %v222
  %1141 = vmatpush1.msra.mxu0 %v221
  %1142 = vmatprep.subr.mxu0 %v226
  %1143 = vmatpush1.msra.mxu0 %v225
  %1144 = vmatprep.mubr.f32.mxu0 %v910
  %1145 = vmatmul.mubr.f32.gmra.mrb[0].mxu0 %v1079
  %v1146 = vpop.f32.mrb[0].mxu0
  %v1147 = vadd.f32 %v234, %v1146
  %v1148 = vpop.f32.mrb[0].mxu0
  %v1149 = vadd.f32 %v238, %v1148
  %1150 = vdwg.mxu0
  %1151 = vmatprep.subr.mxu0 %v104
  %1152 = vmatpush1.msra.mxu0 %v103
  %1153 = vmatprep.subr.mxu0 %v108
  %1154 = vmatpush1.msra.mxu0 %v107
  %1155 = vmatprep.subr.mxu0 %v112
  %1156 = vmatpush1.msra.mxu0 %v111
  %1157 = vmatprep.subr.mxu0 %v116
  %1158 = vmatpush1.msra.mxu0 %v115
  %1159 = vmatprep.subr.mxu0 %v120
  %1160 = vmatpush1.msra.mxu0 %v119
  %1161 = vmatprep.subr.mxu0 %v124
  %1162 = vmatpush1.msra.mxu0 %v123
  %1163 = vmatprep.subr.mxu0 %v128
  %1164 = vmatpush1.msra.mxu0 %v127
  %1165 = vmatprep.subr.mxu0 %v132
  %1166 = vmatpush1.msra.mxu0 %v131
  %1167 = vmatprep.subr.mxu0 %v136
  %1168 = vmatpush1.msra.mxu0 %v135
  %1169 = vmatprep.subr.mxu0 %v140
  %1170 = vmatpush1.msra.mxu0 %v139
  %1171 = vmatprep.subr.mxu0 %v144
  %1172 = vmatpush1.msra.mxu0 %v143
  %1173 = vmatprep.subr.mxu0 %v148
  %1174 = vmatpush1.msra.mxu0 %v147
  %1175 = vmatprep.subr.mxu0 %v152
  %1176 = vmatpush1.msra.mxu0 %v151
  %1177 = vmatprep.subr.mxu0 %v156
  %1178 = vmatpush1.msra.mxu0 %v155
  %1179 = vmatprep.subr.mxu0 %v160
  %1180 = vmatpush1.msra.mxu0 %v159
  %1181 = vmatprep.subr.mxu0 %v164
  %1182 = vmatpush1.msra.mxu0 %v163
  %1183 = vmatprep.subr.mxu0 %v168
  %1184 = vmatpush1.msra.mxu0 %v167
  %1185 = vmatprep.subr.mxu0 %v172
  %1186 = vmatpush1.msra.mxu0 %v171
  %1187 = vmatprep.subr.mxu0 %v176
  %1188 = vmatpush1.msra.mxu0 %v175
  %1189 = vmatprep.subr.mxu0 %v180
  %1190 = vmatpush1.msra.mxu0 %v179
  %1191 = vmatprep.subr.mxu0 %v184
  %1192 = vmatpush1.msra.mxu0 %v183
  %1193 = vmatprep.subr.mxu0 %v188
  %1194 = vmatpush1.msra.mxu0 %v187
  %1195 = vmatprep.subr.mxu0 %v192
  %1196 = vmatpush1.msra.mxu0 %v191
  %1197 = vmatprep.subr.mxu0 %v196
  %1198 = vmatpush1.msra.mxu0 %v195
  %1199 = vmatprep.subr.mxu0 %v200
  %1200 = vmatpush1.msra.mxu0 %v199
  %1201 = vmatprep.subr.mxu0 %v204
  %1202 = vmatpush1.msra.mxu0 %v203
  %1203 = vmatprep.subr.mxu0 %v208
  %1204 = vmatpush1.msra.mxu0 %v207
  %1205 = vmatprep.subr.mxu0 %v212
  %1206 = vmatpush1.msra.mxu0 %v211
  %1207 = vmatprep.subr.mxu0 %v216
  %1208 = vmatpush1.msra.mxu0 %v215
  %1209 = vmatprep.subr.mxu0 %v220
  %1210 = vmatpush1.msra.mxu0 %v219
  %1211 = vmatprep.subr.mxu0 %v224
  %1212 = vmatpush1.msra.mxu0 %v223
  %1213 = vmatprep.subr.mxu0 %v228
  %1214 = vmatpush1.msra.mxu0 %v227
  %1215 = vmatprep.mubr.f32.mxu0 %v910
  %1216 = vmatmul.mubr.f32.gmra.mrb[0].mxu0 %v1079
  %v1217 = vpop.f32.mrb[0].mxu0
  %v1218 = vadd.f32 %v242, %v1217
  %v1219 = vpop.f32.mrb[0].mxu0
  %v1220 = vadd.f32 %v246, %v1219
  %1221 = vdwg.mxu0
  %v1222 = vmul.f32 %v1147, 0.5
  %v1223 = vtanh.pop %v1222
  %v1224 = vmul.f32 %v1223, 0.5
  %v1225 = vadd.f32 %v1224, 0.5
  %v1226 = vmul.f32 %v1149, 0.5
  %v1227 = vtanh.pop %v1226
  %v1228 = vmul.f32 %v1227, 0.5
  %v1229 = vadd.f32 %v1228, 0.5
  %v1230 = vtanh.pop %v1218
  %v1231 = vmul.f32 %v1220, 0.5
  %v1232 = vtanh.pop %v1231
  %v1233 = vmul.f32 %v1232, 0.5
  %v1234 = vadd.f32 %v1233, 0.5
  %v1235 = vmul.f32 %v1229, %v908
  %v1236 = vmul.f32 %v1225, %v1230
  %v1237 = vadd.f32 %v1235, %v1236
  %v1238 = vtanh.pop %v1237
  %v1239 = vmul.f32 %v1234, %v1238
  %s1240 = scalar_lea.vmem [#allocation6], 64
  %v1241 = vld [vmem:[%s1240] sm:$0xff]
  %v1242 = vld [vmem:[%s1240 + $0x8] sm:$0xff]
  %v1243 = vld [vmem:[%s1240 + $0x10] sm:$0xff]
  %v1244 = vld [vmem:[%s1240 + $0x18] sm:$0xff]
  %1245 = vmatprep.subr.mxu0 %v38
  %1246 = vmatpush1.msra.mxu0 %v37
  %1247 = vmatprep.subr.mxu0 %v42
  %1248 = vmatpush1.msra.mxu0 %v41
  %1249 = vmatprep.subr.mxu0 %v46
  %1250 = vmatpush1.msra.mxu0 %v45
  %1251 = vmatprep.subr.mxu0 %v50
  %1252 = vmatpush1.msra.mxu0 %v49
  %1253 = vmatprep.subr.mxu0 %v54
  %1254 = vmatpush1.msra.mxu0 %v53
  %1255 = vmatprep.subr.mxu0 %v58
  %1256 = vmatpush1.msra.mxu0 %v57
  %1257 = vmatprep.subr.mxu0 %v62
  %1258 = vmatpush1.msra.mxu0 %v61
  %1259 = vmatprep.subr.mxu0 %v66
  %1260 = vmatpush1.msra.mxu0 %v65
  %1261 = vmatprep.subr.mxu0 %v70
  %1262 = vmatpush1.msra.mxu0 %v69
  %1263 = vmatprep.subr.mxu0 %v74
  %1264 = vmatpush1.msra.mxu0 %v73
  %1265 = vmatprep.subr.mxu0 %v78
  %1266 = vmatpush1.msra.mxu0 %v77
  %1267 = vmatprep.subr.mxu0 %v82
  %1268 = vmatpush1.msra.mxu0 %v81
  %1269 = vmatprep.subr.mxu0 %v86
  %1270 = vmatpush1.msra.mxu0 %v85
  %1271 = vmatprep.subr.mxu0 %v90
  %1272 = vmatpush1.msra.mxu0 %v89
  %1273 = vmatprep.subr.mxu0 %v94
  %1274 = vmatpush1.msra.mxu0 %v93
  %1275 = vmatprep.subr.mxu0 %v98
  %1276 = vmatpush1.msra.mxu0 %v97
  %1277 = vmatprep.subr.mxu0 0.0
  %1278 = vmatpush1.msra.mxu0 0.0
  %1279 = vmatprep.subr.mxu0 0.0
  %1280 = vmatpush1.msra.mxu0 0.0
  %1281 = vmatprep.subr.mxu0 0.0
  %1282 = vmatpush1.msra.mxu0 0.0
  %1283 = vmatprep.subr.mxu0 0.0
  %1284 = vmatpush1.msra.mxu0 0.0
  %1285 = vmatprep.subr.mxu0 0.0
  %1286 = vmatpush1.msra.mxu0 0.0
  %1287 = vmatprep.subr.mxu0 0.0
  %1288 = vmatpush1.msra.mxu0 0.0
  %1289 = vmatprep.subr.mxu0 0.0
  %1290 = vmatpush1.msra.mxu0 0.0
  %1291 = vmatprep.subr.mxu0 0.0
  %1292 = vmatpush1.msra.mxu0 0.0
  %1293 = vmatprep.subr.mxu0 0.0
  %1294 = vmatpush1.msra.mxu0 0.0
  %1295 = vmatprep.subr.mxu0 0.0
  %1296 = vmatpush1.msra.mxu0 0.0
  %1297 = vmatprep.subr.mxu0 0.0
  %1298 = vmatpush1.msra.mxu0 0.0
  %1299 = vmatprep.subr.mxu0 0.0
  %1300 = vmatpush1.msra.mxu0 0.0
  %1301 = vmatprep.subr.mxu0 0.0
  %1302 = vmatpush1.msra.mxu0 0.0
  %1303 = vmatprep.subr.mxu0 0.0
  %1304 = vmatpush1.msra.mxu0 0.0
  %1305 = vmatprep.subr.mxu0 0.0
  %1306 = vmatpush1.msra.mxu0 0.0
  %1307 = vmatprep.subr.mxu0 0.0
  %1308 = vmatpush1.msra.mxu0 0.0
  %1309 = vmatprep.mubr.f32.mxu0 0.0
  %1310 = vmatmul.mubr.f32.gmra.mrb[0].mxu0 %v1079
  %v1311 = vpop.f32.mrb[0].mxu0
  %v1312 = vadd.f32 0.0, %v1311
  %v1313 = vpop.f32.mrb[0].mxu0
  %v1314 = vadd.f32 0.0, %v1313
  %1315 = vdwg.mxu0
  %1316 = vmatprep.subr.mxu0 %v40
  %1317 = vmatpush1.msra.mxu0 %v39
  %1318 = vmatprep.subr.mxu0 %v44
  %1319 = vmatpush1.msra.mxu0 %v43
  %1320 = vmatprep.subr.mxu0 %v48
  %1321 = vmatpush1.msra.mxu0 %v47
  %1322 = vmatprep.subr.mxu0 %v52
  %1323 = vmatpush1.msra.mxu0 %v51
  %1324 = vmatprep.subr.mxu0 %v56
  %1325 = vmatpush1.msra.mxu0 %v55
  %1326 = vmatprep.subr.mxu0 %v60
  %1327 = vmatpush1.msra.mxu0 %v59
  %1328 = vmatprep.subr.mxu0 %v64
  %1329 = vmatpush1.msra.mxu0 %v63
  %1330 = vmatprep.subr.mxu0 %v68
  %1331 = vmatpush1.msra.mxu0 %v67
  %1332 = vmatprep.subr.mxu0 %v72
  %1333 = vmatpush1.msra.mxu0 %v71
  %1334 = vmatprep.subr.mxu0 %v76
  %1335 = vmatpush1.msra.mxu0 %v75
  %1336 = vmatprep.subr.mxu0 %v80
  %1337 = vmatpush1.msra.mxu0 %v79
  %1338 = vmatprep.subr.mxu0 %v84
  %1339 = vmatpush1.msra.mxu0 %v83
  %1340 = vmatprep.subr.mxu0 %v88
  %1341 = vmatpush1.msra.mxu0 %v87
  %1342 = vmatprep.subr.mxu0 %v92
  %1343 = vmatpush1.msra.mxu0 %v91
  %1344 = vmatprep.subr.mxu0 %v96
  %1345 = vmatpush1.msra.mxu0 %v95
  %1346 = vmatprep.subr.mxu0 %v100
  %1347 = vmatpush1.msra.mxu0 %v99
  %1348 = vmatprep.subr.mxu0 0.0
  %1349 = vmatpush1.msra.mxu0 0.0
  %1350 = vmatprep.subr.mxu0 0.0
  %1351 = vmatpush1.msra.mxu0 0.0
  %1352 = vmatprep.subr.mxu0 0.0
  %1353 = vmatpush1.msra.mxu0 0.0
  %1354 = vmatprep.subr.mxu0 0.0
  %1355 = vmatpush1.msra.mxu0 0.0
  %1356 = vmatprep.subr.mxu0 0.0
  %1357 = vmatpush1.msra.mxu0 0.0
  %1358 = vmatprep.subr.mxu0 0.0
  %1359 = vmatpush1.msra.mxu0 0.0
  %1360 = vmatprep.subr.mxu0 0.0
  %1361 = vmatpush1.msra.mxu0 0.0
  %1362 = vmatprep.subr.mxu0 0.0
  %1363 = vmatpush1.msra.mxu0 0.0
  %1364 = vmatprep.subr.mxu0 0.0
  %1365 = vmatpush1.msra.mxu0 0.0
  %1366 = vmatprep.subr.mxu0 0.0
  %1367 = vmatpush1.msra.mxu0 0.0
  %1368 = vmatprep.subr.mxu0 0.0
  %1369 = vmatpush1.msra.mxu0 0.0
  %1370 = vmatprep.subr.mxu0 0.0
  %1371 = vmatpush1.msra.mxu0 0.0
  %1372 = vmatprep.subr.mxu0 0.0
  %1373 = vmatpush1.msra.mxu0 0.0
  %1374 = vmatprep.subr.mxu0 0.0
  %1375 = vmatpush1.msra.mxu0 0.0
  %1376 = vmatprep.subr.mxu0 0.0
  %1377 = vmatpush1.msra.mxu0 0.0
  %1378 = vmatprep.subr.mxu0 0.0
  %1379 = vmatpush1.msra.mxu0 0.0
  %1380 = vmatprep.mubr.f32.mxu0 0.0
  %1381 = vmatmul.mubr.f32.gmra.mrb[0].mxu0 %v1079
  %v1382 = vpop.f32.mrb[0].mxu0
  %v1383 = vadd.f32 0.0, %v1382
  %v1384 = vpop.f32.mrb[0].mxu0
  %v1385 = vadd.f32 0.0, %v1384
  %1386 = vdwg.mxu0
  %v1387 = vadd.f32 %v1241, %v1312
  %v1388 = vadd.f32 %v1242, %v1314
  %v1389 = vadd.f32 %v1243, %v1383
  %v1390 = vadd.f32 %v1244, %v1385
  %v1391 = vmul.f32 %v1387, 0.5
  %v1392 = vtanh.pop %v1391
  %v1393 = vmul.f32 %v1392, 0.5
  %v1394 = vadd.f32 %v1393, 0.5
  %v1395 = vmul.f32 %v1388, 0.5
  %v1396 = vtanh.pop %v1395
  %v1397 = vmul.f32 %v1396, 0.5
  %v1398 = vadd.f32 %v1397, 0.5
  %v1399 = vtanh.pop %v1389
  %v1400 = vmul.f32 %v1390, 0.5
  %v1401 = vtanh.pop %v1400
  %v1402 = vmul.f32 %v1401, 0.5
  %v1403 = vadd.f32 %v1402, 0.5
  %v1404 = vmul.f32 %v1398, %v1077
  %v1405 = vmul.f32 %v1394, %v1399
  %v1406 = vadd.f32 %v1404, %v1405
  %v1407 = vtanh.pop %v1406
  %v1408 = vmul.f32 %v1403, %v1407
  %1409 = vmatprep.subr.mxu0 %v102
  %1410 = vmatpush1.msra.mxu0 %v101
  %1411 = vmatprep.subr.mxu0 %v106
  %1412 = vmatpush1.msra.mxu0 %v105
  %1413 = vmatprep.subr.mxu0 %v110
  %1414 = vmatpush1.msra.mxu0 %v109
  %1415 = vmatprep.subr.mxu0 %v114
  %1416 = vmatpush1.msra.mxu0 %v113
  %1417 = vmatprep.subr.mxu0 %v118
  %1418 = vmatpush1.msra.mxu0 %v117
  %1419 = vmatprep.subr.mxu0 %v122
  %1420 = vmatpush1.msra.mxu0 %v121
  %1421 = vmatprep.subr.mxu0 %v126
  %1422 = vmatpush1.msra.mxu0 %v125
  %1423 = vmatprep.subr.mxu0 %v130
  %1424 = vmatpush1.msra.mxu0 %v129
  %1425 = vmatprep.subr.mxu0 %v134
  %1426 = vmatpush1.msra.mxu0 %v133
  %1427 = vmatprep.subr.mxu0 %v138
  %1428 = vmatpush1.msra.mxu0 %v137
  %1429 = vmatprep.subr.mxu0 %v142
  %1430 = vmatpush1.msra.mxu0 %v141
  %1431 = vmatprep.subr.mxu0 %v146
  %1432 = vmatpush1.msra.mxu0 %v145
  %1433 = vmatprep.subr.mxu0 %v150
  %1434 = vmatpush1.msra.mxu0 %v149
  %1435 = vmatprep.subr.mxu0 %v154
  %1436 = vmatpush1.msra.mxu0 %v153
  %1437 = vmatprep.subr.mxu0 %v158
  %1438 = vmatpush1.msra.mxu0 %v157
  %1439 = vmatprep.subr.mxu0 %v162
  %1440 = vmatpush1.msra.mxu0 %v161
  %1441 = vmatprep.subr.mxu0 %v166
  %1442 = vmatpush1.msra.mxu0 %v165
  %1443 = vmatprep.subr.mxu0 %v170
  %1444 = vmatpush1.msra.mxu0 %v169
  %1445 = vmatprep.subr.mxu0 %v174
  %1446 = vmatpush1.msra.mxu0 %v173
  %1447 = vmatprep.subr.mxu0 %v178
  %1448 = vmatpush1.msra.mxu0 %v177
  %1449 = vmatprep.subr.mxu0 %v182
  %1450 = vmatpush1.msra.mxu0 %v181
  %1451 = vmatprep.subr.mxu0 %v186
  %1452 = vmatpush1.msra.mxu0 %v185
  %1453 = vmatprep.subr.mxu0 %v190
  %1454 = vmatpush1.msra.mxu0 %v189
  %1455 = vmatprep.subr.mxu0 %v194
  %1456 = vmatpush1.msra.mxu0 %v193
  %1457 = vmatprep.subr.mxu0 %v198
  %1458 = vmatpush1.msra.mxu0 %v197
  %1459 = vmatprep.subr.mxu0 %v202
  %1460 = vmatpush1.msra.mxu0 %v201
  %1461 = vmatprep.subr.mxu0 %v206
  %1462 = vmatpush1.msra.mxu0 %v205
  %1463 = vmatprep.subr.mxu0 %v210
  %1464 = vmatpush1.msra.mxu0 %v209
  %1465 = vmatprep.subr.mxu0 %v214
  %1466 = vmatpush1.msra.mxu0 %v213
  %1467 = vmatprep.subr.mxu0 %v218
  %1468 = vmatpush1.msra.mxu0 %v217
  %1469 = vmatprep.subr.mxu0 %v222
  %1470 = vmatpush1.msra.mxu0 %v221
  %1471 = vmatprep.subr.mxu0 %v226
  %1472 = vmatpush1.msra.mxu0 %v225
  %1473 = vmatprep.mubr.f32.mxu0 %v1239
  %1474 = vmatmul.mubr.f32.gmra.mrb[0].mxu0 %v1408
  %v1475 = vpop.f32.mrb[0].mxu0
  %v1476 = vadd.f32 %v234, %v1475
  %v1477 = vpop.f32.mrb[0].mxu0
  %v1478 = vadd.f32 %v238, %v1477
  %1479 = vdwg.mxu0
  %1480 = vmatprep.subr.mxu0 %v104
  %1481 = vmatpush1.msra.mxu0 %v103
  %1482 = vmatprep.subr.mxu0 %v108
  %1483 = vmatpush1.msra.mxu0 %v107
  %1484 = vmatprep.subr.mxu0 %v112
  %1485 = vmatpush1.msra.mxu0 %v111
  %1486 = vmatprep.subr.mxu0 %v116
  %1487 = vmatpush1.msra.mxu0 %v115
  %1488 = vmatprep.subr.mxu0 %v120
  %1489 = vmatpush1.msra.mxu0 %v119
  %1490 = vmatprep.subr.mxu0 %v124
  %1491 = vmatpush1.msra.mxu0 %v123
  %1492 = vmatprep.subr.mxu0 %v128
  %1493 = vmatpush1.msra.mxu0 %v127
  %1494 = vmatprep.subr.mxu0 %v132
  %1495 = vmatpush1.msra.mxu0 %v131
  %1496 = vmatprep.subr.mxu0 %v136
  %1497 = vmatpush1.msra.mxu0 %v135
  %1498 = vmatprep.subr.mxu0 %v140
  %1499 = vmatpush1.msra.mxu0 %v139
  %1500 = vmatprep.subr.mxu0 %v144
  %1501 = vmatpush1.msra.mxu0 %v143
  %1502 = vmatprep.subr.mxu0 %v148
  %1503 = vmatpush1.msra.mxu0 %v147
  %1504 = vmatprep.subr.mxu0 %v152
  %1505 = vmatpush1.msra.mxu0 %v151
  %1506 = vmatprep.subr.mxu0 %v156
  %1507 = vmatpush1.msra.mxu0 %v155
  %1508 = vmatprep.subr.mxu0 %v160
  %1509 = vmatpush1.msra.mxu0 %v159
  %1510 = vmatprep.subr.mxu0 %v164
  %1511 = vmatpush1.msra.mxu0 %v163
  %1512 = vmatprep.subr.mxu0 %v168
  %1513 = vmatpush1.msra.mxu0 %v167
  %1514 = vmatprep.subr.mxu0 %v172
  %1515 = vmatpush1.msra.mxu0 %v171
  %1516 = vmatprep.subr.mxu0 %v176
  %1517 = vmatpush1.msra.mxu0 %v175
  %1518 = vmatprep.subr.mxu0 %v180
  %1519 = vmatpush1.msra.mxu0 %v179
  %1520 = vmatprep.subr.mxu0 %v184
  %1521 = vmatpush1.msra.mxu0 %v183
  %1522 = vmatprep.subr.mxu0 %v188
  %1523 = vmatpush1.msra.mxu0 %v187
  %1524 = vmatprep.subr.mxu0 %v192
  %1525 = vmatpush1.msra.mxu0 %v191
  %1526 = vmatprep.subr.mxu0 %v196
  %1527 = vmatpush1.msra.mxu0 %v195
  %1528 = vmatprep.subr.mxu0 %v200
  %1529 = vmatpush1.msra.mxu0 %v199
  %1530 = vmatprep.subr.mxu0 %v204
  %1531 = vmatpush1.msra.mxu0 %v203
  %1532 = vmatprep.subr.mxu0 %v208
  %1533 = vmatpush1.msra.mxu0 %v207
  %1534 = vmatprep.subr.mxu0 %v212
  %1535 = vmatpush1.msra.mxu0 %v211
  %1536 = vmatprep.subr.mxu0 %v216
  %1537 = vmatpush1.msra.mxu0 %v215
  %1538 = vmatprep.subr.mxu0 %v220
  %1539 = vmatpush1.msra.mxu0 %v219
  %1540 = vmatprep.subr.mxu0 %v224
  %1541 = vmatpush1.msra.mxu0 %v223
  %1542 = vmatprep.subr.mxu0 %v228
  %1543 = vmatpush1.msra.mxu0 %v227
  %1544 = vmatprep.mubr.f32.mxu0 %v1239
  %1545 = vmatmul.mubr.f32.gmra.mrb[0].mxu0 %v1408
  %v1546 = vpop.f32.mrb[0].mxu0
  %v1547 = vadd.f32 %v242, %v1546
  %v1548 = vpop.f32.mrb[0].mxu0
  %v1549 = vadd.f32 %v246, %v1548
  %1550 = vdwg.mxu0
  %v1551 = vmul.f32 %v1476, 0.5
  %v1552 = vtanh.pop %v1551
  %v1553 = vmul.f32 %v1552, 0.5
  %v1554 = vadd.f32 %v1553, 0.5
  %v1555 = vmul.f32 %v1478, 0.5
  %v1556 = vtanh.pop %v1555
  %v1557 = vmul.f32 %v1556, 0.5
  %v1558 = vadd.f32 %v1557, 0.5
  %v1559 = vtanh.pop %v1547
  %v1560 = vmul.f32 %v1549, 0.5
  %v1561 = vtanh.pop %v1560
  %v1562 = vmul.f32 %v1561, 0.5
  %v1563 = vadd.f32 %v1562, 0.5
  %v1564 = vmul.f32 %v1558, %v1237
  %v1565 = vmul.f32 %v1554, %v1559
  %v1566 = vadd.f32 %v1564, %v1565
  %v1567 = vtanh.pop %v1566
  %v1568 = vmul.f32 %v1563, %v1567
  %s1569 = scalar_lea.vmem [#allocation6], 96
  %v1570 = vld [vmem:[%s1569] sm:$0xff]
  %v1571 = vld [vmem:[%s1569 + $0x8] sm:$0xff]
  %v1572 = vld [vmem:[%s1569 + $0x10] sm:$0xff]
  %v1573 = vld [vmem:[%s1569 + $0x18] sm:$0xff]
  %1574 = vmatprep.subr.mxu0 %v38
  %1575 = vmatpush1.msra.mxu0 %v37
  %1576 = vmatprep.subr.mxu0 %v42
  %1577 = vmatpush1.msra.mxu0 %v41
  %1578 = vmatprep.subr.mxu0 %v46
  %1579 = vmatpush1.msra.mxu0 %v45
  %1580 = vmatprep.subr.mxu0 %v50
  %1581 = vmatpush1.msra.mxu0 %v49
  %1582 = vmatprep.subr.mxu0 %v54
  %1583 = vmatpush1.msra.mxu0 %v53
  %1584 = vmatprep.subr.mxu0 %v58
  %1585 = vmatpush1.msra.mxu0 %v57
  %1586 = vmatprep.subr.mxu0 %v62
  %1587 = vmatpush1.msra.mxu0 %v61
  %1588 = vmatprep.subr.mxu0 %v66
  %1589 = vmatpush1.msra.mxu0 %v65
  %1590 = vmatprep.subr.mxu0 %v70
  %1591 = vmatpush1.msra.mxu0 %v69
  %1592 = vmatprep.subr.mxu0 %v74
  %1593 = vmatpush1.msra.mxu0 %v73
  %1594 = vmatprep.subr.mxu0 %v78
  %1595 = vmatpush1.msra.mxu0 %v77
  %1596 = vmatprep.subr.mxu0 %v82
  %1597 = vmatpush1.msra.mxu0 %v81
  %1598 = vmatprep.subr.mxu0 %v86
  %1599 = vmatpush1.msra.mxu0 %v85
  %1600 = vmatprep.subr.mxu0 %v90
  %1601 = vmatpush1.msra.mxu0 %v89
  %1602 = vmatprep.subr.mxu0 %v94
  %1603 = vmatpush1.msra.mxu0 %v93
  %1604 = vmatprep.subr.mxu0 %v98
  %1605 = vmatpush1.msra.mxu0 %v97
  %1606 = vmatprep.subr.mxu0 0.0
  %1607 = vmatpush1.msra.mxu0 0.0
  %1608 = vmatprep.subr.mxu0 0.0
  %1609 = vmatpush1.msra.mxu0 0.0
  %1610 = vmatprep.subr.mxu0 0.0
  %1611 = vmatpush1.msra.mxu0 0.0
  %1612 = vmatprep.subr.mxu0 0.0
  %1613 = vmatpush1.msra.mxu0 0.0
  %1614 = vmatprep.subr.mxu0 0.0
  %1615 = vmatpush1.msra.mxu0 0.0
  %1616 = vmatprep.subr.mxu0 0.0
  %1617 = vmatpush1.msra.mxu0 0.0
  %1618 = vmatprep.subr.mxu0 0.0
  %1619 = vmatpush1.msra.mxu0 0.0
  %1620 = vmatprep.subr.mxu0 0.0
  %1621 = vmatpush1.msra.mxu0 0.0
  %1622 = vmatprep.subr.mxu0 0.0
  %1623 = vmatpush1.msra.mxu0 0.0
  %1624 = vmatprep.subr.mxu0 0.0
  %1625 = vmatpush1.msra.mxu0 0.0
  %1626 = vmatprep.subr.mxu0 0.0
  %1627 = vmatpush1.msra.mxu0 0.0
  %1628 = vmatprep.subr.mxu0 0.0
  %1629 = vmatpush1.msra.mxu0 0.0
  %1630 = vmatprep.subr.mxu0 0.0
  %1631 = vmatpush1.msra.mxu0 0.0
  %1632 = vmatprep.subr.mxu0 0.0
  %1633 = vmatpush1.msra.mxu0 0.0
  %1634 = vmatprep.subr.mxu0 0.0
  %1635 = vmatpush1.msra.mxu0 0.0
  %1636 = vmatprep.subr.mxu0 0.0
  %1637 = vmatpush1.msra.mxu0 0.0
  %1638 = vmatprep.mubr.f32.mxu0 0.0
  %1639 = vmatmul.mubr.f32.gmra.mrb[0].mxu0 %v1408
  %v1640 = vpop.f32.mrb[0].mxu0
  %v1641 = vadd.f32 0.0, %v1640
  %v1642 = vpop.f32.mrb[0].mxu0
  %v1643 = vadd.f32 0.0, %v1642
  %1644 = vdwg.mxu0
  %1645 = vmatprep.subr.mxu0 %v40
  %1646 = vmatpush1.msra.mxu0 %v39
  %1647 = vmatprep.subr.mxu0 %v44
  %1648 = vmatpush1.msra.mxu0 %v43
  %1649 = vmatprep.subr.mxu0 %v48
  %1650 = vmatpush1.msra.mxu0 %v47
  %1651 = vmatprep.subr.mxu0 %v52
  %1652 = vmatpush1.msra.mxu0 %v51
  %1653 = vmatprep.subr.mxu0 %v56
  %1654 = vmatpush1.msra.mxu0 %v55
  %1655 = vmatprep.subr.mxu0 %v60
  %1656 = vmatpush1.msra.mxu0 %v59
  %1657 = vmatprep.subr.mxu0 %v64
  %1658 = vmatpush1.msra.mxu0 %v63
  %1659 = vmatprep.subr.mxu0 %v68
  %1660 = vmatpush1.msra.mxu0 %v67
  %1661 = vmatprep.subr.mxu0 %v72
  %1662 = vmatpush1.msra.mxu0 %v71
  %1663 = vmatprep.subr.mxu0 %v76
  %1664 = vmatpush1.msra.mxu0 %v75
  %1665 = vmatprep.subr.mxu0 %v80
  %1666 = vmatpush1.msra.mxu0 %v79
  %1667 = vmatprep.subr.mxu0 %v84
  %1668 = vmatpush1.msra.mxu0 %v83
  %1669 = vmatprep.subr.mxu0 %v88
  %1670 = vmatpush1.msra.mxu0 %v87
  %1671 = vmatprep.subr.mxu0 %v92
  %1672 = vmatpush1.msra.mxu0 %v91
  %1673 = vmatprep.subr.mxu0 %v96
  %1674 = vmatpush1.msra.mxu0 %v95
  %1675 = vmatprep.subr.mxu0 %v100
  %1676 = vmatpush1.msra.mxu0 %v99
  %1677 = vmatprep.subr.mxu0 0.0
  %1678 = vmatpush1.msra.mxu0 0.0
  %1679 = vmatprep.subr.mxu0 0.0
  %1680 = vmatpush1.msra.mxu0 0.0
  %1681 = vmatprep.subr.mxu0 0.0
  %1682 = vmatpush1.msra.mxu0 0.0
  %1683 = vmatprep.subr.mxu0 0.0
  %1684 = vmatpush1.msra.mxu0 0.0
  %1685 = vmatprep.subr.mxu0 0.0
  %1686 = vmatpush1.msra.mxu0 0.0
  %1687 = vmatprep.subr.mxu0 0.0
  %1688 = vmatpush1.msra.mxu0 0.0
  %1689 = vmatprep.subr.mxu0 0.0
  %1690 = vmatpush1.msra.mxu0 0.0
  %1691 = vmatprep.subr.mxu0 0.0
  %1692 = vmatpush1.msra.mxu0 0.0
  %1693 = vmatprep.subr.mxu0 0.0
  %1694 = vmatpush1.msra.mxu0 0.0
  %1695 = vmatprep.subr.mxu0 0.0
  %1696 = vmatpush1.msra.mxu0 0.0
  %1697 = vmatprep.subr.mxu0 0.0
  %1698 = vmatpush1.msra.mxu0 0.0
  %1699 = vmatprep.subr.mxu0 0.0
  %1700 = vmatpush1.msra.mxu0 0.0
  %1701 = vmatprep.subr.mxu0 0.0
  %1702 = vmatpush1.msra.mxu0 0.0
  %1703 = vmatprep.subr.mxu0 0.0
  %1704 = vmatpush1.msra.mxu0 0.0
  %1705 = vmatprep.subr.mxu0 0.0
  %1706 = vmatpush1.msra.mxu0 0.0
  %1707 = vmatprep.subr.mxu0 0.0
  %1708 = vmatpush1.msra.mxu0 0.0
  %1709 = vmatprep.mubr.f32.mxu0 0.0
  %1710 = vmatmul.mubr.f32.gmra.mrb[0].mxu0 %v1408
  %v1711 = vpop.f32.mrb[0].mxu0
  %v1712 = vadd.f32 0.0, %v1711
  %v1713 = vpop.f32.mrb[0].mxu0
  %v1714 = vadd.f32 0.0, %v1713
  %1715 = vdwg.mxu0
  %v1716 = vadd.f32 %v1570, %v1641
  %v1717 = vadd.f32 %v1571, %v1643
  %v1718 = vadd.f32 %v1572, %v1712
  %v1719 = vadd.f32 %v1573, %v1714
  %v1720 = vmul.f32 %v1716, 0.5
  %v1721 = vtanh.pop %v1720
  %v1722 = vmul.f32 %v1721, 0.5
  %v1723 = vadd.f32 %v1722, 0.5
  %v1724 = vmul.f32 %v1717, 0.5
  %v1725 = vtanh.pop %v1724
  %v1726 = vmul.f32 %v1725, 0.5
  %v1727 = vadd.f32 %v1726, 0.5
  %v1728 = vtanh.pop %v1718
  %v1729 = vmul.f32 %v1719, 0.5
  %v1730 = vtanh.pop %v1729
  %v1731 = vmul.f32 %v1730, 0.5
  %v1732 = vadd.f32 %v1731, 0.5
  %v1733 = vmul.f32 %v1727, %v1406
  %v1734 = vmul.f32 %v1723, %v1728
  %v1735 = vadd.f32 %v1733, %v1734
  %v1736 = vtanh.pop %v1735
  %v1737 = vmul.f32 %v1732, %v1736
  %1738 = vmatprep.subr.mxu0 %v102
  %1739 = vmatpush1.msra.mxu0 %v101
  %1740 = vmatprep.subr.mxu0 %v106
  %1741 = vmatpush1.msra.mxu0 %v105
  %1742 = vmatprep.subr.mxu0 %v110
  %1743 = vmatpush1.msra.mxu0 %v109
  %1744 = vmatprep.subr.mxu0 %v114
  %1745 = vmatpush1.msra.mxu0 %v113
  %1746 = vmatprep.subr.mxu0 %v118
  %1747 = vmatpush1.msra.mxu0 %v117
  %1748 = vmatprep.subr.mxu0 %v122
  %1749 = vmatpush1.msra.mxu0 %v121
  %1750 = vmatprep.subr.mxu0 %v126
  %1751 = vmatpush1.msra.mxu0 %v125
  %1752 = vmatprep.subr.mxu0 %v130
  %1753 = vmatpush1.msra.mxu0 %v129
  %1754 = vmatprep.subr.mxu0 %v134
  %1755 = vmatpush1.msra.mxu0 %v133
  %1756 = vmatprep.subr.mxu0 %v138
  %1757 = vmatpush1.msra.mxu0 %v137
  %1758 = vmatprep.subr.mxu0 %v142
  %1759 = vmatpush1.msra.mxu0 %v141
  %1760 = vmatprep.subr.mxu0 %v146
  %1761 = vmatpush1.msra.mxu0 %v145
  %1762 = vmatprep.subr.mxu0 %v150
  %1763 = vmatpush1.msra.mxu0 %v149
  %1764 = vmatprep.subr.mxu0 %v154
  %1765 = vmatpush1.msra.mxu0 %v153
  %1766 = vmatprep.subr.mxu0 %v158
  %1767 = vmatpush1.msra.mxu0 %v157
  %1768 = vmatprep.subr.mxu0 %v162
  %1769 = vmatpush1.msra.mxu0 %v161
  %1770 = vmatprep.subr.mxu0 %v166
  %1771 = vmatpush1.msra.mxu0 %v165
  %1772 = vmatprep.subr.mxu0 %v170
  %1773 = vmatpush1.msra.mxu0 %v169
  %1774 = vmatprep.subr.mxu0 %v174
  %1775 = vmatpush1.msra.mxu0 %v173
  %1776 = vmatprep.subr.mxu0 %v178
  %1777 = vmatpush1.msra.mxu0 %v177
  %1778 = vmatprep.subr.mxu0 %v182
  %1779 = vmatpush1.msra.mxu0 %v181
  %1780 = vmatprep.subr.mxu0 %v186
  %1781 = vmatpush1.msra.mxu0 %v185
  %1782 = vmatprep.subr.mxu0 %v190
  %1783 = vmatpush1.msra.mxu0 %v189
  %1784 = vmatprep.subr.mxu0 %v194
  %1785 = vmatpush1.msra.mxu0 %v193
  %1786 = vmatprep.subr.mxu0 %v198
  %1787 = vmatpush1.msra.mxu0 %v197
  %1788 = vmatprep.subr.mxu0 %v202
  %1789 = vmatpush1.msra.mxu0 %v201
  %1790 = vmatprep.subr.mxu0 %v206
  %1791 = vmatpush1.msra.mxu0 %v205
  %1792 = vmatprep.subr.mxu0 %v210
  %1793 = vmatpush1.msra.mxu0 %v209
  %1794 = vmatprep.subr.mxu0 %v214
  %1795 = vmatpush1.msra.mxu0 %v213
  %1796 = vmatprep.subr.mxu0 %v218
  %1797 = vmatpush1.msra.mxu0 %v217
  %1798 = vmatprep.subr.mxu0 %v222
  %1799 = vmatpush1.msra.mxu0 %v221
  %1800 = vmatprep.subr.mxu0 %v226
  %1801 = vmatpush1.msra.mxu0 %v225
  %1802 = vmatprep.mubr.f32.mxu0 %v1568
  %1803 = vmatmul.mubr.f32.gmra.mrb[0].mxu0 %v1737
  %v1804 = vpop.f32.mrb[0].mxu0
  %v1805 = vadd.f32 %v234, %v1804
  %v1806 = vpop.f32.mrb[0].mxu0
  %v1807 = vadd.f32 %v238, %v1806
  %1808 = vdwg.mxu0
  %1809 = vmatprep.subr.mxu0 %v104
  %1810 = vmatpush1.msra.mxu0 %v103
  %1811 = vmatprep.subr.mxu0 %v108
  %1812 = vmatpush1.msra.mxu0 %v107
  %1813 = vmatprep.subr.mxu0 %v112
  %1814 = vmatpush1.msra.mxu0 %v111
  %1815 = vmatprep.subr.mxu0 %v116
  %1816 = vmatpush1.msra.mxu0 %v115
  %1817 = vmatprep.subr.mxu0 %v120
  %1818 = vmatpush1.msra.mxu0 %v119
  %1819 = vmatprep.subr.mxu0 %v124
  %1820 = vmatpush1.msra.mxu0 %v123
  %1821 = vmatprep.subr.mxu0 %v128
  %1822 = vmatpush1.msra.mxu0 %v127
  %1823 = vmatprep.subr.mxu0 %v132
  %1824 = vmatpush1.msra.mxu0 %v131
  %1825 = vmatprep.subr.mxu0 %v136
  %1826 = vmatpush1.msra.mxu0 %v135
  %1827 = vmatprep.subr.mxu0 %v140
  %1828 = vmatpush1.msra.mxu0 %v139
  %1829 = vmatprep.subr.mxu0 %v144
  %1830 = vmatpush1.msra.mxu0 %v143
  %1831 = vmatprep.subr.mxu0 %v148
  %1832 = vmatpush1.msra.mxu0 %v147
  %1833 = vmatprep.subr.mxu0 %v152
  %1834 = vmatpush1.msra.mxu0 %v151
  %1835 = vmatprep.subr.mxu0 %v156
  %1836 = vmatpush1.msra.mxu0 %v155
  %1837 = vmatprep.subr.mxu0 %v160
  %1838 = vmatpush1.msra.mxu0 %v159
  %1839 = vmatprep.subr.mxu0 %v164
  %1840 = vmatpush1.msra.mxu0 %v163
  %1841 = vmatprep.subr.mxu0 %v168
  %1842 = vmatpush1.msra.mxu0 %v167
  %1843 = vmatprep.subr.mxu0 %v172
  %1844 = vmatpush1.msra.mxu0 %v171
  %1845 = vmatprep.subr.mxu0 %v176
  %1846 = vmatpush1.msra.mxu0 %v175
  %1847 = vmatprep.subr.mxu0 %v180
  %1848 = vmatpush1.msra.mxu0 %v179
  %1849 = vmatprep.subr.mxu0 %v184
  %1850 = vmatpush1.msra.mxu0 %v183
  %1851 = vmatprep.subr.mxu0 %v188
  %1852 = vmatpush1.msra.mxu0 %v187
  %1853 = vmatprep.subr.mxu0 %v192
  %1854 = vmatpush1.msra.mxu0 %v191
  %1855 = vmatprep.subr.mxu0 %v196
  %1856 = vmatpush1.msra.mxu0 %v195
  %1857 = vmatprep.subr.mxu0 %v200
  %1858 = vmatpush1.msra.mxu0 %v199
  %1859 = vmatprep.subr.mxu0 %v204
  %1860 = vmatpush1.msra.mxu0 %v203
  %1861 = vmatprep.subr.mxu0 %v208
  %1862 = vmatpush1.msra.mxu0 %v207
  %1863 = vmatprep.subr.mxu0 %v212
  %1864 = vmatpush1.msra.mxu0 %v211
  %1865 = vmatprep.subr.mxu0 %v216
  %1866 = vmatpush1.msra.mxu0 %v215
  %1867 = vmatprep.subr.mxu0 %v220
  %1868 = vmatpush1.msra.mxu0 %v219
  %1869 = vmatprep.subr.mxu0 %v224
  %1870 = vmatpush1.msra.mxu0 %v223
  %1871 = vmatprep.subr.mxu0 %v228
  %1872 = vmatpush1.msra.mxu0 %v227
  %1873 = vmatprep.mubr.f32.mxu0 %v1568
  %1874 = vmatmul.mubr.f32.gmra.mrb[0].mxu0 %v1737
  %v1875 = vpop.f32.mrb[0].mxu0
  %v1876 = vadd.f32 %v242, %v1875
  %v1877 = vpop.f32.mrb[0].mxu0
  %v1878 = vadd.f32 %v246, %v1877
  %1879 = vdwg.mxu0
  %v1880 = vmul.f32 %v1805, 0.5
  %v1881 = vtanh.pop %v1880
  %v1882 = vmul.f32 %v1881, 0.5
  %v1883 = vadd.f32 %v1882, 0.5
  %v1884 = vmul.f32 %v1807, 0.5
  %v1885 = vtanh.pop %v1884
  %v1886 = vmul.f32 %v1885, 0.5
  %v1887 = vadd.f32 %v1886, 0.5
  %v1888 = vtanh.pop %v1876
  %v1889 = vmul.f32 %v1878, 0.5
  %v1890 = vtanh.pop %v1889
  %v1891 = vmul.f32 %v1890, 0.5
  %v1892 = vadd.f32 %v1891, 0.5
  %v1893 = vmul.f32 %v1887, %v1566
  %v1894 = vmul.f32 %v1883, %v1888
  %v1895 = vadd.f32 %v1893, %v1894
  %v1896 = vtanh.pop %v1895
  %v1897 = vmul.f32 %v1892, %v1896
  %s1898 = scalar_lea.vmem [#allocation6], 128
  %v1899 = vld [vmem:[%s1898] sm:$0xff]
  %v1900 = vld [vmem:[%s1898 + $0x8] sm:$0xff]
  %v1901 = vld [vmem:[%s1898 + $0x10] sm:$0xff]
  %v1902 = vld [vmem:[%s1898 + $0x18] sm:$0xff]
  %1903 = vmatprep.subr.mxu0 %v38
  %1904 = vmatpush1.msra.mxu0 %v37
  %1905 = vmatprep.subr.mxu0 %v42
  %1906 = vmatpush1.msra.mxu0 %v41
  %1907 = vmatprep.subr.mxu0 %v46
  %1908 = vmatpush1.msra.mxu0 %v45
  %1909 = vmatprep.subr.mxu0 %v50
  %1910 = vmatpush1.msra.mxu0 %v49
  %1911 = vmatprep.subr.mxu0 %v54
  %1912 = vmatpush1.msra.mxu0 %v53
  %1913 = vmatprep.subr.mxu0 %v58
  %1914 = vmatpush1.msra.mxu0 %v57
  %1915 = vmatprep.subr.mxu0 %v62
  %1916 = vmatpush1.msra.mxu0 %v61
  %1917 = vmatprep.subr.mxu0 %v66
  %1918 = vmatpush1.msra.mxu0 %v65
  %1919 = vmatprep.subr.mxu0 %v70
  %1920 = vmatpush1.msra.mxu0 %v69
  %1921 = vmatprep.subr.mxu0 %v74
  %1922 = vmatpush1.msra.mxu0 %v73
  %1923 = vmatprep.subr.mxu0 %v78
  %1924 = vmatpush1.msra.mxu0 %v77
  %1925 = vmatprep.subr.mxu0 %v82
  %1926 = vmatpush1.msra.mxu0 %v81
  %1927 = vmatprep.subr.mxu0 %v86
  %1928 = vmatpush1.msra.mxu0 %v85
  %1929 = vmatprep.subr.mxu0 %v90
  %1930 = vmatpush1.msra.mxu0 %v89
  %1931 = vmatprep.subr.mxu0 %v94
  %1932 = vmatpush1.msra.mxu0 %v93
  %1933 = vmatprep.subr.mxu0 %v98
  %1934 = vmatpush1.msra.mxu0 %v97
  %1935 = vmatprep.subr.mxu0 0.0
  %1936 = vmatpush1.msra.mxu0 0.0
  %1937 = vmatprep.subr.mxu0 0.0
  %1938 = vmatpush1.msra.mxu0 0.0
  %1939 = vmatprep.subr.mxu0 0.0
  %1940 = vmatpush1.msra.mxu0 0.0
  %1941 = vmatprep.subr.mxu0 0.0
  %1942 = vmatpush1.msra.mxu0 0.0
  %1943 = vmatprep.subr.mxu0 0.0
  %1944 = vmatpush1.msra.mxu0 0.0
  %1945 = vmatprep.subr.mxu0 0.0
  %1946 = vmatpush1.msra.mxu0 0.0
  %1947 = vmatprep.subr.mxu0 0.0
  %1948 = vmatpush1.msra.mxu0 0.0
  %1949 = vmatprep.subr.mxu0 0.0
  %1950 = vmatpush1.msra.mxu0 0.0
  %1951 = vmatprep.subr.mxu0 0.0
  %1952 = vmatpush1.msra.mxu0 0.0
  %1953 = vmatprep.subr.mxu0 0.0
  %1954 = vmatpush1.msra.mxu0 0.0
  %1955 = vmatprep.subr.mxu0 0.0
  %1956 = vmatpush1.msra.mxu0 0.0
  %1957 = vmatprep.subr.mxu0 0.0
  %1958 = vmatpush1.msra.mxu0 0.0
  %1959 = vmatprep.subr.mxu0 0.0
  %1960 = vmatpush1.msra.mxu0 0.0
  %1961 = vmatprep.subr.mxu0 0.0
  %1962 = vmatpush1.msra.mxu0 0.0
  %1963 = vmatprep.subr.mxu0 0.0
  %1964 = vmatpush1.msra.mxu0 0.0
  %1965 = vmatprep.subr.mxu0 0.0
  %1966 = vmatpush1.msra.mxu0 0.0
  %1967 = vmatprep.mubr.f32.mxu0 0.0
  %1968 = vmatmul.mubr.f32.gmra.mrb[0].mxu0 %v1737
  %v1969 = vpop.f32.mrb[0].mxu0
  %v1970 = vadd.f32 0.0, %v1969
  %v1971 = vpop.f32.mrb[0].mxu0
  %v1972 = vadd.f32 0.0, %v1971
  %1973 = vdwg.mxu0
  %1974 = vmatprep.subr.mxu0 %v40
  %1975 = vmatpush1.msra.mxu0 %v39
  %1976 = vmatprep.subr.mxu0 %v44
  %1977 = vmatpush1.msra.mxu0 %v43
  %1978 = vmatprep.subr.mxu0 %v48
  %1979 = vmatpush1.msra.mxu0 %v47
  %1980 = vmatprep.subr.mxu0 %v52
  %1981 = vmatpush1.msra.mxu0 %v51
  %1982 = vmatprep.subr.mxu0 %v56
  %1983 = vmatpush1.msra.mxu0 %v55
  %1984 = vmatprep.subr.mxu0 %v60
  %1985 = vmatpush1.msra.mxu0 %v59
  %1986 = vmatprep.subr.mxu0 %v64
  %1987 = vmatpush1.msra.mxu0 %v63
  %1988 = vmatprep.subr.mxu0 %v68
  %1989 = vmatpush1.msra.mxu0 %v67
  %1990 = vmatprep.subr.mxu0 %v72
  %1991 = vmatpush1.msra.mxu0 %v71
  %1992 = vmatprep.subr.mxu0 %v76
  %1993 = vmatpush1.msra.mxu0 %v75
  %1994 = vmatprep.subr.mxu0 %v80
  %1995 = vmatpush1.msra.mxu0 %v79
  %1996 = vmatprep.subr.mxu0 %v84
  %1997 = vmatpush1.msra.mxu0 %v83
  %1998 = vmatprep.subr.mxu0 %v88
  %1999 = vmatpush1.msra.mxu0 %v87
  %2000 = vmatprep.subr.mxu0 %v92
  %2001 = vmatpush1.msra.mxu0 %v91
  %2002 = vmatprep.subr.mxu0 %v96
  %2003 = vmatpush1.msra.mxu0 %v95
  %2004 = vmatprep.subr.mxu0 %v100
  %2005 = vmatpush1.msra.mxu0 %v99
  %2006 = vmatprep.subr.mxu0 0.0
  %2007 = vmatpush1.msra.mxu0 0.0
  %2008 = vmatprep.subr.mxu0 0.0
  %2009 = vmatpush1.msra.mxu0 0.0
  %2010 = vmatprep.subr.mxu0 0.0
  %2011 = vmatpush1.msra.mxu0 0.0
  %2012 = vmatprep.subr.mxu0 0.0
  %2013 = vmatpush1.msra.mxu0 0.0
  %2014 = vmatprep.subr.mxu0 0.0
  %2015 = vmatpush1.msra.mxu0 0.0
  %2016 = vmatprep.subr.mxu0 0.0
  %2017 = vmatpush1.msra.mxu0 0.0
  %2018 = vmatprep.subr.mxu0 0.0
  %2019 = vmatpush1.msra.mxu0 0.0
  %2020 = vmatprep.subr.mxu0 0.0
  %2021 = vmatpush1.msra.mxu0 0.0
  %2022 = vmatprep.subr.mxu0 0.0
  %2023 = vmatpush1.msra.mxu0 0.0
  %2024 = vmatprep.subr.mxu0 0.0
  %2025 = vmatpush1.msra.mxu0 0.0
  %2026 = vmatprep.subr.mxu0 0.0
  %2027 = vmatpush1.msra.mxu0 0.0
  %2028 = vmatprep.subr.mxu0 0.0
  %2029 = vmatpush1.msra.mxu0 0.0
  %2030 = vmatprep.subr.mxu0 0.0
  %2031 = vmatpush1.msra.mxu0 0.0
  %2032 = vmatprep.subr.mxu0 0.0
  %2033 = vmatpush1.msra.mxu0 0.0
  %2034 = vmatprep.subr.mxu0 0.0
  %2035 = vmatpush1.msra.mxu0 0.0
  %2036 = vmatprep.subr.mxu0 0.0
  %2037 = vmatpush1.msra.mxu0 0.0
  %2038 = vmatprep.mubr.f32.mxu0 0.0
  %2039 = vmatmul.mubr.f32.gmra.mrb[0].mxu0 %v1737
  %v2040 = vpop.f32.mrb[0].mxu0
  %v2041 = vadd.f32 0.0, %v2040
  %v2042 = vpop.f32.mrb[0].mxu0
  %v2043 = vadd.f32 0.0, %v2042
  %2044 = vdwg.mxu0
  %v2045 = vadd.f32 %v1899, %v1970
  %v2046 = vadd.f32 %v1900, %v1972
  %v2047 = vadd.f32 %v1901, %v2041
  %v2048 = vadd.f32 %v1902, %v2043
  %v2049 = vmul.f32 %v2045, 0.5
  %v2050 = vtanh.pop %v2049
  %v2051 = vmul.f32 %v2050, 0.5
  %v2052 = vadd.f32 %v2051, 0.5
  %v2053 = vmul.f32 %v2046, 0.5
  %v2054 = vtanh.pop %v2053
  %v2055 = vmul.f32 %v2054, 0.5
  %v2056 = vadd.f32 %v2055, 0.5
  %v2057 = vtanh.pop %v2047
  %v2058 = vmul.f32 %v2048, 0.5
  %v2059 = vtanh.pop %v2058
  %v2060 = vmul.f32 %v2059, 0.5
  %v2061 = vadd.f32 %v2060, 0.5
  %v2062 = vmul.f32 %v2056, %v1735
  %v2063 = vmul.f32 %v2052, %v2057
  %v2064 = vadd.f32 %v2062, %v2063
  %v2065 = vtanh.pop %v2064
  %v2066 = vmul.f32 %v2061, %v2065
  %2067 = vmatprep.subr.mxu0 %v102
  %2068 = vmatpush1.msra.mxu0 %v101
  %2069 = vmatprep.subr.mxu0 %v106
  %2070 = vmatpush1.msra.mxu0 %v105
  %2071 = vmatprep.subr.mxu0 %v110
  %2072 = vmatpush1.msra.mxu0 %v109
  %2073 = vmatprep.subr.mxu0 %v114
  %2074 = vmatpush1.msra.mxu0 %v113
  %2075 = vmatprep.subr.mxu0 %v118
  %2076 = vmatpush1.msra.mxu0 %v117
  %2077 = vmatprep.subr.mxu0 %v122
  %2078 = vmatpush1.msra.mxu0 %v121
  %2079 = vmatprep.subr.mxu0 %v126
  %2080 = vmatpush1.msra.mxu0 %v125
  %2081 = vmatprep.subr.mxu0 %v130
  %2082 = vmatpush1.msra.mxu0 %v129
  %2083 = vmatprep.subr.mxu0 %v134
  %2084 = vmatpush1.msra.mxu0 %v133
  %2085 = vmatprep.subr.mxu0 %v138
  %2086 = vmatpush1.msra.mxu0 %v137
  %2087 = vmatprep.subr.mxu0 %v142
  %2088 = vmatpush1.msra.mxu0 %v141
  %2089 = vmatprep.subr.mxu0 %v146
  %2090 = vmatpush1.msra.mxu0 %v145
  %2091 = vmatprep.subr.mxu0 %v150
  %2092 = vmatpush1.msra.mxu0 %v149
  %2093 = vmatprep.subr.mxu0 %v154
  %2094 = vmatpush1.msra.mxu0 %v153
  %2095 = vmatprep.subr.mxu0 %v158
  %2096 = vmatpush1.msra.mxu0 %v157
  %2097 = vmatprep.subr.mxu0 %v162
  %2098 = vmatpush1.msra.mxu0 %v161
  %2099 = vmatprep.subr.mxu0 %v166
  %2100 = vmatpush1.msra.mxu0 %v165
  %2101 = vmatprep.subr.mxu0 %v170
  %2102 = vmatpush1.msra.mxu0 %v169
  %2103 = vmatprep.subr.mxu0 %v174
  %2104 = vmatpush1.msra.mxu0 %v173
  %2105 = vmatprep.subr.mxu0 %v178
  %2106 = vmatpush1.msra.mxu0 %v177
  %2107 = vmatprep.subr.mxu0 %v182
  %2108 = vmatpush1.msra.mxu0 %v181
  %2109 = vmatprep.subr.mxu0 %v186
  %2110 = vmatpush1.msra.mxu0 %v185
  %2111 = vmatprep.subr.mxu0 %v190
  %2112 = vmatpush1.msra.mxu0 %v189
  %2113 = vmatprep.subr.mxu0 %v194
  %2114 = vmatpush1.msra.mxu0 %v193
  %2115 = vmatprep.subr.mxu0 %v198
  %2116 = vmatpush1.msra.mxu0 %v197
  %2117 = vmatprep.subr.mxu0 %v202
  %2118 = vmatpush1.msra.mxu0 %v201
  %2119 = vmatprep.subr.mxu0 %v206
  %2120 = vmatpush1.msra.mxu0 %v205
  %2121 = vmatprep.subr.mxu0 %v210
  %2122 = vmatpush1.msra.mxu0 %v209
  %2123 = vmatprep.subr.mxu0 %v214
  %2124 = vmatpush1.msra.mxu0 %v213
  %2125 = vmatprep.subr.mxu0 %v218
  %2126 = vmatpush1.msra.mxu0 %v217
  %2127 = vmatprep.subr.mxu0 %v222
  %2128 = vmatpush1.msra.mxu0 %v221
  %2129 = vmatprep.subr.mxu0 %v226
  %2130 = vmatpush1.msra.mxu0 %v225
  %2131 = vmatprep.mubr.f32.mxu0 %v1897
  %2132 = vmatmul.mubr.f32.gmra.mrb[0].mxu0 %v2066
  %v2133 = vpop.f32.mrb[0].mxu0
  %v2134 = vadd.f32 %v234, %v2133
  %v2135 = vpop.f32.mrb[0].mxu0
  %v2136 = vadd.f32 %v238, %v2135
  %2137 = vdwg.mxu0
  %2138 = vmatprep.subr.mxu0 %v104
  %2139 = vmatpush1.msra.mxu0 %v103
  %2140 = vmatprep.subr.mxu0 %v108
  %2141 = vmatpush1.msra.mxu0 %v107
  %2142 = vmatprep.subr.mxu0 %v112
  %2143 = vmatpush1.msra.mxu0 %v111
  %2144 = vmatprep.subr.mxu0 %v116
  %2145 = vmatpush1.msra.mxu0 %v115
  %2146 = vmatprep.subr.mxu0 %v120
  %2147 = vmatpush1.msra.mxu0 %v119
  %2148 = vmatprep.subr.mxu0 %v124
  %2149 = vmatpush1.msra.mxu0 %v123
  %2150 = vmatprep.subr.mxu0 %v128
  %2151 = vmatpush1.msra.mxu0 %v127
  %2152 = vmatprep.subr.mxu0 %v132
  %2153 = vmatpush1.msra.mxu0 %v131
  %2154 = vmatprep.subr.mxu0 %v136
  %2155 = vmatpush1.msra.mxu0 %v135
  %2156 = vmatprep.subr.mxu0 %v140
  %2157 = vmatpush1.msra.mxu0 %v139
  %2158 = vmatprep.subr.mxu0 %v144
  %2159 = vmatpush1.msra.mxu0 %v143
  %2160 = vmatprep.subr.mxu0 %v148
  %2161 = vmatpush1.msra.mxu0 %v147
  %2162 = vmatprep.subr.mxu0 %v152
  %2163 = vmatpush1.msra.mxu0 %v151
  %2164 = vmatprep.subr.mxu0 %v156
  %2165 = vmatpush1.msra.mxu0 %v155
  %2166 = vmatprep.subr.mxu0 %v160
  %2167 = vmatpush1.msra.mxu0 %v159
  %2168 = vmatprep.subr.mxu0 %v164
  %2169 = vmatpush1.msra.mxu0 %v163
  %2170 = vmatprep.subr.mxu0 %v168
  %2171 = vmatpush1.msra.mxu0 %v167
  %2172 = vmatprep.subr.mxu0 %v172
  %2173 = vmatpush1.msra.mxu0 %v171
  %2174 = vmatprep.subr.mxu0 %v176
  %2175 = vmatpush1.msra.mxu0 %v175
  %2176 = vmatprep.subr.mxu0 %v180
  %2177 = vmatpush1.msra.mxu0 %v179
  %2178 = vmatprep.subr.mxu0 %v184
  %2179 = vmatpush1.msra.mxu0 %v183
  %2180 = vmatprep.subr.mxu0 %v188
  %2181 = vmatpush1.msra.mxu0 %v187
  %2182 = vmatprep.subr.mxu0 %v192
  %2183 = vmatpush1.msra.mxu0 %v191
  %2184 = vmatprep.subr.mxu0 %v196
  %2185 = vmatpush1.msra.mxu0 %v195
  %2186 = vmatprep.subr.mxu0 %v200
  %2187 = vmatpush1.msra.mxu0 %v199
  %2188 = vmatprep.subr.mxu0 %v204
  %2189 = vmatpush1.msra.mxu0 %v203
  %2190 = vmatprep.subr.mxu0 %v208
  %2191 = vmatpush1.msra.mxu0 %v207
  %2192 = vmatprep.subr.mxu0 %v212
  %2193 = vmatpush1.msra.mxu0 %v211
  %2194 = vmatprep.subr.mxu0 %v216
  %2195 = vmatpush1.msra.mxu0 %v215
  %2196 = vmatprep.subr.mxu0 %v220
  %2197 = vmatpush1.msra.mxu0 %v219
  %2198 = vmatprep.subr.mxu0 %v224
  %2199 = vmatpush1.msra.mxu0 %v223
  %2200 = vmatprep.subr.mxu0 %v228
  %2201 = vmatpush1.msra.mxu0 %v227
  %2202 = vmatprep.mubr.f32.mxu0 %v1897
  %2203 = vmatmul.mubr.f32.gmra.mrb[0].mxu0 %v2066
  %v2204 = vpop.f32.mrb[0].mxu0
  %v2205 = vadd.f32 %v242, %v2204
  %v2206 = vpop.f32.mrb[0].mxu0
  %v2207 = vadd.f32 %v246, %v2206
  %2208 = vdwg.mxu0
  %v2209 = vmul.f32 %v2134, 0.5
  %v2210 = vtanh.pop %v2209
  %v2211 = vmul.f32 %v2210, 0.5
  %v2212 = vadd.f32 %v2211, 0.5
  %v2213 = vmul.f32 %v2136, 0.5
  %v2214 = vtanh.pop %v2213
  %v2215 = vmul.f32 %v2214, 0.5
  %v2216 = vadd.f32 %v2215, 0.5
  %v2217 = vtanh.pop %v2205
  %v2218 = vmul.f32 %v2207, 0.5
  %v2219 = vtanh.pop %v2218
  %v2220 = vmul.f32 %v2219, 0.5
  %v2221 = vadd.f32 %v2220, 0.5
  %v2222 = vmul.f32 %v2216, %v1895
  %v2223 = vmul.f32 %v2212, %v2217
  %v2224 = vadd.f32 %v2222, %v2223
  %v2225 = vtanh.pop %v2224
  %v2226 = vmul.f32 %v2221, %v2225
  %s2227 = scalar_lea.vmem [#allocation6], 160
  %v2228 = vld [vmem:[%s2227] sm:$0xff]
  %v2229 = vld [vmem:[%s2227 + $0x8] sm:$0xff]
  %v2230 = vld [vmem:[%s2227 + $0x10] sm:$0xff]
  %v2231 = vld [vmem:[%s2227 + $0x18] sm:$0xff]
  %2232 = vmatprep.subr.mxu0 %v38
  %2233 = vmatpush1.msra.mxu0 %v37
  %2234 = vmatprep.subr.mxu0 %v42
  %2235 = vmatpush1.msra.mxu0 %v41
  %2236 = vmatprep.subr.mxu0 %v46
  %2237 = vmatpush1.msra.mxu0 %v45
  %2238 = vmatprep.subr.mxu0 %v50
  %2239 = vmatpush1.msra.mxu0 %v49
  %2240 = vmatprep.subr.mxu0 %v54
  %2241 = vmatpush1.msra.mxu0 %v53
  %2242 = vmatprep.subr.mxu0 %v58
  %2243 = vmatpush1.msra.mxu0 %v57
  %2244 = vmatprep.subr.mxu0 %v62
  %2245 = vmatpush1.msra.mxu0 %v61
  %2246 = vmatprep.subr.mxu0 %v66
  %2247 = vmatpush1.msra.mxu0 %v65
  %2248 = vmatprep.subr.mxu0 %v70
  %2249 = vmatpush1.msra.mxu0 %v69
  %2250 = vmatprep.subr.mxu0 %v74
  %2251 = vmatpush1.msra.mxu0 %v73
  %2252 = vmatprep.subr.mxu0 %v78
  %2253 = vmatpush1.msra.mxu0 %v77
  %2254 = vmatprep.subr.mxu0 %v82
  %2255 = vmatpush1.msra.mxu0 %v81
  %2256 = vmatprep.subr.mxu0 %v86
  %2257 = vmatpush1.msra.mxu0 %v85
  %2258 = vmatprep.subr.mxu0 %v90
  %2259 = vmatpush1.msra.mxu0 %v89
  %2260 = vmatprep.subr.mxu0 %v94
  %2261 = vmatpush1.msra.mxu0 %v93
  %2262 = vmatprep.subr.mxu0 %v98
  %2263 = vmatpush1.msra.mxu0 %v97
  %2264 = vmatprep.subr.mxu0 0.0
  %2265 = vmatpush1.msra.mxu0 0.0
  %2266 = vmatprep.subr.mxu0 0.0
  %2267 = vmatpush1.msra.mxu0 0.0
  %2268 = vmatprep.subr.mxu0 0.0
  %2269 = vmatpush1.msra.mxu0 0.0
  %2270 = vmatprep.subr.mxu0 0.0
  %2271 = vmatpush1.msra.mxu0 0.0
  %2272 = vmatprep.subr.mxu0 0.0
  %2273 = vmatpush1.msra.mxu0 0.0
  %2274 = vmatprep.subr.mxu0 0.0
  %2275 = vmatpush1.msra.mxu0 0.0
  %2276 = vmatprep.subr.mxu0 0.0
  %2277 = vmatpush1.msra.mxu0 0.0
  %2278 = vmatprep.subr.mxu0 0.0
  %2279 = vmatpush1.msra.mxu0 0.0
  %2280 = vmatprep.subr.mxu0 0.0
  %2281 = vmatpush1.msra.mxu0 0.0
  %2282 = vmatprep.subr.mxu0 0.0
  %2283 = vmatpush1.msra.mxu0 0.0
  %2284 = vmatprep.subr.mxu0 0.0
  %2285 = vmatpush1.msra.mxu0 0.0
  %2286 = vmatprep.subr.mxu0 0.0
  %2287 = vmatpush1.msra.mxu0 0.0
  %2288 = vmatprep.subr.mxu0 0.0
  %2289 = vmatpush1.msra.mxu0 0.0
  %2290 = vmatprep.subr.mxu0 0.0
  %2291 = vmatpush1.msra.mxu0 0.0
  %2292 = vmatprep.subr.mxu0 0.0
  %2293 = vmatpush1.msra.mxu0 0.0
  %2294 = vmatprep.subr.mxu0 0.0
  %2295 = vmatpush1.msra.mxu0 0.0
  %2296 = vmatprep.mubr.f32.mxu0 0.0
  %2297 = vmatmul.mubr.f32.gmra.mrb[0].mxu0 %v2066
  %v2298 = vpop.f32.mrb[0].mxu0
  %v2299 = vadd.f32 0.0, %v2298
  %v2300 = vpop.f32.mrb[0].mxu0
  %v2301 = vadd.f32 0.0, %v2300
  %2302 = vdwg.mxu0
  %2303 = vmatprep.subr.mxu0 %v40
  %2304 = vmatpush1.msra.mxu0 %v39
  %2305 = vmatprep.subr.mxu0 %v44
  %2306 = vmatpush1.msra.mxu0 %v43
  %2307 = vmatprep.subr.mxu0 %v48
  %2308 = vmatpush1.msra.mxu0 %v47
  %2309 = vmatprep.subr.mxu0 %v52
  %2310 = vmatpush1.msra.mxu0 %v51
  %2311 = vmatprep.subr.mxu0 %v56
  %2312 = vmatpush1.msra.mxu0 %v55
  %2313 = vmatprep.subr.mxu0 %v60
  %2314 = vmatpush1.msra.mxu0 %v59
  %2315 = vmatprep.subr.mxu0 %v64
  %2316 = vmatpush1.msra.mxu0 %v63
  %2317 = vmatprep.subr.mxu0 %v68
  %2318 = vmatpush1.msra.mxu0 %v67
  %2319 = vmatprep.subr.mxu0 %v72
  %2320 = vmatpush1.msra.mxu0 %v71
  %2321 = vmatprep.subr.mxu0 %v76
  %2322 = vmatpush1.msra.mxu0 %v75
  %2323 = vmatprep.subr.mxu0 %v80
  %2324 = vmatpush1.msra.mxu0 %v79
  %2325 = vmatprep.subr.mxu0 %v84
  %2326 = vmatpush1.msra.mxu0 %v83
  %2327 = vmatprep.subr.mxu0 %v88
  %2328 = vmatpush1.msra.mxu0 %v87
  %2329 = vmatprep.subr.mxu0 %v92
  %2330 = vmatpush1.msra.mxu0 %v91
  %2331 = vmatprep.subr.mxu0 %v96
  %2332 = vmatpush1.msra.mxu0 %v95
  %2333 = vmatprep.subr.mxu0 %v100
  %2334 = vmatpush1.msra.mxu0 %v99
  %2335 = vmatprep.subr.mxu0 0.0
  %2336 = vmatpush1.msra.mxu0 0.0
  %2337 = vmatprep.subr.mxu0 0.0
  %2338 = vmatpush1.msra.mxu0 0.0
  %2339 = vmatprep.subr.mxu0 0.0
  %2340 = vmatpush1.msra.mxu0 0.0
  %2341 = vmatprep.subr.mxu0 0.0
  %2342 = vmatpush1.msra.mxu0 0.0
  %2343 = vmatprep.subr.mxu0 0.0
  %2344 = vmatpush1.msra.mxu0 0.0
  %2345 = vmatprep.subr.mxu0 0.0
  %2346 = vmatpush1.msra.mxu0 0.0
  %2347 = vmatprep.subr.mxu0 0.0
  %2348 = vmatpush1.msra.mxu0 0.0
  %2349 = vmatprep.subr.mxu0 0.0
  %2350 = vmatpush1.msra.mxu0 0.0
  %2351 = vmatprep.subr.mxu0 0.0
  %2352 = vmatpush1.msra.mxu0 0.0
  %2353 = vmatprep.subr.mxu0 0.0
  %2354 = vmatpush1.msra.mxu0 0.0
  %2355 = vmatprep.subr.mxu0 0.0
  %2356 = vmatpush1.msra.mxu0 0.0
  %2357 = vmatprep.subr.mxu0 0.0
  %2358 = vmatpush1.msra.mxu0 0.0
  %2359 = vmatprep.subr.mxu0 0.0
  %2360 = vmatpush1.msra.mxu0 0.0
  %2361 = vmatprep.subr.mxu0 0.0
  %2362 = vmatpush1.msra.mxu0 0.0
  %2363 = vmatprep.subr.mxu0 0.0
  %2364 = vmatpush1.msra.mxu0 0.0
  %2365 = vmatprep.subr.mxu0 0.0
  %2366 = vmatpush1.msra.mxu0 0.0
  %2367 = vmatprep.mubr.f32.mxu0 0.0
  %2368 = vmatmul.mubr.f32.gmra.mrb[0].mxu0 %v2066
  %v2369 = vpop.f32.mrb[0].mxu0
  %v2370 = vadd.f32 0.0, %v2369
  %v2371 = vpop.f32.mrb[0].mxu0
  %v2372 = vadd.f32 0.0, %v2371
  %2373 = vdwg.mxu0
  %v2374 = vadd.f32 %v2228, %v2299
  %v2375 = vadd.f32 %v2229, %v2301
  %v2376 = vadd.f32 %v2230, %v2370
  %v2377 = vadd.f32 %v2231, %v2372
  %v2378 = vmul.f32 %v2374, 0.5
  %v2379 = vtanh.pop %v2378
  %v2380 = vmul.f32 %v2379, 0.5
  %v2381 = vadd.f32 %v2380, 0.5
  %v2382 = vmul.f32 %v2375, 0.5
  %v2383 = vtanh.pop %v2382
  %v2384 = vmul.f32 %v2383, 0.5
  %v2385 = vadd.f32 %v2384, 0.5
  %v2386 = vtanh.pop %v2376
  %v2387 = vmul.f32 %v2377, 0.5
  %v2388 = vtanh.pop %v2387
  %v2389 = vmul.f32 %v2388, 0.5
  %v2390 = vadd.f32 %v2389, 0.5
  %v2391 = vmul.f32 %v2385, %v2064
  %v2392 = vmul.f32 %v2381, %v2386
  %v2393 = vadd.f32 %v2391, %v2392
  %v2394 = vtanh.pop %v2393
  %v2395 = vmul.f32 %v2390, %v2394
  %2396 = vmatprep.subr.mxu0 %v102
  %2397 = vmatpush1.msra.mxu0 %v101
  %2398 = vmatprep.subr.mxu0 %v106
  %2399 = vmatpush1.msra.mxu0 %v105
  %2400 = vmatprep.subr.mxu0 %v110
  %2401 = vmatpush1.msra.mxu0 %v109
  %2402 = vmatprep.subr.mxu0 %v114
  %2403 = vmatpush1.msra.mxu0 %v113
  %2404 = vmatprep.subr.mxu0 %v118
  %2405 = vmatpush1.msra.mxu0 %v117
  %2406 = vmatprep.subr.mxu0 %v122
  %2407 = vmatpush1.msra.mxu0 %v121
  %2408 = vmatprep.subr.mxu0 %v126
  %2409 = vmatpush1.msra.mxu0 %v125
  %2410 = vmatprep.subr.mxu0 %v130
  %2411 = vmatpush1.msra.mxu0 %v129
  %2412 = vmatprep.subr.mxu0 %v134
  %2413 = vmatpush1.msra.mxu0 %v133
  %2414 = vmatprep.subr.mxu0 %v138
  %2415 = vmatpush1.msra.mxu0 %v137
  %2416 = vmatprep.subr.mxu0 %v142
  %2417 = vmatpush1.msra.mxu0 %v141
  %2418 = vmatprep.subr.mxu0 %v146
  %2419 = vmatpush1.msra.mxu0 %v145
  %2420 = vmatprep.subr.mxu0 %v150
  %2421 = vmatpush1.msra.mxu0 %v149
  %2422 = vmatprep.subr.mxu0 %v154
  %2423 = vmatpush1.msra.mxu0 %v153
  %2424 = vmatprep.subr.mxu0 %v158
  %2425 = vmatpush1.msra.mxu0 %v157
  %2426 = vmatprep.subr.mxu0 %v162
  %2427 = vmatpush1.msra.mxu0 %v161
  %2428 = vmatprep.subr.mxu0 %v166
  %2429 = vmatpush1.msra.mxu0 %v165
  %2430 = vmatprep.subr.mxu0 %v170
  %2431 = vmatpush1.msra.mxu0 %v169
  %2432 = vmatprep.subr.mxu0 %v174
  %2433 = vmatpush1.msra.mxu0 %v173
  %2434 = vmatprep.subr.mxu0 %v178
  %2435 = vmatpush1.msra.mxu0 %v177
  %2436 = vmatprep.subr.mxu0 %v182
  %2437 = vmatpush1.msra.mxu0 %v181
  %2438 = vmatprep.subr.mxu0 %v186
  %2439 = vmatpush1.msra.mxu0 %v185
  %2440 = vmatprep.subr.mxu0 %v190
  %2441 = vmatpush1.msra.mxu0 %v189
  %2442 = vmatprep.subr.mxu0 %v194
  %2443 = vmatpush1.msra.mxu0 %v193
  %2444 = vmatprep.subr.mxu0 %v198
  %2445 = vmatpush1.msra.mxu0 %v197
  %2446 = vmatprep.subr.mxu0 %v202
  %2447 = vmatpush1.msra.mxu0 %v201
  %2448 = vmatprep.subr.mxu0 %v206
  %2449 = vmatpush1.msra.mxu0 %v205
  %2450 = vmatprep.subr.mxu0 %v210
  %2451 = vmatpush1.msra.mxu0 %v209
  %2452 = vmatprep.subr.mxu0 %v214
  %2453 = vmatpush1.msra.mxu0 %v213
  %2454 = vmatprep.subr.mxu0 %v218
  %2455 = vmatpush1.msra.mxu0 %v217
  %2456 = vmatprep.subr.mxu0 %v222
  %2457 = vmatpush1.msra.mxu0 %v221
  %2458 = vmatprep.subr.mxu0 %v226
  %2459 = vmatpush1.msra.mxu0 %v225
  %2460 = vmatprep.mubr.f32.mxu0 %v2226
  %2461 = vmatmul.mubr.f32.gmra.mrb[0].mxu0 %v2395
  %v2462 = vpop.f32.mrb[0].mxu0
  %v2463 = vadd.f32 %v234, %v2462
  %v2464 = vpop.f32.mrb[0].mxu0
  %v2465 = vadd.f32 %v238, %v2464
  %2466 = vdwg.mxu0
  %2467 = vmatprep.subr.mxu0 %v104
  %2468 = vmatpush1.msra.mxu0 %v103
  %2469 = vmatprep.subr.mxu0 %v108
  %2470 = vmatpush1.msra.mxu0 %v107
  %2471 = vmatprep.subr.mxu0 %v112
  %2472 = vmatpush1.msra.mxu0 %v111
  %2473 = vmatprep.subr.mxu0 %v116
  %2474 = vmatpush1.msra.mxu0 %v115
  %2475 = vmatprep.subr.mxu0 %v120
  %2476 = vmatpush1.msra.mxu0 %v119
  %2477 = vmatprep.subr.mxu0 %v124
  %2478 = vmatpush1.msra.mxu0 %v123
  %2479 = vmatprep.subr.mxu0 %v128
  %2480 = vmatpush1.msra.mxu0 %v127
  %2481 = vmatprep.subr.mxu0 %v132
  %2482 = vmatpush1.msra.mxu0 %v131
  %2483 = vmatprep.subr.mxu0 %v136
  %2484 = vmatpush1.msra.mxu0 %v135
  %2485 = vmatprep.subr.mxu0 %v140
  %2486 = vmatpush1.msra.mxu0 %v139
  %2487 = vmatprep.subr.mxu0 %v144
  %2488 = vmatpush1.msra.mxu0 %v143
  %2489 = vmatprep.subr.mxu0 %v148
  %2490 = vmatpush1.msra.mxu0 %v147
  %2491 = vmatprep.subr.mxu0 %v152
  %2492 = vmatpush1.msra.mxu0 %v151
  %2493 = vmatprep.subr.mxu0 %v156
  %2494 = vmatpush1.msra.mxu0 %v155
  %2495 = vmatprep.subr.mxu0 %v160
  %2496 = vmatpush1.msra.mxu0 %v159
  %2497 = vmatprep.subr.mxu0 %v164
  %2498 = vmatpush1.msra.mxu0 %v163
  %2499 = vmatprep.subr.mxu0 %v168
  %2500 = vmatpush1.msra.mxu0 %v167
  %2501 = vmatprep.subr.mxu0 %v172
  %2502 = vmatpush1.msra.mxu0 %v171
  %2503 = vmatprep.subr.mxu0 %v176
  %2504 = vmatpush1.msra.mxu0 %v175
  %2505 = vmatprep.subr.mxu0 %v180
  %2506 = vmatpush1.msra.mxu0 %v179
  %2507 = vmatprep.subr.mxu0 %v184
  %2508 = vmatpush1.msra.mxu0 %v183
  %2509 = vmatprep.subr.mxu0 %v188
  %2510 = vmatpush1.msra.mxu0 %v187
  %2511 = vmatprep.subr.mxu0 %v192
  %2512 = vmatpush1.msra.mxu0 %v191
  %2513 = vmatprep.subr.mxu0 %v196
  %2514 = vmatpush1.msra.mxu0 %v195
  %2515 = vmatprep.subr.mxu0 %v200
  %2516 = vmatpush1.msra.mxu0 %v199
  %2517 = vmatprep.subr.mxu0 %v204
  %2518 = vmatpush1.msra.mxu0 %v203
  %2519 = vmatprep.subr.mxu0 %v208
  %2520 = vmatpush1.msra.mxu0 %v207
  %2521 = vmatprep.subr.mxu0 %v212
  %2522 = vmatpush1.msra.mxu0 %v211
  %2523 = vmatprep.subr.mxu0 %v216
  %2524 = vmatpush1.msra.mxu0 %v215
  %2525 = vmatprep.subr.mxu0 %v220
  %2526 = vmatpush1.msra.mxu0 %v219
  %2527 = vmatprep.subr.mxu0 %v224
  %2528 = vmatpush1.msra.mxu0 %v223
  %2529 = vmatprep.subr.mxu0 %v228
  %2530 = vmatpush1.msra.mxu0 %v227
  %2531 = vmatprep.mubr.f32.mxu0 %v2226
  %2532 = vmatmul.mubr.f32.gmra.mrb[0].mxu0 %v2395
  %v2533 = vpop.f32.mrb[0].mxu0
  %v2534 = vadd.f32 %v242, %v2533
  %v2535 = vpop.f32.mrb[0].mxu0
  %v2536 = vadd.f32 %v246, %v2535
  %2537 = vdwg.mxu0
  %v2538 = vmul.f32 %v2463, 0.5
  %v2539 = vtanh.pop %v2538
  %v2540 = vmul.f32 %v2539, 0.5
  %v2541 = vadd.f32 %v2540, 0.5
  %v2542 = vmul.f32 %v2465, 0.5
  %v2543 = vtanh.pop %v2542
  %v2544 = vmul.f32 %v2543, 0.5
  %v2545 = vadd.f32 %v2544, 0.5
  %v2546 = vtanh.pop %v2534
  %v2547 = vmul.f32 %v2536, 0.5
  %v2548 = vtanh.pop %v2547
  %v2549 = vmul.f32 %v2548, 0.5
  %v2550 = vadd.f32 %v2549, 0.5
  %v2551 = vmul.f32 %v2545, %v2224
  %v2552 = vmul.f32 %v2541, %v2546
  %v2553 = vadd.f32 %v2551, %v2552
  %v2554 = vtanh.pop %v2553
  %v2555 = vmul.f32 %v2550, %v2554
  %s2556 = scalar_lea.vmem [#allocation6], 192
  %v2557 = vld [vmem:[%s2556] sm:$0xff]
  %v2558 = vld [vmem:[%s2556 + $0x8] sm:$0xff]
  %v2559 = vld [vmem:[%s2556 + $0x10] sm:$0xff]
  %v2560 = vld [vmem:[%s2556 + $0x18] sm:$0xff]
  %2561 = vmatprep.subr.mxu0 %v38
  %2562 = vmatpush1.msra.mxu0 %v37
  %2563 = vmatprep.subr.mxu0 %v42
  %2564 = vmatpush1.msra.mxu0 %v41
  %2565 = vmatprep.subr.mxu0 %v46
  %2566 = vmatpush1.msra.mxu0 %v45
  %2567 = vmatprep.subr.mxu0 %v50
  %2568 = vmatpush1.msra.mxu0 %v49
  %2569 = vmatprep.subr.mxu0 %v54
  %2570 = vmatpush1.msra.mxu0 %v53
  %2571 = vmatprep.subr.mxu0 %v58
  %2572 = vmatpush1.msra.mxu0 %v57
  %2573 = vmatprep.subr.mxu0 %v62
  %2574 = vmatpush1.msra.mxu0 %v61
  %2575 = vmatprep.subr.mxu0 %v66
  %2576 = vmatpush1.msra.mxu0 %v65
  %2577 = vmatprep.subr.mxu0 %v70
  %2578 = vmatpush1.msra.mxu0 %v69
  %2579 = vmatprep.subr.mxu0 %v74
  %2580 = vmatpush1.msra.mxu0 %v73
  %2581 = vmatprep.subr.mxu0 %v78
  %2582 = vmatpush1.msra.mxu0 %v77
  %2583 = vmatprep.subr.mxu0 %v82
  %2584 = vmatpush1.msra.mxu0 %v81
  %2585 = vmatprep.subr.mxu0 %v86
  %2586 = vmatpush1.msra.mxu0 %v85
  %2587 = vmatprep.subr.mxu0 %v90
  %2588 = vmatpush1.msra.mxu0 %v89
  %2589 = vmatprep.subr.mxu0 %v94
  %2590 = vmatpush1.msra.mxu0 %v93
  %2591 = vmatprep.subr.mxu0 %v98
  %2592 = vmatpush1.msra.mxu0 %v97
  %2593 = vmatprep.subr.mxu0 0.0
  %2594 = vmatpush1.msra.mxu0 0.0
  %2595 = vmatprep.subr.mxu0 0.0
  %2596 = vmatpush1.msra.mxu0 0.0
  %2597 = vmatprep.subr.mxu0 0.0
  %2598 = vmatpush1.msra.mxu0 0.0
  %2599 = vmatprep.subr.mxu0 0.0
  %2600 = vmatpush1.msra.mxu0 0.0
  %2601 = vmatprep.subr.mxu0 0.0
  %2602 = vmatpush1.msra.mxu0 0.0
  %2603 = vmatprep.subr.mxu0 0.0
  %2604 = vmatpush1.msra.mxu0 0.0
  %2605 = vmatprep.subr.mxu0 0.0
  %2606 = vmatpush1.msra.mxu0 0.0
  %2607 = vmatprep.subr.mxu0 0.0
  %2608 = vmatpush1.msra.mxu0 0.0
  %2609 = vmatprep.subr.mxu0 0.0
  %2610 = vmatpush1.msra.mxu0 0.0
  %2611 = vmatprep.subr.mxu0 0.0
  %2612 = vmatpush1.msra.mxu0 0.0
  %2613 = vmatprep.subr.mxu0 0.0
  %2614 = vmatpush1.msra.mxu0 0.0
  %2615 = vmatprep.subr.mxu0 0.0
  %2616 = vmatpush1.msra.mxu0 0.0
  %2617 = vmatprep.subr.mxu0 0.0
  %2618 = vmatpush1.msra.mxu0 0.0
  %2619 = vmatprep.subr.mxu0 0.0
  %2620 = vmatpush1.msra.mxu0 0.0
  %2621 = vmatprep.subr.mxu0 0.0
  %2622 = vmatpush1.msra.mxu0 0.0
  %2623 = vmatprep.subr.mxu0 0.0
  %2624 = vmatpush1.msra.mxu0 0.0
  %2625 = vmatprep.mubr.f32.mxu0 0.0
  %2626 = vmatmul.mubr.f32.gmra.mrb[0].mxu0 %v2395
  %v2627 = vpop.f32.mrb[0].mxu0
  %v2628 = vadd.f32 0.0, %v2627
  %v2629 = vpop.f32.mrb[0].mxu0
  %v2630 = vadd.f32 0.0, %v2629
  %2631 = vdwg.mxu0
  %2632 = vmatprep.subr.mxu0 %v40
  %2633 = vmatpush1.msra.mxu0 %v39
  %2634 = vmatprep.subr.mxu0 %v44
  %2635 = vmatpush1.msra.mxu0 %v43
  %2636 = vmatprep.subr.mxu0 %v48
  %2637 = vmatpush1.msra.mxu0 %v47
  %2638 = vmatprep.subr.mxu0 %v52
  %2639 = vmatpush1.msra.mxu0 %v51
  %2640 = vmatprep.subr.mxu0 %v56
  %2641 = vmatpush1.msra.mxu0 %v55
  %2642 = vmatprep.subr.mxu0 %v60
  %2643 = vmatpush1.msra.mxu0 %v59
  %2644 = vmatprep.subr.mxu0 %v64
  %2645 = vmatpush1.msra.mxu0 %v63
  %2646 = vmatprep.subr.mxu0 %v68
  %2647 = vmatpush1.msra.mxu0 %v67
  %2648 = vmatprep.subr.mxu0 %v72
  %2649 = vmatpush1.msra.mxu0 %v71
  %2650 = vmatprep.subr.mxu0 %v76
  %2651 = vmatpush1.msra.mxu0 %v75
  %2652 = vmatprep.subr.mxu0 %v80
  %2653 = vmatpush1.msra.mxu0 %v79
  %2654 = vmatprep.subr.mxu0 %v84
  %2655 = vmatpush1.msra.mxu0 %v83
  %2656 = vmatprep.subr.mxu0 %v88
  %2657 = vmatpush1.msra.mxu0 %v87
  %2658 = vmatprep.subr.mxu0 %v92
  %2659 = vmatpush1.msra.mxu0 %v91
  %2660 = vmatprep.subr.mxu0 %v96
  %2661 = vmatpush1.msra.mxu0 %v95
  %2662 = vmatprep.subr.mxu0 %v100
  %2663 = vmatpush1.msra.mxu0 %v99
  %2664 = vmatprep.subr.mxu0 0.0
  %2665 = vmatpush1.msra.mxu0 0.0
  %2666 = vmatprep.subr.mxu0 0.0
  %2667 = vmatpush1.msra.mxu0 0.0
  %2668 = vmatprep.subr.mxu0 0.0
  %2669 = vmatpush1.msra.mxu0 0.0
  %2670 = vmatprep.subr.mxu0 0.0
  %2671 = vmatpush1.msra.mxu0 0.0
  %2672 = vmatprep.subr.mxu0 0.0
  %2673 = vmatpush1.msra.mxu0 0.0
  %2674 = vmatprep.subr.mxu0 0.0
  %2675 = vmatpush1.msra.mxu0 0.0
  %2676 = vmatprep.subr.mxu0 0.0
  %2677 = vmatpush1.msra.mxu0 0.0
  %2678 = vmatprep.subr.mxu0 0.0
  %2679 = vmatpush1.msra.mxu0 0.0
  %2680 = vmatprep.subr.mxu0 0.0
  %2681 = vmatpush1.msra.mxu0 0.0
  %2682 = vmatprep.subr.mxu0 0.0
  %2683 = vmatpush1.msra.mxu0 0.0
  %2684 = vmatprep.subr.mxu0 0.0
  %2685 = vmatpush1.msra.mxu0 0.0
  %2686 = vmatprep.subr.mxu0 0.0
  %2687 = vmatpush1.msra.mxu0 0.0
  %2688 = vmatprep.subr.mxu0 0.0
  %2689 = vmatpush1.msra.mxu0 0.0
  %2690 = vmatprep.subr.mxu0 0.0
  %2691 = vmatpush1.msra.mxu0 0.0
  %2692 = vmatprep.subr.mxu0 0.0
  %2693 = vmatpush1.msra.mxu0 0.0
  %2694 = vmatprep.subr.mxu0 0.0
  %2695 = vmatpush1.msra.mxu0 0.0
  %2696 = vmatprep.mubr.f32.mxu0 0.0
  %2697 = vmatmul.mubr.f32.gmra.mrb[0].mxu0 %v2395
  %v2698 = vpop.f32.mrb[0].mxu0
  %v2699 = vadd.f32 0.0, %v2698
  %v2700 = vpop.f32.mrb[0].mxu0
  %v2701 = vadd.f32 0.0, %v2700
  %2702 = vdwg.mxu0
  %v2703 = vadd.f32 %v2557, %v2628
  %v2704 = vadd.f32 %v2558, %v2630
  %v2705 = vadd.f32 %v2559, %v2699
  %v2706 = vadd.f32 %v2560, %v2701
  %v2707 = vmul.f32 %v2703, 0.5
  %v2708 = vtanh.pop %v2707
  %v2709 = vmul.f32 %v2708, 0.5
  %v2710 = vadd.f32 %v2709, 0.5
  %v2711 = vmul.f32 %v2704, 0.5
  %v2712 = vtanh.pop %v2711
  %v2713 = vmul.f32 %v2712, 0.5
  %v2714 = vadd.f32 %v2713, 0.5
  %v2715 = vtanh.pop %v2705
  %v2716 = vmul.f32 %v2706, 0.5
  %v2717 = vtanh.pop %v2716
  %v2718 = vmul.f32 %v2717, 0.5
  %v2719 = vadd.f32 %v2718, 0.5
  %v2720 = vmul.f32 %v2714, %v2393
  %v2721 = vmul.f32 %v2710, %v2715
  %v2722 = vadd.f32 %v2720, %v2721
  %v2723 = vtanh.pop %v2722
  %v2724 = vmul.f32 %v2719, %v2723
  %2725 = vmatprep.subr.mxu0 %v102
  %2726 = vmatpush1.msra.mxu0 %v101
  %2727 = vmatprep.subr.mxu0 %v106
  %2728 = vmatpush1.msra.mxu0 %v105
  %2729 = vmatprep.subr.mxu0 %v110
  %2730 = vmatpush1.msra.mxu0 %v109
  %2731 = vmatprep.subr.mxu0 %v114
  %2732 = vmatpush1.msra.mxu0 %v113
  %2733 = vmatprep.subr.mxu0 %v118
  %2734 = vmatpush1.msra.mxu0 %v117
  %2735 = vmatprep.subr.mxu0 %v122
  %2736 = vmatpush1.msra.mxu0 %v121
  %2737 = vmatprep.subr.mxu0 %v126
  %2738 = vmatpush1.msra.mxu0 %v125
  %2739 = vmatprep.subr.mxu0 %v130
  %2740 = vmatpush1.msra.mxu0 %v129
  %2741 = vmatprep.subr.mxu0 %v134
  %2742 = vmatpush1.msra.mxu0 %v133
  %2743 = vmatprep.subr.mxu0 %v138
  %2744 = vmatpush1.msra.mxu0 %v137
  %2745 = vmatprep.subr.mxu0 %v142
  %2746 = vmatpush1.msra.mxu0 %v141
  %2747 = vmatprep.subr.mxu0 %v146
  %2748 = vmatpush1.msra.mxu0 %v145
  %2749 = vmatprep.subr.mxu0 %v150
  %2750 = vmatpush1.msra.mxu0 %v149
  %2751 = vmatprep.subr.mxu0 %v154
  %2752 = vmatpush1.msra.mxu0 %v153
  %2753 = vmatprep.subr.mxu0 %v158
  %2754 = vmatpush1.msra.mxu0 %v157
  %2755 = vmatprep.subr.mxu0 %v162
  %2756 = vmatpush1.msra.mxu0 %v161
  %2757 = vmatprep.subr.mxu0 %v166
  %2758 = vmatpush1.msra.mxu0 %v165
  %2759 = vmatprep.subr.mxu0 %v170
  %2760 = vmatpush1.msra.mxu0 %v169
  %2761 = vmatprep.subr.mxu0 %v174
  %2762 = vmatpush1.msra.mxu0 %v173
  %2763 = vmatprep.subr.mxu0 %v178
  %2764 = vmatpush1.msra.mxu0 %v177
  %2765 = vmatprep.subr.mxu0 %v182
  %2766 = vmatpush1.msra.mxu0 %v181
  %2767 = vmatprep.subr.mxu0 %v186
  %2768 = vmatpush1.msra.mxu0 %v185
  %2769 = vmatprep.subr.mxu0 %v190
  %2770 = vmatpush1.msra.mxu0 %v189
  %2771 = vmatprep.subr.mxu0 %v194
  %2772 = vmatpush1.msra.mxu0 %v193
  %2773 = vmatprep.subr.mxu0 %v198
  %2774 = vmatpush1.msra.mxu0 %v197
  %2775 = vmatprep.subr.mxu0 %v202
  %2776 = vmatpush1.msra.mxu0 %v201
  %2777 = vmatprep.subr.mxu0 %v206
  %2778 = vmatpush1.msra.mxu0 %v205
  %2779 = vmatprep.subr.mxu0 %v210
  %2780 = vmatpush1.msra.mxu0 %v209
  %2781 = vmatprep.subr.mxu0 %v214
  %2782 = vmatpush1.msra.mxu0 %v213
  %2783 = vmatprep.subr.mxu0 %v218
  %2784 = vmatpush1.msra.mxu0 %v217
  %2785 = vmatprep.subr.mxu0 %v222
  %2786 = vmatpush1.msra.mxu0 %v221
  %2787 = vmatprep.subr.mxu0 %v226
  %2788 = vmatpush1.msra.mxu0 %v225
  %2789 = vmatprep.mubr.f32.mxu0 %v2555
  %2790 = vmatmul.mubr.f32.gmra.mrb[0].mxu0 %v2724
  %v2791 = vpop.f32.mrb[0].mxu0
  %v2792 = vadd.f32 %v234, %v2791
  %v2793 = vpop.f32.mrb[0].mxu0
  %v2794 = vadd.f32 %v238, %v2793
  %2795 = vdwg.mxu0
  %2796 = vmatprep.subr.mxu0 %v104
  %2797 = vmatpush1.msra.mxu0 %v103
  %2798 = vmatprep.subr.mxu0 %v108
  %2799 = vmatpush1.msra.mxu0 %v107
  %2800 = vmatprep.subr.mxu0 %v112
  %2801 = vmatpush1.msra.mxu0 %v111
  %2802 = vmatprep.subr.mxu0 %v116
  %2803 = vmatpush1.msra.mxu0 %v115
  %2804 = vmatprep.subr.mxu0 %v120
  %2805 = vmatpush1.msra.mxu0 %v119
  %2806 = vmatprep.subr.mxu0 %v124
  %2807 = vmatpush1.msra.mxu0 %v123
  %2808 = vmatprep.subr.mxu0 %v128
  %2809 = vmatpush1.msra.mxu0 %v127
  %2810 = vmatprep.subr.mxu0 %v132
  %2811 = vmatpush1.msra.mxu0 %v131
  %2812 = vmatprep.subr.mxu0 %v136
  %2813 = vmatpush1.msra.mxu0 %v135
  %2814 = vmatprep.subr.mxu0 %v140
  %2815 = vmatpush1.msra.mxu0 %v139
  %2816 = vmatprep.subr.mxu0 %v144
  %2817 = vmatpush1.msra.mxu0 %v143
  %2818 = vmatprep.subr.mxu0 %v148
  %2819 = vmatpush1.msra.mxu0 %v147
  %2820 = vmatprep.subr.mxu0 %v152
  %2821 = vmatpush1.msra.mxu0 %v151
  %2822 = vmatprep.subr.mxu0 %v156
  %2823 = vmatpush1.msra.mxu0 %v155
  %2824 = vmatprep.subr.mxu0 %v160
  %2825 = vmatpush1.msra.mxu0 %v159
  %2826 = vmatprep.subr.mxu0 %v164
  %2827 = vmatpush1.msra.mxu0 %v163
  %2828 = vmatprep.subr.mxu0 %v168
  %2829 = vmatpush1.msra.mxu0 %v167
  %2830 = vmatprep.subr.mxu0 %v172
  %2831 = vmatpush1.msra.mxu0 %v171
  %2832 = vmatprep.subr.mxu0 %v176
  %2833 = vmatpush1.msra.mxu0 %v175
  %2834 = vmatprep.subr.mxu0 %v180
  %2835 = vmatpush1.msra.mxu0 %v179
  %2836 = vmatprep.subr.mxu0 %v184
  %2837 = vmatpush1.msra.mxu0 %v183
  %2838 = vmatprep.subr.mxu0 %v188
  %2839 = vmatpush1.msra.mxu0 %v187
  %2840 = vmatprep.subr.mxu0 %v192
  %2841 = vmatpush1.msra.mxu0 %v191
  %2842 = vmatprep.subr.mxu0 %v196
  %2843 = vmatpush1.msra.mxu0 %v195
  %2844 = vmatprep.subr.mxu0 %v200
  %2845 = vmatpush1.msra.mxu0 %v199
  %2846 = vmatprep.subr.mxu0 %v204
  %2847 = vmatpush1.msra.mxu0 %v203
  %2848 = vmatprep.subr.mxu0 %v208
  %2849 = vmatpush1.msra.mxu0 %v207
  %2850 = vmatprep.subr.mxu0 %v212
  %2851 = vmatpush1.msra.mxu0 %v211
  %2852 = vmatprep.subr.mxu0 %v216
  %2853 = vmatpush1.msra.mxu0 %v215
  %2854 = vmatprep.subr.mxu0 %v220
  %2855 = vmatpush1.msra.mxu0 %v219
  %2856 = vmatprep.subr.mxu0 %v224
  %2857 = vmatpush1.msra.mxu0 %v223
  %2858 = vmatprep.subr.mxu0 %v228
  %2859 = vmatpush1.msra.mxu0 %v227
  %2860 = vmatprep.mubr.f32.mxu0 %v2555
  %2861 = vmatmul.mubr.f32.gmra.mrb[0].mxu0 %v2724
  %v2862 = vpop.f32.mrb[0].mxu0
  %v2863 = vadd.f32 %v242, %v2862
  %v2864 = vpop.f32.mrb[0].mxu0
  %v2865 = vadd.f32 %v246, %v2864
  %2866 = vdwg.mxu0
  %v2867 = vmul.f32 %v2792, 0.5
  %v2868 = vtanh.pop %v2867
  %v2869 = vmul.f32 %v2868, 0.5
  %v2870 = vadd.f32 %v2869, 0.5
  %v2871 = vmul.f32 %v2794, 0.5
  %v2872 = vtanh.pop %v2871
  %v2873 = vmul.f32 %v2872, 0.5
  %v2874 = vadd.f32 %v2873, 0.5
  %v2875 = vtanh.pop %v2863
  %v2876 = vmul.f32 %v2865, 0.5
  %v2877 = vtanh.pop %v2876
  %v2878 = vmul.f32 %v2877, 0.5
  %v2879 = vadd.f32 %v2878, 0.5
  %v2880 = vmul.f32 %v2874, %v2553
  %v2881 = vmul.f32 %v2870, %v2875
  %v2882 = vadd.f32 %v2880, %v2881
  %v2883 = vtanh.pop %v2882
  %v2884 = vmul.f32 %v2879, %v2883
  %s2885 = scalar_lea.vmem [#allocation6], 224
  %v2886 = vld [vmem:[%s2885] sm:$0xff]
  %v2887 = vld [vmem:[%s2885 + $0x8] sm:$0xff]
  %v2888 = vld [vmem:[%s2885 + $0x10] sm:$0xff]
  %v2889 = vld [vmem:[%s2885 + $0x18] sm:$0xff]
  %2890 = vmatprep.subr.mxu0 %v38
  %2891 = vmatpush1.msra.mxu0 %v37
  %2892 = vmatprep.subr.mxu0 %v42
  %2893 = vmatpush1.msra.mxu0 %v41
  %2894 = vmatprep.subr.mxu0 %v46
  %2895 = vmatpush1.msra.mxu0 %v45
  %2896 = vmatprep.subr.mxu0 %v50
  %2897 = vmatpush1.msra.mxu0 %v49
  %2898 = vmatprep.subr.mxu0 %v54
  %2899 = vmatpush1.msra.mxu0 %v53
  %2900 = vmatprep.subr.mxu0 %v58
  %2901 = vmatpush1.msra.mxu0 %v57
  %2902 = vmatprep.subr.mxu0 %v62
  %2903 = vmatpush1.msra.mxu0 %v61
  %2904 = vmatprep.subr.mxu0 %v66
  %2905 = vmatpush1.msra.mxu0 %v65
  %2906 = vmatprep.subr.mxu0 %v70
  %2907 = vmatpush1.msra.mxu0 %v69
  %2908 = vmatprep.subr.mxu0 %v74
  %2909 = vmatpush1.msra.mxu0 %v73
  %2910 = vmatprep.subr.mxu0 %v78
  %2911 = vmatpush1.msra.mxu0 %v77
  %2912 = vmatprep.subr.mxu0 %v82
  %2913 = vmatpush1.msra.mxu0 %v81
  %2914 = vmatprep.subr.mxu0 %v86
  %2915 = vmatpush1.msra.mxu0 %v85
  %2916 = vmatprep.subr.mxu0 %v90
  %2917 = vmatpush1.msra.mxu0 %v89
  %2918 = vmatprep.subr.mxu0 %v94
  %2919 = vmatpush1.msra.mxu0 %v93
  %2920 = vmatprep.subr.mxu0 %v98
  %2921 = vmatpush1.msra.mxu0 %v97
  %2922 = vmatprep.subr.mxu0 0.0
  %2923 = vmatpush1.msra.mxu0 0.0
  %2924 = vmatprep.subr.mxu0 0.0
  %2925 = vmatpush1.msra.mxu0 0.0
  %2926 = vmatprep.subr.mxu0 0.0
  %2927 = vmatpush1.msra.mxu0 0.0
  %2928 = vmatprep.subr.mxu0 0.0
  %2929 = vmatpush1.msra.mxu0 0.0
  %2930 = vmatprep.subr.mxu0 0.0
  %2931 = vmatpush1.msra.mxu0 0.0
  %2932 = vmatprep.subr.mxu0 0.0
  %2933 = vmatpush1.msra.mxu0 0.0
  %2934 = vmatprep.subr.mxu0 0.0
  %2935 = vmatpush1.msra.mxu0 0.0
  %2936 = vmatprep.subr.mxu0 0.0
  %2937 = vmatpush1.msra.mxu0 0.0
  %2938 = vmatprep.subr.mxu0 0.0
  %2939 = vmatpush1.msra.mxu0 0.0
  %2940 = vmatprep.subr.mxu0 0.0
  %2941 = vmatpush1.msra.mxu0 0.0
  %2942 = vmatprep.subr.mxu0 0.0
  %2943 = vmatpush1.msra.mxu0 0.0
  %2944 = vmatprep.subr.mxu0 0.0
  %2945 = vmatpush1.msra.mxu0 0.0
  %2946 = vmatprep.subr.mxu0 0.0
  %2947 = vmatpush1.msra.mxu0 0.0
  %2948 = vmatprep.subr.mxu0 0.0
  %2949 = vmatpush1.msra.mxu0 0.0
  %2950 = vmatprep.subr.mxu0 0.0
  %2951 = vmatpush1.msra.mxu0 0.0
  %2952 = vmatprep.subr.mxu0 0.0
  %2953 = vmatpush1.msra.mxu0 0.0
  %2954 = vmatprep.mubr.f32.mxu0 0.0
  %2955 = vmatmul.mubr.f32.gmra.mrb[0].mxu0 %v2724
  %v2956 = vpop.f32.mrb[0].mxu0
  %v2957 = vadd.f32 0.0, %v2956
  %v2958 = vpop.f32.mrb[0].mxu0
  %v2959 = vadd.f32 0.0, %v2958
  %2960 = vdwg.mxu0
  %2961 = vmatprep.subr.mxu0 %v40
  %2962 = vmatpush1.msra.mxu0 %v39
  %2963 = vmatprep.subr.mxu0 %v44
  %2964 = vmatpush1.msra.mxu0 %v43
  %2965 = vmatprep.subr.mxu0 %v48
  %2966 = vmatpush1.msra.mxu0 %v47
  %2967 = vmatprep.subr.mxu0 %v52
  %2968 = vmatpush1.msra.mxu0 %v51
  %2969 = vmatprep.subr.mxu0 %v56
  %2970 = vmatpush1.msra.mxu0 %v55
  %2971 = vmatprep.subr.mxu0 %v60
  %2972 = vmatpush1.msra.mxu0 %v59
  %2973 = vmatprep.subr.mxu0 %v64
  %2974 = vmatpush1.msra.mxu0 %v63
  %2975 = vmatprep.subr.mxu0 %v68
  %2976 = vmatpush1.msra.mxu0 %v67
  %2977 = vmatprep.subr.mxu0 %v72
  %2978 = vmatpush1.msra.mxu0 %v71
  %2979 = vmatprep.subr.mxu0 %v76
  %2980 = vmatpush1.msra.mxu0 %v75
  %2981 = vmatprep.subr.mxu0 %v80
  %2982 = vmatpush1.msra.mxu0 %v79
  %2983 = vmatprep.subr.mxu0 %v84
  %2984 = vmatpush1.msra.mxu0 %v83
  %2985 = vmatprep.subr.mxu0 %v88
  %2986 = vmatpush1.msra.mxu0 %v87
  %2987 = vmatprep.subr.mxu0 %v92
  %2988 = vmatpush1.msra.mxu0 %v91
  %2989 = vmatprep.subr.mxu0 %v96
  %2990 = vmatpush1.msra.mxu0 %v95
  %2991 = vmatprep.subr.mxu0 %v100
  %2992 = vmatpush1.msra.mxu0 %v99
  %2993 = vmatprep.subr.mxu0 0.0
  %2994 = vmatpush1.msra.mxu0 0.0
  %2995 = vmatprep.subr.mxu0 0.0
  %2996 = vmatpush1.msra.mxu0 0.0
  %2997 = vmatprep.subr.mxu0 0.0
  %2998 = vmatpush1.msra.mxu0 0.0
  %2999 = vmatprep.subr.mxu0 0.0
  %3000 = vmatpush1.msra.mxu0 0.0
  %3001 = vmatprep.subr.mxu0 0.0
  %3002 = vmatpush1.msra.mxu0 0.0
  %3003 = vmatprep.subr.mxu0 0.0
  %3004 = vmatpush1.msra.mxu0 0.0
  %3005 = vmatprep.subr.mxu0 0.0
  %3006 = vmatpush1.msra.mxu0 0.0
  %3007 = vmatprep.subr.mxu0 0.0
  %3008 = vmatpush1.msra.mxu0 0.0
  %3009 = vmatprep.subr.mxu0 0.0
  %3010 = vmatpush1.msra.mxu0 0.0
  %3011 = vmatprep.subr.mxu0 0.0
  %3012 = vmatpush1.msra.mxu0 0.0
  %3013 = vmatprep.subr.mxu0 0.0
  %3014 = vmatpush1.msra.mxu0 0.0
  %3015 = vmatprep.subr.mxu0 0.0
  %3016 = vmatpush1.msra.mxu0 0.0
  %3017 = vmatprep.subr.mxu0 0.0
  %3018 = vmatpush1.msra.mxu0 0.0
  %3019 = vmatprep.subr.mxu0 0.0
  %3020 = vmatpush1.msra.mxu0 0.0
  %3021 = vmatprep.subr.mxu0 0.0
  %3022 = vmatpush1.msra.mxu0 0.0
  %3023 = vmatprep.subr.mxu0 0.0
  %3024 = vmatpush1.msra.mxu0 0.0
  %3025 = vmatprep.mubr.f32.mxu0 0.0
  %3026 = vmatmul.mubr.f32.gmra.mrb[0].mxu0 %v2724
  %v3027 = vpop.f32.mrb[0].mxu0
  %v3028 = vadd.f32 0.0, %v3027
  %v3029 = vpop.f32.mrb[0].mxu0
  %v3030 = vadd.f32 0.0, %v3029
  %3031 = vdwg.mxu0
  %v3032 = vadd.f32 %v2886, %v2957
  %v3033 = vadd.f32 %v2887, %v2959
  %v3034 = vadd.f32 %v2888, %v3028
  %v3035 = vadd.f32 %v2889, %v3030
  %v3036 = vmul.f32 %v3032, 0.5
  %v3037 = vtanh.pop %v3036
  %v3038 = vmul.f32 %v3037, 0.5
  %v3039 = vadd.f32 %v3038, 0.5
  %v3040 = vmul.f32 %v3033, 0.5
  %v3041 = vtanh.pop %v3040
  %v3042 = vmul.f32 %v3041, 0.5
  %v3043 = vadd.f32 %v3042, 0.5
  %v3044 = vtanh.pop %v3034
  %v3045 = vmul.f32 %v3035, 0.5
  %v3046 = vtanh.pop %v3045
  %v3047 = vmul.f32 %v3046, 0.5
  %v3048 = vadd.f32 %v3047, 0.5
  %v3049 = vmul.f32 %v3043, %v2722
  %v3050 = vmul.f32 %v3039, %v3044
  %v3051 = vadd.f32 %v3049, %v3050
  %v3052 = vtanh.pop %v3051
  %v3053 = vmul.f32 %v3048, %v3052
  %3054 = vmatprep.subr.mxu0 %v102
  %3055 = vmatpush1.msra.mxu0 %v101
  %3056 = vmatprep.subr.mxu0 %v106
  %3057 = vmatpush1.msra.mxu0 %v105
  %3058 = vmatprep.subr.mxu0 %v110
  %3059 = vmatpush1.msra.mxu0 %v109
  %3060 = vmatprep.subr.mxu0 %v114
  %3061 = vmatpush1.msra.mxu0 %v113
  %3062 = vmatprep.subr.mxu0 %v118
  %3063 = vmatpush1.msra.mxu0 %v117
  %3064 = vmatprep.subr.mxu0 %v122
  %3065 = vmatpush1.msra.mxu0 %v121
  %3066 = vmatprep.subr.mxu0 %v126
  %3067 = vmatpush1.msra.mxu0 %v125
  %3068 = vmatprep.subr.mxu0 %v130
  %3069 = vmatpush1.msra.mxu0 %v129
  %3070 = vmatprep.subr.mxu0 %v134
  %3071 = vmatpush1.msra.mxu0 %v133
  %3072 = vmatprep.subr.mxu0 %v138
  %3073 = vmatpush1.msra.mxu0 %v137
  %3074 = vmatprep.subr.mxu0 %v142
  %3075 = vmatpush1.msra.mxu0 %v141
  %3076 = vmatprep.subr.mxu0 %v146
  %3077 = vmatpush1.msra.mxu0 %v145
  %3078 = vmatprep.subr.mxu0 %v150
  %3079 = vmatpush1.msra.mxu0 %v149
  %3080 = vmatprep.subr.mxu0 %v154
  %3081 = vmatpush1.msra.mxu0 %v153
  %3082 = vmatprep.subr.mxu0 %v158
  %3083 = vmatpush1.msra.mxu0 %v157
  %3084 = vmatprep.subr.mxu0 %v162
  %3085 = vmatpush1.msra.mxu0 %v161
  %3086 = vmatprep.subr.mxu0 %v166
  %3087 = vmatpush1.msra.mxu0 %v165
  %3088 = vmatprep.subr.mxu0 %v170
  %3089 = vmatpush1.msra.mxu0 %v169
  %3090 = vmatprep.subr.mxu0 %v174
  %3091 = vmatpush1.msra.mxu0 %v173
  %3092 = vmatprep.subr.mxu0 %v178
  %3093 = vmatpush1.msra.mxu0 %v177
  %3094 = vmatprep.subr.mxu0 %v182
  %3095 = vmatpush1.msra.mxu0 %v181
  %3096 = vmatprep.subr.mxu0 %v186
  %3097 = vmatpush1.msra.mxu0 %v185
  %3098 = vmatprep.subr.mxu0 %v190
  %3099 = vmatpush1.msra.mxu0 %v189
  %3100 = vmatprep.subr.mxu0 %v194
  %3101 = vmatpush1.msra.mxu0 %v193
  %3102 = vmatprep.subr.mxu0 %v198
  %3103 = vmatpush1.msra.mxu0 %v197
  %3104 = vmatprep.subr.mxu0 %v202
  %3105 = vmatpush1.msra.mxu0 %v201
  %3106 = vmatprep.subr.mxu0 %v206
  %3107 = vmatpush1.msra.mxu0 %v205
  %3108 = vmatprep.subr.mxu0 %v210
  %3109 = vmatpush1.msra.mxu0 %v209
  %3110 = vmatprep.subr.mxu0 %v214
  %3111 = vmatpush1.msra.mxu0 %v213
  %3112 = vmatprep.subr.mxu0 %v218
  %3113 = vmatpush1.msra.mxu0 %v217
  %3114 = vmatprep.subr.mxu0 %v222
  %3115 = vmatpush1.msra.mxu0 %v221
  %3116 = vmatprep.subr.mxu0 %v226
  %3117 = vmatpush1.msra.mxu0 %v225
  %3118 = vmatprep.mubr.f32.mxu0 %v2884
  %3119 = vmatmul.mubr.f32.gmra.mrb[0].mxu0 %v3053
  %v3120 = vpop.f32.mrb[0].mxu0
  %v3121 = vadd.f32 %v234, %v3120
  %v3122 = vpop.f32.mrb[0].mxu0
  %v3123 = vadd.f32 %v238, %v3122
  %3124 = vdwg.mxu0
  %3125 = vmatprep.subr.mxu0 %v104
  %3126 = vmatpush1.msra.mxu0 %v103
  %3127 = vmatprep.subr.mxu0 %v108
  %3128 = vmatpush1.msra.mxu0 %v107
  %3129 = vmatprep.subr.mxu0 %v112
  %3130 = vmatpush1.msra.mxu0 %v111
  %3131 = vmatprep.subr.mxu0 %v116
  %3132 = vmatpush1.msra.mxu0 %v115
  %3133 = vmatprep.subr.mxu0 %v120
  %3134 = vmatpush1.msra.mxu0 %v119
  %3135 = vmatprep.subr.mxu0 %v124
  %3136 = vmatpush1.msra.mxu0 %v123
  %3137 = vmatprep.subr.mxu0 %v128
  %3138 = vmatpush1.msra.mxu0 %v127
  %3139 = vmatprep.subr.mxu0 %v132
  %3140 = vmatpush1.msra.mxu0 %v131
  %3141 = vmatprep.subr.mxu0 %v136
  %3142 = vmatpush1.msra.mxu0 %v135
  %3143 = vmatprep.subr.mxu0 %v140
  %3144 = vmatpush1.msra.mxu0 %v139
  %3145 = vmatprep.subr.mxu0 %v144
  %3146 = vmatpush1.msra.mxu0 %v143
  %3147 = vmatprep.subr.mxu0 %v148
  %3148 = vmatpush1.msra.mxu0 %v147
  %3149 = vmatprep.subr.mxu0 %v152
  %3150 = vmatpush1.msra.mxu0 %v151
  %3151 = vmatprep.subr.mxu0 %v156
  %3152 = vmatpush1.msra.mxu0 %v155
  %3153 = vmatprep.subr.mxu0 %v160
  %3154 = vmatpush1.msra.mxu0 %v159
  %3155 = vmatprep.subr.mxu0 %v164
  %3156 = vmatpush1.msra.mxu0 %v163
  %3157 = vmatprep.subr.mxu0 %v168
  %3158 = vmatpush1.msra.mxu0 %v167
  %3159 = vmatprep.subr.mxu0 %v172
  %3160 = vmatpush1.msra.mxu0 %v171
  %3161 = vmatprep.subr.mxu0 %v176
  %3162 = vmatpush1.msra.mxu0 %v175
  %3163 = vmatprep.subr.mxu0 %v180
  %3164 = vmatpush1.msra.mxu0 %v179
  %3165 = vmatprep.subr.mxu0 %v184
  %3166 = vmatpush1.msra.mxu0 %v183
  %3167 = vmatprep.subr.mxu0 %v188
  %3168 = vmatpush1.msra.mxu0 %v187
  %3169 = vmatprep.subr.mxu0 %v192
  %3170 = vmatpush1.msra.mxu0 %v191
  %3171 = vmatprep.subr.mxu0 %v196
  %3172 = vmatpush1.msra.mxu0 %v195
  %3173 = vmatprep.subr.mxu0 %v200
  %3174 = vmatpush1.msra.mxu0 %v199
  %3175 = vmatprep.subr.mxu0 %v204
  %3176 = vmatpush1.msra.mxu0 %v203
  %3177 = vmatprep.subr.mxu0 %v208
  %3178 = vmatpush1.msra.mxu0 %v207
  %3179 = vmatprep.subr.mxu0 %v212
  %3180 = vmatpush1.msra.mxu0 %v211
  %3181 = vmatprep.subr.mxu0 %v216
  %3182 = vmatpush1.msra.mxu0 %v215
  %3183 = vmatprep.subr.mxu0 %v220
  %3184 = vmatpush1.msra.mxu0 %v219
  %3185 = vmatprep.subr.mxu0 %v224
  %3186 = vmatpush1.msra.mxu0 %v223
  %3187 = vmatprep.subr.mxu0 %v228
  %3188 = vmatpush1.msra.mxu0 %v227
  %3189 = vmatprep.mubr.f32.mxu0 %v2884
  %3190 = vmatmul.mubr.f32.gmra.mrb[0].mxu0 %v3053
  %v3191 = vpop.f32.mrb[0].mxu0
  %v3192 = vadd.f32 %v242, %v3191
  %v3193 = vpop.f32.mrb[0].mxu0
  %v3194 = vadd.f32 %v246, %v3193
  %3195 = vdwg.mxu0
  %v3196 = vmul.f32 %v3121, 0.5
  %v3197 = vtanh.pop %v3196
  %v3198 = vmul.f32 %v3197, 0.5
  %v3199 = vadd.f32 %v3198, 0.5
  %v3200 = vmul.f32 %v3123, 0.5
  %v3201 = vtanh.pop %v3200
  %v3202 = vmul.f32 %v3201, 0.5
  %v3203 = vadd.f32 %v3202, 0.5
  %v3204 = vtanh.pop %v3192
  %v3205 = vmul.f32 %v3194, 0.5
  %v3206 = vtanh.pop %v3205
  %v3207 = vmul.f32 %v3206, 0.5
  %v3208 = vadd.f32 %v3207, 0.5
  %v3209 = vmul.f32 %v3203, %v2882
  %v3210 = vmul.f32 %v3199, %v3204
  %v3211 = vadd.f32 %v3209, %v3210
  %v3212 = vtanh.pop %v3211
  %v3213 = vmul.f32 %v3208, %v3212
  %3214 = vst [vmem:[#allocation2] sm:$0xff] %v3053
  %3215 = vst [vmem:[#allocation4] sm:$0xff] %v3051
  %3216 = vst [vmem:[#allocation3] sm:$0xff] %v3213
  %3217 = vst [vmem:[#allocation5] sm:$0xff] %v3211
  // Predicated region
  $region38: #{fwd.1} parent=0 // pred_check
    %p3218 = pneg %p29
  $region39: #{fwd.1} parent=0 // pred_check_branch
    %3220 = sbr.rel (%p3218) target = $region41
  $region40: #{fwd.1} parent=0 // pred_region
    %v3221 = vld [vmem:[%s6] sm:$0xff]
    %v3222 = vld [vmem:[%s6 + $0x8] sm:$0xff]
    %v3223 = vld [vmem:[%s6 + $0x10] sm:$0xff]
    %v3224 = vld [vmem:[%s6 + $0x18] sm:$0xff]
    %v3225 = vld [vmem:[%s6 + $0x20] sm:$0xff]
    %v3226 = vld [vmem:[%s6 + $0x28] sm:$0xff]
    %v3227 = vld [vmem:[%s6 + $0x30] sm:$0xff]
    %v3228 = vld [vmem:[%s6 + $0x38] sm:$0xff]
    %v3229 = vld [vmem:[%s6 + $0x40] sm:$0xff]
    %v3230 = vld [vmem:[%s6 + $0x48] sm:$0xff]
    %v3231 = vld [vmem:[%s6 + $0x50] sm:$0xff]
    %v3232 = vld [vmem:[%s6 + $0x58] sm:$0xff]
    %v3233 = vld [vmem:[%s6 + $0x60] sm:$0xff]
    %v3234 = vld [vmem:[%s6 + $0x68] sm:$0xff]
    %v3235 = vld [vmem:[%s6 + $0x70] sm:$0xff]
    %v3236 = vld [vmem:[%s6 + $0x78] sm:$0xff]
    %v3237 = vld [vmem:[%s7] sm:$0x1]
    %v3239 = vlaneseq
    %v3240 = vshrl.u32 %v3239, 7
    %v3241 = vsub.s32 0, %v3240
    %v3242 = vrot.slane %v3237, %v3241
    %3244 = vmatprep.subr.mxu0 0.0
    %3245 = vmatpush1.msra.mxu0 %v3221
    %3246 = vmatprep.subr.mxu0 0.0
    %3247 = vmatpush1.msra.mxu0 %v3222
    %3248 = vmatprep.subr.mxu0 0.0
    %3249 = vmatpush1.msra.mxu0 %v3223
    %3250 = vmatprep.subr.mxu0 0.0
    %3251 = vmatpush1.msra.mxu0 %v3224
    %3252 = vmatprep.subr.mxu0 0.0
    %3253 = vmatpush1.msra.mxu0 %v3225
    %3254 = vmatprep.subr.mxu0 0.0
    %3255 = vmatpush1.msra.mxu0 %v3226
    %3256 = vmatprep.subr.mxu0 0.0
    %3257 = vmatpush1.msra.mxu0 %v3227
    %3258 = vmatprep.subr.mxu0 0.0
    %3259 = vmatpush1.msra.mxu0 %v3228
    %3260 = vmatprep.subr.mxu0 0.0
    %3261 = vmatpush1.msra.mxu0 %v3229
    %3262 = vmatprep.subr.mxu0 0.0
    %3263 = vmatpush1.msra.mxu0 %v3230
    %3264 = vmatprep.subr.mxu0 0.0
    %3265 = vmatpush1.msra.mxu0 %v3231
    %3266 = vmatprep.subr.mxu0 0.0
    %3267 = vmatpush1.msra.mxu0 %v3232
    %3268 = vmatprep.subr.mxu0 0.0
    %3269 = vmatpush1.msra.mxu0 %v3233
    %3270 = vmatprep.subr.mxu0 0.0
    %3271 = vmatpush1.msra.mxu0 %v3234
    %3272 = vmatprep.subr.mxu0 0.0
    %3273 = vmatpush1.msra.mxu0 %v3235
    %3274 = vmatprep.subr.mxu0 0.0
    %3275 = vmatpush1.msra.mxu0 %v3236
    %3276 = vmatprep.subr.mxu0 0.0
    %3277 = vmatpush1.msra.mxu0 0.0
    %3278 = vmatprep.subr.mxu0 0.0
    %3279 = vmatpush1.msra.mxu0 0.0
    %3280 = vmatprep.subr.mxu0 0.0
    %3281 = vmatpush1.msra.mxu0 0.0
    %3282 = vmatprep.subr.mxu0 0.0
    %3283 = vmatpush1.msra.mxu0 0.0
    %3284 = vmatprep.subr.mxu0 0.0
    %3285 = vmatpush1.msra.mxu0 0.0
    %3286 = vmatprep.subr.mxu0 0.0
    %3287 = vmatpush1.msra.mxu0 0.0
    %3288 = vmatprep.subr.mxu0 0.0
    %3289 = vmatpush1.msra.mxu0 0.0
    %3290 = vmatprep.subr.mxu0 0.0
    %3291 = vmatpush1.msra.mxu0 0.0
    %3292 = vmatprep.subr.mxu0 0.0
    %3293 = vmatpush1.msra.mxu0 0.0
    %3294 = vmatprep.subr.mxu0 0.0
    %3295 = vmatpush1.msra.mxu0 0.0
    %3296 = vmatprep.subr.mxu0 0.0
    %3297 = vmatpush1.msra.mxu0 0.0
    %3298 = vmatprep.subr.mxu0 0.0
    %3299 = vmatpush1.msra.mxu0 0.0
    %3300 = vmatprep.subr.mxu0 0.0
    %3301 = vmatpush1.msra.mxu0 0.0
    %3302 = vmatprep.subr.mxu0 0.0
    %3303 = vmatpush1.msra.mxu0 0.0
    %3304 = vmatprep.subr.mxu0 0.0
    %3305 = vmatpush1.msra.mxu0 0.0
    %3306 = vmatprep.subr.mxu0 0.0
    %3307 = vmatpush1.msra.mxu0 0.0
    %3308 = vmatprep.mubr.f32.mxu0 0.0
    %3309 = vmatmul.mubr.f32.gmra.mrb[0].mxu0 %v3213
    %v3310 = vpop.f32.mrb[0].mxu0
    %v3311 = vadd.f32 %v3242, %v3310
    %v3312 = vpop.f32.mrb[0].mxu0
    %3313 = vdwg.mxu0
    %3314 = vst [vmem:[%s8] sm:$0xff] %v3311
  $region41: #{fwd.1} parent=0 // pred_fallthru
    _
  // Predicated region
  $region42: #{fwd.1} parent=0 // pred_check
    _
  $region43: #{fwd.1} parent=0 // pred_check_branch
    %3316 = sbr.rel (0) target = $region45
  $region44: #{fwd.1} parent=0 // pred_region
    _
  $region45: #{fwd.1} parent=0 // pred_fallthru
    _
  // Predicated region
  $region46: #{fwd.1} parent=0 // pred_check
    _
  $region47: #{fwd.1} parent=0 // pred_check_branch
    %3318 = sbr.rel (0) target = $region49
  $region48: #{fwd.1} parent=0 // pred_region
    _
  $region49: #{fwd.1} parent=0 // pred_fallthru
    _

</llo_original>
